<compile_context>
chip_gen: v7x
topology: tpu7x:2x2x1
jax: 0.10.0
libtpu: 0.0.40
codegen_flags: <defaults>
</compile_context>

<pallas_src>
import jax
import jax.numpy as jnp
from jax.experimental import pallas as pl
from jax.experimental.pallas import tpu as pltpu

KH = KW = 3  # fixed 3x3 kernels, padding=1, stride=1


def encoder_block_kernel(xpad_ref, w1_ref, b1_ref, w2_ref, b2_ref,
                         out_ref, h1pad):
    # xpad_ref : (N, Cin, H+2, W+2)  VMEM  zero-padded input (whole batch)
    # w1_ref   : (Cm*Cin*9,)         SMEM  flat, idx = ((co*Cin+ci)*3+dy)*3+dx
    # b1_ref   : (Cm,)               SMEM
    # w2_ref   : (Cm*Cm*9,)          SMEM
    # b2_ref   : (Cm,)               SMEM
    # out_ref  : (N, Cm, H, W)       VMEM
    # h1pad    : (N, Cm, H+2, W+2)   VMEM scratch (padded intermediate)
    N, Cm, H, W = out_ref.shape
    Cin = xpad_ref.shape[1]
    Hp, Wp = H + 2, W + 2

    # Zero ONLY the 1-pixel border of the scratch (it acts as conv2's zero
    # padding).  The interior is fully overwritten below, and with grid=(1,)
    # this runs exactly once per call -> no redundant full-scratch stores.
    h1pad[:, :, 0:1, :] = jnp.zeros((N, Cm, 1, Wp), jnp.float32)
    h1pad[:, :, Hp - 1:Hp, :] = jnp.zeros((N, Cm, 1, Wp), jnp.float32)
    h1pad[:, :, :, 0:1] = jnp.zeros((N, Cm, Hp, 1), jnp.float32)
    h1pad[:, :, :, Wp - 1:Wp] = jnp.zeros((N, Cm, Hp, 1), jnp.float32)

    # --- conv1 + bias + ReLU -> padded scratch interior ----------------------
    # (ci, dy, dx) outer so each shifted (N, H, W) plane is loaded once;
    # co inner over Cm live accumulators (initialised with the bias).
    acc1 = [jnp.full((N, H, W), b1_ref[co], dtype=jnp.float32)
            for co in range(Cm)]
    for ci in range(Cin):
        for dy in range(KH):
            for dx in range(KW):
                plane = xpad_ref[:, ci, dy:dy + H, dx:dx + W]   # loaded once
                for co in range(Cm):
                    wv = w1_ref[((co * Cin + ci) * KH + dy) * KW + dx]
                    acc1[co] = acc1[co] + wv * plane
    for co in range(Cm):
        h1pad[:, co, 1:H + 1, 1:W + 1] = jnp.maximum(acc1[co], 0.0)

    # --- conv2 + bias + residual add ------------------------------------------
    acc2 = [jnp.full((N, H, W), b2_ref[co], dtype=jnp.float32)
            for co in range(Cm)]
    for ci in range(Cm):
        for dy in range(KH):
            for dx in range(KW):
                plane = h1pad[:, ci, dy:dy + H, dx:dx + W]      # loaded once
                for co in range(Cm):
                    wv = w2_ref[((co * Cm + ci) * KH + dy) * KW + dx]
                    acc2[co] = acc2[co] + wv * plane
    for co in range(Cm):
        # residual = original x (interior of the padded input), same channel
        out_ref[:, co] = acc2[co] + xpad_ref[:, co, 1:H + 1, 1:W + 1]


def encoder_block(x, w1, b1, w2, b2):
    """x: (N, Cin, H, W) float32; w1: (Cm, Cin, 3, 3); w2: (Cm, Cm, 3, 3)."""
    N, Cin, H, W = x.shape
    Cm = w1.shape[0]
    assert Cm == Cin, "no-BN residual path requires inter_channels == in_channels"

    xpad = jnp.pad(x, ((0, 0), (0, 0), (1, 1), (1, 1)))
    w1_flat = w1.reshape(-1).astype(jnp.float32)
    w2_flat = w2.reshape(-1).astype(jnp.float32)

    # Whole batch in ONE grid step: amortizes the ~600-cycle per-step fixed
    # overhead across all N items; everything fits VMEM with huge headroom.
    # If N ever grows large (or to use both v7x TensorCores), switch to a
    # batch-chunk grid with dimension_semantics=("parallel",).
    return pl.pallas_call(
        encoder_block_kernel,
        out_shape=jax.ShapeDtypeStruct((N, Cm, H, W), jnp.float32),
        grid_spec=pltpu.PrefetchScalarGridSpec(
            num_scalar_prefetch=0,
            grid=(1,),
            in_specs=[
                pl.BlockSpec((N, Cin, H + 2, W + 2), lambda i: (0, 0, 0, 0)),
                pl.BlockSpec(memory_space=pltpu.MemorySpace.SMEM),
                pl.BlockSpec(memory_space=pltpu.MemorySpace.SMEM),
                pl.BlockSpec(memory_space=pltpu.MemorySpace.SMEM),
                pl.BlockSpec(memory_space=pltpu.MemorySpace.SMEM),
            ],
            out_specs=pl.BlockSpec((N, Cm, H, W), lambda i: (0, 0, 0, 0)),
            scratch_shapes=[pltpu.VMEM((N, Cm, H + 2, W + 2), jnp.float32)],
        ),
        compiler_params=pltpu.CompilerParams(
            dimension_semantics=("arbitrary",)),
    )(xpad, w1_flat, b1.astype(jnp.float32), w2_flat, b2.astype(jnp.float32))


def encoder_block_ref(x, w1, b1, w2, b2):
    """Pure-JAX reference (matches PyTorch EncoderBlock, use_bn=False)."""
    dn = jax.lax.conv_dimension_numbers(x.shape, w1.shape,
                                        ('NCHW', 'OIHW', 'NCHW'))
    h = jax.lax.conv_general_dilated(x, w1, (1, 1), ((1, 1), (1, 1)),
                                     dimension_numbers=dn)
    h = h + b1[None, :, None, None]
    h = jnp.maximum(h, 0.0)
    y = jax.lax.conv_general_dilated(h, w2, (1, 1), ((1, 1), (1, 1)),
                                     dimension_numbers=dn)
    y = y + b2[None, :, None, None]
    return y + x


if __name__ == "__main__":
    # EncoderBlock(in_channels=4, out_channels=8) -> inter_channels=4
    N, Cin, H, W = 2, 4, 16, 16
    Cm = 8 // 2  # inter_channels

    key = jax.random.PRNGKey(0)
    kx, kw1, kb1, kw2, kb2 = jax.random.split(key, 5)
    x = jax.random.normal(kx, (N, Cin, H, W), dtype=jnp.float32)
    w1 = 0.1 * jax.random.normal(kw1, (Cm, Cin, KH, KW), dtype=jnp.float32)
    b1 = 0.1 * jax.random.normal(kb1, (Cm,), dtype=jnp.float32)
    w2 = 0.1 * jax.random.normal(kw2, (Cm, Cm, KH, KW), dtype=jnp.float32)
    b2 = 0.1 * jax.random.normal(kb2, (Cm,), dtype=jnp.float32)

    out = encoder_block(x, w1, b1, w2, b2)
    out = jax.block_until_ready(out)

    ref = encoder_block_ref(x, w1, b1, w2, b2)
    assert out.shape == (N, Cm, H, W)
    assert jnp.allclose(out, ref, atol=1e-4, rtol=1e-4), \
        f"max abs err {jnp.max(jnp.abs(out - ref))}"

    print("KERNEL_OK")
</pallas_src>

<mosaic_0001>
module attributes {stable_mosaic.version = 11 : i64} {
  func.func @encoder_block_kernel(%arg0: i32, %arg1: memref<2x4x18x18xf32, #tpu.memory_space<vmem>>, %arg2: memref<144xf32, #tpu.memory_space<smem>>, %arg3: memref<4xf32, #tpu.memory_space<smem>>, %arg4: memref<144xf32, #tpu.memory_space<smem>>, %arg5: memref<4xf32, #tpu.memory_space<smem>>, %arg6: memref<2x4x16x16xf32, #tpu.memory_space<vmem>>, %arg7: memref<2x4x18x18xf32, #tpu.memory_space<vmem>>) attributes {dimension_semantics = [#tpu.dimension_semantics<arbitrary>], iteration_bounds = array<i64: 1>, scalar_prefetch = 0 : i64, scratch_operands = 1 : i64, tpu.core_type = #tpu.core_type<tc>, window_params = [{pipeline_mode = #tpu.pipeline_mode<synchronous>, transform_indices = @transform_0, window_bounds = array<i64: 2, 4, 18, 18>}, {transform_indices = @transform_1, window_bounds = array<i64: 144>}, {transform_indices = @transform_2, window_bounds = array<i64: 4>}, {transform_indices = @transform_3, window_bounds = array<i64: 144>}, {transform_indices = @transform_4, window_bounds = array<i64: 4>}, {pipeline_mode = #tpu.pipeline_mode<synchronous>, transform_indices = @transform_5, window_bounds = array<i64: 2, 4, 16, 16>}]} {
    %cst = arith.constant 0.000000e+00 : f32
    %0 = vector.broadcast %cst : f32 to vector<2x4x1x18xf32>
    %c0 = arith.constant 0 : index
    %c0_0 = arith.constant 0 : index
    %c0_1 = arith.constant 0 : index
    %c0_2 = arith.constant 0 : index
    %1 = vector.load %arg7[%c0, %c0_0, %c0_1, %c0_2] : memref<2x4x18x18xf32, #tpu.memory_space<vmem>>, vector<2x4x1x18xf32>
    tpu.vector_store %arg7[%c0, %c0_0, %c0_1, %c0_2], %0 {strides = array<i32>} : memref<2x4x18x18xf32, #tpu.memory_space<vmem>>, vector<2x4x1x18xf32>,
    %cst_3 = arith.constant 0.000000e+00 : f32
    %2 = vector.broadcast %cst_3 : f32 to vector<2x4x1x18xf32>
    %c0_4 = arith.constant 0 : index
    %c0_5 = arith.constant 0 : index
    %c17 = arith.constant 17 : index
    %c0_6 = arith.constant 0 : index
    %3 = vector.load %arg7[%c0_4, %c0_5, %c17, %c0_6] : memref<2x4x18x18xf32, #tpu.memory_space<vmem>>, vector<2x4x1x18xf32>
    tpu.vector_store %arg7[%c0_4, %c0_5, %c17, %c0_6], %2 {strides = array<i32>} : memref<2x4x18x18xf32, #tpu.memory_space<vmem>>, vector<2x4x1x18xf32>,
    %cst_7 = arith.constant 0.000000e+00 : f32
    %4 = vector.broadcast %cst_7 : f32 to vector<2x4x18x1xf32>
    %c0_8 = arith.constant 0 : index
    %c0_9 = arith.constant 0 : index
    %c0_10 = arith.constant 0 : index
    %c0_11 = arith.constant 0 : index
    %5 = vector.load %arg7[%c0_8, %c0_9, %c0_10, %c0_11] : memref<2x4x18x18xf32, #tpu.memory_space<vmem>>, vector<2x4x18x1xf32>
    tpu.vector_store %arg7[%c0_8, %c0_9, %c0_10, %c0_11], %4 {strides = array<i32>} : memref<2x4x18x18xf32, #tpu.memory_space<vmem>>, vector<2x4x18x1xf32>,
    %cst_12 = arith.constant 0.000000e+00 : f32
    %6 = vector.broadcast %cst_12 : f32 to vector<2x4x18x1xf32>
    %c0_13 = arith.constant 0 : index
    %c0_14 = arith.constant 0 : index
    %c0_15 = arith.constant 0 : index
    %c17_16 = arith.constant 17 : index
    %7 = vector.load %arg7[%c0_13, %c0_14, %c0_15, %c17_16] : memref<2x4x18x18xf32, #tpu.memory_space<vmem>>, vector<2x4x18x1xf32>
    tpu.vector_store %arg7[%c0_13, %c0_14, %c0_15, %c17_16], %6 {strides = array<i32>} : memref<2x4x18x18xf32, #tpu.memory_space<vmem>>, vector<2x4x18x1xf32>,
    %c0_17 = arith.constant 0 : index
    %8 = memref.load %arg3[%c0_17] : memref<4xf32, #tpu.memory_space<smem>>
    %9 = vector.broadcast %8 : f32 to vector<2x16x16xf32>
    %c1 = arith.constant 1 : index
    %10 = memref.load %arg3[%c1] : memref<4xf32, #tpu.memory_space<smem>>
    %11 = vector.broadcast %10 : f32 to vector<2x16x16xf32>
    %c2 = arith.constant 2 : index
    %12 = memref.load %arg3[%c2] : memref<4xf32, #tpu.memory_space<smem>>
    %13 = vector.broadcast %12 : f32 to vector<2x16x16xf32>
    %c3 = arith.constant 3 : index
    %14 = memref.load %arg3[%c3] : memref<4xf32, #tpu.memory_space<smem>>
    %15 = vector.broadcast %14 : f32 to vector<2x16x16xf32>
    %c0_18 = arith.constant 0 : index
    %c0_19 = arith.constant 0 : index
    %c0_20 = arith.constant 0 : index
    %c0_21 = arith.constant 0 : index
    %16 = vector.load %arg1[%c0_18, %c0_19, %c0_20, %c0_21] : memref<2x4x18x18xf32, #tpu.memory_space<vmem>>, vector<2x1x16x16xf32>
    %17 = vector.shape_cast %16 : vector<2x1x16x16xf32> to vector<2x16x16xf32>
    %c0_22 = arith.constant 0 : index
    %18 = memref.load %arg2[%c0_22] : memref<144xf32, #tpu.memory_space<smem>>
    %19 = vector.broadcast %18 : f32 to vector<2x16x16xf32>
    %20 = arith.mulf %19, %17 : vector<2x16x16xf32>
    %21 = arith.addf %9, %20 : vector<2x16x16xf32>
    %c36 = arith.constant 36 : index
    %22 = memref.load %arg2[%c36] : memref<144xf32, #tpu.memory_space<smem>>
    %23 = vector.broadcast %22 : f32 to vector<2x16x16xf32>
    %24 = arith.mulf %23, %17 : vector<2x16x16xf32>
    %25 = arith.addf %11, %24 : vector<2x16x16xf32>
    %c72 = arith.constant 72 : index
    %26 = memref.load %arg2[%c72] : memref<144xf32, #tpu.memory_space<smem>>
    %27 = vector.broadcast %26 : f32 to vector<2x16x16xf32>
    %28 = arith.mulf %27, %17 : vector<2x16x16xf32>
    %29 = arith.addf %13, %28 : vector<2x16x16xf32>
    %c108 = arith.constant 108 : index
    %30 = memref.load %arg2[%c108] : memref<144xf32, #tpu.memory_space<smem>>
    %31 = vector.broadcast %30 : f32 to vector<2x16x16xf32>
    %32 = arith.mulf %31, %17 : vector<2x16x16xf32>
    %33 = arith.addf %15, %32 : vector<2x16x16xf32>
    %c0_23 = arith.constant 0 : index
    %c0_24 = arith.constant 0 : index
    %c0_25 = arith.constant 0 : index
    %c1_26 = arith.constant 1 : index
    %34 = vector.load %arg1[%c0_23, %c0_24, %c0_25, %c1_26] : memref<2x4x18x18xf32, #tpu.memory_space<vmem>>, vector<2x1x16x16xf32>
    %35 = vector.shape_cast %34 : vector<2x1x16x16xf32> to vector<2x16x16xf32>
    %c1_27 = arith.constant 1 : index
    %36 = memref.load %arg2[%c1_27] : memref<144xf32, #tpu.memory_space<smem>>
    %37 = vector.broadcast %36 : f32 to vector<2x16x16xf32>
    %38 = arith.mulf %37, %35 : vector<2x16x16xf32>
    %39 = arith.addf %21, %38 : vector<2x16x16xf32>
    %c37 = arith.constant 37 : index
    %40 = memref.load %arg2[%c37] : memref<144xf32, #tpu.memory_space<smem>>
    %41 = vector.broadcast %40 : f32 to vector<2x16x16xf32>
    %42 = arith.mulf %41, %35 : vector<2x16x16xf32>
    %43 = arith.addf %25, %42 : vector<2x16x16xf32>
    %c73 = arith.constant 73 : index
    %44 = memref.load %arg2[%c73] : memref<144xf32, #tpu.memory_space<smem>>
    %45 = vector.broadcast %44 : f32 to vector<2x16x16xf32>
    %46 = arith.mulf %45, %35 : vector<2x16x16xf32>
    %47 = arith.addf %29, %46 : vector<2x16x16xf32>
    %c109 = arith.constant 109 : index
    %48 = memref.load %arg2[%c109] : memref<144xf32, #tpu.memory_space<smem>>
    %49 = vector.broadcast %48 : f32 to vector<2x16x16xf32>
    %50 = arith.mulf %49, %35 : vector<2x16x16xf32>
    %51 = arith.addf %33, %50 : vector<2x16x16xf32>
    %c0_28 = arith.constant 0 : index
    %c0_29 = arith.constant 0 : index
    %c0_30 = arith.constant 0 : index
    %c2_31 = arith.constant 2 : index
    %52 = vector.load %arg1[%c0_28, %c0_29, %c0_30, %c2_31] : memref<2x4x18x18xf32, #tpu.memory_space<vmem>>, vector<2x1x16x16xf32>
    %53 = vector.shape_cast %52 : vector<2x1x16x16xf32> to vector<2x16x16xf32>
    %c2_32 = arith.constant 2 : index
    %54 = memref.load %arg2[%c2_32] : memref<144xf32, #tpu.memory_space<smem>>
    %55 = vector.broadcast %54 : f32 to vector<2x16x16xf32>
    %56 = arith.mulf %55, %53 : vector<2x16x16xf32>
    %57 = arith.addf %39, %56 : vector<2x16x16xf32>
    %c38 = arith.constant 38 : index
    %58 = memref.load %arg2[%c38] : memref<144xf32, #tpu.memory_space<smem>>
    %59 = vector.broadcast %58 : f32 to vector<2x16x16xf32>
    %60 = arith.mulf %59, %53 : vector<2x16x16xf32>
    %61 = arith.addf %43, %60 : vector<2x16x16xf32>
    %c74 = arith.constant 74 : index
    %62 = memref.load %arg2[%c74] : memref<144xf32, #tpu.memory_space<smem>>
    %63 = vector.broadcast %62 : f32 to vector<2x16x16xf32>
    %64 = arith.mulf %63, %53 : vector<2x16x16xf32>
    %65 = arith.addf %47, %64 : vector<2x16x16xf32>
    %c110 = arith.constant 110 : index
    %66 = memref.load %arg2[%c110] : memref<144xf32, #tpu.memory_space<smem>>
    %67 = vector.broadcast %66 : f32 to vector<2x16x16xf32>
    %68 = arith.mulf %67, %53 : vector<2x16x16xf32>
    %69 = arith.addf %51, %68 : vector<2x16x16xf32>
    %c0_33 = arith.constant 0 : index
    %c0_34 = arith.constant 0 : index
    %c1_35 = arith.constant 1 : index
    %c0_36 = arith.constant 0 : index
    %70 = vector.load %arg1[%c0_33, %c0_34, %c1_35, %c0_36] : memref<2x4x18x18xf32, #tpu.memory_space<vmem>>, vector<2x1x16x16xf32>
    %71 = vector.shape_cast %70 : vector<2x1x16x16xf32> to vector<2x16x16xf32>
    %c3_37 = arith.constant 3 : index
    %72 = memref.load %arg2[%c3_37] : memref<144xf32, #tpu.memory_space<smem>>
    %73 = vector.broadcast %72 : f32 to vector<2x16x16xf32>
    %74 = arith.mulf %73, %71 : vector<2x16x16xf32>
    %75 = arith.addf %57, %74 : vector<2x16x16xf32>
    %c39 = arith.constant 39 : index
    %76 = memref.load %arg2[%c39] : memref<144xf32, #tpu.memory_space<smem>>
    %77 = vector.broadcast %76 : f32 to vector<2x16x16xf32>
    %78 = arith.mulf %77, %71 : vector<2x16x16xf32>
    %79 = arith.addf %61, %78 : vector<2x16x16xf32>
    %c75 = arith.constant 75 : index
    %80 = memref.load %arg2[%c75] : memref<144xf32, #tpu.memory_space<smem>>
    %81 = vector.broadcast %80 : f32 to vector<2x16x16xf32>
    %82 = arith.mulf %81, %71 : vector<2x16x16xf32>
    %83 = arith.addf %65, %82 : vector<2x16x16xf32>
    %c111 = arith.constant 111 : index
    %84 = memref.load %arg2[%c111] : memref<144xf32, #tpu.memory_space<smem>>
    %85 = vector.broadcast %84 : f32 to vector<2x16x16xf32>
    %86 = arith.mulf %85, %71 : vector<2x16x16xf32>
    %87 = arith.addf %69, %86 : vector<2x16x16xf32>
    %c0_38 = arith.constant 0 : index
    %c0_39 = arith.constant 0 : index
    %c1_40 = arith.constant 1 : index
    %c1_41 = arith.constant 1 : index
    %88 = vector.load %arg1[%c0_38, %c0_39, %c1_40, %c1_41] : memref<2x4x18x18xf32, #tpu.memory_space<vmem>>, vector<2x1x16x16xf32>
    %89 = vector.shape_cast %88 : vector<2x1x16x16xf32> to vector<2x16x16xf32>
    %c4 = arith.constant 4 : index
    %90 = memref.load %arg2[%c4] : memref<144xf32, #tpu.memory_space<smem>>
    %91 = vector.broadcast %90 : f32 to vector<2x16x16xf32>
    %92 = arith.mulf %91, %89 : vector<2x16x16xf32>
    %93 = arith.addf %75, %92 : vector<2x16x16xf32>
    %c40 = arith.constant 40 : index
    %94 = memref.load %arg2[%c40] : memref<144xf32, #tpu.memory_space<smem>>
    %95 = vector.broadcast %94 : f32 to vector<2x16x16xf32>
    %96 = arith.mulf %95, %89 : vector<2x16x16xf32>
    %97 = arith.addf %79, %96 : vector<2x16x16xf32>
    %c76 = arith.constant 76 : index
    %98 = memref.load %arg2[%c76] : memref<144xf32, #tpu.memory_space<smem>>
    %99 = vector.broadcast %98 : f32 to vector<2x16x16xf32>
    %100 = arith.mulf %99, %89 : vector<2x16x16xf32>
    %101 = arith.addf %83, %100 : vector<2x16x16xf32>
    %c112 = arith.constant 112 : index
    %102 = memref.load %arg2[%c112] : memref<144xf32, #tpu.memory_space<smem>>
    %103 = vector.broadcast %102 : f32 to vector<2x16x16xf32>
    %104 = arith.mulf %103, %89 : vector<2x16x16xf32>
    %105 = arith.addf %87, %104 : vector<2x16x16xf32>
    %c0_42 = arith.constant 0 : index
    %c0_43 = arith.constant 0 : index
    %c1_44 = arith.constant 1 : index
    %c2_45 = arith.constant 2 : index
    %106 = vector.load %arg1[%c0_42, %c0_43, %c1_44, %c2_45] : memref<2x4x18x18xf32, #tpu.memory_space<vmem>>, vector<2x1x16x16xf32>
    %107 = vector.shape_cast %106 : vector<2x1x16x16xf32> to vector<2x16x16xf32>
    %c5 = arith.constant 5 : index
    %108 = memref.load %arg2[%c5] : memref<144xf32, #tpu.memory_space<smem>>
    %109 = vector.broadcast %108 : f32 to vector<2x16x16xf32>
    %110 = arith.mulf %109, %107 : vector<2x16x16xf32>
    %111 = arith.addf %93, %110 : vector<2x16x16xf32>
    %c41 = arith.constant 41 : index
    %112 = memref.load %arg2[%c41] : memref<144xf32, #tpu.memory_space<smem>>
    %113 = vector.broadcast %112 : f32 to vector<2x16x16xf32>
    %114 = arith.mulf %113, %107 : vector<2x16x16xf32>
    %115 = arith.addf %97, %114 : vector<2x16x16xf32>
    %c77 = arith.constant 77 : index
    %116 = memref.load %arg2[%c77] : memref<144xf32, #tpu.memory_space<smem>>
    %117 = vector.broadcast %116 : f32 to vector<2x16x16xf32>
    %118 = arith.mulf %117, %107 : vector<2x16x16xf32>
    %119 = arith.addf %101, %118 : vector<2x16x16xf32>
    %c113 = arith.constant 113 : index
    %120 = memref.load %arg2[%c113] : memref<144xf32, #tpu.memory_space<smem>>
    %121 = vector.broadcast %120 : f32 to vector<2x16x16xf32>
    %122 = arith.mulf %121, %107 : vector<2x16x16xf32>
    %123 = arith.addf %105, %122 : vector<2x16x16xf32>
    %c0_46 = arith.constant 0 : index
    %c0_47 = arith.constant 0 : index
    %c2_48 = arith.constant 2 : index
    %c0_49 = arith.constant 0 : index
    %124 = vector.load %arg1[%c0_46, %c0_47, %c2_48, %c0_49] : memref<2x4x18x18xf32, #tpu.memory_space<vmem>>, vector<2x1x16x16xf32>
    %125 = vector.shape_cast %124 : vector<2x1x16x16xf32> to vector<2x16x16xf32>
    %c6 = arith.constant 6 : index
    %126 = memref.load %arg2[%c6] : memref<144xf32, #tpu.memory_space<smem>>
    %127 = vector.broadcast %126 : f32 to vector<2x16x16xf32>
    %128 = arith.mulf %127, %125 : vector<2x16x16xf32>
    %129 = arith.addf %111, %128 : vector<2x16x16xf32>
    %c42 = arith.constant 42 : index
    %130 = memref.load %arg2[%c42] : memref<144xf32, #tpu.memory_space<smem>>
    %131 = vector.broadcast %130 : f32 to vector<2x16x16xf32>
    %132 = arith.mulf %131, %125 : vector<2x16x16xf32>
    %133 = arith.addf %115, %132 : vector<2x16x16xf32>
    %c78 = arith.constant 78 : index
    %134 = memref.load %arg2[%c78] : memref<144xf32, #tpu.memory_space<smem>>
    %135 = vector.broadcast %134 : f32 to vector<2x16x16xf32>
    %136 = arith.mulf %135, %125 : vector<2x16x16xf32>
    %137 = arith.addf %119, %136 : vector<2x16x16xf32>
    %c114 = arith.constant 114 : index
    %138 = memref.load %arg2[%c114] : memref<144xf32, #tpu.memory_space<smem>>
    %139 = vector.broadcast %138 : f32 to vector<2x16x16xf32>
    %140 = arith.mulf %139, %125 : vector<2x16x16xf32>
    %141 = arith.addf %123, %140 : vector<2x16x16xf32>
    %c0_50 = arith.constant 0 : index
    %c0_51 = arith.constant 0 : index
    %c2_52 = arith.constant 2 : index
    %c1_53 = arith.constant 1 : index
    %142 = vector.load %arg1[%c0_50, %c0_51, %c2_52, %c1_53] : memref<2x4x18x18xf32, #tpu.memory_space<vmem>>, vector<2x1x16x16xf32>
    %143 = vector.shape_cast %142 : vector<2x1x16x16xf32> to vector<2x16x16xf32>
    %c7 = arith.constant 7 : index
    %144 = memref.load %arg2[%c7] : memref<144xf32, #tpu.memory_space<smem>>
    %145 = vector.broadcast %144 : f32 to vector<2x16x16xf32>
    %146 = arith.mulf %145, %143 : vector<2x16x16xf32>
    %147 = arith.addf %129, %146 : vector<2x16x16xf32>
    %c43 = arith.constant 43 : index
    %148 = memref.load %arg2[%c43] : memref<144xf32, #tpu.memory_space<smem>>
    %149 = vector.broadcast %148 : f32 to vector<2x16x16xf32>
    %150 = arith.mulf %149, %143 : vector<2x16x16xf32>
    %151 = arith.addf %133, %150 : vector<2x16x16xf32>
    %c79 = arith.constant 79 : index
    %152 = memref.load %arg2[%c79] : memref<144xf32, #tpu.memory_space<smem>>
    %153 = vector.broadcast %152 : f32 to vector<2x16x16xf32>
    %154 = arith.mulf %153, %143 : vector<2x16x16xf32>
    %155 = arith.addf %137, %154 : vector<2x16x16xf32>
    %c115 = arith.constant 115 : index
    %156 = memref.load %arg2[%c115] : memref<144xf32, #tpu.memory_space<smem>>
    %157 = vector.broadcast %156 : f32 to vector<2x16x16xf32>
    %158 = arith.mulf %157, %143 : vector<2x16x16xf32>
    %159 = arith.addf %141, %158 : vector<2x16x16xf32>
    %c0_54 = arith.constant 0 : index
    %c0_55 = arith.constant 0 : index
    %c2_56 = arith.constant 2 : index
    %c2_57 = arith.constant 2 : index
    %160 = vector.load %arg1[%c0_54, %c0_55, %c2_56, %c2_57] : memref<2x4x18x18xf32, #tpu.memory_space<vmem>>, vector<2x1x16x16xf32>
    %161 = vector.shape_cast %160 : vector<2x1x16x16xf32> to vector<2x16x16xf32>
    %c8 = arith.constant 8 : index
    %162 = memref.load %arg2[%c8] : memref<144xf32, #tpu.memory_space<smem>>
    %163 = vector.broadcast %162 : f32 to vector<2x16x16xf32>
    %164 = arith.mulf %163, %161 : vector<2x16x16xf32>
    %165 = arith.addf %147, %164 : vector<2x16x16xf32>
    %c44 = arith.constant 44 : index
    %166 = memref.load %arg2[%c44] : memref<144xf32, #tpu.memory_space<smem>>
    %167 = vector.broadcast %166 : f32 to vector<2x16x16xf32>
    %168 = arith.mulf %167, %161 : vector<2x16x16xf32>
    %169 = arith.addf %151, %168 : vector<2x16x16xf32>
    %c80 = arith.constant 80 : index
    %170 = memref.load %arg2[%c80] : memref<144xf32, #tpu.memory_space<smem>>
    %171 = vector.broadcast %170 : f32 to vector<2x16x16xf32>
    %172 = arith.mulf %171, %161 : vector<2x16x16xf32>
    %173 = arith.addf %155, %172 : vector<2x16x16xf32>
    %c116 = arith.constant 116 : index
    %174 = memref.load %arg2[%c116] : memref<144xf32, #tpu.memory_space<smem>>
    %175 = vector.broadcast %174 : f32 to vector<2x16x16xf32>
    %176 = arith.mulf %175, %161 : vector<2x16x16xf32>
    %177 = arith.addf %159, %176 : vector<2x16x16xf32>
    %c0_58 = arith.constant 0 : index
    %c1_59 = arith.constant 1 : index
    %c0_60 = arith.constant 0 : index
    %c0_61 = arith.constant 0 : index
    %178 = vector.load %arg1[%c0_58, %c1_59, %c0_60, %c0_61] : memref<2x4x18x18xf32, #tpu.memory_space<vmem>>, vector<2x1x16x16xf32>
    %179 = vector.shape_cast %178 : vector<2x1x16x16xf32> to vector<2x16x16xf32>
    %c9 = arith.constant 9 : index
    %180 = memref.load %arg2[%c9] : memref<144xf32, #tpu.memory_space<smem>>
    %181 = vector.broadcast %180 : f32 to vector<2x16x16xf32>
    %182 = arith.mulf %181, %179 : vector<2x16x16xf32>
    %183 = arith.addf %165, %182 : vector<2x16x16xf32>
    %c45 = arith.constant 45 : index
    %184 = memref.load %arg2[%c45] : memref<144xf32, #tpu.memory_space<smem>>
    %185 = vector.broadcast %184 : f32 to vector<2x16x16xf32>
    %186 = arith.mulf %185, %179 : vector<2x16x16xf32>
    %187 = arith.addf %169, %186 : vector<2x16x16xf32>
    %c81 = arith.constant 81 : index
    %188 = memref.load %arg2[%c81] : memref<144xf32, #tpu.memory_space<smem>>
    %189 = vector.broadcast %188 : f32 to vector<2x16x16xf32>
    %190 = arith.mulf %189, %179 : vector<2x16x16xf32>
    %191 = arith.addf %173, %190 : vector<2x16x16xf32>
    %c117 = arith.constant 117 : index
    %192 = memref.load %arg2[%c117] : memref<144xf32, #tpu.memory_space<smem>>
    %193 = vector.broadcast %192 : f32 to vector<2x16x16xf32>
    %194 = arith.mulf %193, %179 : vector<2x16x16xf32>
    %195 = arith.addf %177, %194 : vector<2x16x16xf32>
    %c0_62 = arith.constant 0 : index
    %c1_63 = arith.constant 1 : index
    %c0_64 = arith.constant 0 : index
    %c1_65 = arith.constant 1 : index
    %196 = vector.load %arg1[%c0_62, %c1_63, %c0_64, %c1_65] : memref<2x4x18x18xf32, #tpu.memory_space<vmem>>, vector<2x1x16x16xf32>
    %197 = vector.shape_cast %196 : vector<2x1x16x16xf32> to vector<2x16x16xf32>
    %c10 = arith.constant 10 : index
    %198 = memref.load %arg2[%c10] : memref<144xf32, #tpu.memory_space<smem>>
    %199 = vector.broadcast %198 : f32 to vector<2x16x16xf32>
    %200 = arith.mulf %199, %197 : vector<2x16x16xf32>
    %201 = arith.addf %183, %200 : vector<2x16x16xf32>
    %c46 = arith.constant 46 : index
    %202 = memref.load %arg2[%c46] : memref<144xf32, #tpu.memory_space<smem>>
    %203 = vector.broadcast %202 : f32 to vector<2x16x16xf32>
    %204 = arith.mulf %203, %197 : vector<2x16x16xf32>
    %205 = arith.addf %187, %204 : vector<2x16x16xf32>
    %c82 = arith.constant 82 : index
    %206 = memref.load %arg2[%c82] : memref<144xf32, #tpu.memory_space<smem>>
    %207 = vector.broadcast %206 : f32 to vector<2x16x16xf32>
    %208 = arith.mulf %207, %197 : vector<2x16x16xf32>
    %209 = arith.addf %191, %208 : vector<2x16x16xf32>
    %c118 = arith.constant 118 : index
    %210 = memref.load %arg2[%c118] : memref<144xf32, #tpu.memory_space<smem>>
    %211 = vector.broadcast %210 : f32 to vector<2x16x16xf32>
    %212 = arith.mulf %211, %197 : vector<2x16x16xf32>
    %213 = arith.addf %195, %212 : vector<2x16x16xf32>
    %c0_66 = arith.constant 0 : index
    %c1_67 = arith.constant 1 : index
    %c0_68 = arith.constant 0 : index
    %c2_69 = arith.constant 2 : index
    %214 = vector.load %arg1[%c0_66, %c1_67, %c0_68, %c2_69] : memref<2x4x18x18xf32, #tpu.memory_space<vmem>>, vector<2x1x16x16xf32>
    %215 = vector.shape_cast %214 : vector<2x1x16x16xf32> to vector<2x16x16xf32>
    %c11 = arith.constant 11 : index
    %216 = memref.load %arg2[%c11] : memref<144xf32, #tpu.memory_space<smem>>
    %217 = vector.broadcast %216 : f32 to vector<2x16x16xf32>
    %218 = arith.mulf %217, %215 : vector<2x16x16xf32>
    %219 = arith.addf %201, %218 : vector<2x16x16xf32>
    %c47 = arith.constant 47 : index
    %220 = memref.load %arg2[%c47] : memref<144xf32, #tpu.memory_space<smem>>
    %221 = vector.broadcast %220 : f32 to vector<2x16x16xf32>
    %222 = arith.mulf %221, %215 : vector<2x16x16xf32>
    %223 = arith.addf %205, %222 : vector<2x16x16xf32>
    %c83 = arith.constant 83 : index
    %224 = memref.load %arg2[%c83] : memref<144xf32, #tpu.memory_space<smem>>
    %225 = vector.broadcast %224 : f32 to vector<2x16x16xf32>
    %226 = arith.mulf %225, %215 : vector<2x16x16xf32>
    %227 = arith.addf %209, %226 : vector<2x16x16xf32>
    %c119 = arith.constant 119 : index
    %228 = memref.load %arg2[%c119] : memref<144xf32, #tpu.memory_space<smem>>
    %229 = vector.broadcast %228 : f32 to vector<2x16x16xf32>
    %230 = arith.mulf %229, %215 : vector<2x16x16xf32>
    %231 = arith.addf %213, %230 : vector<2x16x16xf32>
    %c0_70 = arith.constant 0 : index
    %c1_71 = arith.constant 1 : index
    %c1_72 = arith.constant 1 : index
    %c0_73 = arith.constant 0 : index
    %232 = vector.load %arg1[%c0_70, %c1_71, %c1_72, %c0_73] : memref<2x4x18x18xf32, #tpu.memory_space<vmem>>, vector<2x1x16x16xf32>
    %233 = vector.shape_cast %232 : vector<2x1x16x16xf32> to vector<2x16x16xf32>
    %c12 = arith.constant 12 : index
    %234 = memref.load %arg2[%c12] : memref<144xf32, #tpu.memory_space<smem>>
    %235 = vector.broadcast %234 : f32 to vector<2x16x16xf32>
    %236 = arith.mulf %235, %233 : vector<2x16x16xf32>
    %237 = arith.addf %219, %236 : vector<2x16x16xf32>
    %c48 = arith.constant 48 : index
    %238 = memref.load %arg2[%c48] : memref<144xf32, #tpu.memory_space<smem>>
    %239 = vector.broadcast %238 : f32 to vector<2x16x16xf32>
    %240 = arith.mulf %239, %233 : vector<2x16x16xf32>
    %241 = arith.addf %223, %240 : vector<2x16x16xf32>
    %c84 = arith.constant 84 : index
    %242 = memref.load %arg2[%c84] : memref<144xf32, #tpu.memory_space<smem>>
    %243 = vector.broadcast %242 : f32 to vector<2x16x16xf32>
    %244 = arith.mulf %243, %233 : vector<2x16x16xf32>
    %245 = arith.addf %227, %244 : vector<2x16x16xf32>
    %c120 = arith.constant 120 : index
    %246 = memref.load %arg2[%c120] : memref<144xf32, #tpu.memory_space<smem>>
    %247 = vector.broadcast %246 : f32 to vector<2x16x16xf32>
    %248 = arith.mulf %247, %233 : vector<2x16x16xf32>
    %249 = arith.addf %231, %248 : vector<2x16x16xf32>
    %c0_74 = arith.constant 0 : index
    %c1_75 = arith.constant 1 : index
    %c1_76 = arith.constant 1 : index
    %c1_77 = arith.constant 1 : index
    %250 = vector.load %arg1[%c0_74, %c1_75, %c1_76, %c1_77] : memref<2x4x18x18xf32, #tpu.memory_space<vmem>>, vector<2x1x16x16xf32>
    %251 = vector.shape_cast %250 : vector<2x1x16x16xf32> to vector<2x16x16xf32>
    %c13 = arith.constant 13 : index
    %252 = memref.load %arg2[%c13] : memref<144xf32, #tpu.memory_space<smem>>
    %253 = vector.broadcast %252 : f32 to vector<2x16x16xf32>
    %254 = arith.mulf %253, %251 : vector<2x16x16xf32>
    %255 = arith.addf %237, %254 : vector<2x16x16xf32>
    %c49 = arith.constant 49 : index
    %256 = memref.load %arg2[%c49] : memref<144xf32, #tpu.memory_space<smem>>
    %257 = vector.broadcast %256 : f32 to vector<2x16x16xf32>
    %258 = arith.mulf %257, %251 : vector<2x16x16xf32>
    %259 = arith.addf %241, %258 : vector<2x16x16xf32>
    %c85 = arith.constant 85 : index
    %260 = memref.load %arg2[%c85] : memref<144xf32, #tpu.memory_space<smem>>
    %261 = vector.broadcast %260 : f32 to vector<2x16x16xf32>
    %262 = arith.mulf %261, %251 : vector<2x16x16xf32>
    %263 = arith.addf %245, %262 : vector<2x16x16xf32>
    %c121 = arith.constant 121 : index
    %264 = memref.load %arg2[%c121] : memref<144xf32, #tpu.memory_space<smem>>
    %265 = vector.broadcast %264 : f32 to vector<2x16x16xf32>
    %266 = arith.mulf %265, %251 : vector<2x16x16xf32>
    %267 = arith.addf %249, %266 : vector<2x16x16xf32>
    %c0_78 = arith.constant 0 : index
    %c1_79 = arith.constant 1 : index
    %c1_80 = arith.constant 1 : index
    %c2_81 = arith.constant 2 : index
    %268 = vector.load %arg1[%c0_78, %c1_79, %c1_80, %c2_81] : memref<2x4x18x18xf32, #tpu.memory_space<vmem>>, vector<2x1x16x16xf32>
    %269 = vector.shape_cast %268 : vector<2x1x16x16xf32> to vector<2x16x16xf32>
    %c14 = arith.constant 14 : index
    %270 = memref.load %arg2[%c14] : memref<144xf32, #tpu.memory_space<smem>>
    %271 = vector.broadcast %270 : f32 to vector<2x16x16xf32>
    %272 = arith.mulf %271, %269 : vector<2x16x16xf32>
    %273 = arith.addf %255, %272 : vector<2x16x16xf32>
    %c50 = arith.constant 50 : index
    %274 = memref.load %arg2[%c50] : memref<144xf32, #tpu.memory_space<smem>>
    %275 = vector.broadcast %274 : f32 to vector<2x16x16xf32>
    %276 = arith.mulf %275, %269 : vector<2x16x16xf32>
    %277 = arith.addf %259, %276 : vector<2x16x16xf32>
    %c86 = arith.constant 86 : index
    %278 = memref.load %arg2[%c86] : memref<144xf32, #tpu.memory_space<smem>>
    %279 = vector.broadcast %278 : f32 to vector<2x16x16xf32>
    %280 = arith.mulf %279, %269 : vector<2x16x16xf32>
    %281 = arith.addf %263, %280 : vector<2x16x16xf32>
    %c122 = arith.constant 122 : index
    %282 = memref.load %arg2[%c122] : memref<144xf32, #tpu.memory_space<smem>>
    %283 = vector.broadcast %282 : f32 to vector<2x16x16xf32>
    %284 = arith.mulf %283, %269 : vector<2x16x16xf32>
    %285 = arith.addf %267, %284 : vector<2x16x16xf32>
    %c0_82 = arith.constant 0 : index
    %c1_83 = arith.constant 1 : index
    %c2_84 = arith.constant 2 : index
    %c0_85 = arith.constant 0 : index
    %286 = vector.load %arg1[%c0_82, %c1_83, %c2_84, %c0_85] : memref<2x4x18x18xf32, #tpu.memory_space<vmem>>, vector<2x1x16x16xf32>
    %287 = vector.shape_cast %286 : vector<2x1x16x16xf32> to vector<2x16x16xf32>
    %c15 = arith.constant 15 : index
    %288 = memref.load %arg2[%c15] : memref<144xf32, #tpu.memory_space<smem>>
    %289 = vector.broadcast %288 : f32 to vector<2x16x16xf32>
    %290 = arith.mulf %289, %287 : vector<2x16x16xf32>
    %291 = arith.addf %273, %290 : vector<2x16x16xf32>
    %c51 = arith.constant 51 : index
    %292 = memref.load %arg2[%c51] : memref<144xf32, #tpu.memory_space<smem>>
    %293 = vector.broadcast %292 : f32 to vector<2x16x16xf32>
    %294 = arith.mulf %293, %287 : vector<2x16x16xf32>
    %295 = arith.addf %277, %294 : vector<2x16x16xf32>
    %c87 = arith.constant 87 : index
    %296 = memref.load %arg2[%c87] : memref<144xf32, #tpu.memory_space<smem>>
    %297 = vector.broadcast %296 : f32 to vector<2x16x16xf32>
    %298 = arith.mulf %297, %287 : vector<2x16x16xf32>
    %299 = arith.addf %281, %298 : vector<2x16x16xf32>
    %c123 = arith.constant 123 : index
    %300 = memref.load %arg2[%c123] : memref<144xf32, #tpu.memory_space<smem>>
    %301 = vector.broadcast %300 : f32 to vector<2x16x16xf32>
    %302 = arith.mulf %301, %287 : vector<2x16x16xf32>
    %303 = arith.addf %285, %302 : vector<2x16x16xf32>
    %c0_86 = arith.constant 0 : index
    %c1_87 = arith.constant 1 : index
    %c2_88 = arith.constant 2 : index
    %c1_89 = arith.constant 1 : index
    %304 = vector.load %arg1[%c0_86, %c1_87, %c2_88, %c1_89] : memref<2x4x18x18xf32, #tpu.memory_space<vmem>>, vector<2x1x16x16xf32>
    %305 = vector.shape_cast %304 : vector<2x1x16x16xf32> to vector<2x16x16xf32>
    %c16 = arith.constant 16 : index
    %306 = memref.load %arg2[%c16] : memref<144xf32, #tpu.memory_space<smem>>
    %307 = vector.broadcast %306 : f32 to vector<2x16x16xf32>
    %308 = arith.mulf %307, %305 : vector<2x16x16xf32>
    %309 = arith.addf %291, %308 : vector<2x16x16xf32>
    %c52 = arith.constant 52 : index
    %310 = memref.load %arg2[%c52] : memref<144xf32, #tpu.memory_space<smem>>
    %311 = vector.broadcast %310 : f32 to vector<2x16x16xf32>
    %312 = arith.mulf %311, %305 : vector<2x16x16xf32>
    %313 = arith.addf %295, %312 : vector<2x16x16xf32>
    %c88 = arith.constant 88 : index
    %314 = memref.load %arg2[%c88] : memref<144xf32, #tpu.memory_space<smem>>
    %315 = vector.broadcast %314 : f32 to vector<2x16x16xf32>
    %316 = arith.mulf %315, %305 : vector<2x16x16xf32>
    %317 = arith.addf %299, %316 : vector<2x16x16xf32>
    %c124 = arith.constant 124 : index
    %318 = memref.load %arg2[%c124] : memref<144xf32, #tpu.memory_space<smem>>
    %319 = vector.broadcast %318 : f32 to vector<2x16x16xf32>
    %320 = arith.mulf %319, %305 : vector<2x16x16xf32>
    %321 = arith.addf %303, %320 : vector<2x16x16xf32>
    %c0_90 = arith.constant 0 : index
    %c1_91 = arith.constant 1 : index
    %c2_92 = arith.constant 2 : index
    %c2_93 = arith.constant 2 : index
    %322 = vector.load %arg1[%c0_90, %c1_91, %c2_92, %c2_93] : memref<2x4x18x18xf32, #tpu.memory_space<vmem>>, vector<2x1x16x16xf32>
    %323 = vector.shape_cast %322 : vector<2x1x16x16xf32> to vector<2x16x16xf32>
    %c17_94 = arith.constant 17 : index
    %324 = memref.load %arg2[%c17_94] : memref<144xf32, #tpu.memory_space<smem>>
    %325 = vector.broadcast %324 : f32 to vector<2x16x16xf32>
    %326 = arith.mulf %325, %323 : vector<2x16x16xf32>
    %327 = arith.addf %309, %326 : vector<2x16x16xf32>
    %c53 = arith.constant 53 : index
    %328 = memref.load %arg2[%c53] : memref<144xf32, #tpu.memory_space<smem>>
    %329 = vector.broadcast %328 : f32 to vector<2x16x16xf32>
    %330 = arith.mulf %329, %323 : vector<2x16x16xf32>
    %331 = arith.addf %313, %330 : vector<2x16x16xf32>
    %c89 = arith.constant 89 : index
    %332 = memref.load %arg2[%c89] : memref<144xf32, #tpu.memory_space<smem>>
    %333 = vector.broadcast %332 : f32 to vector<2x16x16xf32>
    %334 = arith.mulf %333, %323 : vector<2x16x16xf32>
    %335 = arith.addf %317, %334 : vector<2x16x16xf32>
    %c125 = arith.constant 125 : index
    %336 = memref.load %arg2[%c125] : memref<144xf32, #tpu.memory_space<smem>>
    %337 = vector.broadcast %336 : f32 to vector<2x16x16xf32>
    %338 = arith.mulf %337, %323 : vector<2x16x16xf32>
    %339 = arith.addf %321, %338 : vector<2x16x16xf32>
    %c0_95 = arith.constant 0 : index
    %c2_96 = arith.constant 2 : index
    %c0_97 = arith.constant 0 : index
    %c0_98 = arith.constant 0 : index
    %340 = vector.load %arg1[%c0_95, %c2_96, %c0_97, %c0_98] : memref<2x4x18x18xf32, #tpu.memory_space<vmem>>, vector<2x1x16x16xf32>
    %341 = vector.shape_cast %340 : vector<2x1x16x16xf32> to vector<2x16x16xf32>
    %c18 = arith.constant 18 : index
    %342 = memref.load %arg2[%c18] : memref<144xf32, #tpu.memory_space<smem>>
    %343 = vector.broadcast %342 : f32 to vector<2x16x16xf32>
    %344 = arith.mulf %343, %341 : vector<2x16x16xf32>
    %345 = arith.addf %327, %344 : vector<2x16x16xf32>
    %c54 = arith.constant 54 : index
    %346 = memref.load %arg2[%c54] : memref<144xf32, #tpu.memory_space<smem>>
    %347 = vector.broadcast %346 : f32 to vector<2x16x16xf32>
    %348 = arith.mulf %347, %341 : vector<2x16x16xf32>
    %349 = arith.addf %331, %348 : vector<2x16x16xf32>
    %c90 = arith.constant 90 : index
    %350 = memref.load %arg2[%c90] : memref<144xf32, #tpu.memory_space<smem>>
    %351 = vector.broadcast %350 : f32 to vector<2x16x16xf32>
    %352 = arith.mulf %351, %341 : vector<2x16x16xf32>
    %353 = arith.addf %335, %352 : vector<2x16x16xf32>
    %c126 = arith.constant 126 : index
    %354 = memref.load %arg2[%c126] : memref<144xf32, #tpu.memory_space<smem>>
    %355 = vector.broadcast %354 : f32 to vector<2x16x16xf32>
    %356 = arith.mulf %355, %341 : vector<2x16x16xf32>
    %357 = arith.addf %339, %356 : vector<2x16x16xf32>
    %c0_99 = arith.constant 0 : index
    %c2_100 = arith.constant 2 : index
    %c0_101 = arith.constant 0 : index
    %c1_102 = arith.constant 1 : index
    %358 = vector.load %arg1[%c0_99, %c2_100, %c0_101, %c1_102] : memref<2x4x18x18xf32, #tpu.memory_space<vmem>>, vector<2x1x16x16xf32>
    %359 = vector.shape_cast %358 : vector<2x1x16x16xf32> to vector<2x16x16xf32>
    %c19 = arith.constant 19 : index
    %360 = memref.load %arg2[%c19] : memref<144xf32, #tpu.memory_space<smem>>
    %361 = vector.broadcast %360 : f32 to vector<2x16x16xf32>
    %362 = arith.mulf %361, %359 : vector<2x16x16xf32>
    %363 = arith.addf %345, %362 : vector<2x16x16xf32>
    %c55 = arith.constant 55 : index
    %364 = memref.load %arg2[%c55] : memref<144xf32, #tpu.memory_space<smem>>
    %365 = vector.broadcast %364 : f32 to vector<2x16x16xf32>
    %366 = arith.mulf %365, %359 : vector<2x16x16xf32>
    %367 = arith.addf %349, %366 : vector<2x16x16xf32>
    %c91 = arith.constant 91 : index
    %368 = memref.load %arg2[%c91] : memref<144xf32, #tpu.memory_space<smem>>
    %369 = vector.broadcast %368 : f32 to vector<2x16x16xf32>
    %370 = arith.mulf %369, %359 : vector<2x16x16xf32>
    %371 = arith.addf %353, %370 : vector<2x16x16xf32>
    %c127 = arith.constant 127 : index
    %372 = memref.load %arg2[%c127] : memref<144xf32, #tpu.memory_space<smem>>
    %373 = vector.broadcast %372 : f32 to vector<2x16x16xf32>
    %374 = arith.mulf %373, %359 : vector<2x16x16xf32>
    %375 = arith.addf %357, %374 : vector<2x16x16xf32>
    %c0_103 = arith.constant 0 : index
    %c2_104 = arith.constant 2 : index
    %c0_105 = arith.constant 0 : index
    %c2_106 = arith.constant 2 : index
    %376 = vector.load %arg1[%c0_103, %c2_104, %c0_105, %c2_106] : memref<2x4x18x18xf32, #tpu.memory_space<vmem>>, vector<2x1x16x16xf32>
    %377 = vector.shape_cast %376 : vector<2x1x16x16xf32> to vector<2x16x16xf32>
    %c20 = arith.constant 20 : index
    %378 = memref.load %arg2[%c20] : memref<144xf32, #tpu.memory_space<smem>>
    %379 = vector.broadcast %378 : f32 to vector<2x16x16xf32>
    %380 = arith.mulf %379, %377 : vector<2x16x16xf32>
    %381 = arith.addf %363, %380 : vector<2x16x16xf32>
    %c56 = arith.constant 56 : index
    %382 = memref.load %arg2[%c56] : memref<144xf32, #tpu.memory_space<smem>>
    %383 = vector.broadcast %382 : f32 to vector<2x16x16xf32>
    %384 = arith.mulf %383, %377 : vector<2x16x16xf32>
    %385 = arith.addf %367, %384 : vector<2x16x16xf32>
    %c92 = arith.constant 92 : index
    %386 = memref.load %arg2[%c92] : memref<144xf32, #tpu.memory_space<smem>>
    %387 = vector.broadcast %386 : f32 to vector<2x16x16xf32>
    %388 = arith.mulf %387, %377 : vector<2x16x16xf32>
    %389 = arith.addf %371, %388 : vector<2x16x16xf32>
    %c128 = arith.constant 128 : index
    %390 = memref.load %arg2[%c128] : memref<144xf32, #tpu.memory_space<smem>>
    %391 = vector.broadcast %390 : f32 to vector<2x16x16xf32>
    %392 = arith.mulf %391, %377 : vector<2x16x16xf32>
    %393 = arith.addf %375, %392 : vector<2x16x16xf32>
    %c0_107 = arith.constant 0 : index
    %c2_108 = arith.constant 2 : index
    %c1_109 = arith.constant 1 : index
    %c0_110 = arith.constant 0 : index
    %394 = vector.load %arg1[%c0_107, %c2_108, %c1_109, %c0_110] : memref<2x4x18x18xf32, #tpu.memory_space<vmem>>, vector<2x1x16x16xf32>
    %395 = vector.shape_cast %394 : vector<2x1x16x16xf32> to vector<2x16x16xf32>
    %c21 = arith.constant 21 : index
    %396 = memref.load %arg2[%c21] : memref<144xf32, #tpu.memory_space<smem>>
    %397 = vector.broadcast %396 : f32 to vector<2x16x16xf32>
    %398 = arith.mulf %397, %395 : vector<2x16x16xf32>
    %399 = arith.addf %381, %398 : vector<2x16x16xf32>
    %c57 = arith.constant 57 : index
    %400 = memref.load %arg2[%c57] : memref<144xf32, #tpu.memory_space<smem>>
    %401 = vector.broadcast %400 : f32 to vector<2x16x16xf32>
    %402 = arith.mulf %401, %395 : vector<2x16x16xf32>
    %403 = arith.addf %385, %402 : vector<2x16x16xf32>
    %c93 = arith.constant 93 : index
    %404 = memref.load %arg2[%c93] : memref<144xf32, #tpu.memory_space<smem>>
    %405 = vector.broadcast %404 : f32 to vector<2x16x16xf32>
    %406 = arith.mulf %405, %395 : vector<2x16x16xf32>
    %407 = arith.addf %389, %406 : vector<2x16x16xf32>
    %c129 = arith.constant 129 : index
    %408 = memref.load %arg2[%c129] : memref<144xf32, #tpu.memory_space<smem>>
    %409 = vector.broadcast %408 : f32 to vector<2x16x16xf32>
    %410 = arith.mulf %409, %395 : vector<2x16x16xf32>
    %411 = arith.addf %393, %410 : vector<2x16x16xf32>
    %c0_111 = arith.constant 0 : index
    %c2_112 = arith.constant 2 : index
    %c1_113 = arith.constant 1 : index
    %c1_114 = arith.constant 1 : index
    %412 = vector.load %arg1[%c0_111, %c2_112, %c1_113, %c1_114] : memref<2x4x18x18xf32, #tpu.memory_space<vmem>>, vector<2x1x16x16xf32>
    %413 = vector.shape_cast %412 : vector<2x1x16x16xf32> to vector<2x16x16xf32>
    %c22 = arith.constant 22 : index
    %414 = memref.load %arg2[%c22] : memref<144xf32, #tpu.memory_space<smem>>
    %415 = vector.broadcast %414 : f32 to vector<2x16x16xf32>
    %416 = arith.mulf %415, %413 : vector<2x16x16xf32>
    %417 = arith.addf %399, %416 : vector<2x16x16xf32>
    %c58 = arith.constant 58 : index
    %418 = memref.load %arg2[%c58] : memref<144xf32, #tpu.memory_space<smem>>
    %419 = vector.broadcast %418 : f32 to vector<2x16x16xf32>
    %420 = arith.mulf %419, %413 : vector<2x16x16xf32>
    %421 = arith.addf %403, %420 : vector<2x16x16xf32>
    %c94 = arith.constant 94 : index
    %422 = memref.load %arg2[%c94] : memref<144xf32, #tpu.memory_space<smem>>
    %423 = vector.broadcast %422 : f32 to vector<2x16x16xf32>
    %424 = arith.mulf %423, %413 : vector<2x16x16xf32>
    %425 = arith.addf %407, %424 : vector<2x16x16xf32>
    %c130 = arith.constant 130 : index
    %426 = memref.load %arg2[%c130] : memref<144xf32, #tpu.memory_space<smem>>
    %427 = vector.broadcast %426 : f32 to vector<2x16x16xf32>
    %428 = arith.mulf %427, %413 : vector<2x16x16xf32>
    %429 = arith.addf %411, %428 : vector<2x16x16xf32>
    %c0_115 = arith.constant 0 : index
    %c2_116 = arith.constant 2 : index
    %c1_117 = arith.constant 1 : index
    %c2_118 = arith.constant 2 : index
    %430 = vector.load %arg1[%c0_115, %c2_116, %c1_117, %c2_118] : memref<2x4x18x18xf32, #tpu.memory_space<vmem>>, vector<2x1x16x16xf32>
    %431 = vector.shape_cast %430 : vector<2x1x16x16xf32> to vector<2x16x16xf32>
    %c23 = arith.constant 23 : index
    %432 = memref.load %arg2[%c23] : memref<144xf32, #tpu.memory_space<smem>>
    %433 = vector.broadcast %432 : f32 to vector<2x16x16xf32>
    %434 = arith.mulf %433, %431 : vector<2x16x16xf32>
    %435 = arith.addf %417, %434 : vector<2x16x16xf32>
    %c59 = arith.constant 59 : index
    %436 = memref.load %arg2[%c59] : memref<144xf32, #tpu.memory_space<smem>>
    %437 = vector.broadcast %436 : f32 to vector<2x16x16xf32>
    %438 = arith.mulf %437, %431 : vector<2x16x16xf32>
    %439 = arith.addf %421, %438 : vector<2x16x16xf32>
    %c95 = arith.constant 95 : index
    %440 = memref.load %arg2[%c95] : memref<144xf32, #tpu.memory_space<smem>>
    %441 = vector.broadcast %440 : f32 to vector<2x16x16xf32>
    %442 = arith.mulf %441, %431 : vector<2x16x16xf32>
    %443 = arith.addf %425, %442 : vector<2x16x16xf32>
    %c131 = arith.constant 131 : index
    %444 = memref.load %arg2[%c131] : memref<144xf32, #tpu.memory_space<smem>>
    %445 = vector.broadcast %444 : f32 to vector<2x16x16xf32>
    %446 = arith.mulf %445, %431 : vector<2x16x16xf32>
    %447 = arith.addf %429, %446 : vector<2x16x16xf32>
    %c0_119 = arith.constant 0 : index
    %c2_120 = arith.constant 2 : index
    %c2_121 = arith.constant 2 : index
    %c0_122 = arith.constant 0 : index
    %448 = vector.load %arg1[%c0_119, %c2_120, %c2_121, %c0_122] : memref<2x4x18x18xf32, #tpu.memory_space<vmem>>, vector<2x1x16x16xf32>
    %449 = vector.shape_cast %448 : vector<2x1x16x16xf32> to vector<2x16x16xf32>
    %c24 = arith.constant 24 : index
    %450 = memref.load %arg2[%c24] : memref<144xf32, #tpu.memory_space<smem>>
    %451 = vector.broadcast %450 : f32 to vector<2x16x16xf32>
    %452 = arith.mulf %451, %449 : vector<2x16x16xf32>
    %453 = arith.addf %435, %452 : vector<2x16x16xf32>
    %c60 = arith.constant 60 : index
    %454 = memref.load %arg2[%c60] : memref<144xf32, #tpu.memory_space<smem>>
    %455 = vector.broadcast %454 : f32 to vector<2x16x16xf32>
    %456 = arith.mulf %455, %449 : vector<2x16x16xf32>
    %457 = arith.addf %439, %456 : vector<2x16x16xf32>
    %c96 = arith.constant 96 : index
    %458 = memref.load %arg2[%c96] : memref<144xf32, #tpu.memory_space<smem>>
    %459 = vector.broadcast %458 : f32 to vector<2x16x16xf32>
    %460 = arith.mulf %459, %449 : vector<2x16x16xf32>
    %461 = arith.addf %443, %460 : vector<2x16x16xf32>
    %c132 = arith.constant 132 : index
    %462 = memref.load %arg2[%c132] : memref<144xf32, #tpu.memory_space<smem>>
    %463 = vector.broadcast %462 : f32 to vector<2x16x16xf32>
    %464 = arith.mulf %463, %449 : vector<2x16x16xf32>
    %465 = arith.addf %447, %464 : vector<2x16x16xf32>
    %c0_123 = arith.constant 0 : index
    %c2_124 = arith.constant 2 : index
    %c2_125 = arith.constant 2 : index
    %c1_126 = arith.constant 1 : index
    %466 = vector.load %arg1[%c0_123, %c2_124, %c2_125, %c1_126] : memref<2x4x18x18xf32, #tpu.memory_space<vmem>>, vector<2x1x16x16xf32>
    %467 = vector.shape_cast %466 : vector<2x1x16x16xf32> to vector<2x16x16xf32>
    %c25 = arith.constant 25 : index
    %468 = memref.load %arg2[%c25] : memref<144xf32, #tpu.memory_space<smem>>
    %469 = vector.broadcast %468 : f32 to vector<2x16x16xf32>
    %470 = arith.mulf %469, %467 : vector<2x16x16xf32>
    %471 = arith.addf %453, %470 : vector<2x16x16xf32>
    %c61 = arith.constant 61 : index
    %472 = memref.load %arg2[%c61] : memref<144xf32, #tpu.memory_space<smem>>
    %473 = vector.broadcast %472 : f32 to vector<2x16x16xf32>
    %474 = arith.mulf %473, %467 : vector<2x16x16xf32>
    %475 = arith.addf %457, %474 : vector<2x16x16xf32>
    %c97 = arith.constant 97 : index
    %476 = memref.load %arg2[%c97] : memref<144xf32, #tpu.memory_space<smem>>
    %477 = vector.broadcast %476 : f32 to vector<2x16x16xf32>
    %478 = arith.mulf %477, %467 : vector<2x16x16xf32>
    %479 = arith.addf %461, %478 : vector<2x16x16xf32>
    %c133 = arith.constant 133 : index
    %480 = memref.load %arg2[%c133] : memref<144xf32, #tpu.memory_space<smem>>
    %481 = vector.broadcast %480 : f32 to vector<2x16x16xf32>
    %482 = arith.mulf %481, %467 : vector<2x16x16xf32>
    %483 = arith.addf %465, %482 : vector<2x16x16xf32>
    %c0_127 = arith.constant 0 : index
    %c2_128 = arith.constant 2 : index
    %c2_129 = arith.constant 2 : index
    %c2_130 = arith.constant 2 : index
    %484 = vector.load %arg1[%c0_127, %c2_128, %c2_129, %c2_130] : memref<2x4x18x18xf32, #tpu.memory_space<vmem>>, vector<2x1x16x16xf32>
    %485 = vector.shape_cast %484 : vector<2x1x16x16xf32> to vector<2x16x16xf32>
    %c26 = arith.constant 26 : index
    %486 = memref.load %arg2[%c26] : memref<144xf32, #tpu.memory_space<smem>>
    %487 = vector.broadcast %486 : f32 to vector<2x16x16xf32>
    %488 = arith.mulf %487, %485 : vector<2x16x16xf32>
    %489 = arith.addf %471, %488 : vector<2x16x16xf32>
    %c62 = arith.constant 62 : index
    %490 = memref.load %arg2[%c62] : memref<144xf32, #tpu.memory_space<smem>>
    %491 = vector.broadcast %490 : f32 to vector<2x16x16xf32>
    %492 = arith.mulf %491, %485 : vector<2x16x16xf32>
    %493 = arith.addf %475, %492 : vector<2x16x16xf32>
    %c98 = arith.constant 98 : index
    %494 = memref.load %arg2[%c98] : memref<144xf32, #tpu.memory_space<smem>>
    %495 = vector.broadcast %494 : f32 to vector<2x16x16xf32>
    %496 = arith.mulf %495, %485 : vector<2x16x16xf32>
    %497 = arith.addf %479, %496 : vector<2x16x16xf32>
    %c134 = arith.constant 134 : index
    %498 = memref.load %arg2[%c134] : memref<144xf32, #tpu.memory_space<smem>>
    %499 = vector.broadcast %498 : f32 to vector<2x16x16xf32>
    %500 = arith.mulf %499, %485 : vector<2x16x16xf32>
    %501 = arith.addf %483, %500 : vector<2x16x16xf32>
    %c0_131 = arith.constant 0 : index
    %c3_132 = arith.constant 3 : index
    %c0_133 = arith.constant 0 : index
    %c0_134 = arith.constant 0 : index
    %502 = vector.load %arg1[%c0_131, %c3_132, %c0_133, %c0_134] : memref<2x4x18x18xf32, #tpu.memory_space<vmem>>, vector<2x1x16x16xf32>
    %503 = vector.shape_cast %502 : vector<2x1x16x16xf32> to vector<2x16x16xf32>
    %c27 = arith.constant 27 : index
    %504 = memref.load %arg2[%c27] : memref<144xf32, #tpu.memory_space<smem>>
    %505 = vector.broadcast %504 : f32 to vector<2x16x16xf32>
    %506 = arith.mulf %505, %503 : vector<2x16x16xf32>
    %507 = arith.addf %489, %506 : vector<2x16x16xf32>
    %c63 = arith.constant 63 : index
    %508 = memref.load %arg2[%c63] : memref<144xf32, #tpu.memory_space<smem>>
    %509 = vector.broadcast %508 : f32 to vector<2x16x16xf32>
    %510 = arith.mulf %509, %503 : vector<2x16x16xf32>
    %511 = arith.addf %493, %510 : vector<2x16x16xf32>
    %c99 = arith.constant 99 : index
    %512 = memref.load %arg2[%c99] : memref<144xf32, #tpu.memory_space<smem>>
    %513 = vector.broadcast %512 : f32 to vector<2x16x16xf32>
    %514 = arith.mulf %513, %503 : vector<2x16x16xf32>
    %515 = arith.addf %497, %514 : vector<2x16x16xf32>
    %c135 = arith.constant 135 : index
    %516 = memref.load %arg2[%c135] : memref<144xf32, #tpu.memory_space<smem>>
    %517 = vector.broadcast %516 : f32 to vector<2x16x16xf32>
    %518 = arith.mulf %517, %503 : vector<2x16x16xf32>
    %519 = arith.addf %501, %518 : vector<2x16x16xf32>
    %c0_135 = arith.constant 0 : index
    %c3_136 = arith.constant 3 : index
    %c0_137 = arith.constant 0 : index
    %c1_138 = arith.constant 1 : index
    %520 = vector.load %arg1[%c0_135, %c3_136, %c0_137, %c1_138] : memref<2x4x18x18xf32, #tpu.memory_space<vmem>>, vector<2x1x16x16xf32>
    %521 = vector.shape_cast %520 : vector<2x1x16x16xf32> to vector<2x16x16xf32>
    %c28 = arith.constant 28 : index
    %522 = memref.load %arg2[%c28] : memref<144xf32, #tpu.memory_space<smem>>
    %523 = vector.broadcast %522 : f32 to vector<2x16x16xf32>
    %524 = arith.mulf %523, %521 : vector<2x16x16xf32>
    %525 = arith.addf %507, %524 : vector<2x16x16xf32>
    %c64 = arith.constant 64 : index
    %526 = memref.load %arg2[%c64] : memref<144xf32, #tpu.memory_space<smem>>
    %527 = vector.broadcast %526 : f32 to vector<2x16x16xf32>
    %528 = arith.mulf %527, %521 : vector<2x16x16xf32>
    %529 = arith.addf %511, %528 : vector<2x16x16xf32>
    %c100 = arith.constant 100 : index
    %530 = memref.load %arg2[%c100] : memref<144xf32, #tpu.memory_space<smem>>
    %531 = vector.broadcast %530 : f32 to vector<2x16x16xf32>
    %532 = arith.mulf %531, %521 : vector<2x16x16xf32>
    %533 = arith.addf %515, %532 : vector<2x16x16xf32>
    %c136 = arith.constant 136 : index
    %534 = memref.load %arg2[%c136] : memref<144xf32, #tpu.memory_space<smem>>
    %535 = vector.broadcast %534 : f32 to vector<2x16x16xf32>
    %536 = arith.mulf %535, %521 : vector<2x16x16xf32>
    %537 = arith.addf %519, %536 : vector<2x16x16xf32>
    %c0_139 = arith.constant 0 : index
    %c3_140 = arith.constant 3 : index
    %c0_141 = arith.constant 0 : index
    %c2_142 = arith.constant 2 : index
    %538 = vector.load %arg1[%c0_139, %c3_140, %c0_141, %c2_142] : memref<2x4x18x18xf32, #tpu.memory_space<vmem>>, vector<2x1x16x16xf32>
    %539 = vector.shape_cast %538 : vector<2x1x16x16xf32> to vector<2x16x16xf32>
    %c29 = arith.constant 29 : index
    %540 = memref.load %arg2[%c29] : memref<144xf32, #tpu.memory_space<smem>>
    %541 = vector.broadcast %540 : f32 to vector<2x16x16xf32>
    %542 = arith.mulf %541, %539 : vector<2x16x16xf32>
    %543 = arith.addf %525, %542 : vector<2x16x16xf32>
    %c65 = arith.constant 65 : index
    %544 = memref.load %arg2[%c65] : memref<144xf32, #tpu.memory_space<smem>>
    %545 = vector.broadcast %544 : f32 to vector<2x16x16xf32>
    %546 = arith.mulf %545, %539 : vector<2x16x16xf32>
    %547 = arith.addf %529, %546 : vector<2x16x16xf32>
    %c101 = arith.constant 101 : index
    %548 = memref.load %arg2[%c101] : memref<144xf32, #tpu.memory_space<smem>>
    %549 = vector.broadcast %548 : f32 to vector<2x16x16xf32>
    %550 = arith.mulf %549, %539 : vector<2x16x16xf32>
    %551 = arith.addf %533, %550 : vector<2x16x16xf32>
    %c137 = arith.constant 137 : index
    %552 = memref.load %arg2[%c137] : memref<144xf32, #tpu.memory_space<smem>>
    %553 = vector.broadcast %552 : f32 to vector<2x16x16xf32>
    %554 = arith.mulf %553, %539 : vector<2x16x16xf32>
    %555 = arith.addf %537, %554 : vector<2x16x16xf32>
    %c0_143 = arith.constant 0 : index
    %c3_144 = arith.constant 3 : index
    %c1_145 = arith.constant 1 : index
    %c0_146 = arith.constant 0 : index
    %556 = vector.load %arg1[%c0_143, %c3_144, %c1_145, %c0_146] : memref<2x4x18x18xf32, #tpu.memory_space<vmem>>, vector<2x1x16x16xf32>
    %557 = vector.shape_cast %556 : vector<2x1x16x16xf32> to vector<2x16x16xf32>
    %c30 = arith.constant 30 : index
    %558 = memref.load %arg2[%c30] : memref<144xf32, #tpu.memory_space<smem>>
    %559 = vector.broadcast %558 : f32 to vector<2x16x16xf32>
    %560 = arith.mulf %559, %557 : vector<2x16x16xf32>
    %561 = arith.addf %543, %560 : vector<2x16x16xf32>
    %c66 = arith.constant 66 : index
    %562 = memref.load %arg2[%c66] : memref<144xf32, #tpu.memory_space<smem>>
    %563 = vector.broadcast %562 : f32 to vector<2x16x16xf32>
    %564 = arith.mulf %563, %557 : vector<2x16x16xf32>
    %565 = arith.addf %547, %564 : vector<2x16x16xf32>
    %c102 = arith.constant 102 : index
    %566 = memref.load %arg2[%c102] : memref<144xf32, #tpu.memory_space<smem>>
    %567 = vector.broadcast %566 : f32 to vector<2x16x16xf32>
    %568 = arith.mulf %567, %557 : vector<2x16x16xf32>
    %569 = arith.addf %551, %568 : vector<2x16x16xf32>
    %c138 = arith.constant 138 : index
    %570 = memref.load %arg2[%c138] : memref<144xf32, #tpu.memory_space<smem>>
    %571 = vector.broadcast %570 : f32 to vector<2x16x16xf32>
    %572 = arith.mulf %571, %557 : vector<2x16x16xf32>
    %573 = arith.addf %555, %572 : vector<2x16x16xf32>
    %c0_147 = arith.constant 0 : index
    %c3_148 = arith.constant 3 : index
    %c1_149 = arith.constant 1 : index
    %c1_150 = arith.constant 1 : index
    %574 = vector.load %arg1[%c0_147, %c3_148, %c1_149, %c1_150] : memref<2x4x18x18xf32, #tpu.memory_space<vmem>>, vector<2x1x16x16xf32>
    %575 = vector.shape_cast %574 : vector<2x1x16x16xf32> to vector<2x16x16xf32>
    %c31 = arith.constant 31 : index
    %576 = memref.load %arg2[%c31] : memref<144xf32, #tpu.memory_space<smem>>
    %577 = vector.broadcast %576 : f32 to vector<2x16x16xf32>
    %578 = arith.mulf %577, %575 : vector<2x16x16xf32>
    %579 = arith.addf %561, %578 : vector<2x16x16xf32>
    %c67 = arith.constant 67 : index
    %580 = memref.load %arg2[%c67] : memref<144xf32, #tpu.memory_space<smem>>
    %581 = vector.broadcast %580 : f32 to vector<2x16x16xf32>
    %582 = arith.mulf %581, %575 : vector<2x16x16xf32>
    %583 = arith.addf %565, %582 : vector<2x16x16xf32>
    %c103 = arith.constant 103 : index
    %584 = memref.load %arg2[%c103] : memref<144xf32, #tpu.memory_space<smem>>
    %585 = vector.broadcast %584 : f32 to vector<2x16x16xf32>
    %586 = arith.mulf %585, %575 : vector<2x16x16xf32>
    %587 = arith.addf %569, %586 : vector<2x16x16xf32>
    %c139 = arith.constant 139 : index
    %588 = memref.load %arg2[%c139] : memref<144xf32, #tpu.memory_space<smem>>
    %589 = vector.broadcast %588 : f32 to vector<2x16x16xf32>
    %590 = arith.mulf %589, %575 : vector<2x16x16xf32>
    %591 = arith.addf %573, %590 : vector<2x16x16xf32>
    %c0_151 = arith.constant 0 : index
    %c3_152 = arith.constant 3 : index
    %c1_153 = arith.constant 1 : index
    %c2_154 = arith.constant 2 : index
    %592 = vector.load %arg1[%c0_151, %c3_152, %c1_153, %c2_154] : memref<2x4x18x18xf32, #tpu.memory_space<vmem>>, vector<2x1x16x16xf32>
    %593 = vector.shape_cast %592 : vector<2x1x16x16xf32> to vector<2x16x16xf32>
    %c32 = arith.constant 32 : index
    %594 = memref.load %arg2[%c32] : memref<144xf32, #tpu.memory_space<smem>>
    %595 = vector.broadcast %594 : f32 to vector<2x16x16xf32>
    %596 = arith.mulf %595, %593 : vector<2x16x16xf32>
    %597 = arith.addf %579, %596 : vector<2x16x16xf32>
    %c68 = arith.constant 68 : index
    %598 = memref.load %arg2[%c68] : memref<144xf32, #tpu.memory_space<smem>>
    %599 = vector.broadcast %598 : f32 to vector<2x16x16xf32>
    %600 = arith.mulf %599, %593 : vector<2x16x16xf32>
    %601 = arith.addf %583, %600 : vector<2x16x16xf32>
    %c104 = arith.constant 104 : index
    %602 = memref.load %arg2[%c104] : memref<144xf32, #tpu.memory_space<smem>>
    %603 = vector.broadcast %602 : f32 to vector<2x16x16xf32>
    %604 = arith.mulf %603, %593 : vector<2x16x16xf32>
    %605 = arith.addf %587, %604 : vector<2x16x16xf32>
    %c140 = arith.constant 140 : index
    %606 = memref.load %arg2[%c140] : memref<144xf32, #tpu.memory_space<smem>>
    %607 = vector.broadcast %606 : f32 to vector<2x16x16xf32>
    %608 = arith.mulf %607, %593 : vector<2x16x16xf32>
    %609 = arith.addf %591, %608 : vector<2x16x16xf32>
    %c0_155 = arith.constant 0 : index
    %c3_156 = arith.constant 3 : index
    %c2_157 = arith.constant 2 : index
    %c0_158 = arith.constant 0 : index
    %610 = vector.load %arg1[%c0_155, %c3_156, %c2_157, %c0_158] : memref<2x4x18x18xf32, #tpu.memory_space<vmem>>, vector<2x1x16x16xf32>
    %611 = vector.shape_cast %610 : vector<2x1x16x16xf32> to vector<2x16x16xf32>
    %c33 = arith.constant 33 : index
    %612 = memref.load %arg2[%c33] : memref<144xf32, #tpu.memory_space<smem>>
    %613 = vector.broadcast %612 : f32 to vector<2x16x16xf32>
    %614 = arith.mulf %613, %611 : vector<2x16x16xf32>
    %615 = arith.addf %597, %614 : vector<2x16x16xf32>
    %c69 = arith.constant 69 : index
    %616 = memref.load %arg2[%c69] : memref<144xf32, #tpu.memory_space<smem>>
    %617 = vector.broadcast %616 : f32 to vector<2x16x16xf32>
    %618 = arith.mulf %617, %611 : vector<2x16x16xf32>
    %619 = arith.addf %601, %618 : vector<2x16x16xf32>
    %c105 = arith.constant 105 : index
    %620 = memref.load %arg2[%c105] : memref<144xf32, #tpu.memory_space<smem>>
    %621 = vector.broadcast %620 : f32 to vector<2x16x16xf32>
    %622 = arith.mulf %621, %611 : vector<2x16x16xf32>
    %623 = arith.addf %605, %622 : vector<2x16x16xf32>
    %c141 = arith.constant 141 : index
    %624 = memref.load %arg2[%c141] : memref<144xf32, #tpu.memory_space<smem>>
    %625 = vector.broadcast %624 : f32 to vector<2x16x16xf32>
    %626 = arith.mulf %625, %611 : vector<2x16x16xf32>
    %627 = arith.addf %609, %626 : vector<2x16x16xf32>
    %c0_159 = arith.constant 0 : index
    %c3_160 = arith.constant 3 : index
    %c2_161 = arith.constant 2 : index
    %c1_162 = arith.constant 1 : index
    %628 = vector.load %arg1[%c0_159, %c3_160, %c2_161, %c1_162] : memref<2x4x18x18xf32, #tpu.memory_space<vmem>>, vector<2x1x16x16xf32>
    %629 = vector.shape_cast %628 : vector<2x1x16x16xf32> to vector<2x16x16xf32>
    %c34 = arith.constant 34 : index
    %630 = memref.load %arg2[%c34] : memref<144xf32, #tpu.memory_space<smem>>
    %631 = vector.broadcast %630 : f32 to vector<2x16x16xf32>
    %632 = arith.mulf %631, %629 : vector<2x16x16xf32>
    %633 = arith.addf %615, %632 : vector<2x16x16xf32>
    %c70 = arith.constant 70 : index
    %634 = memref.load %arg2[%c70] : memref<144xf32, #tpu.memory_space<smem>>
    %635 = vector.broadcast %634 : f32 to vector<2x16x16xf32>
    %636 = arith.mulf %635, %629 : vector<2x16x16xf32>
    %637 = arith.addf %619, %636 : vector<2x16x16xf32>
    %c106 = arith.constant 106 : index
    %638 = memref.load %arg2[%c106] : memref<144xf32, #tpu.memory_space<smem>>
    %639 = vector.broadcast %638 : f32 to vector<2x16x16xf32>
    %640 = arith.mulf %639, %629 : vector<2x16x16xf32>
    %641 = arith.addf %623, %640 : vector<2x16x16xf32>
    %c142 = arith.constant 142 : index
    %642 = memref.load %arg2[%c142] : memref<144xf32, #tpu.memory_space<smem>>
    %643 = vector.broadcast %642 : f32 to vector<2x16x16xf32>
    %644 = arith.mulf %643, %629 : vector<2x16x16xf32>
    %645 = arith.addf %627, %644 : vector<2x16x16xf32>
    %c0_163 = arith.constant 0 : index
    %c3_164 = arith.constant 3 : index
    %c2_165 = arith.constant 2 : index
    %c2_166 = arith.constant 2 : index
    %646 = vector.load %arg1[%c0_163, %c3_164, %c2_165, %c2_166] : memref<2x4x18x18xf32, #tpu.memory_space<vmem>>, vector<2x1x16x16xf32>
    %647 = vector.shape_cast %646 : vector<2x1x16x16xf32> to vector<2x16x16xf32>
    %c35 = arith.constant 35 : index
    %648 = memref.load %arg2[%c35] : memref<144xf32, #tpu.memory_space<smem>>
    %649 = vector.broadcast %648 : f32 to vector<2x16x16xf32>
    %650 = arith.mulf %649, %647 : vector<2x16x16xf32>
    %651 = arith.addf %633, %650 : vector<2x16x16xf32>
    %c71 = arith.constant 71 : index
    %652 = memref.load %arg2[%c71] : memref<144xf32, #tpu.memory_space<smem>>
    %653 = vector.broadcast %652 : f32 to vector<2x16x16xf32>
    %654 = arith.mulf %653, %647 : vector<2x16x16xf32>
    %655 = arith.addf %637, %654 : vector<2x16x16xf32>
    %c107 = arith.constant 107 : index
    %656 = memref.load %arg2[%c107] : memref<144xf32, #tpu.memory_space<smem>>
    %657 = vector.broadcast %656 : f32 to vector<2x16x16xf32>
    %658 = arith.mulf %657, %647 : vector<2x16x16xf32>
    %659 = arith.addf %641, %658 : vector<2x16x16xf32>
    %c143 = arith.constant 143 : index
    %660 = memref.load %arg2[%c143] : memref<144xf32, #tpu.memory_space<smem>>
    %661 = vector.broadcast %660 : f32 to vector<2x16x16xf32>
    %662 = arith.mulf %661, %647 : vector<2x16x16xf32>
    %663 = arith.addf %645, %662 : vector<2x16x16xf32>
    %cst_167 = arith.constant 0.000000e+00 : f32
    %664 = vector.broadcast %cst_167 : f32 to vector<2x16x16xf32>
    %665 = arith.maximumf %651, %664 : vector<2x16x16xf32>
    %c0_168 = arith.constant 0 : index
    %c0_169 = arith.constant 0 : index
    %c1_170 = arith.constant 1 : index
    %c1_171 = arith.constant 1 : index
    %666 = vector.load %arg7[%c0_168, %c0_169, %c1_170, %c1_171] : memref<2x4x18x18xf32, #tpu.memory_space<vmem>>, vector<2x1x16x16xf32>
    %667 = vector.shape_cast %666 : vector<2x1x16x16xf32> to vector<2x16x16xf32>
    %668 = vector.shape_cast %665 : vector<2x16x16xf32> to vector<2x1x16x16xf32>
    tpu.vector_store %arg7[%c0_168, %c0_169, %c1_170, %c1_171], %668 {strides = array<i32>} : memref<2x4x18x18xf32, #tpu.memory_space<vmem>>, vector<2x1x16x16xf32>,
    %cst_172 = arith.constant 0.000000e+00 : f32
    %669 = vector.broadcast %cst_172 : f32 to vector<2x16x16xf32>
    %670 = arith.maximumf %655, %669 : vector<2x16x16xf32>
    %c0_173 = arith.constant 0 : index
    %c1_174 = arith.constant 1 : index
    %c1_175 = arith.constant 1 : index
    %c1_176 = arith.constant 1 : index
    %671 = vector.load %arg7[%c0_173, %c1_174, %c1_175, %c1_176] : memref<2x4x18x18xf32, #tpu.memory_space<vmem>>, vector<2x1x16x16xf32>
    %672 = vector.shape_cast %671 : vector<2x1x16x16xf32> to vector<2x16x16xf32>
    %673 = vector.shape_cast %670 : vector<2x16x16xf32> to vector<2x1x16x16xf32>
    tpu.vector_store %arg7[%c0_173, %c1_174, %c1_175, %c1_176], %673 {strides = array<i32>} : memref<2x4x18x18xf32, #tpu.memory_space<vmem>>, vector<2x1x16x16xf32>,
    %cst_177 = arith.constant 0.000000e+00 : f32
    %674 = vector.broadcast %cst_177 : f32 to vector<2x16x16xf32>
    %675 = arith.maximumf %659, %674 : vector<2x16x16xf32>
    %c0_178 = arith.constant 0 : index
    %c2_179 = arith.constant 2 : index
    %c1_180 = arith.constant 1 : index
    %c1_181 = arith.constant 1 : index
    %676 = vector.load %arg7[%c0_178, %c2_179, %c1_180, %c1_181] : memref<2x4x18x18xf32, #tpu.memory_space<vmem>>, vector<2x1x16x16xf32>
    %677 = vector.shape_cast %676 : vector<2x1x16x16xf32> to vector<2x16x16xf32>
    %678 = vector.shape_cast %675 : vector<2x16x16xf32> to vector<2x1x16x16xf32>
    tpu.vector_store %arg7[%c0_178, %c2_179, %c1_180, %c1_181], %678 {strides = array<i32>} : memref<2x4x18x18xf32, #tpu.memory_space<vmem>>, vector<2x1x16x16xf32>,
    %cst_182 = arith.constant 0.000000e+00 : f32
    %679 = vector.broadcast %cst_182 : f32 to vector<2x16x16xf32>
    %680 = arith.maximumf %663, %679 : vector<2x16x16xf32>
    %c0_183 = arith.constant 0 : index
    %c3_184 = arith.constant 3 : index
    %c1_185 = arith.constant 1 : index
    %c1_186 = arith.constant 1 : index
    %681 = vector.load %arg7[%c0_183, %c3_184, %c1_185, %c1_186] : memref<2x4x18x18xf32, #tpu.memory_space<vmem>>, vector<2x1x16x16xf32>
    %682 = vector.shape_cast %681 : vector<2x1x16x16xf32> to vector<2x16x16xf32>
    %683 = vector.shape_cast %680 : vector<2x16x16xf32> to vector<2x1x16x16xf32>
    tpu.vector_store %arg7[%c0_183, %c3_184, %c1_185, %c1_186], %683 {strides = array<i32>} : memref<2x4x18x18xf32, #tpu.memory_space<vmem>>, vector<2x1x16x16xf32>,
    %c0_187 = arith.constant 0 : index
    %684 = memref.load %arg5[%c0_187] : memref<4xf32, #tpu.memory_space<smem>>
    %685 = vector.broadcast %684 : f32 to vector<2x16x16xf32>
    %c1_188 = arith.constant 1 : index
    %686 = memref.load %arg5[%c1_188] : memref<4xf32, #tpu.memory_space<smem>>
    %687 = vector.broadcast %686 : f32 to vector<2x16x16xf32>
    %c2_189 = arith.constant 2 : index
    %688 = memref.load %arg5[%c2_189] : memref<4xf32, #tpu.memory_space<smem>>
    %689 = vector.broadcast %688 : f32 to vector<2x16x16xf32>
    %c3_190 = arith.constant 3 : index
    %690 = memref.load %arg5[%c3_190] : memref<4xf32, #tpu.memory_space<smem>>
    %691 = vector.broadcast %690 : f32 to vector<2x16x16xf32>
    %c0_191 = arith.constant 0 : index
    %c0_192 = arith.constant 0 : index
    %c0_193 = arith.constant 0 : index
    %c0_194 = arith.constant 0 : index
    %692 = vector.load %arg7[%c0_191, %c0_192, %c0_193, %c0_194] : memref<2x4x18x18xf32, #tpu.memory_space<vmem>>, vector<2x1x16x16xf32>
    %693 = vector.shape_cast %692 : vector<2x1x16x16xf32> to vector<2x16x16xf32>
    %c0_195 = arith.constant 0 : index
    %694 = memref.load %arg4[%c0_195] : memref<144xf32, #tpu.memory_space<smem>>
    %695 = vector.broadcast %694 : f32 to vector<2x16x16xf32>
    %696 = arith.mulf %695, %693 : vector<2x16x16xf32>
    %697 = arith.addf %685, %696 : vector<2x16x16xf32>
    %c36_196 = arith.constant 36 : index
    %698 = memref.load %arg4[%c36_196] : memref<144xf32, #tpu.memory_space<smem>>
    %699 = vector.broadcast %698 : f32 to vector<2x16x16xf32>
    %700 = arith.mulf %699, %693 : vector<2x16x16xf32>
    %701 = arith.addf %687, %700 : vector<2x16x16xf32>
    %c72_197 = arith.constant 72 : index
    %702 = memref.load %arg4[%c72_197] : memref<144xf32, #tpu.memory_space<smem>>
    %703 = vector.broadcast %702 : f32 to vector<2x16x16xf32>
    %704 = arith.mulf %703, %693 : vector<2x16x16xf32>
    %705 = arith.addf %689, %704 : vector<2x16x16xf32>
    %c108_198 = arith.constant 108 : index
    %706 = memref.load %arg4[%c108_198] : memref<144xf32, #tpu.memory_space<smem>>
    %707 = vector.broadcast %706 : f32 to vector<2x16x16xf32>
    %708 = arith.mulf %707, %693 : vector<2x16x16xf32>
    %709 = arith.addf %691, %708 : vector<2x16x16xf32>
    %c0_199 = arith.constant 0 : index
    %c0_200 = arith.constant 0 : index
    %c0_201 = arith.constant 0 : index
    %c1_202 = arith.constant 1 : index
    %710 = vector.load %arg7[%c0_199, %c0_200, %c0_201, %c1_202] : memref<2x4x18x18xf32, #tpu.memory_space<vmem>>, vector<2x1x16x16xf32>
    %711 = vector.shape_cast %710 : vector<2x1x16x16xf32> to vector<2x16x16xf32>
    %c1_203 = arith.constant 1 : index
    %712 = memref.load %arg4[%c1_203] : memref<144xf32, #tpu.memory_space<smem>>
    %713 = vector.broadcast %712 : f32 to vector<2x16x16xf32>
    %714 = arith.mulf %713, %711 : vector<2x16x16xf32>
    %715 = arith.addf %697, %714 : vector<2x16x16xf32>
    %c37_204 = arith.constant 37 : index
    %716 = memref.load %arg4[%c37_204] : memref<144xf32, #tpu.memory_space<smem>>
    %717 = vector.broadcast %716 : f32 to vector<2x16x16xf32>
    %718 = arith.mulf %717, %711 : vector<2x16x16xf32>
    %719 = arith.addf %701, %718 : vector<2x16x16xf32>
    %c73_205 = arith.constant 73 : index
    %720 = memref.load %arg4[%c73_205] : memref<144xf32, #tpu.memory_space<smem>>
    %721 = vector.broadcast %720 : f32 to vector<2x16x16xf32>
    %722 = arith.mulf %721, %711 : vector<2x16x16xf32>
    %723 = arith.addf %705, %722 : vector<2x16x16xf32>
    %c109_206 = arith.constant 109 : index
    %724 = memref.load %arg4[%c109_206] : memref<144xf32, #tpu.memory_space<smem>>
    %725 = vector.broadcast %724 : f32 to vector<2x16x16xf32>
    %726 = arith.mulf %725, %711 : vector<2x16x16xf32>
    %727 = arith.addf %709, %726 : vector<2x16x16xf32>
    %c0_207 = arith.constant 0 : index
    %c0_208 = arith.constant 0 : index
    %c0_209 = arith.constant 0 : index
    %c2_210 = arith.constant 2 : index
    %728 = vector.load %arg7[%c0_207, %c0_208, %c0_209, %c2_210] : memref<2x4x18x18xf32, #tpu.memory_space<vmem>>, vector<2x1x16x16xf32>
    %729 = vector.shape_cast %728 : vector<2x1x16x16xf32> to vector<2x16x16xf32>
    %c2_211 = arith.constant 2 : index
    %730 = memref.load %arg4[%c2_211] : memref<144xf32, #tpu.memory_space<smem>>
    %731 = vector.broadcast %730 : f32 to vector<2x16x16xf32>
    %732 = arith.mulf %731, %729 : vector<2x16x16xf32>
    %733 = arith.addf %715, %732 : vector<2x16x16xf32>
    %c38_212 = arith.constant 38 : index
    %734 = memref.load %arg4[%c38_212] : memref<144xf32, #tpu.memory_space<smem>>
    %735 = vector.broadcast %734 : f32 to vector<2x16x16xf32>
    %736 = arith.mulf %735, %729 : vector<2x16x16xf32>
    %737 = arith.addf %719, %736 : vector<2x16x16xf32>
    %c74_213 = arith.constant 74 : index
    %738 = memref.load %arg4[%c74_213] : memref<144xf32, #tpu.memory_space<smem>>
    %739 = vector.broadcast %738 : f32 to vector<2x16x16xf32>
    %740 = arith.mulf %739, %729 : vector<2x16x16xf32>
    %741 = arith.addf %723, %740 : vector<2x16x16xf32>
    %c110_214 = arith.constant 110 : index
    %742 = memref.load %arg4[%c110_214] : memref<144xf32, #tpu.memory_space<smem>>
    %743 = vector.broadcast %742 : f32 to vector<2x16x16xf32>
    %744 = arith.mulf %743, %729 : vector<2x16x16xf32>
    %745 = arith.addf %727, %744 : vector<2x16x16xf32>
    %c0_215 = arith.constant 0 : index
    %c0_216 = arith.constant 0 : index
    %c1_217 = arith.constant 1 : index
    %c0_218 = arith.constant 0 : index
    %746 = vector.load %arg7[%c0_215, %c0_216, %c1_217, %c0_218] : memref<2x4x18x18xf32, #tpu.memory_space<vmem>>, vector<2x1x16x16xf32>
    %747 = vector.shape_cast %746 : vector<2x1x16x16xf32> to vector<2x16x16xf32>
    %c3_219 = arith.constant 3 : index
    %748 = memref.load %arg4[%c3_219] : memref<144xf32, #tpu.memory_space<smem>>
    %749 = vector.broadcast %748 : f32 to vector<2x16x16xf32>
    %750 = arith.mulf %749, %747 : vector<2x16x16xf32>
    %751 = arith.addf %733, %750 : vector<2x16x16xf32>
    %c39_220 = arith.constant 39 : index
    %752 = memref.load %arg4[%c39_220] : memref<144xf32, #tpu.memory_space<smem>>
    %753 = vector.broadcast %752 : f32 to vector<2x16x16xf32>
    %754 = arith.mulf %753, %747 : vector<2x16x16xf32>
    %755 = arith.addf %737, %754 : vector<2x16x16xf32>
    %c75_221 = arith.constant 75 : index
    %756 = memref.load %arg4[%c75_221] : memref<144xf32, #tpu.memory_space<smem>>
    %757 = vector.broadcast %756 : f32 to vector<2x16x16xf32>
    %758 = arith.mulf %757, %747 : vector<2x16x16xf32>
    %759 = arith.addf %741, %758 : vector<2x16x16xf32>
    %c111_222 = arith.constant 111 : index
    %760 = memref.load %arg4[%c111_222] : memref<144xf32, #tpu.memory_space<smem>>
    %761 = vector.broadcast %760 : f32 to vector<2x16x16xf32>
    %762 = arith.mulf %761, %747 : vector<2x16x16xf32>
    %763 = arith.addf %745, %762 : vector<2x16x16xf32>
    %c0_223 = arith.constant 0 : index
    %c0_224 = arith.constant 0 : index
    %c1_225 = arith.constant 1 : index
    %c1_226 = arith.constant 1 : index
    %764 = vector.load %arg7[%c0_223, %c0_224, %c1_225, %c1_226] : memref<2x4x18x18xf32, #tpu.memory_space<vmem>>, vector<2x1x16x16xf32>
    %765 = vector.shape_cast %764 : vector<2x1x16x16xf32> to vector<2x16x16xf32>
    %c4_227 = arith.constant 4 : index
    %766 = memref.load %arg4[%c4_227] : memref<144xf32, #tpu.memory_space<smem>>
    %767 = vector.broadcast %766 : f32 to vector<2x16x16xf32>
    %768 = arith.mulf %767, %765 : vector<2x16x16xf32>
    %769 = arith.addf %751, %768 : vector<2x16x16xf32>
    %c40_228 = arith.constant 40 : index
    %770 = memref.load %arg4[%c40_228] : memref<144xf32, #tpu.memory_space<smem>>
    %771 = vector.broadcast %770 : f32 to vector<2x16x16xf32>
    %772 = arith.mulf %771, %765 : vector<2x16x16xf32>
    %773 = arith.addf %755, %772 : vector<2x16x16xf32>
    %c76_229 = arith.constant 76 : index
    %774 = memref.load %arg4[%c76_229] : memref<144xf32, #tpu.memory_space<smem>>
    %775 = vector.broadcast %774 : f32 to vector<2x16x16xf32>
    %776 = arith.mulf %775, %765 : vector<2x16x16xf32>
    %777 = arith.addf %759, %776 : vector<2x16x16xf32>
    %c112_230 = arith.constant 112 : index
    %778 = memref.load %arg4[%c112_230] : memref<144xf32, #tpu.memory_space<smem>>
    %779 = vector.broadcast %778 : f32 to vector<2x16x16xf32>
    %780 = arith.mulf %779, %765 : vector<2x16x16xf32>
    %781 = arith.addf %763, %780 : vector<2x16x16xf32>
    %c0_231 = arith.constant 0 : index
    %c0_232 = arith.constant 0 : index
    %c1_233 = arith.constant 1 : index
    %c2_234 = arith.constant 2 : index
    %782 = vector.load %arg7[%c0_231, %c0_232, %c1_233, %c2_234] : memref<2x4x18x18xf32, #tpu.memory_space<vmem>>, vector<2x1x16x16xf32>
    %783 = vector.shape_cast %782 : vector<2x1x16x16xf32> to vector<2x16x16xf32>
    %c5_235 = arith.constant 5 : index
    %784 = memref.load %arg4[%c5_235] : memref<144xf32, #tpu.memory_space<smem>>
    %785 = vector.broadcast %784 : f32 to vector<2x16x16xf32>
    %786 = arith.mulf %785, %783 : vector<2x16x16xf32>
    %787 = arith.addf %769, %786 : vector<2x16x16xf32>
    %c41_236 = arith.constant 41 : index
    %788 = memref.load %arg4[%c41_236] : memref<144xf32, #tpu.memory_space<smem>>
    %789 = vector.broadcast %788 : f32 to vector<2x16x16xf32>
    %790 = arith.mulf %789, %783 : vector<2x16x16xf32>
    %791 = arith.addf %773, %790 : vector<2x16x16xf32>
    %c77_237 = arith.constant 77 : index
    %792 = memref.load %arg4[%c77_237] : memref<144xf32, #tpu.memory_space<smem>>
    %793 = vector.broadcast %792 : f32 to vector<2x16x16xf32>
    %794 = arith.mulf %793, %783 : vector<2x16x16xf32>
    %795 = arith.addf %777, %794 : vector<2x16x16xf32>
    %c113_238 = arith.constant 113 : index
    %796 = memref.load %arg4[%c113_238] : memref<144xf32, #tpu.memory_space<smem>>
    %797 = vector.broadcast %796 : f32 to vector<2x16x16xf32>
    %798 = arith.mulf %797, %783 : vector<2x16x16xf32>
    %799 = arith.addf %781, %798 : vector<2x16x16xf32>
    %c0_239 = arith.constant 0 : index
    %c0_240 = arith.constant 0 : index
    %c2_241 = arith.constant 2 : index
    %c0_242 = arith.constant 0 : index
    %800 = vector.load %arg7[%c0_239, %c0_240, %c2_241, %c0_242] : memref<2x4x18x18xf32, #tpu.memory_space<vmem>>, vector<2x1x16x16xf32>
    %801 = vector.shape_cast %800 : vector<2x1x16x16xf32> to vector<2x16x16xf32>
    %c6_243 = arith.constant 6 : index
    %802 = memref.load %arg4[%c6_243] : memref<144xf32, #tpu.memory_space<smem>>
    %803 = vector.broadcast %802 : f32 to vector<2x16x16xf32>
    %804 = arith.mulf %803, %801 : vector<2x16x16xf32>
    %805 = arith.addf %787, %804 : vector<2x16x16xf32>
    %c42_244 = arith.constant 42 : index
    %806 = memref.load %arg4[%c42_244] : memref<144xf32, #tpu.memory_space<smem>>
    %807 = vector.broadcast %806 : f32 to vector<2x16x16xf32>
    %808 = arith.mulf %807, %801 : vector<2x16x16xf32>
    %809 = arith.addf %791, %808 : vector<2x16x16xf32>
    %c78_245 = arith.constant 78 : index
    %810 = memref.load %arg4[%c78_245] : memref<144xf32, #tpu.memory_space<smem>>
    %811 = vector.broadcast %810 : f32 to vector<2x16x16xf32>
    %812 = arith.mulf %811, %801 : vector<2x16x16xf32>
    %813 = arith.addf %795, %812 : vector<2x16x16xf32>
    %c114_246 = arith.constant 114 : index
    %814 = memref.load %arg4[%c114_246] : memref<144xf32, #tpu.memory_space<smem>>
    %815 = vector.broadcast %814 : f32 to vector<2x16x16xf32>
    %816 = arith.mulf %815, %801 : vector<2x16x16xf32>
    %817 = arith.addf %799, %816 : vector<2x16x16xf32>
    %c0_247 = arith.constant 0 : index
    %c0_248 = arith.constant 0 : index
    %c2_249 = arith.constant 2 : index
    %c1_250 = arith.constant 1 : index
    %818 = vector.load %arg7[%c0_247, %c0_248, %c2_249, %c1_250] : memref<2x4x18x18xf32, #tpu.memory_space<vmem>>, vector<2x1x16x16xf32>
    %819 = vector.shape_cast %818 : vector<2x1x16x16xf32> to vector<2x16x16xf32>
    %c7_251 = arith.constant 7 : index
    %820 = memref.load %arg4[%c7_251] : memref<144xf32, #tpu.memory_space<smem>>
    %821 = vector.broadcast %820 : f32 to vector<2x16x16xf32>
    %822 = arith.mulf %821, %819 : vector<2x16x16xf32>
    %823 = arith.addf %805, %822 : vector<2x16x16xf32>
    %c43_252 = arith.constant 43 : index
    %824 = memref.load %arg4[%c43_252] : memref<144xf32, #tpu.memory_space<smem>>
    %825 = vector.broadcast %824 : f32 to vector<2x16x16xf32>
    %826 = arith.mulf %825, %819 : vector<2x16x16xf32>
    %827 = arith.addf %809, %826 : vector<2x16x16xf32>
    %c79_253 = arith.constant 79 : index
    %828 = memref.load %arg4[%c79_253] : memref<144xf32, #tpu.memory_space<smem>>
    %829 = vector.broadcast %828 : f32 to vector<2x16x16xf32>
    %830 = arith.mulf %829, %819 : vector<2x16x16xf32>
    %831 = arith.addf %813, %830 : vector<2x16x16xf32>
    %c115_254 = arith.constant 115 : index
    %832 = memref.load %arg4[%c115_254] : memref<144xf32, #tpu.memory_space<smem>>
    %833 = vector.broadcast %832 : f32 to vector<2x16x16xf32>
    %834 = arith.mulf %833, %819 : vector<2x16x16xf32>
    %835 = arith.addf %817, %834 : vector<2x16x16xf32>
    %c0_255 = arith.constant 0 : index
    %c0_256 = arith.constant 0 : index
    %c2_257 = arith.constant 2 : index
    %c2_258 = arith.constant 2 : index
    %836 = vector.load %arg7[%c0_255, %c0_256, %c2_257, %c2_258] : memref<2x4x18x18xf32, #tpu.memory_space<vmem>>, vector<2x1x16x16xf32>
    %837 = vector.shape_cast %836 : vector<2x1x16x16xf32> to vector<2x16x16xf32>
    %c8_259 = arith.constant 8 : index
    %838 = memref.load %arg4[%c8_259] : memref<144xf32, #tpu.memory_space<smem>>
    %839 = vector.broadcast %838 : f32 to vector<2x16x16xf32>
    %840 = arith.mulf %839, %837 : vector<2x16x16xf32>
    %841 = arith.addf %823, %840 : vector<2x16x16xf32>
    %c44_260 = arith.constant 44 : index
    %842 = memref.load %arg4[%c44_260] : memref<144xf32, #tpu.memory_space<smem>>
    %843 = vector.broadcast %842 : f32 to vector<2x16x16xf32>
    %844 = arith.mulf %843, %837 : vector<2x16x16xf32>
    %845 = arith.addf %827, %844 : vector<2x16x16xf32>
    %c80_261 = arith.constant 80 : index
    %846 = memref.load %arg4[%c80_261] : memref<144xf32, #tpu.memory_space<smem>>
    %847 = vector.broadcast %846 : f32 to vector<2x16x16xf32>
    %848 = arith.mulf %847, %837 : vector<2x16x16xf32>
    %849 = arith.addf %831, %848 : vector<2x16x16xf32>
    %c116_262 = arith.constant 116 : index
    %850 = memref.load %arg4[%c116_262] : memref<144xf32, #tpu.memory_space<smem>>
    %851 = vector.broadcast %850 : f32 to vector<2x16x16xf32>
    %852 = arith.mulf %851, %837 : vector<2x16x16xf32>
    %853 = arith.addf %835, %852 : vector<2x16x16xf32>
    %c0_263 = arith.constant 0 : index
    %c1_264 = arith.constant 1 : index
    %c0_265 = arith.constant 0 : index
    %c0_266 = arith.constant 0 : index
    %854 = vector.load %arg7[%c0_263, %c1_264, %c0_265, %c0_266] : memref<2x4x18x18xf32, #tpu.memory_space<vmem>>, vector<2x1x16x16xf32>
    %855 = vector.shape_cast %854 : vector<2x1x16x16xf32> to vector<2x16x16xf32>
    %c9_267 = arith.constant 9 : index
    %856 = memref.load %arg4[%c9_267] : memref<144xf32, #tpu.memory_space<smem>>
    %857 = vector.broadcast %856 : f32 to vector<2x16x16xf32>
    %858 = arith.mulf %857, %855 : vector<2x16x16xf32>
    %859 = arith.addf %841, %858 : vector<2x16x16xf32>
    %c45_268 = arith.constant 45 : index
    %860 = memref.load %arg4[%c45_268] : memref<144xf32, #tpu.memory_space<smem>>
    %861 = vector.broadcast %860 : f32 to vector<2x16x16xf32>
    %862 = arith.mulf %861, %855 : vector<2x16x16xf32>
    %863 = arith.addf %845, %862 : vector<2x16x16xf32>
    %c81_269 = arith.constant 81 : index
    %864 = memref.load %arg4[%c81_269] : memref<144xf32, #tpu.memory_space<smem>>
    %865 = vector.broadcast %864 : f32 to vector<2x16x16xf32>
    %866 = arith.mulf %865, %855 : vector<2x16x16xf32>
    %867 = arith.addf %849, %866 : vector<2x16x16xf32>
    %c117_270 = arith.constant 117 : index
    %868 = memref.load %arg4[%c117_270] : memref<144xf32, #tpu.memory_space<smem>>
    %869 = vector.broadcast %868 : f32 to vector<2x16x16xf32>
    %870 = arith.mulf %869, %855 : vector<2x16x16xf32>
    %871 = arith.addf %853, %870 : vector<2x16x16xf32>
    %c0_271 = arith.constant 0 : index
    %c1_272 = arith.constant 1 : index
    %c0_273 = arith.constant 0 : index
    %c1_274 = arith.constant 1 : index
    %872 = vector.load %arg7[%c0_271, %c1_272, %c0_273, %c1_274] : memref<2x4x18x18xf32, #tpu.memory_space<vmem>>, vector<2x1x16x16xf32>
    %873 = vector.shape_cast %872 : vector<2x1x16x16xf32> to vector<2x16x16xf32>
    %c10_275 = arith.constant 10 : index
    %874 = memref.load %arg4[%c10_275] : memref<144xf32, #tpu.memory_space<smem>>
    %875 = vector.broadcast %874 : f32 to vector<2x16x16xf32>
    %876 = arith.mulf %875, %873 : vector<2x16x16xf32>
    %877 = arith.addf %859, %876 : vector<2x16x16xf32>
    %c46_276 = arith.constant 46 : index
    %878 = memref.load %arg4[%c46_276] : memref<144xf32, #tpu.memory_space<smem>>
    %879 = vector.broadcast %878 : f32 to vector<2x16x16xf32>
    %880 = arith.mulf %879, %873 : vector<2x16x16xf32>
    %881 = arith.addf %863, %880 : vector<2x16x16xf32>
    %c82_277 = arith.constant 82 : index
    %882 = memref.load %arg4[%c82_277] : memref<144xf32, #tpu.memory_space<smem>>
    %883 = vector.broadcast %882 : f32 to vector<2x16x16xf32>
    %884 = arith.mulf %883, %873 : vector<2x16x16xf32>
    %885 = arith.addf %867, %884 : vector<2x16x16xf32>
    %c118_278 = arith.constant 118 : index
    %886 = memref.load %arg4[%c118_278] : memref<144xf32, #tpu.memory_space<smem>>
    %887 = vector.broadcast %886 : f32 to vector<2x16x16xf32>
    %888 = arith.mulf %887, %873 : vector<2x16x16xf32>
    %889 = arith.addf %871, %888 : vector<2x16x16xf32>
    %c0_279 = arith.constant 0 : index
    %c1_280 = arith.constant 1 : index
    %c0_281 = arith.constant 0 : index
    %c2_282 = arith.constant 2 : index
    %890 = vector.load %arg7[%c0_279, %c1_280, %c0_281, %c2_282] : memref<2x4x18x18xf32, #tpu.memory_space<vmem>>, vector<2x1x16x16xf32>
    %891 = vector.shape_cast %890 : vector<2x1x16x16xf32> to vector<2x16x16xf32>
    %c11_283 = arith.constant 11 : index
    %892 = memref.load %arg4[%c11_283] : memref<144xf32, #tpu.memory_space<smem>>
    %893 = vector.broadcast %892 : f32 to vector<2x16x16xf32>
    %894 = arith.mulf %893, %891 : vector<2x16x16xf32>
    %895 = arith.addf %877, %894 : vector<2x16x16xf32>
    %c47_284 = arith.constant 47 : index
    %896 = memref.load %arg4[%c47_284] : memref<144xf32, #tpu.memory_space<smem>>
    %897 = vector.broadcast %896 : f32 to vector<2x16x16xf32>
    %898 = arith.mulf %897, %891 : vector<2x16x16xf32>
    %899 = arith.addf %881, %898 : vector<2x16x16xf32>
    %c83_285 = arith.constant 83 : index
    %900 = memref.load %arg4[%c83_285] : memref<144xf32, #tpu.memory_space<smem>>
    %901 = vector.broadcast %900 : f32 to vector<2x16x16xf32>
    %902 = arith.mulf %901, %891 : vector<2x16x16xf32>
    %903 = arith.addf %885, %902 : vector<2x16x16xf32>
    %c119_286 = arith.constant 119 : index
    %904 = memref.load %arg4[%c119_286] : memref<144xf32, #tpu.memory_space<smem>>
    %905 = vector.broadcast %904 : f32 to vector<2x16x16xf32>
    %906 = arith.mulf %905, %891 : vector<2x16x16xf32>
    %907 = arith.addf %889, %906 : vector<2x16x16xf32>
    %c0_287 = arith.constant 0 : index
    %c1_288 = arith.constant 1 : index
    %c1_289 = arith.constant 1 : index
    %c0_290 = arith.constant 0 : index
    %908 = vector.load %arg7[%c0_287, %c1_288, %c1_289, %c0_290] : memref<2x4x18x18xf32, #tpu.memory_space<vmem>>, vector<2x1x16x16xf32>
    %909 = vector.shape_cast %908 : vector<2x1x16x16xf32> to vector<2x16x16xf32>
    %c12_291 = arith.constant 12 : index
    %910 = memref.load %arg4[%c12_291] : memref<144xf32, #tpu.memory_space<smem>>
    %911 = vector.broadcast %910 : f32 to vector<2x16x16xf32>
    %912 = arith.mulf %911, %909 : vector<2x16x16xf32>
    %913 = arith.addf %895, %912 : vector<2x16x16xf32>
    %c48_292 = arith.constant 48 : index
    %914 = memref.load %arg4[%c48_292] : memref<144xf32, #tpu.memory_space<smem>>
    %915 = vector.broadcast %914 : f32 to vector<2x16x16xf32>
    %916 = arith.mulf %915, %909 : vector<2x16x16xf32>
    %917 = arith.addf %899, %916 : vector<2x16x16xf32>
    %c84_293 = arith.constant 84 : index
    %918 = memref.load %arg4[%c84_293] : memref<144xf32, #tpu.memory_space<smem>>
    %919 = vector.broadcast %918 : f32 to vector<2x16x16xf32>
    %920 = arith.mulf %919, %909 : vector<2x16x16xf32>
    %921 = arith.addf %903, %920 : vector<2x16x16xf32>
    %c120_294 = arith.constant 120 : index
    %922 = memref.load %arg4[%c120_294] : memref<144xf32, #tpu.memory_space<smem>>
    %923 = vector.broadcast %922 : f32 to vector<2x16x16xf32>
    %924 = arith.mulf %923, %909 : vector<2x16x16xf32>
    %925 = arith.addf %907, %924 : vector<2x16x16xf32>
    %c0_295 = arith.constant 0 : index
    %c1_296 = arith.constant 1 : index
    %c1_297 = arith.constant 1 : index
    %c1_298 = arith.constant 1 : index
    %926 = vector.load %arg7[%c0_295, %c1_296, %c1_297, %c1_298] : memref<2x4x18x18xf32, #tpu.memory_space<vmem>>, vector<2x1x16x16xf32>
    %927 = vector.shape_cast %926 : vector<2x1x16x16xf32> to vector<2x16x16xf32>
    %c13_299 = arith.constant 13 : index
    %928 = memref.load %arg4[%c13_299] : memref<144xf32, #tpu.memory_space<smem>>
    %929 = vector.broadcast %928 : f32 to vector<2x16x16xf32>
    %930 = arith.mulf %929, %927 : vector<2x16x16xf32>
    %931 = arith.addf %913, %930 : vector<2x16x16xf32>
    %c49_300 = arith.constant 49 : index
    %932 = memref.load %arg4[%c49_300] : memref<144xf32, #tpu.memory_space<smem>>
    %933 = vector.broadcast %932 : f32 to vector<2x16x16xf32>
    %934 = arith.mulf %933, %927 : vector<2x16x16xf32>
    %935 = arith.addf %917, %934 : vector<2x16x16xf32>
    %c85_301 = arith.constant 85 : index
    %936 = memref.load %arg4[%c85_301] : memref<144xf32, #tpu.memory_space<smem>>
    %937 = vector.broadcast %936 : f32 to vector<2x16x16xf32>
    %938 = arith.mulf %937, %927 : vector<2x16x16xf32>
    %939 = arith.addf %921, %938 : vector<2x16x16xf32>
    %c121_302 = arith.constant 121 : index
    %940 = memref.load %arg4[%c121_302] : memref<144xf32, #tpu.memory_space<smem>>
    %941 = vector.broadcast %940 : f32 to vector<2x16x16xf32>
    %942 = arith.mulf %941, %927 : vector<2x16x16xf32>
    %943 = arith.addf %925, %942 : vector<2x16x16xf32>
    %c0_303 = arith.constant 0 : index
    %c1_304 = arith.constant 1 : index
    %c1_305 = arith.constant 1 : index
    %c2_306 = arith.constant 2 : index
    %944 = vector.load %arg7[%c0_303, %c1_304, %c1_305, %c2_306] : memref<2x4x18x18xf32, #tpu.memory_space<vmem>>, vector<2x1x16x16xf32>
    %945 = vector.shape_cast %944 : vector<2x1x16x16xf32> to vector<2x16x16xf32>
    %c14_307 = arith.constant 14 : index
    %946 = memref.load %arg4[%c14_307] : memref<144xf32, #tpu.memory_space<smem>>
    %947 = vector.broadcast %946 : f32 to vector<2x16x16xf32>
    %948 = arith.mulf %947, %945 : vector<2x16x16xf32>
    %949 = arith.addf %931, %948 : vector<2x16x16xf32>
    %c50_308 = arith.constant 50 : index
    %950 = memref.load %arg4[%c50_308] : memref<144xf32, #tpu.memory_space<smem>>
    %951 = vector.broadcast %950 : f32 to vector<2x16x16xf32>
    %952 = arith.mulf %951, %945 : vector<2x16x16xf32>
    %953 = arith.addf %935, %952 : vector<2x16x16xf32>
    %c86_309 = arith.constant 86 : index
    %954 = memref.load %arg4[%c86_309] : memref<144xf32, #tpu.memory_space<smem>>
    %955 = vector.broadcast %954 : f32 to vector<2x16x16xf32>
    %956 = arith.mulf %955, %945 : vector<2x16x16xf32>
    %957 = arith.addf %939, %956 : vector<2x16x16xf32>
    %c122_310 = arith.constant 122 : index
    %958 = memref.load %arg4[%c122_310] : memref<144xf32, #tpu.memory_space<smem>>
    %959 = vector.broadcast %958 : f32 to vector<2x16x16xf32>
    %960 = arith.mulf %959, %945 : vector<2x16x16xf32>
    %961 = arith.addf %943, %960 : vector<2x16x16xf32>
    %c0_311 = arith.constant 0 : index
    %c1_312 = arith.constant 1 : index
    %c2_313 = arith.constant 2 : index
    %c0_314 = arith.constant 0 : index
    %962 = vector.load %arg7[%c0_311, %c1_312, %c2_313, %c0_314] : memref<2x4x18x18xf32, #tpu.memory_space<vmem>>, vector<2x1x16x16xf32>
    %963 = vector.shape_cast %962 : vector<2x1x16x16xf32> to vector<2x16x16xf32>
    %c15_315 = arith.constant 15 : index
    %964 = memref.load %arg4[%c15_315] : memref<144xf32, #tpu.memory_space<smem>>
    %965 = vector.broadcast %964 : f32 to vector<2x16x16xf32>
    %966 = arith.mulf %965, %963 : vector<2x16x16xf32>
    %967 = arith.addf %949, %966 : vector<2x16x16xf32>
    %c51_316 = arith.constant 51 : index
    %968 = memref.load %arg4[%c51_316] : memref<144xf32, #tpu.memory_space<smem>>
    %969 = vector.broadcast %968 : f32 to vector<2x16x16xf32>
    %970 = arith.mulf %969, %963 : vector<2x16x16xf32>
    %971 = arith.addf %953, %970 : vector<2x16x16xf32>
    %c87_317 = arith.constant 87 : index
    %972 = memref.load %arg4[%c87_317] : memref<144xf32, #tpu.memory_space<smem>>
    %973 = vector.broadcast %972 : f32 to vector<2x16x16xf32>
    %974 = arith.mulf %973, %963 : vector<2x16x16xf32>
    %975 = arith.addf %957, %974 : vector<2x16x16xf32>
    %c123_318 = arith.constant 123 : index
    %976 = memref.load %arg4[%c123_318] : memref<144xf32, #tpu.memory_space<smem>>
    %977 = vector.broadcast %976 : f32 to vector<2x16x16xf32>
    %978 = arith.mulf %977, %963 : vector<2x16x16xf32>
    %979 = arith.addf %961, %978 : vector<2x16x16xf32>
    %c0_319 = arith.constant 0 : index
    %c1_320 = arith.constant 1 : index
    %c2_321 = arith.constant 2 : index
    %c1_322 = arith.constant 1 : index
    %980 = vector.load %arg7[%c0_319, %c1_320, %c2_321, %c1_322] : memref<2x4x18x18xf32, #tpu.memory_space<vmem>>, vector<2x1x16x16xf32>
    %981 = vector.shape_cast %980 : vector<2x1x16x16xf32> to vector<2x16x16xf32>
    %c16_323 = arith.constant 16 : index
    %982 = memref.load %arg4[%c16_323] : memref<144xf32, #tpu.memory_space<smem>>
    %983 = vector.broadcast %982 : f32 to vector<2x16x16xf32>
    %984 = arith.mulf %983, %981 : vector<2x16x16xf32>
    %985 = arith.addf %967, %984 : vector<2x16x16xf32>
    %c52_324 = arith.constant 52 : index
    %986 = memref.load %arg4[%c52_324] : memref<144xf32, #tpu.memory_space<smem>>
    %987 = vector.broadcast %986 : f32 to vector<2x16x16xf32>
    %988 = arith.mulf %987, %981 : vector<2x16x16xf32>
    %989 = arith.addf %971, %988 : vector<2x16x16xf32>
    %c88_325 = arith.constant 88 : index
    %990 = memref.load %arg4[%c88_325] : memref<144xf32, #tpu.memory_space<smem>>
    %991 = vector.broadcast %990 : f32 to vector<2x16x16xf32>
    %992 = arith.mulf %991, %981 : vector<2x16x16xf32>
    %993 = arith.addf %975, %992 : vector<2x16x16xf32>
    %c124_326 = arith.constant 124 : index
    %994 = memref.load %arg4[%c124_326] : memref<144xf32, #tpu.memory_space<smem>>
    %995 = vector.broadcast %994 : f32 to vector<2x16x16xf32>
    %996 = arith.mulf %995, %981 : vector<2x16x16xf32>
    %997 = arith.addf %979, %996 : vector<2x16x16xf32>
    %c0_327 = arith.constant 0 : index
    %c1_328 = arith.constant 1 : index
    %c2_329 = arith.constant 2 : index
    %c2_330 = arith.constant 2 : index
    %998 = vector.load %arg7[%c0_327, %c1_328, %c2_329, %c2_330] : memref<2x4x18x18xf32, #tpu.memory_space<vmem>>, vector<2x1x16x16xf32>
    %999 = vector.shape_cast %998 : vector<2x1x16x16xf32> to vector<2x16x16xf32>
    %c17_331 = arith.constant 17 : index
    %1000 = memref.load %arg4[%c17_331] : memref<144xf32, #tpu.memory_space<smem>>
    %1001 = vector.broadcast %1000 : f32 to vector<2x16x16xf32>
    %1002 = arith.mulf %1001, %999 : vector<2x16x16xf32>
    %1003 = arith.addf %985, %1002 : vector<2x16x16xf32>
    %c53_332 = arith.constant 53 : index
    %1004 = memref.load %arg4[%c53_332] : memref<144xf32, #tpu.memory_space<smem>>
    %1005 = vector.broadcast %1004 : f32 to vector<2x16x16xf32>
    %1006 = arith.mulf %1005, %999 : vector<2x16x16xf32>
    %1007 = arith.addf %989, %1006 : vector<2x16x16xf32>
    %c89_333 = arith.constant 89 : index
    %1008 = memref.load %arg4[%c89_333] : memref<144xf32, #tpu.memory_space<smem>>
    %1009 = vector.broadcast %1008 : f32 to vector<2x16x16xf32>
    %1010 = arith.mulf %1009, %999 : vector<2x16x16xf32>
    %1011 = arith.addf %993, %1010 : vector<2x16x16xf32>
    %c125_334 = arith.constant 125 : index
    %1012 = memref.load %arg4[%c125_334] : memref<144xf32, #tpu.memory_space<smem>>
    %1013 = vector.broadcast %1012 : f32 to vector<2x16x16xf32>
    %1014 = arith.mulf %1013, %999 : vector<2x16x16xf32>
    %1015 = arith.addf %997, %1014 : vector<2x16x16xf32>
    %c0_335 = arith.constant 0 : index
    %c2_336 = arith.constant 2 : index
    %c0_337 = arith.constant 0 : index
    %c0_338 = arith.constant 0 : index
    %1016 = vector.load %arg7[%c0_335, %c2_336, %c0_337, %c0_338] : memref<2x4x18x18xf32, #tpu.memory_space<vmem>>, vector<2x1x16x16xf32>
    %1017 = vector.shape_cast %1016 : vector<2x1x16x16xf32> to vector<2x16x16xf32>
    %c18_339 = arith.constant 18 : index
    %1018 = memref.load %arg4[%c18_339] : memref<144xf32, #tpu.memory_space<smem>>
    %1019 = vector.broadcast %1018 : f32 to vector<2x16x16xf32>
    %1020 = arith.mulf %1019, %1017 : vector<2x16x16xf32>
    %1021 = arith.addf %1003, %1020 : vector<2x16x16xf32>
    %c54_340 = arith.constant 54 : index
    %1022 = memref.load %arg4[%c54_340] : memref<144xf32, #tpu.memory_space<smem>>
    %1023 = vector.broadcast %1022 : f32 to vector<2x16x16xf32>
    %1024 = arith.mulf %1023, %1017 : vector<2x16x16xf32>
    %1025 = arith.addf %1007, %1024 : vector<2x16x16xf32>
    %c90_341 = arith.constant 90 : index
    %1026 = memref.load %arg4[%c90_341] : memref<144xf32, #tpu.memory_space<smem>>
    %1027 = vector.broadcast %1026 : f32 to vector<2x16x16xf32>
    %1028 = arith.mulf %1027, %1017 : vector<2x16x16xf32>
    %1029 = arith.addf %1011, %1028 : vector<2x16x16xf32>
    %c126_342 = arith.constant 126 : index
    %1030 = memref.load %arg4[%c126_342] : memref<144xf32, #tpu.memory_space<smem>>
    %1031 = vector.broadcast %1030 : f32 to vector<2x16x16xf32>
    %1032 = arith.mulf %1031, %1017 : vector<2x16x16xf32>
    %1033 = arith.addf %1015, %1032 : vector<2x16x16xf32>
    %c0_343 = arith.constant 0 : index
    %c2_344 = arith.constant 2 : index
    %c0_345 = arith.constant 0 : index
    %c1_346 = arith.constant 1 : index
    %1034 = vector.load %arg7[%c0_343, %c2_344, %c0_345, %c1_346] : memref<2x4x18x18xf32, #tpu.memory_space<vmem>>, vector<2x1x16x16xf32>
    %1035 = vector.shape_cast %1034 : vector<2x1x16x16xf32> to vector<2x16x16xf32>
    %c19_347 = arith.constant 19 : index
    %1036 = memref.load %arg4[%c19_347] : memref<144xf32, #tpu.memory_space<smem>>
    %1037 = vector.broadcast %1036 : f32 to vector<2x16x16xf32>
    %1038 = arith.mulf %1037, %1035 : vector<2x16x16xf32>
    %1039 = arith.addf %1021, %1038 : vector<2x16x16xf32>
    %c55_348 = arith.constant 55 : index
    %1040 = memref.load %arg4[%c55_348] : memref<144xf32, #tpu.memory_space<smem>>
    %1041 = vector.broadcast %1040 : f32 to vector<2x16x16xf32>
    %1042 = arith.mulf %1041, %1035 : vector<2x16x16xf32>
    %1043 = arith.addf %1025, %1042 : vector<2x16x16xf32>
    %c91_349 = arith.constant 91 : index
    %1044 = memref.load %arg4[%c91_349] : memref<144xf32, #tpu.memory_space<smem>>
    %1045 = vector.broadcast %1044 : f32 to vector<2x16x16xf32>
    %1046 = arith.mulf %1045, %1035 : vector<2x16x16xf32>
    %1047 = arith.addf %1029, %1046 : vector<2x16x16xf32>
    %c127_350 = arith.constant 127 : index
    %1048 = memref.load %arg4[%c127_350] : memref<144xf32, #tpu.memory_space<smem>>
    %1049 = vector.broadcast %1048 : f32 to vector<2x16x16xf32>
    %1050 = arith.mulf %1049, %1035 : vector<2x16x16xf32>
    %1051 = arith.addf %1033, %1050 : vector<2x16x16xf32>
    %c0_351 = arith.constant 0 : index
    %c2_352 = arith.constant 2 : index
    %c0_353 = arith.constant 0 : index
    %c2_354 = arith.constant 2 : index
    %1052 = vector.load %arg7[%c0_351, %c2_352, %c0_353, %c2_354] : memref<2x4x18x18xf32, #tpu.memory_space<vmem>>, vector<2x1x16x16xf32>
    %1053 = vector.shape_cast %1052 : vector<2x1x16x16xf32> to vector<2x16x16xf32>
    %c20_355 = arith.constant 20 : index
    %1054 = memref.load %arg4[%c20_355] : memref<144xf32, #tpu.memory_space<smem>>
    %1055 = vector.broadcast %1054 : f32 to vector<2x16x16xf32>
    %1056 = arith.mulf %1055, %1053 : vector<2x16x16xf32>
    %1057 = arith.addf %1039, %1056 : vector<2x16x16xf32>
    %c56_356 = arith.constant 56 : index
    %1058 = memref.load %arg4[%c56_356] : memref<144xf32, #tpu.memory_space<smem>>
    %1059 = vector.broadcast %1058 : f32 to vector<2x16x16xf32>
    %1060 = arith.mulf %1059, %1053 : vector<2x16x16xf32>
    %1061 = arith.addf %1043, %1060 : vector<2x16x16xf32>
    %c92_357 = arith.constant 92 : index
    %1062 = memref.load %arg4[%c92_357] : memref<144xf32, #tpu.memory_space<smem>>
    %1063 = vector.broadcast %1062 : f32 to vector<2x16x16xf32>
    %1064 = arith.mulf %1063, %1053 : vector<2x16x16xf32>
    %1065 = arith.addf %1047, %1064 : vector<2x16x16xf32>
    %c128_358 = arith.constant 128 : index
    %1066 = memref.load %arg4[%c128_358] : memref<144xf32, #tpu.memory_space<smem>>
    %1067 = vector.broadcast %1066 : f32 to vector<2x16x16xf32>
    %1068 = arith.mulf %1067, %1053 : vector<2x16x16xf32>
    %1069 = arith.addf %1051, %1068 : vector<2x16x16xf32>
    %c0_359 = arith.constant 0 : index
    %c2_360 = arith.constant 2 : index
    %c1_361 = arith.constant 1 : index
    %c0_362 = arith.constant 0 : index
    %1070 = vector.load %arg7[%c0_359, %c2_360, %c1_361, %c0_362] : memref<2x4x18x18xf32, #tpu.memory_space<vmem>>, vector<2x1x16x16xf32>
    %1071 = vector.shape_cast %1070 : vector<2x1x16x16xf32> to vector<2x16x16xf32>
    %c21_363 = arith.constant 21 : index
    %1072 = memref.load %arg4[%c21_363] : memref<144xf32, #tpu.memory_space<smem>>
    %1073 = vector.broadcast %1072 : f32 to vector<2x16x16xf32>
    %1074 = arith.mulf %1073, %1071 : vector<2x16x16xf32>
    %1075 = arith.addf %1057, %1074 : vector<2x16x16xf32>
    %c57_364 = arith.constant 57 : index
    %1076 = memref.load %arg4[%c57_364] : memref<144xf32, #tpu.memory_space<smem>>
    %1077 = vector.broadcast %1076 : f32 to vector<2x16x16xf32>
    %1078 = arith.mulf %1077, %1071 : vector<2x16x16xf32>
    %1079 = arith.addf %1061, %1078 : vector<2x16x16xf32>
    %c93_365 = arith.constant 93 : index
    %1080 = memref.load %arg4[%c93_365] : memref<144xf32, #tpu.memory_space<smem>>
    %1081 = vector.broadcast %1080 : f32 to vector<2x16x16xf32>
    %1082 = arith.mulf %1081, %1071 : vector<2x16x16xf32>
    %1083 = arith.addf %1065, %1082 : vector<2x16x16xf32>
    %c129_366 = arith.constant 129 : index
    %1084 = memref.load %arg4[%c129_366] : memref<144xf32, #tpu.memory_space<smem>>
    %1085 = vector.broadcast %1084 : f32 to vector<2x16x16xf32>
    %1086 = arith.mulf %1085, %1071 : vector<2x16x16xf32>
    %1087 = arith.addf %1069, %1086 : vector<2x16x16xf32>
    %c0_367 = arith.constant 0 : index
    %c2_368 = arith.constant 2 : index
    %c1_369 = arith.constant 1 : index
    %c1_370 = arith.constant 1 : index
    %1088 = vector.load %arg7[%c0_367, %c2_368, %c1_369, %c1_370] : memref<2x4x18x18xf32, #tpu.memory_space<vmem>>, vector<2x1x16x16xf32>
    %1089 = vector.shape_cast %1088 : vector<2x1x16x16xf32> to vector<2x16x16xf32>
    %c22_371 = arith.constant 22 : index
    %1090 = memref.load %arg4[%c22_371] : memref<144xf32, #tpu.memory_space<smem>>
    %1091 = vector.broadcast %1090 : f32 to vector<2x16x16xf32>
    %1092 = arith.mulf %1091, %1089 : vector<2x16x16xf32>
    %1093 = arith.addf %1075, %1092 : vector<2x16x16xf32>
    %c58_372 = arith.constant 58 : index
    %1094 = memref.load %arg4[%c58_372] : memref<144xf32, #tpu.memory_space<smem>>
    %1095 = vector.broadcast %1094 : f32 to vector<2x16x16xf32>
    %1096 = arith.mulf %1095, %1089 : vector<2x16x16xf32>
    %1097 = arith.addf %1079, %1096 : vector<2x16x16xf32>
    %c94_373 = arith.constant 94 : index
    %1098 = memref.load %arg4[%c94_373] : memref<144xf32, #tpu.memory_space<smem>>
    %1099 = vector.broadcast %1098 : f32 to vector<2x16x16xf32>
    %1100 = arith.mulf %1099, %1089 : vector<2x16x16xf32>
    %1101 = arith.addf %1083, %1100 : vector<2x16x16xf32>
    %c130_374 = arith.constant 130 : index
    %1102 = memref.load %arg4[%c130_374] : memref<144xf32, #tpu.memory_space<smem>>
    %1103 = vector.broadcast %1102 : f32 to vector<2x16x16xf32>
    %1104 = arith.mulf %1103, %1089 : vector<2x16x16xf32>
    %1105 = arith.addf %1087, %1104 : vector<2x16x16xf32>
    %c0_375 = arith.constant 0 : index
    %c2_376 = arith.constant 2 : index
    %c1_377 = arith.constant 1 : index
    %c2_378 = arith.constant 2 : index
    %1106 = vector.load %arg7[%c0_375, %c2_376, %c1_377, %c2_378] : memref<2x4x18x18xf32, #tpu.memory_space<vmem>>, vector<2x1x16x16xf32>
    %1107 = vector.shape_cast %1106 : vector<2x1x16x16xf32> to vector<2x16x16xf32>
    %c23_379 = arith.constant 23 : index
    %1108 = memref.load %arg4[%c23_379] : memref<144xf32, #tpu.memory_space<smem>>
    %1109 = vector.broadcast %1108 : f32 to vector<2x16x16xf32>
    %1110 = arith.mulf %1109, %1107 : vector<2x16x16xf32>
    %1111 = arith.addf %1093, %1110 : vector<2x16x16xf32>
    %c59_380 = arith.constant 59 : index
    %1112 = memref.load %arg4[%c59_380] : memref<144xf32, #tpu.memory_space<smem>>
    %1113 = vector.broadcast %1112 : f32 to vector<2x16x16xf32>
    %1114 = arith.mulf %1113, %1107 : vector<2x16x16xf32>
    %1115 = arith.addf %1097, %1114 : vector<2x16x16xf32>
    %c95_381 = arith.constant 95 : index
    %1116 = memref.load %arg4[%c95_381] : memref<144xf32, #tpu.memory_space<smem>>
    %1117 = vector.broadcast %1116 : f32 to vector<2x16x16xf32>
    %1118 = arith.mulf %1117, %1107 : vector<2x16x16xf32>
    %1119 = arith.addf %1101, %1118 : vector<2x16x16xf32>
    %c131_382 = arith.constant 131 : index
    %1120 = memref.load %arg4[%c131_382] : memref<144xf32, #tpu.memory_space<smem>>
    %1121 = vector.broadcast %1120 : f32 to vector<2x16x16xf32>
    %1122 = arith.mulf %1121, %1107 : vector<2x16x16xf32>
    %1123 = arith.addf %1105, %1122 : vector<2x16x16xf32>
    %c0_383 = arith.constant 0 : index
    %c2_384 = arith.constant 2 : index
    %c2_385 = arith.constant 2 : index
    %c0_386 = arith.constant 0 : index
    %1124 = vector.load %arg7[%c0_383, %c2_384, %c2_385, %c0_386] : memref<2x4x18x18xf32, #tpu.memory_space<vmem>>, vector<2x1x16x16xf32>
    %1125 = vector.shape_cast %1124 : vector<2x1x16x16xf32> to vector<2x16x16xf32>
    %c24_387 = arith.constant 24 : index
    %1126 = memref.load %arg4[%c24_387] : memref<144xf32, #tpu.memory_space<smem>>
    %1127 = vector.broadcast %1126 : f32 to vector<2x16x16xf32>
    %1128 = arith.mulf %1127, %1125 : vector<2x16x16xf32>
    %1129 = arith.addf %1111, %1128 : vector<2x16x16xf32>
    %c60_388 = arith.constant 60 : index
    %1130 = memref.load %arg4[%c60_388] : memref<144xf32, #tpu.memory_space<smem>>
    %1131 = vector.broadcast %1130 : f32 to vector<2x16x16xf32>
    %1132 = arith.mulf %1131, %1125 : vector<2x16x16xf32>
    %1133 = arith.addf %1115, %1132 : vector<2x16x16xf32>
    %c96_389 = arith.constant 96 : index
    %1134 = memref.load %arg4[%c96_389] : memref<144xf32, #tpu.memory_space<smem>>
    %1135 = vector.broadcast %1134 : f32 to vector<2x16x16xf32>
    %1136 = arith.mulf %1135, %1125 : vector<2x16x16xf32>
    %1137 = arith.addf %1119, %1136 : vector<2x16x16xf32>
    %c132_390 = arith.constant 132 : index
    %1138 = memref.load %arg4[%c132_390] : memref<144xf32, #tpu.memory_space<smem>>
    %1139 = vector.broadcast %1138 : f32 to vector<2x16x16xf32>
    %1140 = arith.mulf %1139, %1125 : vector<2x16x16xf32>
    %1141 = arith.addf %1123, %1140 : vector<2x16x16xf32>
    %c0_391 = arith.constant 0 : index
    %c2_392 = arith.constant 2 : index
    %c2_393 = arith.constant 2 : index
    %c1_394 = arith.constant 1 : index
    %1142 = vector.load %arg7[%c0_391, %c2_392, %c2_393, %c1_394] : memref<2x4x18x18xf32, #tpu.memory_space<vmem>>, vector<2x1x16x16xf32>
    %1143 = vector.shape_cast %1142 : vector<2x1x16x16xf32> to vector<2x16x16xf32>
    %c25_395 = arith.constant 25 : index
    %1144 = memref.load %arg4[%c25_395] : memref<144xf32, #tpu.memory_space<smem>>
    %1145 = vector.broadcast %1144 : f32 to vector<2x16x16xf32>
    %1146 = arith.mulf %1145, %1143 : vector<2x16x16xf32>
    %1147 = arith.addf %1129, %1146 : vector<2x16x16xf32>
    %c61_396 = arith.constant 61 : index
    %1148 = memref.load %arg4[%c61_396] : memref<144xf32, #tpu.memory_space<smem>>
    %1149 = vector.broadcast %1148 : f32 to vector<2x16x16xf32>
    %1150 = arith.mulf %1149, %1143 : vector<2x16x16xf32>
    %1151 = arith.addf %1133, %1150 : vector<2x16x16xf32>
    %c97_397 = arith.constant 97 : index
    %1152 = memref.load %arg4[%c97_397] : memref<144xf32, #tpu.memory_space<smem>>
    %1153 = vector.broadcast %1152 : f32 to vector<2x16x16xf32>
    %1154 = arith.mulf %1153, %1143 : vector<2x16x16xf32>
    %1155 = arith.addf %1137, %1154 : vector<2x16x16xf32>
    %c133_398 = arith.constant 133 : index
    %1156 = memref.load %arg4[%c133_398] : memref<144xf32, #tpu.memory_space<smem>>
    %1157 = vector.broadcast %1156 : f32 to vector<2x16x16xf32>
    %1158 = arith.mulf %1157, %1143 : vector<2x16x16xf32>
    %1159 = arith.addf %1141, %1158 : vector<2x16x16xf32>
    %c0_399 = arith.constant 0 : index
    %c2_400 = arith.constant 2 : index
    %c2_401 = arith.constant 2 : index
    %c2_402 = arith.constant 2 : index
    %1160 = vector.load %arg7[%c0_399, %c2_400, %c2_401, %c2_402] : memref<2x4x18x18xf32, #tpu.memory_space<vmem>>, vector<2x1x16x16xf32>
    %1161 = vector.shape_cast %1160 : vector<2x1x16x16xf32> to vector<2x16x16xf32>
    %c26_403 = arith.constant 26 : index
    %1162 = memref.load %arg4[%c26_403] : memref<144xf32, #tpu.memory_space<smem>>
    %1163 = vector.broadcast %1162 : f32 to vector<2x16x16xf32>
    %1164 = arith.mulf %1163, %1161 : vector<2x16x16xf32>
    %1165 = arith.addf %1147, %1164 : vector<2x16x16xf32>
    %c62_404 = arith.constant 62 : index
    %1166 = memref.load %arg4[%c62_404] : memref<144xf32, #tpu.memory_space<smem>>
    %1167 = vector.broadcast %1166 : f32 to vector<2x16x16xf32>
    %1168 = arith.mulf %1167, %1161 : vector<2x16x16xf32>
    %1169 = arith.addf %1151, %1168 : vector<2x16x16xf32>
    %c98_405 = arith.constant 98 : index
    %1170 = memref.load %arg4[%c98_405] : memref<144xf32, #tpu.memory_space<smem>>
    %1171 = vector.broadcast %1170 : f32 to vector<2x16x16xf32>
    %1172 = arith.mulf %1171, %1161 : vector<2x16x16xf32>
    %1173 = arith.addf %1155, %1172 : vector<2x16x16xf32>
    %c134_406 = arith.constant 134 : index
    %1174 = memref.load %arg4[%c134_406] : memref<144xf32, #tpu.memory_space<smem>>
    %1175 = vector.broadcast %1174 : f32 to vector<2x16x16xf32>
    %1176 = arith.mulf %1175, %1161 : vector<2x16x16xf32>
    %1177 = arith.addf %1159, %1176 : vector<2x16x16xf32>
    %c0_407 = arith.constant 0 : index
    %c3_408 = arith.constant 3 : index
    %c0_409 = arith.constant 0 : index
    %c0_410 = arith.constant 0 : index
    %1178 = vector.load %arg7[%c0_407, %c3_408, %c0_409, %c0_410] : memref<2x4x18x18xf32, #tpu.memory_space<vmem>>, vector<2x1x16x16xf32>
    %1179 = vector.shape_cast %1178 : vector<2x1x16x16xf32> to vector<2x16x16xf32>
    %c27_411 = arith.constant 27 : index
    %1180 = memref.load %arg4[%c27_411] : memref<144xf32, #tpu.memory_space<smem>>
    %1181 = vector.broadcast %1180 : f32 to vector<2x16x16xf32>
    %1182 = arith.mulf %1181, %1179 : vector<2x16x16xf32>
    %1183 = arith.addf %1165, %1182 : vector<2x16x16xf32>
    %c63_412 = arith.constant 63 : index
    %1184 = memref.load %arg4[%c63_412] : memref<144xf32, #tpu.memory_space<smem>>
    %1185 = vector.broadcast %1184 : f32 to vector<2x16x16xf32>
    %1186 = arith.mulf %1185, %1179 : vector<2x16x16xf32>
    %1187 = arith.addf %1169, %1186 : vector<2x16x16xf32>
    %c99_413 = arith.constant 99 : index
    %1188 = memref.load %arg4[%c99_413] : memref<144xf32, #tpu.memory_space<smem>>
    %1189 = vector.broadcast %1188 : f32 to vector<2x16x16xf32>
    %1190 = arith.mulf %1189, %1179 : vector<2x16x16xf32>
    %1191 = arith.addf %1173, %1190 : vector<2x16x16xf32>
    %c135_414 = arith.constant 135 : index
    %1192 = memref.load %arg4[%c135_414] : memref<144xf32, #tpu.memory_space<smem>>
    %1193 = vector.broadcast %1192 : f32 to vector<2x16x16xf32>
    %1194 = arith.mulf %1193, %1179 : vector<2x16x16xf32>
    %1195 = arith.addf %1177, %1194 : vector<2x16x16xf32>
    %c0_415 = arith.constant 0 : index
    %c3_416 = arith.constant 3 : index
    %c0_417 = arith.constant 0 : index
    %c1_418 = arith.constant 1 : index
    %1196 = vector.load %arg7[%c0_415, %c3_416, %c0_417, %c1_418] : memref<2x4x18x18xf32, #tpu.memory_space<vmem>>, vector<2x1x16x16xf32>
    %1197 = vector.shape_cast %1196 : vector<2x1x16x16xf32> to vector<2x16x16xf32>
    %c28_419 = arith.constant 28 : index
    %1198 = memref.load %arg4[%c28_419] : memref<144xf32, #tpu.memory_space<smem>>
    %1199 = vector.broadcast %1198 : f32 to vector<2x16x16xf32>
    %1200 = arith.mulf %1199, %1197 : vector<2x16x16xf32>
    %1201 = arith.addf %1183, %1200 : vector<2x16x16xf32>
    %c64_420 = arith.constant 64 : index
    %1202 = memref.load %arg4[%c64_420] : memref<144xf32, #tpu.memory_space<smem>>
    %1203 = vector.broadcast %1202 : f32 to vector<2x16x16xf32>
    %1204 = arith.mulf %1203, %1197 : vector<2x16x16xf32>
    %1205 = arith.addf %1187, %1204 : vector<2x16x16xf32>
    %c100_421 = arith.constant 100 : index
    %1206 = memref.load %arg4[%c100_421] : memref<144xf32, #tpu.memory_space<smem>>
    %1207 = vector.broadcast %1206 : f32 to vector<2x16x16xf32>
    %1208 = arith.mulf %1207, %1197 : vector<2x16x16xf32>
    %1209 = arith.addf %1191, %1208 : vector<2x16x16xf32>
    %c136_422 = arith.constant 136 : index
    %1210 = memref.load %arg4[%c136_422] : memref<144xf32, #tpu.memory_space<smem>>
    %1211 = vector.broadcast %1210 : f32 to vector<2x16x16xf32>
    %1212 = arith.mulf %1211, %1197 : vector<2x16x16xf32>
    %1213 = arith.addf %1195, %1212 : vector<2x16x16xf32>
    %c0_423 = arith.constant 0 : index
    %c3_424 = arith.constant 3 : index
    %c0_425 = arith.constant 0 : index
    %c2_426 = arith.constant 2 : index
    %1214 = vector.load %arg7[%c0_423, %c3_424, %c0_425, %c2_426] : memref<2x4x18x18xf32, #tpu.memory_space<vmem>>, vector<2x1x16x16xf32>
    %1215 = vector.shape_cast %1214 : vector<2x1x16x16xf32> to vector<2x16x16xf32>
    %c29_427 = arith.constant 29 : index
    %1216 = memref.load %arg4[%c29_427] : memref<144xf32, #tpu.memory_space<smem>>
    %1217 = vector.broadcast %1216 : f32 to vector<2x16x16xf32>
    %1218 = arith.mulf %1217, %1215 : vector<2x16x16xf32>
    %1219 = arith.addf %1201, %1218 : vector<2x16x16xf32>
    %c65_428 = arith.constant 65 : index
    %1220 = memref.load %arg4[%c65_428] : memref<144xf32, #tpu.memory_space<smem>>
    %1221 = vector.broadcast %1220 : f32 to vector<2x16x16xf32>
    %1222 = arith.mulf %1221, %1215 : vector<2x16x16xf32>
    %1223 = arith.addf %1205, %1222 : vector<2x16x16xf32>
    %c101_429 = arith.constant 101 : index
    %1224 = memref.load %arg4[%c101_429] : memref<144xf32, #tpu.memory_space<smem>>
    %1225 = vector.broadcast %1224 : f32 to vector<2x16x16xf32>
    %1226 = arith.mulf %1225, %1215 : vector<2x16x16xf32>
    %1227 = arith.addf %1209, %1226 : vector<2x16x16xf32>
    %c137_430 = arith.constant 137 : index
    %1228 = memref.load %arg4[%c137_430] : memref<144xf32, #tpu.memory_space<smem>>
    %1229 = vector.broadcast %1228 : f32 to vector<2x16x16xf32>
    %1230 = arith.mulf %1229, %1215 : vector<2x16x16xf32>
    %1231 = arith.addf %1213, %1230 : vector<2x16x16xf32>
    %c0_431 = arith.constant 0 : index
    %c3_432 = arith.constant 3 : index
    %c1_433 = arith.constant 1 : index
    %c0_434 = arith.constant 0 : index
    %1232 = vector.load %arg7[%c0_431, %c3_432, %c1_433, %c0_434] : memref<2x4x18x18xf32, #tpu.memory_space<vmem>>, vector<2x1x16x16xf32>
    %1233 = vector.shape_cast %1232 : vector<2x1x16x16xf32> to vector<2x16x16xf32>
    %c30_435 = arith.constant 30 : index
    %1234 = memref.load %arg4[%c30_435] : memref<144xf32, #tpu.memory_space<smem>>
    %1235 = vector.broadcast %1234 : f32 to vector<2x16x16xf32>
    %1236 = arith.mulf %1235, %1233 : vector<2x16x16xf32>
    %1237 = arith.addf %1219, %1236 : vector<2x16x16xf32>
    %c66_436 = arith.constant 66 : index
    %1238 = memref.load %arg4[%c66_436] : memref<144xf32, #tpu.memory_space<smem>>
    %1239 = vector.broadcast %1238 : f32 to vector<2x16x16xf32>
    %1240 = arith.mulf %1239, %1233 : vector<2x16x16xf32>
    %1241 = arith.addf %1223, %1240 : vector<2x16x16xf32>
    %c102_437 = arith.constant 102 : index
    %1242 = memref.load %arg4[%c102_437] : memref<144xf32, #tpu.memory_space<smem>>
    %1243 = vector.broadcast %1242 : f32 to vector<2x16x16xf32>
    %1244 = arith.mulf %1243, %1233 : vector<2x16x16xf32>
    %1245 = arith.addf %1227, %1244 : vector<2x16x16xf32>
    %c138_438 = arith.constant 138 : index
    %1246 = memref.load %arg4[%c138_438] : memref<144xf32, #tpu.memory_space<smem>>
    %1247 = vector.broadcast %1246 : f32 to vector<2x16x16xf32>
    %1248 = arith.mulf %1247, %1233 : vector<2x16x16xf32>
    %1249 = arith.addf %1231, %1248 : vector<2x16x16xf32>
    %c0_439 = arith.constant 0 : index
    %c3_440 = arith.constant 3 : index
    %c1_441 = arith.constant 1 : index
    %c1_442 = arith.constant 1 : index
    %1250 = vector.load %arg7[%c0_439, %c3_440, %c1_441, %c1_442] : memref<2x4x18x18xf32, #tpu.memory_space<vmem>>, vector<2x1x16x16xf32>
    %1251 = vector.shape_cast %1250 : vector<2x1x16x16xf32> to vector<2x16x16xf32>
    %c31_443 = arith.constant 31 : index
    %1252 = memref.load %arg4[%c31_443] : memref<144xf32, #tpu.memory_space<smem>>
    %1253 = vector.broadcast %1252 : f32 to vector<2x16x16xf32>
    %1254 = arith.mulf %1253, %1251 : vector<2x16x16xf32>
    %1255 = arith.addf %1237, %1254 : vector<2x16x16xf32>
    %c67_444 = arith.constant 67 : index
    %1256 = memref.load %arg4[%c67_444] : memref<144xf32, #tpu.memory_space<smem>>
    %1257 = vector.broadcast %1256 : f32 to vector<2x16x16xf32>
    %1258 = arith.mulf %1257, %1251 : vector<2x16x16xf32>
    %1259 = arith.addf %1241, %1258 : vector<2x16x16xf32>
    %c103_445 = arith.constant 103 : index
    %1260 = memref.load %arg4[%c103_445] : memref<144xf32, #tpu.memory_space<smem>>
    %1261 = vector.broadcast %1260 : f32 to vector<2x16x16xf32>
    %1262 = arith.mulf %1261, %1251 : vector<2x16x16xf32>
    %1263 = arith.addf %1245, %1262 : vector<2x16x16xf32>
    %c139_446 = arith.constant 139 : index
    %1264 = memref.load %arg4[%c139_446] : memref<144xf32, #tpu.memory_space<smem>>
    %1265 = vector.broadcast %1264 : f32 to vector<2x16x16xf32>
    %1266 = arith.mulf %1265, %1251 : vector<2x16x16xf32>
    %1267 = arith.addf %1249, %1266 : vector<2x16x16xf32>
    %c0_447 = arith.constant 0 : index
    %c3_448 = arith.constant 3 : index
    %c1_449 = arith.constant 1 : index
    %c2_450 = arith.constant 2 : index
    %1268 = vector.load %arg7[%c0_447, %c3_448, %c1_449, %c2_450] : memref<2x4x18x18xf32, #tpu.memory_space<vmem>>, vector<2x1x16x16xf32>
    %1269 = vector.shape_cast %1268 : vector<2x1x16x16xf32> to vector<2x16x16xf32>
    %c32_451 = arith.constant 32 : index
    %1270 = memref.load %arg4[%c32_451] : memref<144xf32, #tpu.memory_space<smem>>
    %1271 = vector.broadcast %1270 : f32 to vector<2x16x16xf32>
    %1272 = arith.mulf %1271, %1269 : vector<2x16x16xf32>
    %1273 = arith.addf %1255, %1272 : vector<2x16x16xf32>
    %c68_452 = arith.constant 68 : index
    %1274 = memref.load %arg4[%c68_452] : memref<144xf32, #tpu.memory_space<smem>>
    %1275 = vector.broadcast %1274 : f32 to vector<2x16x16xf32>
    %1276 = arith.mulf %1275, %1269 : vector<2x16x16xf32>
    %1277 = arith.addf %1259, %1276 : vector<2x16x16xf32>
    %c104_453 = arith.constant 104 : index
    %1278 = memref.load %arg4[%c104_453] : memref<144xf32, #tpu.memory_space<smem>>
    %1279 = vector.broadcast %1278 : f32 to vector<2x16x16xf32>
    %1280 = arith.mulf %1279, %1269 : vector<2x16x16xf32>
    %1281 = arith.addf %1263, %1280 : vector<2x16x16xf32>
    %c140_454 = arith.constant 140 : index
    %1282 = memref.load %arg4[%c140_454] : memref<144xf32, #tpu.memory_space<smem>>
    %1283 = vector.broadcast %1282 : f32 to vector<2x16x16xf32>
    %1284 = arith.mulf %1283, %1269 : vector<2x16x16xf32>
    %1285 = arith.addf %1267, %1284 : vector<2x16x16xf32>
    %c0_455 = arith.constant 0 : index
    %c3_456 = arith.constant 3 : index
    %c2_457 = arith.constant 2 : index
    %c0_458 = arith.constant 0 : index
    %1286 = vector.load %arg7[%c0_455, %c3_456, %c2_457, %c0_458] : memref<2x4x18x18xf32, #tpu.memory_space<vmem>>, vector<2x1x16x16xf32>
    %1287 = vector.shape_cast %1286 : vector<2x1x16x16xf32> to vector<2x16x16xf32>
    %c33_459 = arith.constant 33 : index
    %1288 = memref.load %arg4[%c33_459] : memref<144xf32, #tpu.memory_space<smem>>
    %1289 = vector.broadcast %1288 : f32 to vector<2x16x16xf32>
    %1290 = arith.mulf %1289, %1287 : vector<2x16x16xf32>
    %1291 = arith.addf %1273, %1290 : vector<2x16x16xf32>
    %c69_460 = arith.constant 69 : index
    %1292 = memref.load %arg4[%c69_460] : memref<144xf32, #tpu.memory_space<smem>>
    %1293 = vector.broadcast %1292 : f32 to vector<2x16x16xf32>
    %1294 = arith.mulf %1293, %1287 : vector<2x16x16xf32>
    %1295 = arith.addf %1277, %1294 : vector<2x16x16xf32>
    %c105_461 = arith.constant 105 : index
    %1296 = memref.load %arg4[%c105_461] : memref<144xf32, #tpu.memory_space<smem>>
    %1297 = vector.broadcast %1296 : f32 to vector<2x16x16xf32>
    %1298 = arith.mulf %1297, %1287 : vector<2x16x16xf32>
    %1299 = arith.addf %1281, %1298 : vector<2x16x16xf32>
    %c141_462 = arith.constant 141 : index
    %1300 = memref.load %arg4[%c141_462] : memref<144xf32, #tpu.memory_space<smem>>
    %1301 = vector.broadcast %1300 : f32 to vector<2x16x16xf32>
    %1302 = arith.mulf %1301, %1287 : vector<2x16x16xf32>
    %1303 = arith.addf %1285, %1302 : vector<2x16x16xf32>
    %c0_463 = arith.constant 0 : index
    %c3_464 = arith.constant 3 : index
    %c2_465 = arith.constant 2 : index
    %c1_466 = arith.constant 1 : index
    %1304 = vector.load %arg7[%c0_463, %c3_464, %c2_465, %c1_466] : memref<2x4x18x18xf32, #tpu.memory_space<vmem>>, vector<2x1x16x16xf32>
    %1305 = vector.shape_cast %1304 : vector<2x1x16x16xf32> to vector<2x16x16xf32>
    %c34_467 = arith.constant 34 : index
    %1306 = memref.load %arg4[%c34_467] : memref<144xf32, #tpu.memory_space<smem>>
    %1307 = vector.broadcast %1306 : f32 to vector<2x16x16xf32>
    %1308 = arith.mulf %1307, %1305 : vector<2x16x16xf32>
    %1309 = arith.addf %1291, %1308 : vector<2x16x16xf32>
    %c70_468 = arith.constant 70 : index
    %1310 = memref.load %arg4[%c70_468] : memref<144xf32, #tpu.memory_space<smem>>
    %1311 = vector.broadcast %1310 : f32 to vector<2x16x16xf32>
    %1312 = arith.mulf %1311, %1305 : vector<2x16x16xf32>
    %1313 = arith.addf %1295, %1312 : vector<2x16x16xf32>
    %c106_469 = arith.constant 106 : index
    %1314 = memref.load %arg4[%c106_469] : memref<144xf32, #tpu.memory_space<smem>>
    %1315 = vector.broadcast %1314 : f32 to vector<2x16x16xf32>
    %1316 = arith.mulf %1315, %1305 : vector<2x16x16xf32>
    %1317 = arith.addf %1299, %1316 : vector<2x16x16xf32>
    %c142_470 = arith.constant 142 : index
    %1318 = memref.load %arg4[%c142_470] : memref<144xf32, #tpu.memory_space<smem>>
    %1319 = vector.broadcast %1318 : f32 to vector<2x16x16xf32>
    %1320 = arith.mulf %1319, %1305 : vector<2x16x16xf32>
    %1321 = arith.addf %1303, %1320 : vector<2x16x16xf32>
    %c0_471 = arith.constant 0 : index
    %c3_472 = arith.constant 3 : index
    %c2_473 = arith.constant 2 : index
    %c2_474 = arith.constant 2 : index
    %1322 = vector.load %arg7[%c0_471, %c3_472, %c2_473, %c2_474] : memref<2x4x18x18xf32, #tpu.memory_space<vmem>>, vector<2x1x16x16xf32>
    %1323 = vector.shape_cast %1322 : vector<2x1x16x16xf32> to vector<2x16x16xf32>
    %c35_475 = arith.constant 35 : index
    %1324 = memref.load %arg4[%c35_475] : memref<144xf32, #tpu.memory_space<smem>>
    %1325 = vector.broadcast %1324 : f32 to vector<2x16x16xf32>
    %1326 = arith.mulf %1325, %1323 : vector<2x16x16xf32>
    %1327 = arith.addf %1309, %1326 : vector<2x16x16xf32>
    %c71_476 = arith.constant 71 : index
    %1328 = memref.load %arg4[%c71_476] : memref<144xf32, #tpu.memory_space<smem>>
    %1329 = vector.broadcast %1328 : f32 to vector<2x16x16xf32>
    %1330 = arith.mulf %1329, %1323 : vector<2x16x16xf32>
    %1331 = arith.addf %1313, %1330 : vector<2x16x16xf32>
    %c107_477 = arith.constant 107 : index
    %1332 = memref.load %arg4[%c107_477] : memref<144xf32, #tpu.memory_space<smem>>
    %1333 = vector.broadcast %1332 : f32 to vector<2x16x16xf32>
    %1334 = arith.mulf %1333, %1323 : vector<2x16x16xf32>
    %1335 = arith.addf %1317, %1334 : vector<2x16x16xf32>
    %c143_478 = arith.constant 143 : index
    %1336 = memref.load %arg4[%c143_478] : memref<144xf32, #tpu.memory_space<smem>>
    %1337 = vector.broadcast %1336 : f32 to vector<2x16x16xf32>
    %1338 = arith.mulf %1337, %1323 : vector<2x16x16xf32>
    %1339 = arith.addf %1321, %1338 : vector<2x16x16xf32>
    %c0_479 = arith.constant 0 : index
    %c0_480 = arith.constant 0 : index
    %c1_481 = arith.constant 1 : index
    %c1_482 = arith.constant 1 : index
    %1340 = vector.load %arg1[%c0_479, %c0_480, %c1_481, %c1_482] : memref<2x4x18x18xf32, #tpu.memory_space<vmem>>, vector<2x1x16x16xf32>
    %1341 = vector.shape_cast %1340 : vector<2x1x16x16xf32> to vector<2x16x16xf32>
    %1342 = arith.addf %1327, %1341 : vector<2x16x16xf32>
    %c0_483 = arith.constant 0 : index
    %c0_484 = arith.constant 0 : index
    %c0_485 = arith.constant 0 : index
    %c0_486 = arith.constant 0 : index
    %1343 = vector.load %arg6[%c0_483, %c0_484, %c0_485, %c0_486] : memref<2x4x16x16xf32, #tpu.memory_space<vmem>>, vector<2x1x16x16xf32>
    %1344 = vector.shape_cast %1343 : vector<2x1x16x16xf32> to vector<2x16x16xf32>
    %1345 = vector.shape_cast %1342 : vector<2x16x16xf32> to vector<2x1x16x16xf32>
    tpu.vector_store %arg6[%c0_483, %c0_484, %c0_485, %c0_486], %1345 {strides = array<i32>} : memref<2x4x16x16xf32, #tpu.memory_space<vmem>>, vector<2x1x16x16xf32>,
    %c0_487 = arith.constant 0 : index
    %c1_488 = arith.constant 1 : index
    %c1_489 = arith.constant 1 : index
    %c1_490 = arith.constant 1 : index
    %1346 = vector.load %arg1[%c0_487, %c1_488, %c1_489, %c1_490] : memref<2x4x18x18xf32, #tpu.memory_space<vmem>>, vector<2x1x16x16xf32>
    %1347 = vector.shape_cast %1346 : vector<2x1x16x16xf32> to vector<2x16x16xf32>
    %1348 = arith.addf %1331, %1347 : vector<2x16x16xf32>
    %c0_491 = arith.constant 0 : index
    %c1_492 = arith.constant 1 : index
    %c0_493 = arith.constant 0 : index
    %c0_494 = arith.constant 0 : index
    %1349 = vector.load %arg6[%c0_491, %c1_492, %c0_493, %c0_494] : memref<2x4x16x16xf32, #tpu.memory_space<vmem>>, vector<2x1x16x16xf32>
    %1350 = vector.shape_cast %1349 : vector<2x1x16x16xf32> to vector<2x16x16xf32>
    %1351 = vector.shape_cast %1348 : vector<2x16x16xf32> to vector<2x1x16x16xf32>
    tpu.vector_store %arg6[%c0_491, %c1_492, %c0_493, %c0_494], %1351 {strides = array<i32>} : memref<2x4x16x16xf32, #tpu.memory_space<vmem>>, vector<2x1x16x16xf32>,
    %c0_495 = arith.constant 0 : index
    %c2_496 = arith.constant 2 : index
    %c1_497 = arith.constant 1 : index
    %c1_498 = arith.constant 1 : index
    %1352 = vector.load %arg1[%c0_495, %c2_496, %c1_497, %c1_498] : memref<2x4x18x18xf32, #tpu.memory_space<vmem>>, vector<2x1x16x16xf32>
    %1353 = vector.shape_cast %1352 : vector<2x1x16x16xf32> to vector<2x16x16xf32>
    %1354 = arith.addf %1335, %1353 : vector<2x16x16xf32>
    %c0_499 = arith.constant 0 : index
    %c2_500 = arith.constant 2 : index
    %c0_501 = arith.constant 0 : index
    %c0_502 = arith.constant 0 : index
    %1355 = vector.load %arg6[%c0_499, %c2_500, %c0_501, %c0_502] : memref<2x4x16x16xf32, #tpu.memory_space<vmem>>, vector<2x1x16x16xf32>
    %1356 = vector.shape_cast %1355 : vector<2x1x16x16xf32> to vector<2x16x16xf32>
    %1357 = vector.shape_cast %1354 : vector<2x16x16xf32> to vector<2x1x16x16xf32>
    tpu.vector_store %arg6[%c0_499, %c2_500, %c0_501, %c0_502], %1357 {strides = array<i32>} : memref<2x4x16x16xf32, #tpu.memory_space<vmem>>, vector<2x1x16x16xf32>,
    %c0_503 = arith.constant 0 : index
    %c3_504 = arith.constant 3 : index
    %c1_505 = arith.constant 1 : index
    %c1_506 = arith.constant 1 : index
    %1358 = vector.load %arg1[%c0_503, %c3_504, %c1_505, %c1_506] : memref<2x4x18x18xf32, #tpu.memory_space<vmem>>, vector<2x1x16x16xf32>
    %1359 = vector.shape_cast %1358 : vector<2x1x16x16xf32> to vector<2x16x16xf32>
    %1360 = arith.addf %1339, %1359 : vector<2x16x16xf32>
    %c0_507 = arith.constant 0 : index
    %c3_508 = arith.constant 3 : index
    %c0_509 = arith.constant 0 : index
    %c0_510 = arith.constant 0 : index
    %1361 = vector.load %arg6[%c0_507, %c3_508, %c0_509, %c0_510] : memref<2x4x16x16xf32, #tpu.memory_space<vmem>>, vector<2x1x16x16xf32>
    %1362 = vector.shape_cast %1361 : vector<2x1x16x16xf32> to vector<2x16x16xf32>
    %1363 = vector.shape_cast %1360 : vector<2x16x16xf32> to vector<2x1x16x16xf32>
    tpu.vector_store %arg6[%c0_507, %c3_508, %c0_509, %c0_510], %1363 {strides = array<i32>} : memref<2x4x16x16xf32, #tpu.memory_space<vmem>>, vector<2x1x16x16xf32>,
    return
  }
  func.func @transform_0(%arg0: i32) -> (i32, i32, i32, i32) {
    %c0_i32 = arith.constant 0 : i32
    %c0_i32_0 = arith.constant 0 : i32
    %c0_i32_1 = arith.constant 0 : i32
    %c0_i32_2 = arith.constant 0 : i32
    %c0_i32_3 = arith.constant 0 : i32
    return %c0_i32, %c0_i32_0, %c0_i32_1, %c0_i32_2 : i32, i32, i32, i32
  }
  func.func @transform_1(%arg0: i32) -> i32 {
    %c0_i32 = arith.constant 0 : i32
    %c0_i32_0 = arith.constant 0 : i32
    return %c0_i32 : i32
  }
  func.func @transform_2(%arg0: i32) -> i32 {
    %c0_i32 = arith.constant 0 : i32
    %c0_i32_0 = arith.constant 0 : i32
    return %c0_i32 : i32
  }
  func.func @transform_3(%arg0: i32) -> i32 {
    %c0_i32 = arith.constant 0 : i32
    %c0_i32_0 = arith.constant 0 : i32
    return %c0_i32 : i32
  }
  func.func @transform_4(%arg0: i32) -> i32 {
    %c0_i32 = arith.constant 0 : i32
    %c0_i32_0 = arith.constant 0 : i32
    return %c0_i32 : i32
  }
  func.func @transform_5(%arg0: i32) -> (i32, i32, i32, i32) {
    %c0_i32 = arith.constant 0 : i32
    %c0_i32_0 = arith.constant 0 : i32
    %c0_i32_1 = arith.constant 0 : i32
    %c0_i32_2 = arith.constant 0 : i32
    %c0_i32_3 = arith.constant 0 : i32
    return %c0_i32, %c0_i32_0, %c0_i32_1, %c0_i32_2 : i32, i32, i32, i32
  }
}

</mosaic_0001>

<llo_original>
// kernel: tpu_custom_call.1
$region0: #{tpu_custom_call.1}
  #allocation0 [shape = 'u32[]', space=smem, size = 0x4, offset = 0x4, fixed_abs, tag = 'smem constant byte address 0x4 - core index']
  #allocation1 [shape = 'u32[144,128]{1,0:T(1,128)}', space=vmem, size = 0x12000, scoped, tag = 'internal scratch']
  #allocation2 [shape = 'f32[2,4,18,18]{3,2,1,0:T(8,128)}', space=vmem, size = 0x18000, scoped, tag = 'scratch operand']
  %s0 = inlined_call_operand.vmem [shape: f32[2,4,18,18], index: 0, kind: input, shape index: {}]
  %s1 = inlined_call_operand.vmem [shape: f32[144], index: 1, kind: input, shape index: {}]
  %s2 = inlined_call_operand.vmem [shape: f32[4], index: 2, kind: input, shape index: {}]
  %s3 = inlined_call_operand.vmem [shape: f32[144], index: 3, kind: input, shape index: {}]
  %s4 = inlined_call_operand.vmem [shape: f32[4], index: 4, kind: input, shape index: {}]
  %s5 = inlined_call_operand.hbm [shape: f32[2,4,16,16], index: 5, kind: output, shape index: {}]
  %s6 = sld [smem:[#allocation0]]
  $region46: #{tpu_custom_call.1} parent=0
    _
  %s8 = ssub.s32 1, %s6
  %s9 = scalar_select 0, %s8, %s6
  $region1: #{tpu_custom_call.1} parent=0
    #allocation3 [shape = 'u8[1024]{0}', space=smem, size = 0x400, scoped, tag = 'input window, operand 1, single buffered']
    #allocation4 [shape = 's32[1]{0}', space=sflag, size = 0x4, scoped, tag = 'scoped memory for tpu_custom_call.1']
    #allocation5 [shape = 's32[1]{0}', space=sflag, size = 0x4, scoped, tag = 'scoped memory for tpu_custom_call.1']
    #allocation6 [shape = 'u8[512]{0}', space=smem, size = 0x200, scoped, tag = 'input window, operand 2, single buffered']
    #allocation7 [shape = 's32[1]{0}', space=sflag, size = 0x4, scoped, tag = 'scoped memory for tpu_custom_call.1']
    #allocation8 [shape = 'u8[1024]{0}', space=smem, size = 0x400, scoped, tag = 'input window, operand 3, single buffered']
    #allocation9 [shape = 'u8[512]{0}', space=smem, size = 0x200, scoped, tag = 'input window, operand 4, single buffered']
    #allocation10 [shape = 's32[1]{0}', space=sflag, size = 0x4, scoped, tag = 'scoped memory for tpu_custom_call.1']
    #allocation11 [shape = 'u8[65536]{0}', space=vmem, size = 0x10000, scoped, tag = 'output window, operand 0, single buffered']
    %10 = vsyncpa [#allocation5], 0
    %11 = vsyncpa [#allocation7], 0
    %12 = vsyncpa [#allocation10], 0
    %13 = vsyncpa [#allocation4], 0
    // Predicated region
    $region2: #{tpu_custom_call.1} parent=1 // pred_check
      _
    $region3: #{tpu_custom_call.1} parent=1 // pred_check_branch
      %15 = sbr.rel (0) target = $region5
    $region4: #{tpu_custom_call.1} parent=1 // pred_region
      _
    $region5: #{tpu_custom_call.1} parent=1 // pred_fallthru
      _
    // Predicated region
    $region6: #{tpu_custom_call.1} parent=1 // pred_check
      _
    $region7: #{tpu_custom_call.1} parent=1 // pred_check_branch
      %17 = sbr.rel (0) target = $region9
    $region8: #{tpu_custom_call.1} parent=1 // pred_region
      %s19 = ssub.s32 32, 32
      %20 = vsyncadd [#allocation5], %s19
      %s22 = sshll.u32 %s1, 4
      %s23 = int_to_ptr.vmem [resolvable:$true] %s22
      %25 = dma.vmem_to_smem %s23, 32, [#allocation3], [#allocation5]
    $region9: #{tpu_custom_call.1} parent=1 // pred_fallthru
      _
    // Predicated region
    $region10: #{tpu_custom_call.1} parent=1 // pred_check
      _
    $region11: #{tpu_custom_call.1} parent=1 // pred_check_branch
      %27 = sbr.rel (0) target = $region13
    $region12: #{tpu_custom_call.1} parent=1 // pred_region
      %s29 = ssub.s32 16, 16
      %30 = vsyncadd [#allocation7], %s29
      %s32 = sshll.u32 %s2, 4
      %s33 = int_to_ptr.vmem [resolvable:$true] %s32
      %35 = dma.vmem_to_smem %s33, 16, [#allocation6], [#allocation7]
    $region13: #{tpu_custom_call.1} parent=1 // pred_fallthru
      _
    // Predicated region
    $region14: #{tpu_custom_call.1} parent=1 // pred_check
      _
    $region15: #{tpu_custom_call.1} parent=1 // pred_check_branch
      %37 = sbr.rel (0) target = $region17
    $region16: #{tpu_custom_call.1} parent=1 // pred_region
      %s39 = ssub.s32 32, 32
      %40 = vsyncadd [#allocation7], %s39
      %s42 = sshll.u32 %s3, 4
      %s43 = int_to_ptr.vmem [resolvable:$true] %s42
      %45 = dma.vmem_to_smem %s43, 32, [#allocation8], [#allocation7]
    $region17: #{tpu_custom_call.1} parent=1 // pred_fallthru
      _
    // Predicated region
    $region18: #{tpu_custom_call.1} parent=1 // pred_check
      _
    $region19: #{tpu_custom_call.1} parent=1 // pred_check_branch
      %47 = sbr.rel (0) target = $region21
    $region20: #{tpu_custom_call.1} parent=1 // pred_region
      %s49 = ssub.s32 16, 16
      %50 = vsyncadd [#allocation10], %s49
      %s52 = sshll.u32 %s4, 4
      %s53 = int_to_ptr.vmem [resolvable:$true] %s52
      %55 = dma.vmem_to_smem %s53, 16, [#allocation9], [#allocation10]
    $region21: #{tpu_custom_call.1} parent=1 // pred_fallthru
      _
    // Predicated region
    $region22: #{tpu_custom_call.1} parent=1 // pred_check
      _
    $region23: #{tpu_custom_call.1} parent=1 // pred_check_branch
      %57 = sbr.rel (0) target = $region25
    $region24: #{tpu_custom_call.1} parent=1 // pred_region
      %58 = dma.done [#allocation5], 32
    $region25: #{tpu_custom_call.1} parent=1 // pred_fallthru
      _
    // Predicated region
    $region26: #{tpu_custom_call.1} parent=1 // pred_check
      _
    $region27: #{tpu_custom_call.1} parent=1 // pred_check_branch
      %60 = sbr.rel (0) target = $region29
    $region28: #{tpu_custom_call.1} parent=1 // pred_region
      %61 = dma.done [#allocation7], 16
    $region29: #{tpu_custom_call.1} parent=1 // pred_fallthru
      _
    // Predicated region
    $region30: #{tpu_custom_call.1} parent=1 // pred_check
      _
    $region31: #{tpu_custom_call.1} parent=1 // pred_check_branch
      %63 = sbr.rel (0) target = $region33
    $region32: #{tpu_custom_call.1} parent=1 // pred_region
      %64 = dma.done [#allocation7], 32
    $region33: #{tpu_custom_call.1} parent=1 // pred_fallthru
      _
    // Predicated region
    $region34: #{tpu_custom_call.1} parent=1 // pred_check
      _
    $region35: #{tpu_custom_call.1} parent=1 // pred_check_branch
      %66 = sbr.rel (0) target = $region37
    $region36: #{tpu_custom_call.1} parent=1 // pred_region
      %67 = dma.done [#allocation10], 16
    $region37: #{tpu_custom_call.1} parent=1 // pred_fallthru
      _
    %68 = sfence
    %vm69 = vcmask 139264
    %70 = vst.msk [vmem:[#allocation2] sm:$0x1] %vm69, 0.0
    %71 = vst.msk [vmem:[#allocation2 + $0x18] sm:$0x1] %vm69, 0.0
    %72 = vst.msk [vmem:[#allocation2 + $0x30] sm:$0x1] %vm69, 0.0
    %73 = vst.msk [vmem:[#allocation2 + $0x48] sm:$0x1] %vm69, 0.0
    %74 = vst.msk [vmem:[#allocation2 + $0x60] sm:$0x1] %vm69, 0.0
    %75 = vst.msk [vmem:[#allocation2 + $0x78] sm:$0x1] %vm69, 0.0
    %76 = vst.msk [vmem:[#allocation2 + $0x90] sm:$0x1] %vm69, 0.0
    %77 = vst.msk [vmem:[#allocation2 + $0xa8] sm:$0x1] %vm69, 0.0
    %78 = vst.msk [vmem:[#allocation2 + $0x11] sm:$0x1] %vm69, 0.0
    %79 = vst.msk [vmem:[#allocation2 + $0x29] sm:$0x1] %vm69, 0.0
    %80 = vst.msk [vmem:[#allocation2 + $0x41] sm:$0x1] %vm69, 0.0
    %81 = vst.msk [vmem:[#allocation2 + $0x59] sm:$0x1] %vm69, 0.0
    %82 = vst.msk [vmem:[#allocation2 + $0x71] sm:$0x1] %vm69, 0.0
    %83 = vst.msk [vmem:[#allocation2 + $0x89] sm:$0x1] %vm69, 0.0
    %84 = vst.msk [vmem:[#allocation2 + $0xa1] sm:$0x1] %vm69, 0.0
    %85 = vst.msk [vmem:[#allocation2 + $0xb9] sm:$0x1] %vm69, 0.0
    %vm86 = vcmask 7168
    %87 = vst.msk [vmem:[#allocation2] sm:$0xff] %vm86, 0.0
    %88 = vst.msk [vmem:[#allocation2 + $0x8] sm:$0xff] %vm86, 0.0
    %vm89 = vcmask 1024
    %90 = vst.msk [vmem:[#allocation2 + $0x10] sm:$0x3] %vm89, 0.0
    %91 = vst.msk [vmem:[#allocation2 + $0x18] sm:$0xff] %vm86, 0.0
    %92 = vst.msk [vmem:[#allocation2 + $0x20] sm:$0xff] %vm86, 0.0
    %93 = vst.msk [vmem:[#allocation2 + $0x28] sm:$0x3] %vm89, 0.0
    %94 = vst.msk [vmem:[#allocation2 + $0x30] sm:$0xff] %vm86, 0.0
    %95 = vst.msk [vmem:[#allocation2 + $0x38] sm:$0xff] %vm86, 0.0
    %96 = vst.msk [vmem:[#allocation2 + $0x40] sm:$0x3] %vm89, 0.0
    %97 = vst.msk [vmem:[#allocation2 + $0x48] sm:$0xff] %vm86, 0.0
    %98 = vst.msk [vmem:[#allocation2 + $0x50] sm:$0xff] %vm86, 0.0
    %99 = vst.msk [vmem:[#allocation2 + $0x58] sm:$0x3] %vm89, 0.0
    %100 = vst.msk [vmem:[#allocation2 + $0x60] sm:$0xff] %vm86, 0.0
    %101 = vst.msk [vmem:[#allocation2 + $0x68] sm:$0xff] %vm86, 0.0
    %102 = vst.msk [vmem:[#allocation2 + $0x70] sm:$0x3] %vm89, 0.0
    %103 = vst.msk [vmem:[#allocation2 + $0x78] sm:$0xff] %vm86, 0.0
    %104 = vst.msk [vmem:[#allocation2 + $0x80] sm:$0xff] %vm86, 0.0
    %105 = vst.msk [vmem:[#allocation2 + $0x88] sm:$0x3] %vm89, 0.0
    %106 = vst.msk [vmem:[#allocation2 + $0x90] sm:$0xff] %vm86, 0.0
    %107 = vst.msk [vmem:[#allocation2 + $0x98] sm:$0xff] %vm86, 0.0
    %108 = vst.msk [vmem:[#allocation2 + $0xa0] sm:$0x3] %vm89, 0.0
    %109 = vst.msk [vmem:[#allocation2 + $0xa8] sm:$0xff] %vm86, 0.0
    %110 = vst.msk [vmem:[#allocation2 + $0xb0] sm:$0xff] %vm86, 0.0
    %111 = vst.msk [vmem:[#allocation2 + $0xb8] sm:$0x3] %vm89, 0.0
    %vm112 = vcmask 146568
    %113 = vst.msk [vmem:[#allocation2] sm:$0xff] %vm112, 0.0
    %114 = vst.msk [vmem:[#allocation2 + $0x8] sm:$0xff] %vm112, 0.0
    %vm115 = vcmask 140424
    %116 = vst.msk [vmem:[#allocation2 + $0x10] sm:$0x3] %vm115, 0.0
    %117 = vst.msk [vmem:[#allocation2 + $0x18] sm:$0xff] %vm112, 0.0
    %118 = vst.msk [vmem:[#allocation2 + $0x20] sm:$0xff] %vm112, 0.0
    %119 = vst.msk [vmem:[#allocation2 + $0x28] sm:$0x3] %vm115, 0.0
    %120 = vst.msk [vmem:[#allocation2 + $0x30] sm:$0xff] %vm112, 0.0
    %121 = vst.msk [vmem:[#allocation2 + $0x38] sm:$0xff] %vm112, 0.0
    %122 = vst.msk [vmem:[#allocation2 + $0x40] sm:$0x3] %vm115, 0.0
    %123 = vst.msk [vmem:[#allocation2 + $0x48] sm:$0xff] %vm112, 0.0
    %124 = vst.msk [vmem:[#allocation2 + $0x50] sm:$0xff] %vm112, 0.0
    %125 = vst.msk [vmem:[#allocation2 + $0x58] sm:$0x3] %vm115, 0.0
    %126 = vst.msk [vmem:[#allocation2 + $0x60] sm:$0xff] %vm112, 0.0
    %127 = vst.msk [vmem:[#allocation2 + $0x68] sm:$0xff] %vm112, 0.0
    %128 = vst.msk [vmem:[#allocation2 + $0x70] sm:$0x3] %vm115, 0.0
    %129 = vst.msk [vmem:[#allocation2 + $0x78] sm:$0xff] %vm112, 0.0
    %130 = vst.msk [vmem:[#allocation2 + $0x80] sm:$0xff] %vm112, 0.0
    %131 = vst.msk [vmem:[#allocation2 + $0x88] sm:$0x3] %vm115, 0.0
    %132 = vst.msk [vmem:[#allocation2 + $0x90] sm:$0xff] %vm112, 0.0
    %133 = vst.msk [vmem:[#allocation2 + $0x98] sm:$0xff] %vm112, 0.0
    %134 = vst.msk [vmem:[#allocation2 + $0xa0] sm:$0x3] %vm115, 0.0
    %135 = vst.msk [vmem:[#allocation2 + $0xa8] sm:$0xff] %vm112, 0.0
    %136 = vst.msk [vmem:[#allocation2 + $0xb0] sm:$0xff] %vm112, 0.0
    %137 = vst.msk [vmem:[#allocation2 + $0xb8] sm:$0x3] %vm115, 0.0
    %s138 = sld [smem:[#allocation6]]
    %v139 = vstv %s138
    %s140 = sld [smem:[#allocation6 + $0x1]]
    %v141 = vstv %s140
    %s142 = sld [smem:[#allocation6 + $0x2]]
    %v143 = vstv %s142
    %s144 = sld [smem:[#allocation6 + $0x3]]
    %v145 = vstv %s144
    %v146 = vld [vmem:[%s0] sm:$0xff]
    %v147 = vld [vmem:[%s0 + $0x8] sm:$0xff]
    %v148 = vld [vmem:[%s0 + $0x60] sm:$0xff]
    %v149 = vld [vmem:[%s0 + $0x68] sm:$0xff]
    %s150 = sld [smem:[#allocation3]]
    %v151 = vstv %s150
    %v152 = vmul.f32 %v151, %v146
    %v153 = vmul.f32 %v151, %v147
    %v154 = vmul.f32 %v151, %v148
    %v155 = vmul.f32 %v151, %v149
    %v156 = vadd.f32 %v139, %v152
    %v157 = vadd.f32 %v139, %v153
    %v158 = vadd.f32 %v139, %v154
    %v159 = vadd.f32 %v139, %v155
    %s160 = sld [smem:[#allocation3 + $0x24]]
    %v161 = vstv %s160
    %v162 = vmul.f32 %v161, %v146
    %v163 = vmul.f32 %v161, %v147
    %v164 = vmul.f32 %v161, %v148
    %v165 = vmul.f32 %v161, %v149
    %v166 = vadd.f32 %v141, %v162
    %v167 = vadd.f32 %v141, %v163
    %v168 = vadd.f32 %v141, %v164
    %v169 = vadd.f32 %v141, %v165
    %s170 = sld [smem:[#allocation3 + $0x48]]
    %v171 = vstv %s170
    %v172 = vmul.f32 %v171, %v146
    %v173 = vmul.f32 %v171, %v147
    %v174 = vmul.f32 %v171, %v148
    %v175 = vmul.f32 %v171, %v149
    %v176 = vadd.f32 %v143, %v172
    %v177 = vadd.f32 %v143, %v173
    %v178 = vadd.f32 %v143, %v174
    %v179 = vadd.f32 %v143, %v175
    %s180 = sld [smem:[#allocation3 + $0x6c]]
    %v181 = vstv %s180
    %v182 = vmul.f32 %v181, %v146
    %v183 = vmul.f32 %v181, %v147
    %v184 = vmul.f32 %v181, %v148
    %v185 = vmul.f32 %v181, %v149
    %v186 = vadd.f32 %v145, %v182
    %v187 = vadd.f32 %v145, %v183
    %v188 = vadd.f32 %v145, %v184
    %v189 = vadd.f32 %v145, %v185
    %s190 = sld [smem:[#allocation3 + $0x1]]
    %v191 = vstv %s190
    %v192 = vmul.f32 %v191, %v146
    %v193 = vmul.f32 %v191, %v147
    %v194 = vmul.f32 %v191, %v148
    %v195 = vmul.f32 %v191, %v149
    %200 = vrot.lane.b32.xlu0 %v192, 127
    %v201 = vpop.permute.xlu0 %200
    %202 = vrot.lane.b32.xlu0 %v193, 127
    %v203 = vpop.permute.xlu0 %202
    %204 = vrot.lane.b32.xlu0 %v194, 127
    %v205 = vpop.permute.xlu0 %204
    %206 = vrot.lane.b32.xlu0 %v195, 127
    %v207 = vpop.permute.xlu0 %206
    %v212 = vadd.f32 %v156, %v201
    %v213 = vadd.f32 %v157, %v203
    %v214 = vadd.f32 %v158, %v205
    %v215 = vadd.f32 %v159, %v207
    %s216 = sld [smem:[#allocation3 + $0x25]]
    %v217 = vstv %s216
    %v218 = vmul.f32 %v217, %v146
    %v219 = vmul.f32 %v217, %v147
    %v220 = vmul.f32 %v217, %v148
    %v221 = vmul.f32 %v217, %v149
    %226 = vrot.lane.b32.xlu0 %v218, 127
    %v227 = vpop.permute.xlu0 %226
    %228 = vrot.lane.b32.xlu0 %v219, 127
    %v229 = vpop.permute.xlu0 %228
    %230 = vrot.lane.b32.xlu0 %v220, 127
    %v231 = vpop.permute.xlu0 %230
    %232 = vrot.lane.b32.xlu0 %v221, 127
    %v233 = vpop.permute.xlu0 %232
    %v238 = vadd.f32 %v166, %v227
    %v239 = vadd.f32 %v167, %v229
    %v240 = vadd.f32 %v168, %v231
    %v241 = vadd.f32 %v169, %v233
    %s242 = sld [smem:[#allocation3 + $0x49]]
    %v243 = vstv %s242
    %v244 = vmul.f32 %v243, %v146
    %v245 = vmul.f32 %v243, %v147
    %v246 = vmul.f32 %v243, %v148
    %v247 = vmul.f32 %v243, %v149
    %252 = vrot.lane.b32.xlu0 %v244, 127
    %v253 = vpop.permute.xlu0 %252
    %254 = vrot.lane.b32.xlu0 %v245, 127
    %v255 = vpop.permute.xlu0 %254
    %256 = vrot.lane.b32.xlu0 %v246, 127
    %v257 = vpop.permute.xlu0 %256
    %258 = vrot.lane.b32.xlu0 %v247, 127
    %v259 = vpop.permute.xlu0 %258
    %v264 = vadd.f32 %v176, %v253
    %v265 = vadd.f32 %v177, %v255
    %v266 = vadd.f32 %v178, %v257
    %v267 = vadd.f32 %v179, %v259
    %s268 = sld [smem:[#allocation3 + $0x6d]]
    %v269 = vstv %s268
    %v270 = vmul.f32 %v269, %v146
    %v271 = vmul.f32 %v269, %v147
    %v272 = vmul.f32 %v269, %v148
    %v273 = vmul.f32 %v269, %v149
    %278 = vrot.lane.b32.xlu0 %v270, 127
    %v279 = vpop.permute.xlu0 %278
    %280 = vrot.lane.b32.xlu0 %v271, 127
    %v281 = vpop.permute.xlu0 %280
    %282 = vrot.lane.b32.xlu0 %v272, 127
    %v283 = vpop.permute.xlu0 %282
    %284 = vrot.lane.b32.xlu0 %v273, 127
    %v285 = vpop.permute.xlu0 %284
    %v290 = vadd.f32 %v186, %v279
    %v291 = vadd.f32 %v187, %v281
    %v292 = vadd.f32 %v188, %v283
    %v293 = vadd.f32 %v189, %v285
    %s294 = sld [smem:[#allocation3 + $0x2]]
    %v295 = vstv %s294
    %v296 = vmul.f32 %v295, %v146
    %v297 = vmul.f32 %v295, %v147
    %v298 = vmul.f32 %v295, %v148
    %v299 = vmul.f32 %v295, %v149
    %304 = vrot.lane.b32.xlu0 %v296, 126
    %v305 = vpop.permute.xlu0 %304
    %306 = vrot.lane.b32.xlu0 %v297, 126
    %v307 = vpop.permute.xlu0 %306
    %308 = vrot.lane.b32.xlu0 %v298, 126
    %v309 = vpop.permute.xlu0 %308
    %310 = vrot.lane.b32.xlu0 %v299, 126
    %v311 = vpop.permute.xlu0 %310
    %v316 = vadd.f32 %v212, %v305
    %v317 = vadd.f32 %v213, %v307
    %v318 = vadd.f32 %v214, %v309
    %v319 = vadd.f32 %v215, %v311
    %s320 = sld [smem:[#allocation3 + $0x26]]
    %v321 = vstv %s320
    %v322 = vmul.f32 %v321, %v146
    %v323 = vmul.f32 %v321, %v147
    %v324 = vmul.f32 %v321, %v148
    %v325 = vmul.f32 %v321, %v149
    %330 = vrot.lane.b32.xlu0 %v322, 126
    %v331 = vpop.permute.xlu0 %330
    %332 = vrot.lane.b32.xlu0 %v323, 126
    %v333 = vpop.permute.xlu0 %332
    %334 = vrot.lane.b32.xlu0 %v324, 126
    %v335 = vpop.permute.xlu0 %334
    %336 = vrot.lane.b32.xlu0 %v325, 126
    %v337 = vpop.permute.xlu0 %336
    %v342 = vadd.f32 %v238, %v331
    %v343 = vadd.f32 %v239, %v333
    %v344 = vadd.f32 %v240, %v335
    %v345 = vadd.f32 %v241, %v337
    %s346 = sld [smem:[#allocation3 + $0x4a]]
    %v347 = vstv %s346
    %v348 = vmul.f32 %v347, %v146
    %v349 = vmul.f32 %v347, %v147
    %v350 = vmul.f32 %v347, %v148
    %v351 = vmul.f32 %v347, %v149
    %356 = vrot.lane.b32.xlu0 %v348, 126
    %v357 = vpop.permute.xlu0 %356
    %358 = vrot.lane.b32.xlu0 %v349, 126
    %v359 = vpop.permute.xlu0 %358
    %360 = vrot.lane.b32.xlu0 %v350, 126
    %v361 = vpop.permute.xlu0 %360
    %362 = vrot.lane.b32.xlu0 %v351, 126
    %v363 = vpop.permute.xlu0 %362
    %v368 = vadd.f32 %v264, %v357
    %v369 = vadd.f32 %v265, %v359
    %v370 = vadd.f32 %v266, %v361
    %v371 = vadd.f32 %v267, %v363
    %s372 = sld [smem:[#allocation3 + $0x6e]]
    %v373 = vstv %s372
    %v374 = vmul.f32 %v373, %v146
    %v375 = vmul.f32 %v373, %v147
    %v376 = vmul.f32 %v373, %v148
    %v377 = vmul.f32 %v373, %v149
    %382 = vrot.lane.b32.xlu0 %v374, 126
    %v383 = vpop.permute.xlu0 %382
    %384 = vrot.lane.b32.xlu0 %v375, 126
    %v385 = vpop.permute.xlu0 %384
    %386 = vrot.lane.b32.xlu0 %v376, 126
    %v387 = vpop.permute.xlu0 %386
    %388 = vrot.lane.b32.xlu0 %v377, 126
    %v389 = vpop.permute.xlu0 %388
    %v394 = vadd.f32 %v290, %v383
    %v395 = vadd.f32 %v291, %v385
    %v396 = vadd.f32 %v292, %v387
    %v397 = vadd.f32 %v293, %v389
    %v398 = vld [vmem:[%s0 + $0x1] sm:$0xff]
    %v399 = vld [vmem:[%s0 + $0x9] sm:$0xff]
    %v400 = vld [vmem:[%s0 + $0x61] sm:$0xff]
    %v401 = vld [vmem:[%s0 + $0x69] sm:$0xff]
    %s402 = sld [smem:[#allocation3 + $0x3]]
    %v403 = vstv %s402
    %v404 = vmul.f32 %v403, %v398
    %v405 = vmul.f32 %v403, %v399
    %v406 = vmul.f32 %v403, %v400
    %v407 = vmul.f32 %v403, %v401
    %v408 = vadd.f32 %v316, %v404
    %v409 = vadd.f32 %v317, %v405
    %v410 = vadd.f32 %v318, %v406
    %v411 = vadd.f32 %v319, %v407
    %s412 = sld [smem:[#allocation3 + $0x27]]
    %v413 = vstv %s412
    %v414 = vmul.f32 %v413, %v398
    %v415 = vmul.f32 %v413, %v399
    %v416 = vmul.f32 %v413, %v400
    %v417 = vmul.f32 %v413, %v401
    %v418 = vadd.f32 %v342, %v414
    %v419 = vadd.f32 %v343, %v415
    %v420 = vadd.f32 %v344, %v416
    %v421 = vadd.f32 %v345, %v417
    %s422 = sld [smem:[#allocation3 + $0x4b]]
    %v423 = vstv %s422
    %v424 = vmul.f32 %v423, %v398
    %v425 = vmul.f32 %v423, %v399
    %v426 = vmul.f32 %v423, %v400
    %v427 = vmul.f32 %v423, %v401
    %v428 = vadd.f32 %v368, %v424
    %v429 = vadd.f32 %v369, %v425
    %v430 = vadd.f32 %v370, %v426
    %v431 = vadd.f32 %v371, %v427
    %s432 = sld [smem:[#allocation3 + $0x6f]]
    %v433 = vstv %s432
    %v434 = vmul.f32 %v433, %v398
    %v435 = vmul.f32 %v433, %v399
    %v436 = vmul.f32 %v433, %v400
    %v437 = vmul.f32 %v433, %v401
    %v438 = vadd.f32 %v394, %v434
    %v439 = vadd.f32 %v395, %v435
    %v440 = vadd.f32 %v396, %v436
    %v441 = vadd.f32 %v397, %v437
    %s442 = sld [smem:[#allocation3 + $0x4]]
    %v443 = vstv %s442
    %v444 = vmul.f32 %v443, %v398
    %v445 = vmul.f32 %v443, %v399
    %v446 = vmul.f32 %v443, %v400
    %v447 = vmul.f32 %v443, %v401
    %452 = vrot.lane.b32.xlu0 %v444, 127
    %v453 = vpop.permute.xlu0 %452
    %454 = vrot.lane.b32.xlu0 %v445, 127
    %v455 = vpop.permute.xlu0 %454
    %456 = vrot.lane.b32.xlu0 %v446, 127
    %v457 = vpop.permute.xlu0 %456
    %458 = vrot.lane.b32.xlu0 %v447, 127
    %v459 = vpop.permute.xlu0 %458
    %v464 = vadd.f32 %v408, %v453
    %v465 = vadd.f32 %v409, %v455
    %v466 = vadd.f32 %v410, %v457
    %v467 = vadd.f32 %v411, %v459
    %s468 = sld [smem:[#allocation3 + $0x28]]
    %v469 = vstv %s468
    %v470 = vmul.f32 %v469, %v398
    %v471 = vmul.f32 %v469, %v399
    %v472 = vmul.f32 %v469, %v400
    %v473 = vmul.f32 %v469, %v401
    %478 = vrot.lane.b32.xlu0 %v470, 127
    %v479 = vpop.permute.xlu0 %478
    %480 = vrot.lane.b32.xlu0 %v471, 127
    %v481 = vpop.permute.xlu0 %480
    %482 = vrot.lane.b32.xlu0 %v472, 127
    %v483 = vpop.permute.xlu0 %482
    %484 = vrot.lane.b32.xlu0 %v473, 127
    %v485 = vpop.permute.xlu0 %484
    %v490 = vadd.f32 %v418, %v479
    %v491 = vadd.f32 %v419, %v481
    %v492 = vadd.f32 %v420, %v483
    %v493 = vadd.f32 %v421, %v485
    %s494 = sld [smem:[#allocation3 + $0x4c]]
    %v495 = vstv %s494
    %v496 = vmul.f32 %v495, %v398
    %v497 = vmul.f32 %v495, %v399
    %v498 = vmul.f32 %v495, %v400
    %v499 = vmul.f32 %v495, %v401
    %504 = vrot.lane.b32.xlu0 %v496, 127
    %v505 = vpop.permute.xlu0 %504
    %506 = vrot.lane.b32.xlu0 %v497, 127
    %v507 = vpop.permute.xlu0 %506
    %508 = vrot.lane.b32.xlu0 %v498, 127
    %v509 = vpop.permute.xlu0 %508
    %510 = vrot.lane.b32.xlu0 %v499, 127
    %v511 = vpop.permute.xlu0 %510
    %v516 = vadd.f32 %v428, %v505
    %v517 = vadd.f32 %v429, %v507
    %v518 = vadd.f32 %v430, %v509
    %v519 = vadd.f32 %v431, %v511
    %s520 = sld [smem:[#allocation3 + $0x70]]
    %v521 = vstv %s520
    %v522 = vmul.f32 %v521, %v398
    %v523 = vmul.f32 %v521, %v399
    %v524 = vmul.f32 %v521, %v400
    %v525 = vmul.f32 %v521, %v401
    %530 = vrot.lane.b32.xlu0 %v522, 127
    %v531 = vpop.permute.xlu0 %530
    %532 = vrot.lane.b32.xlu0 %v523, 127
    %v533 = vpop.permute.xlu0 %532
    %534 = vrot.lane.b32.xlu0 %v524, 127
    %v535 = vpop.permute.xlu0 %534
    %536 = vrot.lane.b32.xlu0 %v525, 127
    %v537 = vpop.permute.xlu0 %536
    %v542 = vadd.f32 %v438, %v531
    %v543 = vadd.f32 %v439, %v533
    %v544 = vadd.f32 %v440, %v535
    %v545 = vadd.f32 %v441, %v537
    %s546 = sld [smem:[#allocation3 + $0x5]]
    %v547 = vstv %s546
    %v548 = vmul.f32 %v547, %v398
    %v549 = vmul.f32 %v547, %v399
    %v550 = vmul.f32 %v547, %v400
    %v551 = vmul.f32 %v547, %v401
    %556 = vrot.lane.b32.xlu0 %v548, 126
    %v557 = vpop.permute.xlu0 %556
    %558 = vrot.lane.b32.xlu0 %v549, 126
    %v559 = vpop.permute.xlu0 %558
    %560 = vrot.lane.b32.xlu0 %v550, 126
    %v561 = vpop.permute.xlu0 %560
    %562 = vrot.lane.b32.xlu0 %v551, 126
    %v563 = vpop.permute.xlu0 %562
    %v568 = vadd.f32 %v464, %v557
    %v569 = vadd.f32 %v465, %v559
    %v570 = vadd.f32 %v466, %v561
    %v571 = vadd.f32 %v467, %v563
    %s572 = sld [smem:[#allocation3 + $0x29]]
    %v573 = vstv %s572
    %v574 = vmul.f32 %v573, %v398
    %v575 = vmul.f32 %v573, %v399
    %v576 = vmul.f32 %v573, %v400
    %v577 = vmul.f32 %v573, %v401
    %582 = vrot.lane.b32.xlu0 %v574, 126
    %v583 = vpop.permute.xlu0 %582
    %584 = vrot.lane.b32.xlu0 %v575, 126
    %v585 = vpop.permute.xlu0 %584
    %586 = vrot.lane.b32.xlu0 %v576, 126
    %v587 = vpop.permute.xlu0 %586
    %588 = vrot.lane.b32.xlu0 %v577, 126
    %v589 = vpop.permute.xlu0 %588
    %v594 = vadd.f32 %v490, %v583
    %v595 = vadd.f32 %v491, %v585
    %v596 = vadd.f32 %v492, %v587
    %v597 = vadd.f32 %v493, %v589
    %s598 = sld [smem:[#allocation3 + $0x4d]]
    %v599 = vstv %s598
    %v600 = vmul.f32 %v599, %v398
    %v601 = vmul.f32 %v599, %v399
    %v602 = vmul.f32 %v599, %v400
    %v603 = vmul.f32 %v599, %v401
    %608 = vrot.lane.b32.xlu0 %v600, 126
    %v609 = vpop.permute.xlu0 %608
    %610 = vrot.lane.b32.xlu0 %v601, 126
    %v611 = vpop.permute.xlu0 %610
    %612 = vrot.lane.b32.xlu0 %v602, 126
    %v613 = vpop.permute.xlu0 %612
    %614 = vrot.lane.b32.xlu0 %v603, 126
    %v615 = vpop.permute.xlu0 %614
    %v620 = vadd.f32 %v516, %v609
    %v621 = vadd.f32 %v517, %v611
    %v622 = vadd.f32 %v518, %v613
    %v623 = vadd.f32 %v519, %v615
    %s624 = sld [smem:[#allocation3 + $0x71]]
    %v625 = vstv %s624
    %v626 = vmul.f32 %v625, %v398
    %v627 = vmul.f32 %v625, %v399
    %v628 = vmul.f32 %v625, %v400
    %v629 = vmul.f32 %v625, %v401
    %634 = vrot.lane.b32.xlu0 %v626, 126
    %v635 = vpop.permute.xlu0 %634
    %636 = vrot.lane.b32.xlu0 %v627, 126
    %v637 = vpop.permute.xlu0 %636
    %638 = vrot.lane.b32.xlu0 %v628, 126
    %v639 = vpop.permute.xlu0 %638
    %640 = vrot.lane.b32.xlu0 %v629, 126
    %v641 = vpop.permute.xlu0 %640
    %v646 = vadd.f32 %v542, %v635
    %v647 = vadd.f32 %v543, %v637
    %v648 = vadd.f32 %v544, %v639
    %v649 = vadd.f32 %v545, %v641
    %v650 = vld [vmem:[%s0 + $0x2] sm:$0xff]
    %v651 = vld [vmem:[%s0 + $0xa] sm:$0xff]
    %v652 = vld [vmem:[%s0 + $0x62] sm:$0xff]
    %v653 = vld [vmem:[%s0 + $0x6a] sm:$0xff]
    %s654 = sld [smem:[#allocation3 + $0x6]]
    %v655 = vstv %s654
    %v656 = vmul.f32 %v655, %v650
    %v657 = vmul.f32 %v655, %v651
    %v658 = vmul.f32 %v655, %v652
    %v659 = vmul.f32 %v655, %v653
    %v660 = vadd.f32 %v568, %v656
    %v661 = vadd.f32 %v569, %v657
    %v662 = vadd.f32 %v570, %v658
    %v663 = vadd.f32 %v571, %v659
    %s664 = sld [smem:[#allocation3 + $0x2a]]
    %v665 = vstv %s664
    %v666 = vmul.f32 %v665, %v650
    %v667 = vmul.f32 %v665, %v651
    %v668 = vmul.f32 %v665, %v652
    %v669 = vmul.f32 %v665, %v653
    %v670 = vadd.f32 %v594, %v666
    %v671 = vadd.f32 %v595, %v667
    %v672 = vadd.f32 %v596, %v668
    %v673 = vadd.f32 %v597, %v669
    %s674 = sld [smem:[#allocation3 + $0x4e]]
    %v675 = vstv %s674
    %v676 = vmul.f32 %v675, %v650
    %v677 = vmul.f32 %v675, %v651
    %v678 = vmul.f32 %v675, %v652
    %v679 = vmul.f32 %v675, %v653
    %v680 = vadd.f32 %v620, %v676
    %v681 = vadd.f32 %v621, %v677
    %v682 = vadd.f32 %v622, %v678
    %v683 = vadd.f32 %v623, %v679
    %s684 = sld [smem:[#allocation3 + $0x72]]
    %v685 = vstv %s684
    %v686 = vmul.f32 %v685, %v650
    %v687 = vmul.f32 %v685, %v651
    %v688 = vmul.f32 %v685, %v652
    %v689 = vmul.f32 %v685, %v653
    %v690 = vadd.f32 %v646, %v686
    %v691 = vadd.f32 %v647, %v687
    %v692 = vadd.f32 %v648, %v688
    %v693 = vadd.f32 %v649, %v689
    %s694 = sld [smem:[#allocation3 + $0x7]]
    %v695 = vstv %s694
    %v696 = vmul.f32 %v695, %v650
    %v697 = vmul.f32 %v695, %v651
    %v698 = vmul.f32 %v695, %v652
    %v699 = vmul.f32 %v695, %v653
    %704 = vrot.lane.b32.xlu0 %v696, 127
    %v705 = vpop.permute.xlu0 %704
    %706 = vrot.lane.b32.xlu0 %v697, 127
    %v707 = vpop.permute.xlu0 %706
    %708 = vrot.lane.b32.xlu0 %v698, 127
    %v709 = vpop.permute.xlu0 %708
    %710 = vrot.lane.b32.xlu0 %v699, 127
    %v711 = vpop.permute.xlu0 %710
    %v716 = vadd.f32 %v660, %v705
    %v717 = vadd.f32 %v661, %v707
    %v718 = vadd.f32 %v662, %v709
    %v719 = vadd.f32 %v663, %v711
    %s720 = sld [smem:[#allocation3 + $0x2b]]
    %v721 = vstv %s720
    %v722 = vmul.f32 %v721, %v650
    %v723 = vmul.f32 %v721, %v651
    %v724 = vmul.f32 %v721, %v652
    %v725 = vmul.f32 %v721, %v653
    %730 = vrot.lane.b32.xlu0 %v722, 127
    %v731 = vpop.permute.xlu0 %730
    %732 = vrot.lane.b32.xlu0 %v723, 127
    %v733 = vpop.permute.xlu0 %732
    %734 = vrot.lane.b32.xlu0 %v724, 127
    %v735 = vpop.permute.xlu0 %734
    %736 = vrot.lane.b32.xlu0 %v725, 127
    %v737 = vpop.permute.xlu0 %736
    %v742 = vadd.f32 %v670, %v731
    %v743 = vadd.f32 %v671, %v733
    %v744 = vadd.f32 %v672, %v735
    %v745 = vadd.f32 %v673, %v737
    %s746 = sld [smem:[#allocation3 + $0x4f]]
    %v747 = vstv %s746
    %v748 = vmul.f32 %v747, %v650
    %v749 = vmul.f32 %v747, %v651
    %v750 = vmul.f32 %v747, %v652
    %v751 = vmul.f32 %v747, %v653
    %756 = vrot.lane.b32.xlu0 %v748, 127
    %v757 = vpop.permute.xlu0 %756
    %758 = vrot.lane.b32.xlu0 %v749, 127
    %v759 = vpop.permute.xlu0 %758
    %760 = vrot.lane.b32.xlu0 %v750, 127
    %v761 = vpop.permute.xlu0 %760
    %762 = vrot.lane.b32.xlu0 %v751, 127
    %v763 = vpop.permute.xlu0 %762
    %v768 = vadd.f32 %v680, %v757
    %v769 = vadd.f32 %v681, %v759
    %v770 = vadd.f32 %v682, %v761
    %v771 = vadd.f32 %v683, %v763
    %s772 = sld [smem:[#allocation3 + $0x73]]
    %v773 = vstv %s772
    %v774 = vmul.f32 %v773, %v650
    %v775 = vmul.f32 %v773, %v651
    %v776 = vmul.f32 %v773, %v652
    %v777 = vmul.f32 %v773, %v653
    %782 = vrot.lane.b32.xlu0 %v774, 127
    %v783 = vpop.permute.xlu0 %782
    %784 = vrot.lane.b32.xlu0 %v775, 127
    %v785 = vpop.permute.xlu0 %784
    %786 = vrot.lane.b32.xlu0 %v776, 127
    %v787 = vpop.permute.xlu0 %786
    %788 = vrot.lane.b32.xlu0 %v777, 127
    %v789 = vpop.permute.xlu0 %788
    %v794 = vadd.f32 %v690, %v783
    %v795 = vadd.f32 %v691, %v785
    %v796 = vadd.f32 %v692, %v787
    %v797 = vadd.f32 %v693, %v789
    %s798 = sld [smem:[#allocation3 + $0x8]]
    %v799 = vstv %s798
    %v800 = vmul.f32 %v799, %v650
    %v801 = vmul.f32 %v799, %v651
    %v802 = vmul.f32 %v799, %v652
    %v803 = vmul.f32 %v799, %v653
    %808 = vrot.lane.b32.xlu0 %v800, 126
    %v809 = vpop.permute.xlu0 %808
    %810 = vrot.lane.b32.xlu0 %v801, 126
    %v811 = vpop.permute.xlu0 %810
    %812 = vrot.lane.b32.xlu0 %v802, 126
    %v813 = vpop.permute.xlu0 %812
    %814 = vrot.lane.b32.xlu0 %v803, 126
    %v815 = vpop.permute.xlu0 %814
    %v820 = vadd.f32 %v716, %v809
    %v821 = vadd.f32 %v717, %v811
    %v822 = vadd.f32 %v718, %v813
    %v823 = vadd.f32 %v719, %v815
    %s824 = sld [smem:[#allocation3 + $0x2c]]
    %v825 = vstv %s824
    %v826 = vmul.f32 %v825, %v650
    %v827 = vmul.f32 %v825, %v651
    %v828 = vmul.f32 %v825, %v652
    %v829 = vmul.f32 %v825, %v653
    %834 = vrot.lane.b32.xlu0 %v826, 126
    %v835 = vpop.permute.xlu0 %834
    %836 = vrot.lane.b32.xlu0 %v827, 126
    %v837 = vpop.permute.xlu0 %836
    %838 = vrot.lane.b32.xlu0 %v828, 126
    %v839 = vpop.permute.xlu0 %838
    %840 = vrot.lane.b32.xlu0 %v829, 126
    %v841 = vpop.permute.xlu0 %840
    %v846 = vadd.f32 %v742, %v835
    %v847 = vadd.f32 %v743, %v837
    %v848 = vadd.f32 %v744, %v839
    %v849 = vadd.f32 %v745, %v841
    %s850 = sld [smem:[#allocation3 + $0x50]]
    %v851 = vstv %s850
    %v852 = vmul.f32 %v851, %v650
    %v853 = vmul.f32 %v851, %v651
    %v854 = vmul.f32 %v851, %v652
    %v855 = vmul.f32 %v851, %v653
    %860 = vrot.lane.b32.xlu0 %v852, 126
    %v861 = vpop.permute.xlu0 %860
    %862 = vrot.lane.b32.xlu0 %v853, 126
    %v863 = vpop.permute.xlu0 %862
    %864 = vrot.lane.b32.xlu0 %v854, 126
    %v865 = vpop.permute.xlu0 %864
    %866 = vrot.lane.b32.xlu0 %v855, 126
    %v867 = vpop.permute.xlu0 %866
    %v872 = vadd.f32 %v768, %v861
    %v873 = vadd.f32 %v769, %v863
    %v874 = vadd.f32 %v770, %v865
    %v875 = vadd.f32 %v771, %v867
    %s876 = sld [smem:[#allocation3 + $0x74]]
    %v877 = vstv %s876
    %v878 = vmul.f32 %v877, %v650
    %v879 = vmul.f32 %v877, %v651
    %v880 = vmul.f32 %v877, %v652
    %v881 = vmul.f32 %v877, %v653
    %886 = vrot.lane.b32.xlu0 %v878, 126
    %v887 = vpop.permute.xlu0 %886
    %888 = vrot.lane.b32.xlu0 %v879, 126
    %v889 = vpop.permute.xlu0 %888
    %890 = vrot.lane.b32.xlu0 %v880, 126
    %v891 = vpop.permute.xlu0 %890
    %892 = vrot.lane.b32.xlu0 %v881, 126
    %v893 = vpop.permute.xlu0 %892
    %v898 = vadd.f32 %v794, %v887
    %v899 = vadd.f32 %v795, %v889
    %v900 = vadd.f32 %v796, %v891
    %v901 = vadd.f32 %v797, %v893
    %s902 = scalar_lea.vmem %s0, 24
    %v903 = vld [vmem:[%s902] sm:$0xff]
    %v904 = vld [vmem:[%s902 + $0x8] sm:$0xff]
    %v905 = vld [vmem:[%s902 + $0x60] sm:$0xff]
    %v906 = vld [vmem:[%s902 + $0x68] sm:$0xff]
    %s907 = sld [smem:[#allocation3 + $0x9]]
    %v908 = vstv %s907
    %v909 = vmul.f32 %v908, %v903
    %v910 = vmul.f32 %v908, %v904
    %v911 = vmul.f32 %v908, %v905
    %v912 = vmul.f32 %v908, %v906
    %v913 = vadd.f32 %v820, %v909
    %v914 = vadd.f32 %v821, %v910
    %v915 = vadd.f32 %v822, %v911
    %v916 = vadd.f32 %v823, %v912
    %s917 = sld [smem:[#allocation3 + $0x2d]]
    %v918 = vstv %s917
    %v919 = vmul.f32 %v918, %v903
    %v920 = vmul.f32 %v918, %v904
    %v921 = vmul.f32 %v918, %v905
    %v922 = vmul.f32 %v918, %v906
    %v923 = vadd.f32 %v846, %v919
    %v924 = vadd.f32 %v847, %v920
    %v925 = vadd.f32 %v848, %v921
    %v926 = vadd.f32 %v849, %v922
    %s927 = sld [smem:[#allocation3 + $0x51]]
    %v928 = vstv %s927
    %v929 = vmul.f32 %v928, %v903
    %v930 = vmul.f32 %v928, %v904
    %v931 = vmul.f32 %v928, %v905
    %v932 = vmul.f32 %v928, %v906
    %v933 = vadd.f32 %v872, %v929
    %v934 = vadd.f32 %v873, %v930
    %v935 = vadd.f32 %v874, %v931
    %v936 = vadd.f32 %v875, %v932
    %s937 = sld [smem:[#allocation3 + $0x75]]
    %v938 = vstv %s937
    %v939 = vmul.f32 %v938, %v903
    %v940 = vmul.f32 %v938, %v904
    %v941 = vmul.f32 %v938, %v905
    %v942 = vmul.f32 %v938, %v906
    %v943 = vadd.f32 %v898, %v939
    %v944 = vadd.f32 %v899, %v940
    %v945 = vadd.f32 %v900, %v941
    %v946 = vadd.f32 %v901, %v942
    %s947 = sld [smem:[#allocation3 + $0xa]]
    %v948 = vstv %s947
    %v949 = vmul.f32 %v948, %v903
    %v950 = vmul.f32 %v948, %v904
    %v951 = vmul.f32 %v948, %v905
    %v952 = vmul.f32 %v948, %v906
    %957 = vrot.lane.b32.xlu0 %v949, 127
    %v958 = vpop.permute.xlu0 %957
    %959 = vrot.lane.b32.xlu0 %v950, 127
    %v960 = vpop.permute.xlu0 %959
    %961 = vrot.lane.b32.xlu0 %v951, 127
    %v962 = vpop.permute.xlu0 %961
    %963 = vrot.lane.b32.xlu0 %v952, 127
    %v964 = vpop.permute.xlu0 %963
    %v969 = vadd.f32 %v913, %v958
    %v970 = vadd.f32 %v914, %v960
    %v971 = vadd.f32 %v915, %v962
    %v972 = vadd.f32 %v916, %v964
    %s973 = sld [smem:[#allocation3 + $0x2e]]
    %v974 = vstv %s973
    %v975 = vmul.f32 %v974, %v903
    %v976 = vmul.f32 %v974, %v904
    %v977 = vmul.f32 %v974, %v905
    %v978 = vmul.f32 %v974, %v906
    %983 = vrot.lane.b32.xlu0 %v975, 127
    %v984 = vpop.permute.xlu0 %983
    %985 = vrot.lane.b32.xlu0 %v976, 127
    %v986 = vpop.permute.xlu0 %985
    %987 = vrot.lane.b32.xlu0 %v977, 127
    %v988 = vpop.permute.xlu0 %987
    %989 = vrot.lane.b32.xlu0 %v978, 127
    %v990 = vpop.permute.xlu0 %989
    %v995 = vadd.f32 %v923, %v984
    %v996 = vadd.f32 %v924, %v986
    %v997 = vadd.f32 %v925, %v988
    %v998 = vadd.f32 %v926, %v990
    %s999 = sld [smem:[#allocation3 + $0x52]]
    %v1000 = vstv %s999
    %v1001 = vmul.f32 %v1000, %v903
    %v1002 = vmul.f32 %v1000, %v904
    %v1003 = vmul.f32 %v1000, %v905
    %v1004 = vmul.f32 %v1000, %v906
    %1009 = vrot.lane.b32.xlu0 %v1001, 127
    %v1010 = vpop.permute.xlu0 %1009
    %1011 = vrot.lane.b32.xlu0 %v1002, 127
    %v1012 = vpop.permute.xlu0 %1011
    %1013 = vrot.lane.b32.xlu0 %v1003, 127
    %v1014 = vpop.permute.xlu0 %1013
    %1015 = vrot.lane.b32.xlu0 %v1004, 127
    %v1016 = vpop.permute.xlu0 %1015
    %v1021 = vadd.f32 %v933, %v1010
    %v1022 = vadd.f32 %v934, %v1012
    %v1023 = vadd.f32 %v935, %v1014
    %v1024 = vadd.f32 %v936, %v1016
    %s1025 = sld [smem:[#allocation3 + $0x76]]
    %v1026 = vstv %s1025
    %v1027 = vmul.f32 %v1026, %v903
    %v1028 = vmul.f32 %v1026, %v904
    %v1029 = vmul.f32 %v1026, %v905
    %v1030 = vmul.f32 %v1026, %v906
    %1035 = vrot.lane.b32.xlu0 %v1027, 127
    %v1036 = vpop.permute.xlu0 %1035
    %1037 = vrot.lane.b32.xlu0 %v1028, 127
    %v1038 = vpop.permute.xlu0 %1037
    %1039 = vrot.lane.b32.xlu0 %v1029, 127
    %v1040 = vpop.permute.xlu0 %1039
    %1041 = vrot.lane.b32.xlu0 %v1030, 127
    %v1042 = vpop.permute.xlu0 %1041
    %v1047 = vadd.f32 %v943, %v1036
    %v1048 = vadd.f32 %v944, %v1038
    %v1049 = vadd.f32 %v945, %v1040
    %v1050 = vadd.f32 %v946, %v1042
    %s1051 = sld [smem:[#allocation3 + $0xb]]
    %v1052 = vstv %s1051
    %v1053 = vmul.f32 %v1052, %v903
    %v1054 = vmul.f32 %v1052, %v904
    %v1055 = vmul.f32 %v1052, %v905
    %v1056 = vmul.f32 %v1052, %v906
    %1061 = vrot.lane.b32.xlu0 %v1053, 126
    %v1062 = vpop.permute.xlu0 %1061
    %1063 = vrot.lane.b32.xlu0 %v1054, 126
    %v1064 = vpop.permute.xlu0 %1063
    %1065 = vrot.lane.b32.xlu0 %v1055, 126
    %v1066 = vpop.permute.xlu0 %1065
    %1067 = vrot.lane.b32.xlu0 %v1056, 126
    %v1068 = vpop.permute.xlu0 %1067
    %v1073 = vadd.f32 %v969, %v1062
    %v1074 = vadd.f32 %v970, %v1064
    %v1075 = vadd.f32 %v971, %v1066
    %v1076 = vadd.f32 %v972, %v1068
    %s1077 = sld [smem:[#allocation3 + $0x2f]]
    %v1078 = vstv %s1077
    %v1079 = vmul.f32 %v1078, %v903
    %v1080 = vmul.f32 %v1078, %v904
    %v1081 = vmul.f32 %v1078, %v905
    %v1082 = vmul.f32 %v1078, %v906
    %1087 = vrot.lane.b32.xlu0 %v1079, 126
    %v1088 = vpop.permute.xlu0 %1087
    %1089 = vrot.lane.b32.xlu0 %v1080, 126
    %v1090 = vpop.permute.xlu0 %1089
    %1091 = vrot.lane.b32.xlu0 %v1081, 126
    %v1092 = vpop.permute.xlu0 %1091
    %1093 = vrot.lane.b32.xlu0 %v1082, 126
    %v1094 = vpop.permute.xlu0 %1093
    %v1099 = vadd.f32 %v995, %v1088
    %v1100 = vadd.f32 %v996, %v1090
    %v1101 = vadd.f32 %v997, %v1092
    %v1102 = vadd.f32 %v998, %v1094
    %s1103 = sld [smem:[#allocation3 + $0x53]]
    %v1104 = vstv %s1103
    %v1105 = vmul.f32 %v1104, %v903
    %v1106 = vmul.f32 %v1104, %v904
    %v1107 = vmul.f32 %v1104, %v905
    %v1108 = vmul.f32 %v1104, %v906
    %1113 = vrot.lane.b32.xlu0 %v1105, 126
    %v1114 = vpop.permute.xlu0 %1113
    %1115 = vrot.lane.b32.xlu0 %v1106, 126
    %v1116 = vpop.permute.xlu0 %1115
    %1117 = vrot.lane.b32.xlu0 %v1107, 126
    %v1118 = vpop.permute.xlu0 %1117
    %1119 = vrot.lane.b32.xlu0 %v1108, 126
    %v1120 = vpop.permute.xlu0 %1119
    %v1125 = vadd.f32 %v1021, %v1114
    %v1126 = vadd.f32 %v1022, %v1116
    %v1127 = vadd.f32 %v1023, %v1118
    %v1128 = vadd.f32 %v1024, %v1120
    %s1129 = sld [smem:[#allocation3 + $0x77]]
    %v1130 = vstv %s1129
    %v1131 = vmul.f32 %v1130, %v903
    %v1132 = vmul.f32 %v1130, %v904
    %v1133 = vmul.f32 %v1130, %v905
    %v1134 = vmul.f32 %v1130, %v906
    %1139 = vrot.lane.b32.xlu0 %v1131, 126
    %v1140 = vpop.permute.xlu0 %1139
    %1141 = vrot.lane.b32.xlu0 %v1132, 126
    %v1142 = vpop.permute.xlu0 %1141
    %1143 = vrot.lane.b32.xlu0 %v1133, 126
    %v1144 = vpop.permute.xlu0 %1143
    %1145 = vrot.lane.b32.xlu0 %v1134, 126
    %v1146 = vpop.permute.xlu0 %1145
    %v1151 = vadd.f32 %v1047, %v1140
    %v1152 = vadd.f32 %v1048, %v1142
    %v1153 = vadd.f32 %v1049, %v1144
    %v1154 = vadd.f32 %v1050, %v1146
    %v1155 = vld [vmem:[%s902 + $0x1] sm:$0xff]
    %v1156 = vld [vmem:[%s902 + $0x9] sm:$0xff]
    %v1157 = vld [vmem:[%s902 + $0x61] sm:$0xff]
    %v1158 = vld [vmem:[%s902 + $0x69] sm:$0xff]
    %s1159 = sld [smem:[#allocation3 + $0xc]]
    %v1160 = vstv %s1159
    %v1161 = vmul.f32 %v1160, %v1155
    %v1162 = vmul.f32 %v1160, %v1156
    %v1163 = vmul.f32 %v1160, %v1157
    %v1164 = vmul.f32 %v1160, %v1158
    %v1165 = vadd.f32 %v1073, %v1161
    %v1166 = vadd.f32 %v1074, %v1162
    %v1167 = vadd.f32 %v1075, %v1163
    %v1168 = vadd.f32 %v1076, %v1164
    %s1169 = sld [smem:[#allocation3 + $0x30]]
    %v1170 = vstv %s1169
    %v1171 = vmul.f32 %v1170, %v1155
    %v1172 = vmul.f32 %v1170, %v1156
    %v1173 = vmul.f32 %v1170, %v1157
    %v1174 = vmul.f32 %v1170, %v1158
    %v1175 = vadd.f32 %v1099, %v1171
    %v1176 = vadd.f32 %v1100, %v1172
    %v1177 = vadd.f32 %v1101, %v1173
    %v1178 = vadd.f32 %v1102, %v1174
    %s1179 = sld [smem:[#allocation3 + $0x54]]
    %v1180 = vstv %s1179
    %v1181 = vmul.f32 %v1180, %v1155
    %v1182 = vmul.f32 %v1180, %v1156
    %v1183 = vmul.f32 %v1180, %v1157
    %v1184 = vmul.f32 %v1180, %v1158
    %v1185 = vadd.f32 %v1125, %v1181
    %v1186 = vadd.f32 %v1126, %v1182
    %v1187 = vadd.f32 %v1127, %v1183
    %v1188 = vadd.f32 %v1128, %v1184
    %s1189 = sld [smem:[#allocation3 + $0x78]]
    %v1190 = vstv %s1189
    %v1191 = vmul.f32 %v1190, %v1155
    %v1192 = vmul.f32 %v1190, %v1156
    %v1193 = vmul.f32 %v1190, %v1157
    %v1194 = vmul.f32 %v1190, %v1158
    %v1195 = vadd.f32 %v1151, %v1191
    %v1196 = vadd.f32 %v1152, %v1192
    %v1197 = vadd.f32 %v1153, %v1193
    %v1198 = vadd.f32 %v1154, %v1194
    %s1199 = sld [smem:[#allocation3 + $0xd]]
    %v1200 = vstv %s1199
    %v1201 = vmul.f32 %v1200, %v1155
    %v1202 = vmul.f32 %v1200, %v1156
    %v1203 = vmul.f32 %v1200, %v1157
    %v1204 = vmul.f32 %v1200, %v1158
    %1209 = vrot.lane.b32.xlu0 %v1201, 127
    %v1210 = vpop.permute.xlu0 %1209
    %1211 = vrot.lane.b32.xlu0 %v1202, 127
    %v1212 = vpop.permute.xlu0 %1211
    %1213 = vrot.lane.b32.xlu0 %v1203, 127
    %v1214 = vpop.permute.xlu0 %1213
    %1215 = vrot.lane.b32.xlu0 %v1204, 127
    %v1216 = vpop.permute.xlu0 %1215
    %v1221 = vadd.f32 %v1165, %v1210
    %v1222 = vadd.f32 %v1166, %v1212
    %v1223 = vadd.f32 %v1167, %v1214
    %v1224 = vadd.f32 %v1168, %v1216
    %s1225 = sld [smem:[#allocation3 + $0x31]]
    %v1226 = vstv %s1225
    %v1227 = vmul.f32 %v1226, %v1155
    %v1228 = vmul.f32 %v1226, %v1156
    %v1229 = vmul.f32 %v1226, %v1157
    %v1230 = vmul.f32 %v1226, %v1158
    %1235 = vrot.lane.b32.xlu0 %v1227, 127
    %v1236 = vpop.permute.xlu0 %1235
    %1237 = vrot.lane.b32.xlu0 %v1228, 127
    %v1238 = vpop.permute.xlu0 %1237
    %1239 = vrot.lane.b32.xlu0 %v1229, 127
    %v1240 = vpop.permute.xlu0 %1239
    %1241 = vrot.lane.b32.xlu0 %v1230, 127
    %v1242 = vpop.permute.xlu0 %1241
    %v1247 = vadd.f32 %v1175, %v1236
    %v1248 = vadd.f32 %v1176, %v1238
    %v1249 = vadd.f32 %v1177, %v1240
    %v1250 = vadd.f32 %v1178, %v1242
    %s1251 = sld [smem:[#allocation3 + $0x55]]
    %v1252 = vstv %s1251
    %v1253 = vmul.f32 %v1252, %v1155
    %v1254 = vmul.f32 %v1252, %v1156
    %v1255 = vmul.f32 %v1252, %v1157
    %v1256 = vmul.f32 %v1252, %v1158
    %1261 = vrot.lane.b32.xlu0 %v1253, 127
    %v1262 = vpop.permute.xlu0 %1261
    %1263 = vrot.lane.b32.xlu0 %v1254, 127
    %v1264 = vpop.permute.xlu0 %1263
    %1265 = vrot.lane.b32.xlu0 %v1255, 127
    %v1266 = vpop.permute.xlu0 %1265
    %1267 = vrot.lane.b32.xlu0 %v1256, 127
    %v1268 = vpop.permute.xlu0 %1267
    %v1273 = vadd.f32 %v1185, %v1262
    %v1274 = vadd.f32 %v1186, %v1264
    %v1275 = vadd.f32 %v1187, %v1266
    %v1276 = vadd.f32 %v1188, %v1268
    %s1277 = sld [smem:[#allocation3 + $0x79]]
    %v1278 = vstv %s1277
    %v1279 = vmul.f32 %v1278, %v1155
    %v1280 = vmul.f32 %v1278, %v1156
    %v1281 = vmul.f32 %v1278, %v1157
    %v1282 = vmul.f32 %v1278, %v1158
    %1287 = vrot.lane.b32.xlu0 %v1279, 127
    %v1288 = vpop.permute.xlu0 %1287
    %1289 = vrot.lane.b32.xlu0 %v1280, 127
    %v1290 = vpop.permute.xlu0 %1289
    %1291 = vrot.lane.b32.xlu0 %v1281, 127
    %v1292 = vpop.permute.xlu0 %1291
    %1293 = vrot.lane.b32.xlu0 %v1282, 127
    %v1294 = vpop.permute.xlu0 %1293
    %v1299 = vadd.f32 %v1195, %v1288
    %v1300 = vadd.f32 %v1196, %v1290
    %v1301 = vadd.f32 %v1197, %v1292
    %v1302 = vadd.f32 %v1198, %v1294
    %s1303 = sld [smem:[#allocation3 + $0xe]]
    %v1304 = vstv %s1303
    %v1305 = vmul.f32 %v1304, %v1155
    %v1306 = vmul.f32 %v1304, %v1156
    %v1307 = vmul.f32 %v1304, %v1157
    %v1308 = vmul.f32 %v1304, %v1158
    %1313 = vrot.lane.b32.xlu0 %v1305, 126
    %v1314 = vpop.permute.xlu0 %1313
    %1315 = vrot.lane.b32.xlu0 %v1306, 126
    %v1316 = vpop.permute.xlu0 %1315
    %1317 = vrot.lane.b32.xlu0 %v1307, 126
    %v1318 = vpop.permute.xlu0 %1317
    %1319 = vrot.lane.b32.xlu0 %v1308, 126
    %v1320 = vpop.permute.xlu0 %1319
    %v1325 = vadd.f32 %v1221, %v1314
    %v1326 = vadd.f32 %v1222, %v1316
    %v1327 = vadd.f32 %v1223, %v1318
    %v1328 = vadd.f32 %v1224, %v1320
    %s1329 = sld [smem:[#allocation3 + $0x32]]
    %v1330 = vstv %s1329
    %v1331 = vmul.f32 %v1330, %v1155
    %v1332 = vmul.f32 %v1330, %v1156
    %v1333 = vmul.f32 %v1330, %v1157
    %v1334 = vmul.f32 %v1330, %v1158
    %1339 = vrot.lane.b32.xlu0 %v1331, 126
    %v1340 = vpop.permute.xlu0 %1339
    %1341 = vrot.lane.b32.xlu0 %v1332, 126
    %v1342 = vpop.permute.xlu0 %1341
    %1343 = vrot.lane.b32.xlu0 %v1333, 126
    %v1344 = vpop.permute.xlu0 %1343
    %1345 = vrot.lane.b32.xlu0 %v1334, 126
    %v1346 = vpop.permute.xlu0 %1345
    %v1351 = vadd.f32 %v1247, %v1340
    %v1352 = vadd.f32 %v1248, %v1342
    %v1353 = vadd.f32 %v1249, %v1344
    %v1354 = vadd.f32 %v1250, %v1346
    %s1355 = sld [smem:[#allocation3 + $0x56]]
    %v1356 = vstv %s1355
    %v1357 = vmul.f32 %v1356, %v1155
    %v1358 = vmul.f32 %v1356, %v1156
    %v1359 = vmul.f32 %v1356, %v1157
    %v1360 = vmul.f32 %v1356, %v1158
    %1365 = vrot.lane.b32.xlu0 %v1357, 126
    %v1366 = vpop.permute.xlu0 %1365
    %1367 = vrot.lane.b32.xlu0 %v1358, 126
    %v1368 = vpop.permute.xlu0 %1367
    %1369 = vrot.lane.b32.xlu0 %v1359, 126
    %v1370 = vpop.permute.xlu0 %1369
    %1371 = vrot.lane.b32.xlu0 %v1360, 126
    %v1372 = vpop.permute.xlu0 %1371
    %v1377 = vadd.f32 %v1273, %v1366
    %v1378 = vadd.f32 %v1274, %v1368
    %v1379 = vadd.f32 %v1275, %v1370
    %v1380 = vadd.f32 %v1276, %v1372
    %s1381 = sld [smem:[#allocation3 + $0x7a]]
    %v1382 = vstv %s1381
    %v1383 = vmul.f32 %v1382, %v1155
    %v1384 = vmul.f32 %v1382, %v1156
    %v1385 = vmul.f32 %v1382, %v1157
    %v1386 = vmul.f32 %v1382, %v1158
    %1391 = vrot.lane.b32.xlu0 %v1383, 126
    %v1392 = vpop.permute.xlu0 %1391
    %1393 = vrot.lane.b32.xlu0 %v1384, 126
    %v1394 = vpop.permute.xlu0 %1393
    %1395 = vrot.lane.b32.xlu0 %v1385, 126
    %v1396 = vpop.permute.xlu0 %1395
    %1397 = vrot.lane.b32.xlu0 %v1386, 126
    %v1398 = vpop.permute.xlu0 %1397
    %v1403 = vadd.f32 %v1299, %v1392
    %v1404 = vadd.f32 %v1300, %v1394
    %v1405 = vadd.f32 %v1301, %v1396
    %v1406 = vadd.f32 %v1302, %v1398
    %v1407 = vld [vmem:[%s902 + $0x2] sm:$0xff]
    %v1408 = vld [vmem:[%s902 + $0xa] sm:$0xff]
    %v1409 = vld [vmem:[%s902 + $0x62] sm:$0xff]
    %v1410 = vld [vmem:[%s902 + $0x6a] sm:$0xff]
    %s1411 = sld [smem:[#allocation3 + $0xf]]
    %v1412 = vstv %s1411
    %v1413 = vmul.f32 %v1412, %v1407
    %v1414 = vmul.f32 %v1412, %v1408
    %v1415 = vmul.f32 %v1412, %v1409
    %v1416 = vmul.f32 %v1412, %v1410
    %v1417 = vadd.f32 %v1325, %v1413
    %v1418 = vadd.f32 %v1326, %v1414
    %v1419 = vadd.f32 %v1327, %v1415
    %v1420 = vadd.f32 %v1328, %v1416
    %s1421 = sld [smem:[#allocation3 + $0x33]]
    %v1422 = vstv %s1421
    %v1423 = vmul.f32 %v1422, %v1407
    %v1424 = vmul.f32 %v1422, %v1408
    %v1425 = vmul.f32 %v1422, %v1409
    %v1426 = vmul.f32 %v1422, %v1410
    %v1427 = vadd.f32 %v1351, %v1423
    %v1428 = vadd.f32 %v1352, %v1424
    %v1429 = vadd.f32 %v1353, %v1425
    %v1430 = vadd.f32 %v1354, %v1426
    %s1431 = sld [smem:[#allocation3 + $0x57]]
    %v1432 = vstv %s1431
    %v1433 = vmul.f32 %v1432, %v1407
    %v1434 = vmul.f32 %v1432, %v1408
    %v1435 = vmul.f32 %v1432, %v1409
    %v1436 = vmul.f32 %v1432, %v1410
    %v1437 = vadd.f32 %v1377, %v1433
    %v1438 = vadd.f32 %v1378, %v1434
    %v1439 = vadd.f32 %v1379, %v1435
    %v1440 = vadd.f32 %v1380, %v1436
    %s1441 = sld [smem:[#allocation3 + $0x7b]]
    %v1442 = vstv %s1441
    %v1443 = vmul.f32 %v1442, %v1407
    %v1444 = vmul.f32 %v1442, %v1408
    %v1445 = vmul.f32 %v1442, %v1409
    %v1446 = vmul.f32 %v1442, %v1410
    %v1447 = vadd.f32 %v1403, %v1443
    %v1448 = vadd.f32 %v1404, %v1444
    %v1449 = vadd.f32 %v1405, %v1445
    %v1450 = vadd.f32 %v1406, %v1446
    %s1451 = sld [smem:[#allocation3 + $0x10]]
    %v1452 = vstv %s1451
    %v1453 = vmul.f32 %v1452, %v1407
    %v1454 = vmul.f32 %v1452, %v1408
    %v1455 = vmul.f32 %v1452, %v1409
    %v1456 = vmul.f32 %v1452, %v1410
    %1461 = vrot.lane.b32.xlu0 %v1453, 127
    %v1462 = vpop.permute.xlu0 %1461
    %1463 = vrot.lane.b32.xlu0 %v1454, 127
    %v1464 = vpop.permute.xlu0 %1463
    %1465 = vrot.lane.b32.xlu0 %v1455, 127
    %v1466 = vpop.permute.xlu0 %1465
    %1467 = vrot.lane.b32.xlu0 %v1456, 127
    %v1468 = vpop.permute.xlu0 %1467
    %v1473 = vadd.f32 %v1417, %v1462
    %v1474 = vadd.f32 %v1418, %v1464
    %v1475 = vadd.f32 %v1419, %v1466
    %v1476 = vadd.f32 %v1420, %v1468
    %s1477 = sld [smem:[#allocation3 + $0x34]]
    %v1478 = vstv %s1477
    %v1479 = vmul.f32 %v1478, %v1407
    %v1480 = vmul.f32 %v1478, %v1408
    %v1481 = vmul.f32 %v1478, %v1409
    %v1482 = vmul.f32 %v1478, %v1410
    %1487 = vrot.lane.b32.xlu0 %v1479, 127
    %v1488 = vpop.permute.xlu0 %1487
    %1489 = vrot.lane.b32.xlu0 %v1480, 127
    %v1490 = vpop.permute.xlu0 %1489
    %1491 = vrot.lane.b32.xlu0 %v1481, 127
    %v1492 = vpop.permute.xlu0 %1491
    %1493 = vrot.lane.b32.xlu0 %v1482, 127
    %v1494 = vpop.permute.xlu0 %1493
    %v1499 = vadd.f32 %v1427, %v1488
    %v1500 = vadd.f32 %v1428, %v1490
    %v1501 = vadd.f32 %v1429, %v1492
    %v1502 = vadd.f32 %v1430, %v1494
    %s1503 = sld [smem:[#allocation3 + $0x58]]
    %v1504 = vstv %s1503
    %v1505 = vmul.f32 %v1504, %v1407
    %v1506 = vmul.f32 %v1504, %v1408
    %v1507 = vmul.f32 %v1504, %v1409
    %v1508 = vmul.f32 %v1504, %v1410
    %1513 = vrot.lane.b32.xlu0 %v1505, 127
    %v1514 = vpop.permute.xlu0 %1513
    %1515 = vrot.lane.b32.xlu0 %v1506, 127
    %v1516 = vpop.permute.xlu0 %1515
    %1517 = vrot.lane.b32.xlu0 %v1507, 127
    %v1518 = vpop.permute.xlu0 %1517
    %1519 = vrot.lane.b32.xlu0 %v1508, 127
    %v1520 = vpop.permute.xlu0 %1519
    %v1525 = vadd.f32 %v1437, %v1514
    %v1526 = vadd.f32 %v1438, %v1516
    %v1527 = vadd.f32 %v1439, %v1518
    %v1528 = vadd.f32 %v1440, %v1520
    %s1529 = sld [smem:[#allocation3 + $0x7c]]
    %v1530 = vstv %s1529
    %v1531 = vmul.f32 %v1530, %v1407
    %v1532 = vmul.f32 %v1530, %v1408
    %v1533 = vmul.f32 %v1530, %v1409
    %v1534 = vmul.f32 %v1530, %v1410
    %1539 = vrot.lane.b32.xlu0 %v1531, 127
    %v1540 = vpop.permute.xlu0 %1539
    %1541 = vrot.lane.b32.xlu0 %v1532, 127
    %v1542 = vpop.permute.xlu0 %1541
    %1543 = vrot.lane.b32.xlu0 %v1533, 127
    %v1544 = vpop.permute.xlu0 %1543
    %1545 = vrot.lane.b32.xlu0 %v1534, 127
    %v1546 = vpop.permute.xlu0 %1545
    %v1551 = vadd.f32 %v1447, %v1540
    %v1552 = vadd.f32 %v1448, %v1542
    %v1553 = vadd.f32 %v1449, %v1544
    %v1554 = vadd.f32 %v1450, %v1546
    %s1555 = sld [smem:[#allocation3 + $0x11]]
    %v1556 = vstv %s1555
    %v1557 = vmul.f32 %v1556, %v1407
    %v1558 = vmul.f32 %v1556, %v1408
    %v1559 = vmul.f32 %v1556, %v1409
    %v1560 = vmul.f32 %v1556, %v1410
    %1565 = vrot.lane.b32.xlu0 %v1557, 126
    %v1566 = vpop.permute.xlu0 %1565
    %1567 = vrot.lane.b32.xlu0 %v1558, 126
    %v1568 = vpop.permute.xlu0 %1567
    %1569 = vrot.lane.b32.xlu0 %v1559, 126
    %v1570 = vpop.permute.xlu0 %1569
    %1571 = vrot.lane.b32.xlu0 %v1560, 126
    %v1572 = vpop.permute.xlu0 %1571
    %v1577 = vadd.f32 %v1473, %v1566
    %v1578 = vadd.f32 %v1474, %v1568
    %v1579 = vadd.f32 %v1475, %v1570
    %v1580 = vadd.f32 %v1476, %v1572
    %s1581 = sld [smem:[#allocation3 + $0x35]]
    %v1582 = vstv %s1581
    %v1583 = vmul.f32 %v1582, %v1407
    %v1584 = vmul.f32 %v1582, %v1408
    %v1585 = vmul.f32 %v1582, %v1409
    %v1586 = vmul.f32 %v1582, %v1410
    %1591 = vrot.lane.b32.xlu0 %v1583, 126
    %v1592 = vpop.permute.xlu0 %1591
    %1593 = vrot.lane.b32.xlu0 %v1584, 126
    %v1594 = vpop.permute.xlu0 %1593
    %1595 = vrot.lane.b32.xlu0 %v1585, 126
    %v1596 = vpop.permute.xlu0 %1595
    %1597 = vrot.lane.b32.xlu0 %v1586, 126
    %v1598 = vpop.permute.xlu0 %1597
    %v1603 = vadd.f32 %v1499, %v1592
    %v1604 = vadd.f32 %v1500, %v1594
    %v1605 = vadd.f32 %v1501, %v1596
    %v1606 = vadd.f32 %v1502, %v1598
    %s1607 = sld [smem:[#allocation3 + $0x59]]
    %v1608 = vstv %s1607
    %v1609 = vmul.f32 %v1608, %v1407
    %v1610 = vmul.f32 %v1608, %v1408
    %v1611 = vmul.f32 %v1608, %v1409
    %v1612 = vmul.f32 %v1608, %v1410
    %1617 = vrot.lane.b32.xlu0 %v1609, 126
    %v1618 = vpop.permute.xlu0 %1617
    %1619 = vrot.lane.b32.xlu0 %v1610, 126
    %v1620 = vpop.permute.xlu0 %1619
    %1621 = vrot.lane.b32.xlu0 %v1611, 126
    %v1622 = vpop.permute.xlu0 %1621
    %1623 = vrot.lane.b32.xlu0 %v1612, 126
    %v1624 = vpop.permute.xlu0 %1623
    %v1629 = vadd.f32 %v1525, %v1618
    %v1630 = vadd.f32 %v1526, %v1620
    %v1631 = vadd.f32 %v1527, %v1622
    %v1632 = vadd.f32 %v1528, %v1624
    %s1633 = sld [smem:[#allocation3 + $0x7d]]
    %v1634 = vstv %s1633
    %v1635 = vmul.f32 %v1634, %v1407
    %v1636 = vmul.f32 %v1634, %v1408
    %v1637 = vmul.f32 %v1634, %v1409
    %v1638 = vmul.f32 %v1634, %v1410
    %1643 = vrot.lane.b32.xlu0 %v1635, 126
    %v1644 = vpop.permute.xlu0 %1643
    %1645 = vrot.lane.b32.xlu0 %v1636, 126
    %v1646 = vpop.permute.xlu0 %1645
    %1647 = vrot.lane.b32.xlu0 %v1637, 126
    %v1648 = vpop.permute.xlu0 %1647
    %1649 = vrot.lane.b32.xlu0 %v1638, 126
    %v1650 = vpop.permute.xlu0 %1649
    %v1655 = vadd.f32 %v1551, %v1644
    %v1656 = vadd.f32 %v1552, %v1646
    %v1657 = vadd.f32 %v1553, %v1648
    %v1658 = vadd.f32 %v1554, %v1650
    %s1659 = scalar_lea.vmem %s0, 48
    %v1660 = vld [vmem:[%s1659] sm:$0xff]
    %v1661 = vld [vmem:[%s1659 + $0x8] sm:$0xff]
    %v1662 = vld [vmem:[%s1659 + $0x60] sm:$0xff]
    %v1663 = vld [vmem:[%s1659 + $0x68] sm:$0xff]
    %s1664 = sld [smem:[#allocation3 + $0x12]]
    %v1665 = vstv %s1664
    %v1666 = vmul.f32 %v1665, %v1660
    %v1667 = vmul.f32 %v1665, %v1661
    %v1668 = vmul.f32 %v1665, %v1662
    %v1669 = vmul.f32 %v1665, %v1663
    %v1670 = vadd.f32 %v1577, %v1666
    %v1671 = vadd.f32 %v1578, %v1667
    %v1672 = vadd.f32 %v1579, %v1668
    %v1673 = vadd.f32 %v1580, %v1669
    %s1674 = sld [smem:[#allocation3 + $0x36]]
    %v1675 = vstv %s1674
    %v1676 = vmul.f32 %v1675, %v1660
    %v1677 = vmul.f32 %v1675, %v1661
    %v1678 = vmul.f32 %v1675, %v1662
    %v1679 = vmul.f32 %v1675, %v1663
    %v1680 = vadd.f32 %v1603, %v1676
    %v1681 = vadd.f32 %v1604, %v1677
    %v1682 = vadd.f32 %v1605, %v1678
    %v1683 = vadd.f32 %v1606, %v1679
    %s1684 = sld [smem:[#allocation3 + $0x5a]]
    %v1685 = vstv %s1684
    %v1686 = vmul.f32 %v1685, %v1660
    %v1687 = vmul.f32 %v1685, %v1661
    %v1688 = vmul.f32 %v1685, %v1662
    %v1689 = vmul.f32 %v1685, %v1663
    %v1690 = vadd.f32 %v1629, %v1686
    %v1691 = vadd.f32 %v1630, %v1687
    %v1692 = vadd.f32 %v1631, %v1688
    %v1693 = vadd.f32 %v1632, %v1689
    %s1694 = sld [smem:[#allocation3 + $0x7e]]
    %v1695 = vstv %s1694
    %v1696 = vmul.f32 %v1695, %v1660
    %v1697 = vmul.f32 %v1695, %v1661
    %v1698 = vmul.f32 %v1695, %v1662
    %v1699 = vmul.f32 %v1695, %v1663
    %v1700 = vadd.f32 %v1655, %v1696
    %v1701 = vadd.f32 %v1656, %v1697
    %v1702 = vadd.f32 %v1657, %v1698
    %v1703 = vadd.f32 %v1658, %v1699
    %s1704 = sld [smem:[#allocation3 + $0x13]]
    %v1705 = vstv %s1704
    %v1706 = vmul.f32 %v1705, %v1660
    %v1707 = vmul.f32 %v1705, %v1661
    %v1708 = vmul.f32 %v1705, %v1662
    %v1709 = vmul.f32 %v1705, %v1663
    %1714 = vrot.lane.b32.xlu0 %v1706, 127
    %v1715 = vpop.permute.xlu0 %1714
    %1716 = vrot.lane.b32.xlu0 %v1707, 127
    %v1717 = vpop.permute.xlu0 %1716
    %1718 = vrot.lane.b32.xlu0 %v1708, 127
    %v1719 = vpop.permute.xlu0 %1718
    %1720 = vrot.lane.b32.xlu0 %v1709, 127
    %v1721 = vpop.permute.xlu0 %1720
    %v1726 = vadd.f32 %v1670, %v1715
    %v1727 = vadd.f32 %v1671, %v1717
    %v1728 = vadd.f32 %v1672, %v1719
    %v1729 = vadd.f32 %v1673, %v1721
    %s1730 = sld [smem:[#allocation3 + $0x37]]
    %v1731 = vstv %s1730
    %v1732 = vmul.f32 %v1731, %v1660
    %v1733 = vmul.f32 %v1731, %v1661
    %v1734 = vmul.f32 %v1731, %v1662
    %v1735 = vmul.f32 %v1731, %v1663
    %1740 = vrot.lane.b32.xlu0 %v1732, 127
    %v1741 = vpop.permute.xlu0 %1740
    %1742 = vrot.lane.b32.xlu0 %v1733, 127
    %v1743 = vpop.permute.xlu0 %1742
    %1744 = vrot.lane.b32.xlu0 %v1734, 127
    %v1745 = vpop.permute.xlu0 %1744
    %1746 = vrot.lane.b32.xlu0 %v1735, 127
    %v1747 = vpop.permute.xlu0 %1746
    %v1752 = vadd.f32 %v1680, %v1741
    %v1753 = vadd.f32 %v1681, %v1743
    %v1754 = vadd.f32 %v1682, %v1745
    %v1755 = vadd.f32 %v1683, %v1747
    %s1756 = sld [smem:[#allocation3 + $0x5b]]
    %v1757 = vstv %s1756
    %v1758 = vmul.f32 %v1757, %v1660
    %v1759 = vmul.f32 %v1757, %v1661
    %v1760 = vmul.f32 %v1757, %v1662
    %v1761 = vmul.f32 %v1757, %v1663
    %1766 = vrot.lane.b32.xlu0 %v1758, 127
    %v1767 = vpop.permute.xlu0 %1766
    %1768 = vrot.lane.b32.xlu0 %v1759, 127
    %v1769 = vpop.permute.xlu0 %1768
    %1770 = vrot.lane.b32.xlu0 %v1760, 127
    %v1771 = vpop.permute.xlu0 %1770
    %1772 = vrot.lane.b32.xlu0 %v1761, 127
    %v1773 = vpop.permute.xlu0 %1772
    %v1778 = vadd.f32 %v1690, %v1767
    %v1779 = vadd.f32 %v1691, %v1769
    %v1780 = vadd.f32 %v1692, %v1771
    %v1781 = vadd.f32 %v1693, %v1773
    %s1782 = sld [smem:[#allocation3 + $0x7f]]
    %v1783 = vstv %s1782
    %v1784 = vmul.f32 %v1783, %v1660
    %v1785 = vmul.f32 %v1783, %v1661
    %v1786 = vmul.f32 %v1783, %v1662
    %v1787 = vmul.f32 %v1783, %v1663
    %1792 = vrot.lane.b32.xlu0 %v1784, 127
    %v1793 = vpop.permute.xlu0 %1792
    %1794 = vrot.lane.b32.xlu0 %v1785, 127
    %v1795 = vpop.permute.xlu0 %1794
    %1796 = vrot.lane.b32.xlu0 %v1786, 127
    %v1797 = vpop.permute.xlu0 %1796
    %1798 = vrot.lane.b32.xlu0 %v1787, 127
    %v1799 = vpop.permute.xlu0 %1798
    %v1804 = vadd.f32 %v1700, %v1793
    %v1805 = vadd.f32 %v1701, %v1795
    %v1806 = vadd.f32 %v1702, %v1797
    %v1807 = vadd.f32 %v1703, %v1799
    %s1808 = sld [smem:[#allocation3 + $0x14]]
    %v1809 = vstv %s1808
    %v1810 = vmul.f32 %v1809, %v1660
    %v1811 = vmul.f32 %v1809, %v1661
    %v1812 = vmul.f32 %v1809, %v1662
    %v1813 = vmul.f32 %v1809, %v1663
    %1818 = vrot.lane.b32.xlu0 %v1810, 126
    %v1819 = vpop.permute.xlu0 %1818
    %1820 = vrot.lane.b32.xlu0 %v1811, 126
    %v1821 = vpop.permute.xlu0 %1820
    %1822 = vrot.lane.b32.xlu0 %v1812, 126
    %v1823 = vpop.permute.xlu0 %1822
    %1824 = vrot.lane.b32.xlu0 %v1813, 126
    %v1825 = vpop.permute.xlu0 %1824
    %v1830 = vadd.f32 %v1726, %v1819
    %v1831 = vadd.f32 %v1727, %v1821
    %v1832 = vadd.f32 %v1728, %v1823
    %v1833 = vadd.f32 %v1729, %v1825
    %s1834 = sld [smem:[#allocation3 + $0x38]]
    %v1835 = vstv %s1834
    %v1836 = vmul.f32 %v1835, %v1660
    %v1837 = vmul.f32 %v1835, %v1661
    %v1838 = vmul.f32 %v1835, %v1662
    %v1839 = vmul.f32 %v1835, %v1663
    %1844 = vrot.lane.b32.xlu0 %v1836, 126
    %v1845 = vpop.permute.xlu0 %1844
    %1846 = vrot.lane.b32.xlu0 %v1837, 126
    %v1847 = vpop.permute.xlu0 %1846
    %1848 = vrot.lane.b32.xlu0 %v1838, 126
    %v1849 = vpop.permute.xlu0 %1848
    %1850 = vrot.lane.b32.xlu0 %v1839, 126
    %v1851 = vpop.permute.xlu0 %1850
    %v1856 = vadd.f32 %v1752, %v1845
    %v1857 = vadd.f32 %v1753, %v1847
    %v1858 = vadd.f32 %v1754, %v1849
    %v1859 = vadd.f32 %v1755, %v1851
    %s1860 = sld [smem:[#allocation3 + $0x5c]]
    %v1861 = vstv %s1860
    %v1862 = vmul.f32 %v1861, %v1660
    %v1863 = vmul.f32 %v1861, %v1661
    %v1864 = vmul.f32 %v1861, %v1662
    %v1865 = vmul.f32 %v1861, %v1663
    %1870 = vrot.lane.b32.xlu0 %v1862, 126
    %v1871 = vpop.permute.xlu0 %1870
    %1872 = vrot.lane.b32.xlu0 %v1863, 126
    %v1873 = vpop.permute.xlu0 %1872
    %1874 = vrot.lane.b32.xlu0 %v1864, 126
    %v1875 = vpop.permute.xlu0 %1874
    %1876 = vrot.lane.b32.xlu0 %v1865, 126
    %v1877 = vpop.permute.xlu0 %1876
    %v1882 = vadd.f32 %v1778, %v1871
    %v1883 = vadd.f32 %v1779, %v1873
    %v1884 = vadd.f32 %v1780, %v1875
    %v1885 = vadd.f32 %v1781, %v1877
    %s1886 = sld [smem:[#allocation3 + $0x80]]
    %v1887 = vstv %s1886
    %v1888 = vmul.f32 %v1887, %v1660
    %v1889 = vmul.f32 %v1887, %v1661
    %v1890 = vmul.f32 %v1887, %v1662
    %v1891 = vmul.f32 %v1887, %v1663
    %1896 = vrot.lane.b32.xlu0 %v1888, 126
    %v1897 = vpop.permute.xlu0 %1896
    %1898 = vrot.lane.b32.xlu0 %v1889, 126
    %v1899 = vpop.permute.xlu0 %1898
    %1900 = vrot.lane.b32.xlu0 %v1890, 126
    %v1901 = vpop.permute.xlu0 %1900
    %1902 = vrot.lane.b32.xlu0 %v1891, 126
    %v1903 = vpop.permute.xlu0 %1902
    %v1908 = vadd.f32 %v1804, %v1897
    %v1909 = vadd.f32 %v1805, %v1899
    %v1910 = vadd.f32 %v1806, %v1901
    %v1911 = vadd.f32 %v1807, %v1903
    %v1912 = vld [vmem:[%s1659 + $0x1] sm:$0xff]
    %v1913 = vld [vmem:[%s1659 + $0x9] sm:$0xff]
    %v1914 = vld [vmem:[%s1659 + $0x61] sm:$0xff]
    %v1915 = vld [vmem:[%s1659 + $0x69] sm:$0xff]
    %s1916 = sld [smem:[#allocation3 + $0x15]]
    %v1917 = vstv %s1916
    %v1918 = vmul.f32 %v1917, %v1912
    %v1919 = vmul.f32 %v1917, %v1913
    %v1920 = vmul.f32 %v1917, %v1914
    %v1921 = vmul.f32 %v1917, %v1915
    %v1922 = vadd.f32 %v1830, %v1918
    %v1923 = vadd.f32 %v1831, %v1919
    %v1924 = vadd.f32 %v1832, %v1920
    %v1925 = vadd.f32 %v1833, %v1921
    %s1926 = sld [smem:[#allocation3 + $0x39]]
    %v1927 = vstv %s1926
    %v1928 = vmul.f32 %v1927, %v1912
    %v1929 = vmul.f32 %v1927, %v1913
    %v1930 = vmul.f32 %v1927, %v1914
    %v1931 = vmul.f32 %v1927, %v1915
    %v1932 = vadd.f32 %v1856, %v1928
    %v1933 = vadd.f32 %v1857, %v1929
    %v1934 = vadd.f32 %v1858, %v1930
    %v1935 = vadd.f32 %v1859, %v1931
    %s1936 = sld [smem:[#allocation3 + $0x5d]]
    %v1937 = vstv %s1936
    %v1938 = vmul.f32 %v1937, %v1912
    %v1939 = vmul.f32 %v1937, %v1913
    %v1940 = vmul.f32 %v1937, %v1914
    %v1941 = vmul.f32 %v1937, %v1915
    %v1942 = vadd.f32 %v1882, %v1938
    %v1943 = vadd.f32 %v1883, %v1939
    %v1944 = vadd.f32 %v1884, %v1940
    %v1945 = vadd.f32 %v1885, %v1941
    %s1946 = sld [smem:[#allocation3 + $0x81]]
    %v1947 = vstv %s1946
    %v1948 = vmul.f32 %v1947, %v1912
    %v1949 = vmul.f32 %v1947, %v1913
    %v1950 = vmul.f32 %v1947, %v1914
    %v1951 = vmul.f32 %v1947, %v1915
    %v1952 = vadd.f32 %v1908, %v1948
    %v1953 = vadd.f32 %v1909, %v1949
    %v1954 = vadd.f32 %v1910, %v1950
    %v1955 = vadd.f32 %v1911, %v1951
    %s1956 = sld [smem:[#allocation3 + $0x16]]
    %v1957 = vstv %s1956
    %v1958 = vmul.f32 %v1957, %v1912
    %v1959 = vmul.f32 %v1957, %v1913
    %v1960 = vmul.f32 %v1957, %v1914
    %v1961 = vmul.f32 %v1957, %v1915
    %1966 = vrot.lane.b32.xlu0 %v1958, 127
    %v1967 = vpop.permute.xlu0 %1966
    %1968 = vrot.lane.b32.xlu0 %v1959, 127
    %v1969 = vpop.permute.xlu0 %1968
    %1970 = vrot.lane.b32.xlu0 %v1960, 127
    %v1971 = vpop.permute.xlu0 %1970
    %1972 = vrot.lane.b32.xlu0 %v1961, 127
    %v1973 = vpop.permute.xlu0 %1972
    %v1978 = vadd.f32 %v1922, %v1967
    %v1979 = vadd.f32 %v1923, %v1969
    %v1980 = vadd.f32 %v1924, %v1971
    %v1981 = vadd.f32 %v1925, %v1973
    %s1982 = sld [smem:[#allocation3 + $0x3a]]
    %v1983 = vstv %s1982
    %v1984 = vmul.f32 %v1983, %v1912
    %v1985 = vmul.f32 %v1983, %v1913
    %v1986 = vmul.f32 %v1983, %v1914
    %v1987 = vmul.f32 %v1983, %v1915
    %1992 = vrot.lane.b32.xlu0 %v1984, 127
    %v1993 = vpop.permute.xlu0 %1992
    %1994 = vrot.lane.b32.xlu0 %v1985, 127
    %v1995 = vpop.permute.xlu0 %1994
    %1996 = vrot.lane.b32.xlu0 %v1986, 127
    %v1997 = vpop.permute.xlu0 %1996
    %1998 = vrot.lane.b32.xlu0 %v1987, 127
    %v1999 = vpop.permute.xlu0 %1998
    %v2004 = vadd.f32 %v1932, %v1993
    %v2005 = vadd.f32 %v1933, %v1995
    %v2006 = vadd.f32 %v1934, %v1997
    %v2007 = vadd.f32 %v1935, %v1999
    %s2008 = sld [smem:[#allocation3 + $0x5e]]
    %v2009 = vstv %s2008
    %v2010 = vmul.f32 %v2009, %v1912
    %v2011 = vmul.f32 %v2009, %v1913
    %v2012 = vmul.f32 %v2009, %v1914
    %v2013 = vmul.f32 %v2009, %v1915
    %2018 = vrot.lane.b32.xlu0 %v2010, 127
    %v2019 = vpop.permute.xlu0 %2018
    %2020 = vrot.lane.b32.xlu0 %v2011, 127
    %v2021 = vpop.permute.xlu0 %2020
    %2022 = vrot.lane.b32.xlu0 %v2012, 127
    %v2023 = vpop.permute.xlu0 %2022
    %2024 = vrot.lane.b32.xlu0 %v2013, 127
    %v2025 = vpop.permute.xlu0 %2024
    %v2030 = vadd.f32 %v1942, %v2019
    %v2031 = vadd.f32 %v1943, %v2021
    %v2032 = vadd.f32 %v1944, %v2023
    %v2033 = vadd.f32 %v1945, %v2025
    %s2034 = sld [smem:[#allocation3 + $0x82]]
    %v2035 = vstv %s2034
    %v2036 = vmul.f32 %v2035, %v1912
    %v2037 = vmul.f32 %v2035, %v1913
    %v2038 = vmul.f32 %v2035, %v1914
    %v2039 = vmul.f32 %v2035, %v1915
    %2044 = vrot.lane.b32.xlu0 %v2036, 127
    %v2045 = vpop.permute.xlu0 %2044
    %2046 = vrot.lane.b32.xlu0 %v2037, 127
    %v2047 = vpop.permute.xlu0 %2046
    %2048 = vrot.lane.b32.xlu0 %v2038, 127
    %v2049 = vpop.permute.xlu0 %2048
    %2050 = vrot.lane.b32.xlu0 %v2039, 127
    %v2051 = vpop.permute.xlu0 %2050
    %v2056 = vadd.f32 %v1952, %v2045
    %v2057 = vadd.f32 %v1953, %v2047
    %v2058 = vadd.f32 %v1954, %v2049
    %v2059 = vadd.f32 %v1955, %v2051
    %s2060 = sld [smem:[#allocation3 + $0x17]]
    %v2061 = vstv %s2060
    %v2062 = vmul.f32 %v2061, %v1912
    %v2063 = vmul.f32 %v2061, %v1913
    %v2064 = vmul.f32 %v2061, %v1914
    %v2065 = vmul.f32 %v2061, %v1915
    %2070 = vrot.lane.b32.xlu0 %v2062, 126
    %v2071 = vpop.permute.xlu0 %2070
    %2072 = vrot.lane.b32.xlu0 %v2063, 126
    %v2073 = vpop.permute.xlu0 %2072
    %2074 = vrot.lane.b32.xlu0 %v2064, 126
    %v2075 = vpop.permute.xlu0 %2074
    %2076 = vrot.lane.b32.xlu0 %v2065, 126
    %v2077 = vpop.permute.xlu0 %2076
    %v2082 = vadd.f32 %v1978, %v2071
    %v2083 = vadd.f32 %v1979, %v2073
    %v2084 = vadd.f32 %v1980, %v2075
    %v2085 = vadd.f32 %v1981, %v2077
    %s2086 = sld [smem:[#allocation3 + $0x3b]]
    %v2087 = vstv %s2086
    %v2088 = vmul.f32 %v2087, %v1912
    %v2089 = vmul.f32 %v2087, %v1913
    %v2090 = vmul.f32 %v2087, %v1914
    %v2091 = vmul.f32 %v2087, %v1915
    %2096 = vrot.lane.b32.xlu0 %v2088, 126
    %v2097 = vpop.permute.xlu0 %2096
    %2098 = vrot.lane.b32.xlu0 %v2089, 126
    %v2099 = vpop.permute.xlu0 %2098
    %2100 = vrot.lane.b32.xlu0 %v2090, 126
    %v2101 = vpop.permute.xlu0 %2100
    %2102 = vrot.lane.b32.xlu0 %v2091, 126
    %v2103 = vpop.permute.xlu0 %2102
    %v2108 = vadd.f32 %v2004, %v2097
    %v2109 = vadd.f32 %v2005, %v2099
    %v2110 = vadd.f32 %v2006, %v2101
    %v2111 = vadd.f32 %v2007, %v2103
    %s2112 = sld [smem:[#allocation3 + $0x5f]]
    %v2113 = vstv %s2112
    %v2114 = vmul.f32 %v2113, %v1912
    %v2115 = vmul.f32 %v2113, %v1913
    %v2116 = vmul.f32 %v2113, %v1914
    %v2117 = vmul.f32 %v2113, %v1915
    %2122 = vrot.lane.b32.xlu0 %v2114, 126
    %v2123 = vpop.permute.xlu0 %2122
    %2124 = vrot.lane.b32.xlu0 %v2115, 126
    %v2125 = vpop.permute.xlu0 %2124
    %2126 = vrot.lane.b32.xlu0 %v2116, 126
    %v2127 = vpop.permute.xlu0 %2126
    %2128 = vrot.lane.b32.xlu0 %v2117, 126
    %v2129 = vpop.permute.xlu0 %2128
    %v2134 = vadd.f32 %v2030, %v2123
    %v2135 = vadd.f32 %v2031, %v2125
    %v2136 = vadd.f32 %v2032, %v2127
    %v2137 = vadd.f32 %v2033, %v2129
    %s2138 = sld [smem:[#allocation3 + $0x83]]
    %v2139 = vstv %s2138
    %v2140 = vmul.f32 %v2139, %v1912
    %v2141 = vmul.f32 %v2139, %v1913
    %v2142 = vmul.f32 %v2139, %v1914
    %v2143 = vmul.f32 %v2139, %v1915
    %2148 = vrot.lane.b32.xlu0 %v2140, 126
    %v2149 = vpop.permute.xlu0 %2148
    %2150 = vrot.lane.b32.xlu0 %v2141, 126
    %v2151 = vpop.permute.xlu0 %2150
    %2152 = vrot.lane.b32.xlu0 %v2142, 126
    %v2153 = vpop.permute.xlu0 %2152
    %2154 = vrot.lane.b32.xlu0 %v2143, 126
    %v2155 = vpop.permute.xlu0 %2154
    %v2160 = vadd.f32 %v2056, %v2149
    %v2161 = vadd.f32 %v2057, %v2151
    %v2162 = vadd.f32 %v2058, %v2153
    %v2163 = vadd.f32 %v2059, %v2155
    %v2164 = vld [vmem:[%s1659 + $0x2] sm:$0xff]
    %v2165 = vld [vmem:[%s1659 + $0xa] sm:$0xff]
    %v2166 = vld [vmem:[%s1659 + $0x62] sm:$0xff]
    %v2167 = vld [vmem:[%s1659 + $0x6a] sm:$0xff]
    %s2168 = sld [smem:[#allocation3 + $0x18]]
    %v2169 = vstv %s2168
    %v2170 = vmul.f32 %v2169, %v2164
    %v2171 = vmul.f32 %v2169, %v2165
    %v2172 = vmul.f32 %v2169, %v2166
    %v2173 = vmul.f32 %v2169, %v2167
    %v2174 = vadd.f32 %v2082, %v2170
    %v2175 = vadd.f32 %v2083, %v2171
    %v2176 = vadd.f32 %v2084, %v2172
    %v2177 = vadd.f32 %v2085, %v2173
    %s2178 = sld [smem:[#allocation3 + $0x3c]]
    %v2179 = vstv %s2178
    %v2180 = vmul.f32 %v2179, %v2164
    %v2181 = vmul.f32 %v2179, %v2165
    %v2182 = vmul.f32 %v2179, %v2166
    %v2183 = vmul.f32 %v2179, %v2167
    %v2184 = vadd.f32 %v2108, %v2180
    %v2185 = vadd.f32 %v2109, %v2181
    %v2186 = vadd.f32 %v2110, %v2182
    %v2187 = vadd.f32 %v2111, %v2183
    %s2188 = sld [smem:[#allocation3 + $0x60]]
    %v2189 = vstv %s2188
    %v2190 = vmul.f32 %v2189, %v2164
    %v2191 = vmul.f32 %v2189, %v2165
    %v2192 = vmul.f32 %v2189, %v2166
    %v2193 = vmul.f32 %v2189, %v2167
    %v2194 = vadd.f32 %v2134, %v2190
    %v2195 = vadd.f32 %v2135, %v2191
    %v2196 = vadd.f32 %v2136, %v2192
    %v2197 = vadd.f32 %v2137, %v2193
    %s2198 = sld [smem:[#allocation3 + $0x84]]
    %v2199 = vstv %s2198
    %v2200 = vmul.f32 %v2199, %v2164
    %v2201 = vmul.f32 %v2199, %v2165
    %v2202 = vmul.f32 %v2199, %v2166
    %v2203 = vmul.f32 %v2199, %v2167
    %v2204 = vadd.f32 %v2160, %v2200
    %v2205 = vadd.f32 %v2161, %v2201
    %v2206 = vadd.f32 %v2162, %v2202
    %v2207 = vadd.f32 %v2163, %v2203
    %s2208 = sld [smem:[#allocation3 + $0x19]]
    %v2209 = vstv %s2208
    %v2210 = vmul.f32 %v2209, %v2164
    %v2211 = vmul.f32 %v2209, %v2165
    %v2212 = vmul.f32 %v2209, %v2166
    %v2213 = vmul.f32 %v2209, %v2167
    %2218 = vrot.lane.b32.xlu0 %v2210, 127
    %v2219 = vpop.permute.xlu0 %2218
    %2220 = vrot.lane.b32.xlu0 %v2211, 127
    %v2221 = vpop.permute.xlu0 %2220
    %2222 = vrot.lane.b32.xlu0 %v2212, 127
    %v2223 = vpop.permute.xlu0 %2222
    %2224 = vrot.lane.b32.xlu0 %v2213, 127
    %v2225 = vpop.permute.xlu0 %2224
    %v2230 = vadd.f32 %v2174, %v2219
    %v2231 = vadd.f32 %v2175, %v2221
    %v2232 = vadd.f32 %v2176, %v2223
    %v2233 = vadd.f32 %v2177, %v2225
    %s2234 = sld [smem:[#allocation3 + $0x3d]]
    %v2235 = vstv %s2234
    %v2236 = vmul.f32 %v2235, %v2164
    %v2237 = vmul.f32 %v2235, %v2165
    %v2238 = vmul.f32 %v2235, %v2166
    %v2239 = vmul.f32 %v2235, %v2167
    %2244 = vrot.lane.b32.xlu0 %v2236, 127
    %v2245 = vpop.permute.xlu0 %2244
    %2246 = vrot.lane.b32.xlu0 %v2237, 127
    %v2247 = vpop.permute.xlu0 %2246
    %2248 = vrot.lane.b32.xlu0 %v2238, 127
    %v2249 = vpop.permute.xlu0 %2248
    %2250 = vrot.lane.b32.xlu0 %v2239, 127
    %v2251 = vpop.permute.xlu0 %2250
    %v2256 = vadd.f32 %v2184, %v2245
    %v2257 = vadd.f32 %v2185, %v2247
    %v2258 = vadd.f32 %v2186, %v2249
    %v2259 = vadd.f32 %v2187, %v2251
    %s2260 = sld [smem:[#allocation3 + $0x61]]
    %v2261 = vstv %s2260
    %v2262 = vmul.f32 %v2261, %v2164
    %v2263 = vmul.f32 %v2261, %v2165
    %v2264 = vmul.f32 %v2261, %v2166
    %v2265 = vmul.f32 %v2261, %v2167
    %2270 = vrot.lane.b32.xlu0 %v2262, 127
    %v2271 = vpop.permute.xlu0 %2270
    %2272 = vrot.lane.b32.xlu0 %v2263, 127
    %v2273 = vpop.permute.xlu0 %2272
    %2274 = vrot.lane.b32.xlu0 %v2264, 127
    %v2275 = vpop.permute.xlu0 %2274
    %2276 = vrot.lane.b32.xlu0 %v2265, 127
    %v2277 = vpop.permute.xlu0 %2276
    %v2282 = vadd.f32 %v2194, %v2271
    %v2283 = vadd.f32 %v2195, %v2273
    %v2284 = vadd.f32 %v2196, %v2275
    %v2285 = vadd.f32 %v2197, %v2277
    %s2286 = sld [smem:[#allocation3 + $0x85]]
    %v2287 = vstv %s2286
    %v2288 = vmul.f32 %v2287, %v2164
    %v2289 = vmul.f32 %v2287, %v2165
    %v2290 = vmul.f32 %v2287, %v2166
    %v2291 = vmul.f32 %v2287, %v2167
    %2296 = vrot.lane.b32.xlu0 %v2288, 127
    %v2297 = vpop.permute.xlu0 %2296
    %2298 = vrot.lane.b32.xlu0 %v2289, 127
    %v2299 = vpop.permute.xlu0 %2298
    %2300 = vrot.lane.b32.xlu0 %v2290, 127
    %v2301 = vpop.permute.xlu0 %2300
    %2302 = vrot.lane.b32.xlu0 %v2291, 127
    %v2303 = vpop.permute.xlu0 %2302
    %v2308 = vadd.f32 %v2204, %v2297
    %v2309 = vadd.f32 %v2205, %v2299
    %v2310 = vadd.f32 %v2206, %v2301
    %v2311 = vadd.f32 %v2207, %v2303
    %s2312 = sld [smem:[#allocation3 + $0x1a]]
    %v2313 = vstv %s2312
    %v2314 = vmul.f32 %v2313, %v2164
    %v2315 = vmul.f32 %v2313, %v2165
    %v2316 = vmul.f32 %v2313, %v2166
    %v2317 = vmul.f32 %v2313, %v2167
    %2322 = vrot.lane.b32.xlu0 %v2314, 126
    %v2323 = vpop.permute.xlu0 %2322
    %2324 = vrot.lane.b32.xlu0 %v2315, 126
    %v2325 = vpop.permute.xlu0 %2324
    %2326 = vrot.lane.b32.xlu0 %v2316, 126
    %v2327 = vpop.permute.xlu0 %2326
    %2328 = vrot.lane.b32.xlu0 %v2317, 126
    %v2329 = vpop.permute.xlu0 %2328
    %v2334 = vadd.f32 %v2230, %v2323
    %v2335 = vadd.f32 %v2231, %v2325
    %v2336 = vadd.f32 %v2232, %v2327
    %v2337 = vadd.f32 %v2233, %v2329
    %s2338 = sld [smem:[#allocation3 + $0x3e]]
    %v2339 = vstv %s2338
    %v2340 = vmul.f32 %v2339, %v2164
    %v2341 = vmul.f32 %v2339, %v2165
    %v2342 = vmul.f32 %v2339, %v2166
    %v2343 = vmul.f32 %v2339, %v2167
    %2348 = vrot.lane.b32.xlu0 %v2340, 126
    %v2349 = vpop.permute.xlu0 %2348
    %2350 = vrot.lane.b32.xlu0 %v2341, 126
    %v2351 = vpop.permute.xlu0 %2350
    %2352 = vrot.lane.b32.xlu0 %v2342, 126
    %v2353 = vpop.permute.xlu0 %2352
    %2354 = vrot.lane.b32.xlu0 %v2343, 126
    %v2355 = vpop.permute.xlu0 %2354
    %v2360 = vadd.f32 %v2256, %v2349
    %v2361 = vadd.f32 %v2257, %v2351
    %v2362 = vadd.f32 %v2258, %v2353
    %v2363 = vadd.f32 %v2259, %v2355
    %s2364 = sld [smem:[#allocation3 + $0x62]]
    %v2365 = vstv %s2364
    %v2366 = vmul.f32 %v2365, %v2164
    %v2367 = vmul.f32 %v2365, %v2165
    %v2368 = vmul.f32 %v2365, %v2166
    %v2369 = vmul.f32 %v2365, %v2167
    %2374 = vrot.lane.b32.xlu0 %v2366, 126
    %v2375 = vpop.permute.xlu0 %2374
    %2376 = vrot.lane.b32.xlu0 %v2367, 126
    %v2377 = vpop.permute.xlu0 %2376
    %2378 = vrot.lane.b32.xlu0 %v2368, 126
    %v2379 = vpop.permute.xlu0 %2378
    %2380 = vrot.lane.b32.xlu0 %v2369, 126
    %v2381 = vpop.permute.xlu0 %2380
    %v2386 = vadd.f32 %v2282, %v2375
    %v2387 = vadd.f32 %v2283, %v2377
    %v2388 = vadd.f32 %v2284, %v2379
    %v2389 = vadd.f32 %v2285, %v2381
    %s2390 = sld [smem:[#allocation3 + $0x86]]
    %v2391 = vstv %s2390
    %v2392 = vmul.f32 %v2391, %v2164
    %v2393 = vmul.f32 %v2391, %v2165
    %v2394 = vmul.f32 %v2391, %v2166
    %v2395 = vmul.f32 %v2391, %v2167
    %2400 = vrot.lane.b32.xlu0 %v2392, 126
    %v2401 = vpop.permute.xlu0 %2400
    %2402 = vrot.lane.b32.xlu0 %v2393, 126
    %v2403 = vpop.permute.xlu0 %2402
    %2404 = vrot.lane.b32.xlu0 %v2394, 126
    %v2405 = vpop.permute.xlu0 %2404
    %2406 = vrot.lane.b32.xlu0 %v2395, 126
    %v2407 = vpop.permute.xlu0 %2406
    %v2412 = vadd.f32 %v2308, %v2401
    %v2413 = vadd.f32 %v2309, %v2403
    %v2414 = vadd.f32 %v2310, %v2405
    %v2415 = vadd.f32 %v2311, %v2407
    %s2416 = scalar_lea.vmem %s0, 72
    %v2417 = vld [vmem:[%s2416] sm:$0xff]
    %v2418 = vld [vmem:[%s2416 + $0x8] sm:$0xff]
    %v2419 = vld [vmem:[%s2416 + $0x60] sm:$0xff]
    %v2420 = vld [vmem:[%s2416 + $0x68] sm:$0xff]
    %s2421 = sld [smem:[#allocation3 + $0x1b]]
    %v2422 = vstv %s2421
    %v2423 = vmul.f32 %v2422, %v2417
    %v2424 = vmul.f32 %v2422, %v2418
    %v2425 = vmul.f32 %v2422, %v2419
    %v2426 = vmul.f32 %v2422, %v2420
    %v2427 = vadd.f32 %v2334, %v2423
    %v2428 = vadd.f32 %v2335, %v2424
    %v2429 = vadd.f32 %v2336, %v2425
    %v2430 = vadd.f32 %v2337, %v2426
    %s2431 = sld [smem:[#allocation3 + $0x3f]]
    %v2432 = vstv %s2431
    %v2433 = vmul.f32 %v2432, %v2417
    %v2434 = vmul.f32 %v2432, %v2418
    %v2435 = vmul.f32 %v2432, %v2419
    %v2436 = vmul.f32 %v2432, %v2420
    %v2437 = vadd.f32 %v2360, %v2433
    %v2438 = vadd.f32 %v2361, %v2434
    %v2439 = vadd.f32 %v2362, %v2435
    %v2440 = vadd.f32 %v2363, %v2436
    %s2441 = sld [smem:[#allocation3 + $0x63]]
    %v2442 = vstv %s2441
    %v2443 = vmul.f32 %v2442, %v2417
    %v2444 = vmul.f32 %v2442, %v2418
    %v2445 = vmul.f32 %v2442, %v2419
    %v2446 = vmul.f32 %v2442, %v2420
    %v2447 = vadd.f32 %v2386, %v2443
    %v2448 = vadd.f32 %v2387, %v2444
    %v2449 = vadd.f32 %v2388, %v2445
    %v2450 = vadd.f32 %v2389, %v2446
    %s2451 = sld [smem:[#allocation3 + $0x87]]
    %v2452 = vstv %s2451
    %v2453 = vmul.f32 %v2452, %v2417
    %v2454 = vmul.f32 %v2452, %v2418
    %v2455 = vmul.f32 %v2452, %v2419
    %v2456 = vmul.f32 %v2452, %v2420
    %v2457 = vadd.f32 %v2412, %v2453
    %v2458 = vadd.f32 %v2413, %v2454
    %v2459 = vadd.f32 %v2414, %v2455
    %v2460 = vadd.f32 %v2415, %v2456
    %s2461 = sld [smem:[#allocation3 + $0x1c]]
    %v2462 = vstv %s2461
    %v2463 = vmul.f32 %v2462, %v2417
    %v2464 = vmul.f32 %v2462, %v2418
    %v2465 = vmul.f32 %v2462, %v2419
    %v2466 = vmul.f32 %v2462, %v2420
    %2471 = vrot.lane.b32.xlu0 %v2463, 127
    %v2472 = vpop.permute.xlu0 %2471
    %2473 = vrot.lane.b32.xlu0 %v2464, 127
    %v2474 = vpop.permute.xlu0 %2473
    %2475 = vrot.lane.b32.xlu0 %v2465, 127
    %v2476 = vpop.permute.xlu0 %2475
    %2477 = vrot.lane.b32.xlu0 %v2466, 127
    %v2478 = vpop.permute.xlu0 %2477
    %v2483 = vadd.f32 %v2427, %v2472
    %v2484 = vadd.f32 %v2428, %v2474
    %v2485 = vadd.f32 %v2429, %v2476
    %v2486 = vadd.f32 %v2430, %v2478
    %s2487 = sld [smem:[#allocation3 + $0x40]]
    %v2488 = vstv %s2487
    %v2489 = vmul.f32 %v2488, %v2417
    %v2490 = vmul.f32 %v2488, %v2418
    %v2491 = vmul.f32 %v2488, %v2419
    %v2492 = vmul.f32 %v2488, %v2420
    %2497 = vrot.lane.b32.xlu0 %v2489, 127
    %v2498 = vpop.permute.xlu0 %2497
    %2499 = vrot.lane.b32.xlu0 %v2490, 127
    %v2500 = vpop.permute.xlu0 %2499
    %2501 = vrot.lane.b32.xlu0 %v2491, 127
    %v2502 = vpop.permute.xlu0 %2501
    %2503 = vrot.lane.b32.xlu0 %v2492, 127
    %v2504 = vpop.permute.xlu0 %2503
    %v2509 = vadd.f32 %v2437, %v2498
    %v2510 = vadd.f32 %v2438, %v2500
    %v2511 = vadd.f32 %v2439, %v2502
    %v2512 = vadd.f32 %v2440, %v2504
    %s2513 = sld [smem:[#allocation3 + $0x64]]
    %v2514 = vstv %s2513
    %v2515 = vmul.f32 %v2514, %v2417
    %v2516 = vmul.f32 %v2514, %v2418
    %v2517 = vmul.f32 %v2514, %v2419
    %v2518 = vmul.f32 %v2514, %v2420
    %2523 = vrot.lane.b32.xlu0 %v2515, 127
    %v2524 = vpop.permute.xlu0 %2523
    %2525 = vrot.lane.b32.xlu0 %v2516, 127
    %v2526 = vpop.permute.xlu0 %2525
    %2527 = vrot.lane.b32.xlu0 %v2517, 127
    %v2528 = vpop.permute.xlu0 %2527
    %2529 = vrot.lane.b32.xlu0 %v2518, 127
    %v2530 = vpop.permute.xlu0 %2529
    %v2535 = vadd.f32 %v2447, %v2524
    %v2536 = vadd.f32 %v2448, %v2526
    %v2537 = vadd.f32 %v2449, %v2528
    %v2538 = vadd.f32 %v2450, %v2530
    %s2539 = sld [smem:[#allocation3 + $0x88]]
    %v2540 = vstv %s2539
    %v2541 = vmul.f32 %v2540, %v2417
    %v2542 = vmul.f32 %v2540, %v2418
    %v2543 = vmul.f32 %v2540, %v2419
    %v2544 = vmul.f32 %v2540, %v2420
    %2549 = vrot.lane.b32.xlu0 %v2541, 127
    %v2550 = vpop.permute.xlu0 %2549
    %2551 = vrot.lane.b32.xlu0 %v2542, 127
    %v2552 = vpop.permute.xlu0 %2551
    %2553 = vrot.lane.b32.xlu0 %v2543, 127
    %v2554 = vpop.permute.xlu0 %2553
    %2555 = vrot.lane.b32.xlu0 %v2544, 127
    %v2556 = vpop.permute.xlu0 %2555
    %v2561 = vadd.f32 %v2457, %v2550
    %v2562 = vadd.f32 %v2458, %v2552
    %v2563 = vadd.f32 %v2459, %v2554
    %v2564 = vadd.f32 %v2460, %v2556
    %s2565 = sld [smem:[#allocation3 + $0x1d]]
    %v2566 = vstv %s2565
    %v2567 = vmul.f32 %v2566, %v2417
    %v2568 = vmul.f32 %v2566, %v2418
    %v2569 = vmul.f32 %v2566, %v2419
    %v2570 = vmul.f32 %v2566, %v2420
    %2575 = vrot.lane.b32.xlu0 %v2567, 126
    %v2576 = vpop.permute.xlu0 %2575
    %2577 = vrot.lane.b32.xlu0 %v2568, 126
    %v2578 = vpop.permute.xlu0 %2577
    %2579 = vrot.lane.b32.xlu0 %v2569, 126
    %v2580 = vpop.permute.xlu0 %2579
    %2581 = vrot.lane.b32.xlu0 %v2570, 126
    %v2582 = vpop.permute.xlu0 %2581
    %v2587 = vadd.f32 %v2483, %v2576
    %v2588 = vadd.f32 %v2484, %v2578
    %v2589 = vadd.f32 %v2485, %v2580
    %v2590 = vadd.f32 %v2486, %v2582
    %s2591 = sld [smem:[#allocation3 + $0x41]]
    %v2592 = vstv %s2591
    %v2593 = vmul.f32 %v2592, %v2417
    %v2594 = vmul.f32 %v2592, %v2418
    %v2595 = vmul.f32 %v2592, %v2419
    %v2596 = vmul.f32 %v2592, %v2420
    %2601 = vrot.lane.b32.xlu0 %v2593, 126
    %v2602 = vpop.permute.xlu0 %2601
    %2603 = vrot.lane.b32.xlu0 %v2594, 126
    %v2604 = vpop.permute.xlu0 %2603
    %2605 = vrot.lane.b32.xlu0 %v2595, 126
    %v2606 = vpop.permute.xlu0 %2605
    %2607 = vrot.lane.b32.xlu0 %v2596, 126
    %v2608 = vpop.permute.xlu0 %2607
    %v2613 = vadd.f32 %v2509, %v2602
    %v2614 = vadd.f32 %v2510, %v2604
    %v2615 = vadd.f32 %v2511, %v2606
    %v2616 = vadd.f32 %v2512, %v2608
    %s2617 = sld [smem:[#allocation3 + $0x65]]
    %v2618 = vstv %s2617
    %v2619 = vmul.f32 %v2618, %v2417
    %v2620 = vmul.f32 %v2618, %v2418
    %v2621 = vmul.f32 %v2618, %v2419
    %v2622 = vmul.f32 %v2618, %v2420
    %2627 = vrot.lane.b32.xlu0 %v2619, 126
    %v2628 = vpop.permute.xlu0 %2627
    %2629 = vrot.lane.b32.xlu0 %v2620, 126
    %v2630 = vpop.permute.xlu0 %2629
    %2631 = vrot.lane.b32.xlu0 %v2621, 126
    %v2632 = vpop.permute.xlu0 %2631
    %2633 = vrot.lane.b32.xlu0 %v2622, 126
    %v2634 = vpop.permute.xlu0 %2633
    %v2639 = vadd.f32 %v2535, %v2628
    %v2640 = vadd.f32 %v2536, %v2630
    %v2641 = vadd.f32 %v2537, %v2632
    %v2642 = vadd.f32 %v2538, %v2634
    %s2643 = sld [smem:[#allocation3 + $0x89]]
    %v2644 = vstv %s2643
    %v2645 = vmul.f32 %v2644, %v2417
    %v2646 = vmul.f32 %v2644, %v2418
    %v2647 = vmul.f32 %v2644, %v2419
    %v2648 = vmul.f32 %v2644, %v2420
    %2653 = vrot.lane.b32.xlu0 %v2645, 126
    %v2654 = vpop.permute.xlu0 %2653
    %2655 = vrot.lane.b32.xlu0 %v2646, 126
    %v2656 = vpop.permute.xlu0 %2655
    %2657 = vrot.lane.b32.xlu0 %v2647, 126
    %v2658 = vpop.permute.xlu0 %2657
    %2659 = vrot.lane.b32.xlu0 %v2648, 126
    %v2660 = vpop.permute.xlu0 %2659
    %v2665 = vadd.f32 %v2561, %v2654
    %v2666 = vadd.f32 %v2562, %v2656
    %v2667 = vadd.f32 %v2563, %v2658
    %v2668 = vadd.f32 %v2564, %v2660
    %v2669 = vld [vmem:[%s2416 + $0x1] sm:$0xff]
    %v2670 = vld [vmem:[%s2416 + $0x9] sm:$0xff]
    %v2671 = vld [vmem:[%s2416 + $0x61] sm:$0xff]
    %v2672 = vld [vmem:[%s2416 + $0x69] sm:$0xff]
    %s2673 = sld [smem:[#allocation3 + $0x1e]]
    %v2674 = vstv %s2673
    %v2675 = vmul.f32 %v2674, %v2669
    %v2676 = vmul.f32 %v2674, %v2670
    %v2677 = vmul.f32 %v2674, %v2671
    %v2678 = vmul.f32 %v2674, %v2672
    %v2679 = vadd.f32 %v2587, %v2675
    %v2680 = vadd.f32 %v2588, %v2676
    %v2681 = vadd.f32 %v2589, %v2677
    %v2682 = vadd.f32 %v2590, %v2678
    %s2683 = sld [smem:[#allocation3 + $0x42]]
    %v2684 = vstv %s2683
    %v2685 = vmul.f32 %v2684, %v2669
    %v2686 = vmul.f32 %v2684, %v2670
    %v2687 = vmul.f32 %v2684, %v2671
    %v2688 = vmul.f32 %v2684, %v2672
    %v2689 = vadd.f32 %v2613, %v2685
    %v2690 = vadd.f32 %v2614, %v2686
    %v2691 = vadd.f32 %v2615, %v2687
    %v2692 = vadd.f32 %v2616, %v2688
    %s2693 = sld [smem:[#allocation3 + $0x66]]
    %v2694 = vstv %s2693
    %v2695 = vmul.f32 %v2694, %v2669
    %v2696 = vmul.f32 %v2694, %v2670
    %v2697 = vmul.f32 %v2694, %v2671
    %v2698 = vmul.f32 %v2694, %v2672
    %v2699 = vadd.f32 %v2639, %v2695
    %v2700 = vadd.f32 %v2640, %v2696
    %v2701 = vadd.f32 %v2641, %v2697
    %v2702 = vadd.f32 %v2642, %v2698
    %s2703 = sld [smem:[#allocation3 + $0x8a]]
    %v2704 = vstv %s2703
    %v2705 = vmul.f32 %v2704, %v2669
    %v2706 = vmul.f32 %v2704, %v2670
    %v2707 = vmul.f32 %v2704, %v2671
    %v2708 = vmul.f32 %v2704, %v2672
    %v2709 = vadd.f32 %v2665, %v2705
    %v2710 = vadd.f32 %v2666, %v2706
    %v2711 = vadd.f32 %v2667, %v2707
    %v2712 = vadd.f32 %v2668, %v2708
    %s2713 = sld [smem:[#allocation3 + $0x1f]]
    %v2714 = vstv %s2713
    %v2715 = vmul.f32 %v2714, %v2669
    %v2716 = vmul.f32 %v2714, %v2670
    %v2717 = vmul.f32 %v2714, %v2671
    %v2718 = vmul.f32 %v2714, %v2672
    %2723 = vrot.lane.b32.xlu0 %v2715, 127
    %v2724 = vpop.permute.xlu0 %2723
    %2725 = vrot.lane.b32.xlu0 %v2716, 127
    %v2726 = vpop.permute.xlu0 %2725
    %2727 = vrot.lane.b32.xlu0 %v2717, 127
    %v2728 = vpop.permute.xlu0 %2727
    %2729 = vrot.lane.b32.xlu0 %v2718, 127
    %v2730 = vpop.permute.xlu0 %2729
    %v2735 = vadd.f32 %v2679, %v2724
    %v2736 = vadd.f32 %v2680, %v2726
    %v2737 = vadd.f32 %v2681, %v2728
    %v2738 = vadd.f32 %v2682, %v2730
    %s2739 = sld [smem:[#allocation3 + $0x43]]
    %v2740 = vstv %s2739
    %v2741 = vmul.f32 %v2740, %v2669
    %v2742 = vmul.f32 %v2740, %v2670
    %v2743 = vmul.f32 %v2740, %v2671
    %v2744 = vmul.f32 %v2740, %v2672
    %2749 = vrot.lane.b32.xlu0 %v2741, 127
    %v2750 = vpop.permute.xlu0 %2749
    %2751 = vrot.lane.b32.xlu0 %v2742, 127
    %v2752 = vpop.permute.xlu0 %2751
    %2753 = vrot.lane.b32.xlu0 %v2743, 127
    %v2754 = vpop.permute.xlu0 %2753
    %2755 = vrot.lane.b32.xlu0 %v2744, 127
    %v2756 = vpop.permute.xlu0 %2755
    %v2761 = vadd.f32 %v2689, %v2750
    %v2762 = vadd.f32 %v2690, %v2752
    %v2763 = vadd.f32 %v2691, %v2754
    %v2764 = vadd.f32 %v2692, %v2756
    %s2765 = sld [smem:[#allocation3 + $0x67]]
    %v2766 = vstv %s2765
    %v2767 = vmul.f32 %v2766, %v2669
    %v2768 = vmul.f32 %v2766, %v2670
    %v2769 = vmul.f32 %v2766, %v2671
    %v2770 = vmul.f32 %v2766, %v2672
    %2775 = vrot.lane.b32.xlu0 %v2767, 127
    %v2776 = vpop.permute.xlu0 %2775
    %2777 = vrot.lane.b32.xlu0 %v2768, 127
    %v2778 = vpop.permute.xlu0 %2777
    %2779 = vrot.lane.b32.xlu0 %v2769, 127
    %v2780 = vpop.permute.xlu0 %2779
    %2781 = vrot.lane.b32.xlu0 %v2770, 127
    %v2782 = vpop.permute.xlu0 %2781
    %v2787 = vadd.f32 %v2699, %v2776
    %v2788 = vadd.f32 %v2700, %v2778
    %v2789 = vadd.f32 %v2701, %v2780
    %v2790 = vadd.f32 %v2702, %v2782
    %s2791 = sld [smem:[#allocation3 + $0x8b]]
    %v2792 = vstv %s2791
    %v2793 = vmul.f32 %v2792, %v2669
    %v2794 = vmul.f32 %v2792, %v2670
    %v2795 = vmul.f32 %v2792, %v2671
    %v2796 = vmul.f32 %v2792, %v2672
    %2801 = vrot.lane.b32.xlu0 %v2793, 127
    %v2802 = vpop.permute.xlu0 %2801
    %2803 = vrot.lane.b32.xlu0 %v2794, 127
    %v2804 = vpop.permute.xlu0 %2803
    %2805 = vrot.lane.b32.xlu0 %v2795, 127
    %v2806 = vpop.permute.xlu0 %2805
    %2807 = vrot.lane.b32.xlu0 %v2796, 127
    %v2808 = vpop.permute.xlu0 %2807
    %v2813 = vadd.f32 %v2709, %v2802
    %v2814 = vadd.f32 %v2710, %v2804
    %v2815 = vadd.f32 %v2711, %v2806
    %v2816 = vadd.f32 %v2712, %v2808
    %s2817 = sld [smem:[#allocation3 + $0x20]]
    %v2818 = vstv %s2817
    %v2819 = vmul.f32 %v2818, %v2669
    %v2820 = vmul.f32 %v2818, %v2670
    %v2821 = vmul.f32 %v2818, %v2671
    %v2822 = vmul.f32 %v2818, %v2672
    %2827 = vrot.lane.b32.xlu0 %v2819, 126
    %v2828 = vpop.permute.xlu0 %2827
    %2829 = vrot.lane.b32.xlu0 %v2820, 126
    %v2830 = vpop.permute.xlu0 %2829
    %2831 = vrot.lane.b32.xlu0 %v2821, 126
    %v2832 = vpop.permute.xlu0 %2831
    %2833 = vrot.lane.b32.xlu0 %v2822, 126
    %v2834 = vpop.permute.xlu0 %2833
    %v2839 = vadd.f32 %v2735, %v2828
    %v2840 = vadd.f32 %v2736, %v2830
    %v2841 = vadd.f32 %v2737, %v2832
    %v2842 = vadd.f32 %v2738, %v2834
    %s2843 = sld [smem:[#allocation3 + $0x44]]
    %v2844 = vstv %s2843
    %v2845 = vmul.f32 %v2844, %v2669
    %v2846 = vmul.f32 %v2844, %v2670
    %v2847 = vmul.f32 %v2844, %v2671
    %v2848 = vmul.f32 %v2844, %v2672
    %2853 = vrot.lane.b32.xlu0 %v2845, 126
    %v2854 = vpop.permute.xlu0 %2853
    %2855 = vrot.lane.b32.xlu0 %v2846, 126
    %v2856 = vpop.permute.xlu0 %2855
    %2857 = vrot.lane.b32.xlu0 %v2847, 126
    %v2858 = vpop.permute.xlu0 %2857
    %2859 = vrot.lane.b32.xlu0 %v2848, 126
    %v2860 = vpop.permute.xlu0 %2859
    %v2865 = vadd.f32 %v2761, %v2854
    %v2866 = vadd.f32 %v2762, %v2856
    %v2867 = vadd.f32 %v2763, %v2858
    %v2868 = vadd.f32 %v2764, %v2860
    %s2869 = sld [smem:[#allocation3 + $0x68]]
    %v2870 = vstv %s2869
    %v2871 = vmul.f32 %v2870, %v2669
    %v2872 = vmul.f32 %v2870, %v2670
    %v2873 = vmul.f32 %v2870, %v2671
    %v2874 = vmul.f32 %v2870, %v2672
    %2879 = vrot.lane.b32.xlu0 %v2871, 126
    %v2880 = vpop.permute.xlu0 %2879
    %2881 = vrot.lane.b32.xlu0 %v2872, 126
    %v2882 = vpop.permute.xlu0 %2881
    %2883 = vrot.lane.b32.xlu0 %v2873, 126
    %v2884 = vpop.permute.xlu0 %2883
    %2885 = vrot.lane.b32.xlu0 %v2874, 126
    %v2886 = vpop.permute.xlu0 %2885
    %v2891 = vadd.f32 %v2787, %v2880
    %v2892 = vadd.f32 %v2788, %v2882
    %v2893 = vadd.f32 %v2789, %v2884
    %v2894 = vadd.f32 %v2790, %v2886
    %s2895 = sld [smem:[#allocation3 + $0x8c]]
    %v2896 = vstv %s2895
    %v2897 = vmul.f32 %v2896, %v2669
    %v2898 = vmul.f32 %v2896, %v2670
    %v2899 = vmul.f32 %v2896, %v2671
    %v2900 = vmul.f32 %v2896, %v2672
    %2905 = vrot.lane.b32.xlu0 %v2897, 126
    %v2906 = vpop.permute.xlu0 %2905
    %2907 = vrot.lane.b32.xlu0 %v2898, 126
    %v2908 = vpop.permute.xlu0 %2907
    %2909 = vrot.lane.b32.xlu0 %v2899, 126
    %v2910 = vpop.permute.xlu0 %2909
    %2911 = vrot.lane.b32.xlu0 %v2900, 126
    %v2912 = vpop.permute.xlu0 %2911
    %v2917 = vadd.f32 %v2813, %v2906
    %v2918 = vadd.f32 %v2814, %v2908
    %v2919 = vadd.f32 %v2815, %v2910
    %v2920 = vadd.f32 %v2816, %v2912
    %v2921 = vld [vmem:[%s2416 + $0x2] sm:$0xff]
    %v2922 = vld [vmem:[%s2416 + $0xa] sm:$0xff]
    %v2923 = vld [vmem:[%s2416 + $0x62] sm:$0xff]
    %v2924 = vld [vmem:[%s2416 + $0x6a] sm:$0xff]
    %s2925 = sld [smem:[#allocation3 + $0x21]]
    %v2926 = vstv %s2925
    %v2927 = vmul.f32 %v2926, %v2921
    %v2928 = vmul.f32 %v2926, %v2922
    %v2929 = vmul.f32 %v2926, %v2923
    %v2930 = vmul.f32 %v2926, %v2924
    %v2931 = vadd.f32 %v2839, %v2927
    %v2932 = vadd.f32 %v2840, %v2928
    %v2933 = vadd.f32 %v2841, %v2929
    %v2934 = vadd.f32 %v2842, %v2930
    %s2935 = sld [smem:[#allocation3 + $0x45]]
    %v2936 = vstv %s2935
    %v2937 = vmul.f32 %v2936, %v2921
    %v2938 = vmul.f32 %v2936, %v2922
    %v2939 = vmul.f32 %v2936, %v2923
    %v2940 = vmul.f32 %v2936, %v2924
    %v2941 = vadd.f32 %v2865, %v2937
    %v2942 = vadd.f32 %v2866, %v2938
    %v2943 = vadd.f32 %v2867, %v2939
    %v2944 = vadd.f32 %v2868, %v2940
    %s2945 = sld [smem:[#allocation3 + $0x69]]
    %v2946 = vstv %s2945
    %v2947 = vmul.f32 %v2946, %v2921
    %v2948 = vmul.f32 %v2946, %v2922
    %v2949 = vmul.f32 %v2946, %v2923
    %v2950 = vmul.f32 %v2946, %v2924
    %v2951 = vadd.f32 %v2891, %v2947
    %v2952 = vadd.f32 %v2892, %v2948
    %v2953 = vadd.f32 %v2893, %v2949
    %v2954 = vadd.f32 %v2894, %v2950
    %s2955 = sld [smem:[#allocation3 + $0x8d]]
    %v2956 = vstv %s2955
    %v2957 = vmul.f32 %v2956, %v2921
    %v2958 = vmul.f32 %v2956, %v2922
    %v2959 = vmul.f32 %v2956, %v2923
    %v2960 = vmul.f32 %v2956, %v2924
    %v2961 = vadd.f32 %v2917, %v2957
    %v2962 = vadd.f32 %v2918, %v2958
    %v2963 = vadd.f32 %v2919, %v2959
    %v2964 = vadd.f32 %v2920, %v2960
    %s2965 = sld [smem:[#allocation3 + $0x22]]
    %v2966 = vstv %s2965
    %v2967 = vmul.f32 %v2966, %v2921
    %v2968 = vmul.f32 %v2966, %v2922
    %v2969 = vmul.f32 %v2966, %v2923
    %v2970 = vmul.f32 %v2966, %v2924
    %2975 = vrot.lane.b32.xlu0 %v2967, 127
    %v2976 = vpop.permute.xlu0 %2975
    %2977 = vrot.lane.b32.xlu0 %v2968, 127
    %v2978 = vpop.permute.xlu0 %2977
    %2979 = vrot.lane.b32.xlu0 %v2969, 127
    %v2980 = vpop.permute.xlu0 %2979
    %2981 = vrot.lane.b32.xlu0 %v2970, 127
    %v2982 = vpop.permute.xlu0 %2981
    %v2987 = vadd.f32 %v2931, %v2976
    %v2988 = vadd.f32 %v2932, %v2978
    %v2989 = vadd.f32 %v2933, %v2980
    %v2990 = vadd.f32 %v2934, %v2982
    %s2991 = sld [smem:[#allocation3 + $0x46]]
    %v2992 = vstv %s2991
    %v2993 = vmul.f32 %v2992, %v2921
    %v2994 = vmul.f32 %v2992, %v2922
    %v2995 = vmul.f32 %v2992, %v2923
    %v2996 = vmul.f32 %v2992, %v2924
    %3001 = vrot.lane.b32.xlu0 %v2993, 127
    %v3002 = vpop.permute.xlu0 %3001
    %3003 = vrot.lane.b32.xlu0 %v2994, 127
    %v3004 = vpop.permute.xlu0 %3003
    %3005 = vrot.lane.b32.xlu0 %v2995, 127
    %v3006 = vpop.permute.xlu0 %3005
    %3007 = vrot.lane.b32.xlu0 %v2996, 127
    %v3008 = vpop.permute.xlu0 %3007
    %v3013 = vadd.f32 %v2941, %v3002
    %v3014 = vadd.f32 %v2942, %v3004
    %v3015 = vadd.f32 %v2943, %v3006
    %v3016 = vadd.f32 %v2944, %v3008
    %s3017 = sld [smem:[#allocation3 + $0x6a]]
    %v3018 = vstv %s3017
    %v3019 = vmul.f32 %v3018, %v2921
    %v3020 = vmul.f32 %v3018, %v2922
    %v3021 = vmul.f32 %v3018, %v2923
    %v3022 = vmul.f32 %v3018, %v2924
    %3027 = vrot.lane.b32.xlu0 %v3019, 127
    %v3028 = vpop.permute.xlu0 %3027
    %3029 = vrot.lane.b32.xlu0 %v3020, 127
    %v3030 = vpop.permute.xlu0 %3029
    %3031 = vrot.lane.b32.xlu0 %v3021, 127
    %v3032 = vpop.permute.xlu0 %3031
    %3033 = vrot.lane.b32.xlu0 %v3022, 127
    %v3034 = vpop.permute.xlu0 %3033
    %v3039 = vadd.f32 %v2951, %v3028
    %v3040 = vadd.f32 %v2952, %v3030
    %v3041 = vadd.f32 %v2953, %v3032
    %v3042 = vadd.f32 %v2954, %v3034
    %s3043 = sld [smem:[#allocation3 + $0x8e]]
    %v3044 = vstv %s3043
    %v3045 = vmul.f32 %v3044, %v2921
    %v3046 = vmul.f32 %v3044, %v2922
    %v3047 = vmul.f32 %v3044, %v2923
    %v3048 = vmul.f32 %v3044, %v2924
    %3053 = vrot.lane.b32.xlu0 %v3045, 127
    %v3054 = vpop.permute.xlu0 %3053
    %3055 = vrot.lane.b32.xlu0 %v3046, 127
    %v3056 = vpop.permute.xlu0 %3055
    %3057 = vrot.lane.b32.xlu0 %v3047, 127
    %v3058 = vpop.permute.xlu0 %3057
    %3059 = vrot.lane.b32.xlu0 %v3048, 127
    %v3060 = vpop.permute.xlu0 %3059
    %v3065 = vadd.f32 %v2961, %v3054
    %v3066 = vadd.f32 %v2962, %v3056
    %v3067 = vadd.f32 %v2963, %v3058
    %v3068 = vadd.f32 %v2964, %v3060
    %s3069 = sld [smem:[#allocation3 + $0x23]]
    %v3070 = vstv %s3069
    %v3071 = vmul.f32 %v3070, %v2921
    %v3072 = vmul.f32 %v3070, %v2922
    %v3073 = vmul.f32 %v3070, %v2923
    %v3074 = vmul.f32 %v3070, %v2924
    %3079 = vrot.lane.b32.xlu0 %v3071, 126
    %v3080 = vpop.permute.xlu0 %3079
    %3081 = vrot.lane.b32.xlu0 %v3072, 126
    %v3082 = vpop.permute.xlu0 %3081
    %3083 = vrot.lane.b32.xlu0 %v3073, 126
    %v3084 = vpop.permute.xlu0 %3083
    %3085 = vrot.lane.b32.xlu0 %v3074, 126
    %v3086 = vpop.permute.xlu0 %3085
    %v3091 = vadd.f32 %v2987, %v3080
    %v3092 = vadd.f32 %v2988, %v3082
    %v3093 = vadd.f32 %v2989, %v3084
    %v3094 = vadd.f32 %v2990, %v3086
    %s3095 = sld [smem:[#allocation3 + $0x47]]
    %v3096 = vstv %s3095
    %v3097 = vmul.f32 %v3096, %v2921
    %v3098 = vmul.f32 %v3096, %v2922
    %v3099 = vmul.f32 %v3096, %v2923
    %v3100 = vmul.f32 %v3096, %v2924
    %3105 = vrot.lane.b32.xlu0 %v3097, 126
    %v3106 = vpop.permute.xlu0 %3105
    %3107 = vrot.lane.b32.xlu0 %v3098, 126
    %v3108 = vpop.permute.xlu0 %3107
    %3109 = vrot.lane.b32.xlu0 %v3099, 126
    %v3110 = vpop.permute.xlu0 %3109
    %3111 = vrot.lane.b32.xlu0 %v3100, 126
    %v3112 = vpop.permute.xlu0 %3111
    %v3117 = vadd.f32 %v3013, %v3106
    %v3118 = vadd.f32 %v3014, %v3108
    %v3119 = vadd.f32 %v3015, %v3110
    %v3120 = vadd.f32 %v3016, %v3112
    %s3121 = sld [smem:[#allocation3 + $0x6b]]
    %v3122 = vstv %s3121
    %v3123 = vmul.f32 %v3122, %v2921
    %v3124 = vmul.f32 %v3122, %v2922
    %v3125 = vmul.f32 %v3122, %v2923
    %v3126 = vmul.f32 %v3122, %v2924
    %3131 = vrot.lane.b32.xlu0 %v3123, 126
    %v3132 = vpop.permute.xlu0 %3131
    %3133 = vrot.lane.b32.xlu0 %v3124, 126
    %v3134 = vpop.permute.xlu0 %3133
    %3135 = vrot.lane.b32.xlu0 %v3125, 126
    %v3136 = vpop.permute.xlu0 %3135
    %3137 = vrot.lane.b32.xlu0 %v3126, 126
    %v3138 = vpop.permute.xlu0 %3137
    %v3143 = vadd.f32 %v3039, %v3132
    %v3144 = vadd.f32 %v3040, %v3134
    %v3145 = vadd.f32 %v3041, %v3136
    %v3146 = vadd.f32 %v3042, %v3138
    %s3147 = sld [smem:[#allocation3 + $0x8f]]
    %v3148 = vstv %s3147
    %v3149 = vmul.f32 %v3148, %v2921
    %v3150 = vmul.f32 %v3148, %v2922
    %v3151 = vmul.f32 %v3148, %v2923
    %v3152 = vmul.f32 %v3148, %v2924
    %3157 = vrot.lane.b32.xlu0 %v3149, 126
    %v3158 = vpop.permute.xlu0 %3157
    %3159 = vrot.lane.b32.xlu0 %v3150, 126
    %v3160 = vpop.permute.xlu0 %3159
    %3161 = vrot.lane.b32.xlu0 %v3151, 126
    %v3162 = vpop.permute.xlu0 %3161
    %3163 = vrot.lane.b32.xlu0 %v3152, 126
    %v3164 = vpop.permute.xlu0 %3163
    %v3169 = vadd.f32 %v3065, %v3158
    %v3170 = vadd.f32 %v3066, %v3160
    %v3171 = vadd.f32 %v3067, %v3162
    %v3172 = vadd.f32 %v3068, %v3164
    %v3173 = vmax.f32 %v3091, 0.0
    %v3174 = vmax.f32 %v3092, 0.0
    %v3175 = vmax.f32 %v3093, 0.0
    %v3176 = vmax.f32 %v3094, 0.0
    %3181 = vrot.lane.b32.xlu0 %v3173, 1
    %v3182 = vpop.permute.xlu0 %3181
    %3183 = vrot.lane.b32.xlu0 %v3174, 1
    %v3184 = vpop.permute.xlu0 %3183
    %3185 = vrot.lane.b32.xlu0 %v3175, 1
    %v3186 = vpop.permute.xlu0 %3185
    %3187 = vrot.lane.b32.xlu0 %v3176, 1
    %v3188 = vpop.permute.xlu0 %3187
    %vm3193 = vcmask 138248
    %3194 = vst.msk [vmem:[#allocation2 + $0x1] sm:$0xff] %vm3193, %v3182
    %3195 = vst.msk [vmem:[#allocation2 + $0x9] sm:$0xff] %vm3193, %v3184
    %3196 = vst.msk [vmem:[#allocation2 + $0x61] sm:$0xff] %vm3193, %v3186
    %3197 = vst.msk [vmem:[#allocation2 + $0x69] sm:$0xff] %vm3193, %v3188
    %v3198 = vmax.f32 %v3117, 0.0
    %v3199 = vmax.f32 %v3118, 0.0
    %v3200 = vmax.f32 %v3119, 0.0
    %v3201 = vmax.f32 %v3120, 0.0
    %3206 = vrot.lane.b32.xlu0 %v3198, 1
    %v3207 = vpop.permute.xlu0 %3206
    %3208 = vrot.lane.b32.xlu0 %v3199, 1
    %v3209 = vpop.permute.xlu0 %3208
    %3210 = vrot.lane.b32.xlu0 %v3200, 1
    %v3211 = vpop.permute.xlu0 %3210
    %3212 = vrot.lane.b32.xlu0 %v3201, 1
    %v3213 = vpop.permute.xlu0 %3212
    %s3218 = scalar_lea.vmem [#allocation2], 24
    %3219 = vst.msk [vmem:[%s3218 + $0x1] sm:$0xff] %vm3193, %v3207
    %3220 = vst.msk [vmem:[%s3218 + $0x9] sm:$0xff] %vm3193, %v3209
    %3221 = vst.msk [vmem:[%s3218 + $0x61] sm:$0xff] %vm3193, %v3211
    %3222 = vst.msk [vmem:[%s3218 + $0x69] sm:$0xff] %vm3193, %v3213
    %v3223 = vmax.f32 %v3143, 0.0
    %v3224 = vmax.f32 %v3144, 0.0
    %v3225 = vmax.f32 %v3145, 0.0
    %v3226 = vmax.f32 %v3146, 0.0
    %3231 = vrot.lane.b32.xlu0 %v3223, 1
    %v3232 = vpop.permute.xlu0 %3231
    %3233 = vrot.lane.b32.xlu0 %v3224, 1
    %v3234 = vpop.permute.xlu0 %3233
    %3235 = vrot.lane.b32.xlu0 %v3225, 1
    %v3236 = vpop.permute.xlu0 %3235
    %3237 = vrot.lane.b32.xlu0 %v3226, 1
    %v3238 = vpop.permute.xlu0 %3237
    %s3243 = scalar_lea.vmem [#allocation2], 48
    %3244 = vst.msk [vmem:[%s3243 + $0x1] sm:$0xff] %vm3193, %v3232
    %3245 = vst.msk [vmem:[%s3243 + $0x9] sm:$0xff] %vm3193, %v3234
    %3246 = vst.msk [vmem:[%s3243 + $0x61] sm:$0xff] %vm3193, %v3236
    %3247 = vst.msk [vmem:[%s3243 + $0x69] sm:$0xff] %vm3193, %v3238
    %v3248 = vmax.f32 %v3169, 0.0
    %v3249 = vmax.f32 %v3170, 0.0
    %v3250 = vmax.f32 %v3171, 0.0
    %v3251 = vmax.f32 %v3172, 0.0
    %3256 = vrot.lane.b32.xlu0 %v3248, 1
    %v3257 = vpop.permute.xlu0 %3256
    %3258 = vrot.lane.b32.xlu0 %v3249, 1
    %v3259 = vpop.permute.xlu0 %3258
    %3260 = vrot.lane.b32.xlu0 %v3250, 1
    %v3261 = vpop.permute.xlu0 %3260
    %3262 = vrot.lane.b32.xlu0 %v3251, 1
    %v3263 = vpop.permute.xlu0 %3262
    %s3268 = scalar_lea.vmem [#allocation2], 72
    %3269 = vst.msk [vmem:[%s3268 + $0x1] sm:$0xff] %vm3193, %v3257
    %3270 = vst.msk [vmem:[%s3268 + $0x9] sm:$0xff] %vm3193, %v3259
    %3271 = vst.msk [vmem:[%s3268 + $0x61] sm:$0xff] %vm3193, %v3261
    %3272 = vst.msk [vmem:[%s3268 + $0x69] sm:$0xff] %vm3193, %v3263
    %s3273 = sld [smem:[#allocation9]]
    %v3274 = vstv %s3273
    %s3275 = sld [smem:[#allocation9 + $0x1]]
    %v3276 = vstv %s3275
    %s3277 = sld [smem:[#allocation9 + $0x2]]
    %v3278 = vstv %s3277
    %s3279 = sld [smem:[#allocation9 + $0x3]]
    %v3280 = vstv %s3279
    %v3281 = vld [vmem:[#allocation2] sm:$0xff]
    %v3282 = vld [vmem:[#allocation2 + $0x8] sm:$0xff]
    %v3283 = vld [vmem:[#allocation2 + $0x60] sm:$0xff]
    %v3284 = vld [vmem:[#allocation2 + $0x68] sm:$0xff]
    %s3285 = sld [smem:[#allocation8]]
    %v3286 = vstv %s3285
    %v3287 = vmul.f32 %v3286, %v3281
    %v3288 = vmul.f32 %v3286, %v3282
    %v3289 = vmul.f32 %v3286, %v3283
    %v3290 = vmul.f32 %v3286, %v3284
    %v3291 = vadd.f32 %v3274, %v3287
    %v3292 = vadd.f32 %v3274, %v3288
    %v3293 = vadd.f32 %v3274, %v3289
    %v3294 = vadd.f32 %v3274, %v3290
    %s3295 = sld [smem:[#allocation8 + $0x24]]
    %v3296 = vstv %s3295
    %v3297 = vmul.f32 %v3296, %v3281
    %v3298 = vmul.f32 %v3296, %v3282
    %v3299 = vmul.f32 %v3296, %v3283
    %v3300 = vmul.f32 %v3296, %v3284
    %v3301 = vadd.f32 %v3276, %v3297
    %v3302 = vadd.f32 %v3276, %v3298
    %v3303 = vadd.f32 %v3276, %v3299
    %v3304 = vadd.f32 %v3276, %v3300
    %s3305 = sld [smem:[#allocation8 + $0x48]]
    %v3306 = vstv %s3305
    %v3307 = vmul.f32 %v3306, %v3281
    %v3308 = vmul.f32 %v3306, %v3282
    %v3309 = vmul.f32 %v3306, %v3283
    %v3310 = vmul.f32 %v3306, %v3284
    %v3311 = vadd.f32 %v3278, %v3307
    %v3312 = vadd.f32 %v3278, %v3308
    %v3313 = vadd.f32 %v3278, %v3309
    %v3314 = vadd.f32 %v3278, %v3310
    %s3315 = sld [smem:[#allocation8 + $0x6c]]
    %v3316 = vstv %s3315
    %v3317 = vmul.f32 %v3316, %v3281
    %v3318 = vmul.f32 %v3316, %v3282
    %v3319 = vmul.f32 %v3316, %v3283
    %v3320 = vmul.f32 %v3316, %v3284
    %v3321 = vadd.f32 %v3280, %v3317
    %v3322 = vadd.f32 %v3280, %v3318
    %v3323 = vadd.f32 %v3280, %v3319
    %v3324 = vadd.f32 %v3280, %v3320
    %s3325 = sld [smem:[#allocation8 + $0x1]]
    %v3326 = vstv %s3325
    %v3327 = vmul.f32 %v3326, %v3281
    %v3328 = vmul.f32 %v3326, %v3282
    %v3329 = vmul.f32 %v3326, %v3283
    %v3330 = vmul.f32 %v3326, %v3284
    %3335 = vrot.lane.b32.xlu0 %v3327, 127
    %v3336 = vpop.permute.xlu0 %3335
    %3337 = vrot.lane.b32.xlu0 %v3328, 127
    %v3338 = vpop.permute.xlu0 %3337
    %3339 = vrot.lane.b32.xlu0 %v3329, 127
    %v3340 = vpop.permute.xlu0 %3339
    %3341 = vrot.lane.b32.xlu0 %v3330, 127
    %v3342 = vpop.permute.xlu0 %3341
    %v3347 = vadd.f32 %v3291, %v3336
    %v3348 = vadd.f32 %v3292, %v3338
    %v3349 = vadd.f32 %v3293, %v3340
    %v3350 = vadd.f32 %v3294, %v3342
    %s3351 = sld [smem:[#allocation8 + $0x25]]
    %v3352 = vstv %s3351
    %v3353 = vmul.f32 %v3352, %v3281
    %v3354 = vmul.f32 %v3352, %v3282
    %v3355 = vmul.f32 %v3352, %v3283
    %v3356 = vmul.f32 %v3352, %v3284
    %3361 = vrot.lane.b32.xlu0 %v3353, 127
    %v3362 = vpop.permute.xlu0 %3361
    %3363 = vrot.lane.b32.xlu0 %v3354, 127
    %v3364 = vpop.permute.xlu0 %3363
    %3365 = vrot.lane.b32.xlu0 %v3355, 127
    %v3366 = vpop.permute.xlu0 %3365
    %3367 = vrot.lane.b32.xlu0 %v3356, 127
    %v3368 = vpop.permute.xlu0 %3367
    %v3373 = vadd.f32 %v3301, %v3362
    %v3374 = vadd.f32 %v3302, %v3364
    %v3375 = vadd.f32 %v3303, %v3366
    %v3376 = vadd.f32 %v3304, %v3368
    %s3377 = sld [smem:[#allocation8 + $0x49]]
    %v3378 = vstv %s3377
    %v3379 = vmul.f32 %v3378, %v3281
    %v3380 = vmul.f32 %v3378, %v3282
    %v3381 = vmul.f32 %v3378, %v3283
    %v3382 = vmul.f32 %v3378, %v3284
    %3387 = vrot.lane.b32.xlu0 %v3379, 127
    %v3388 = vpop.permute.xlu0 %3387
    %3389 = vrot.lane.b32.xlu0 %v3380, 127
    %v3390 = vpop.permute.xlu0 %3389
    %3391 = vrot.lane.b32.xlu0 %v3381, 127
    %v3392 = vpop.permute.xlu0 %3391
    %3393 = vrot.lane.b32.xlu0 %v3382, 127
    %v3394 = vpop.permute.xlu0 %3393
    %v3399 = vadd.f32 %v3311, %v3388
    %v3400 = vadd.f32 %v3312, %v3390
    %v3401 = vadd.f32 %v3313, %v3392
    %v3402 = vadd.f32 %v3314, %v3394
    %s3403 = sld [smem:[#allocation8 + $0x6d]]
    %v3404 = vstv %s3403
    %v3405 = vmul.f32 %v3404, %v3281
    %v3406 = vmul.f32 %v3404, %v3282
    %v3407 = vmul.f32 %v3404, %v3283
    %v3408 = vmul.f32 %v3404, %v3284
    %3413 = vrot.lane.b32.xlu0 %v3405, 127
    %v3414 = vpop.permute.xlu0 %3413
    %3415 = vrot.lane.b32.xlu0 %v3406, 127
    %v3416 = vpop.permute.xlu0 %3415
    %3417 = vrot.lane.b32.xlu0 %v3407, 127
    %v3418 = vpop.permute.xlu0 %3417
    %3419 = vrot.lane.b32.xlu0 %v3408, 127
    %v3420 = vpop.permute.xlu0 %3419
    %v3425 = vadd.f32 %v3321, %v3414
    %v3426 = vadd.f32 %v3322, %v3416
    %v3427 = vadd.f32 %v3323, %v3418
    %v3428 = vadd.f32 %v3324, %v3420
    %s3429 = sld [smem:[#allocation8 + $0x2]]
    %v3430 = vstv %s3429
    %v3431 = vmul.f32 %v3430, %v3281
    %v3432 = vmul.f32 %v3430, %v3282
    %v3433 = vmul.f32 %v3430, %v3283
    %v3434 = vmul.f32 %v3430, %v3284
    %3439 = vrot.lane.b32.xlu0 %v3431, 126
    %v3440 = vpop.permute.xlu0 %3439
    %3441 = vrot.lane.b32.xlu0 %v3432, 126
    %v3442 = vpop.permute.xlu0 %3441
    %3443 = vrot.lane.b32.xlu0 %v3433, 126
    %v3444 = vpop.permute.xlu0 %3443
    %3445 = vrot.lane.b32.xlu0 %v3434, 126
    %v3446 = vpop.permute.xlu0 %3445
    %v3451 = vadd.f32 %v3347, %v3440
    %v3452 = vadd.f32 %v3348, %v3442
    %v3453 = vadd.f32 %v3349, %v3444
    %v3454 = vadd.f32 %v3350, %v3446
    %s3455 = sld [smem:[#allocation8 + $0x26]]
    %v3456 = vstv %s3455
    %v3457 = vmul.f32 %v3456, %v3281
    %v3458 = vmul.f32 %v3456, %v3282
    %v3459 = vmul.f32 %v3456, %v3283
    %v3460 = vmul.f32 %v3456, %v3284
    %3465 = vrot.lane.b32.xlu0 %v3457, 126
    %v3466 = vpop.permute.xlu0 %3465
    %3467 = vrot.lane.b32.xlu0 %v3458, 126
    %v3468 = vpop.permute.xlu0 %3467
    %3469 = vrot.lane.b32.xlu0 %v3459, 126
    %v3470 = vpop.permute.xlu0 %3469
    %3471 = vrot.lane.b32.xlu0 %v3460, 126
    %v3472 = vpop.permute.xlu0 %3471
    %v3477 = vadd.f32 %v3373, %v3466
    %v3478 = vadd.f32 %v3374, %v3468
    %v3479 = vadd.f32 %v3375, %v3470
    %v3480 = vadd.f32 %v3376, %v3472
    %s3481 = sld [smem:[#allocation8 + $0x4a]]
    %v3482 = vstv %s3481
    %v3483 = vmul.f32 %v3482, %v3281
    %v3484 = vmul.f32 %v3482, %v3282
    %v3485 = vmul.f32 %v3482, %v3283
    %v3486 = vmul.f32 %v3482, %v3284
    %3491 = vrot.lane.b32.xlu0 %v3483, 126
    %v3492 = vpop.permute.xlu0 %3491
    %3493 = vrot.lane.b32.xlu0 %v3484, 126
    %v3494 = vpop.permute.xlu0 %3493
    %3495 = vrot.lane.b32.xlu0 %v3485, 126
    %v3496 = vpop.permute.xlu0 %3495
    %3497 = vrot.lane.b32.xlu0 %v3486, 126
    %v3498 = vpop.permute.xlu0 %3497
    %v3503 = vadd.f32 %v3399, %v3492
    %v3504 = vadd.f32 %v3400, %v3494
    %v3505 = vadd.f32 %v3401, %v3496
    %v3506 = vadd.f32 %v3402, %v3498
    %s3507 = sld [smem:[#allocation8 + $0x6e]]
    %v3508 = vstv %s3507
    %v3509 = vmul.f32 %v3508, %v3281
    %v3510 = vmul.f32 %v3508, %v3282
    %v3511 = vmul.f32 %v3508, %v3283
    %v3512 = vmul.f32 %v3508, %v3284
    %3517 = vrot.lane.b32.xlu0 %v3509, 126
    %v3518 = vpop.permute.xlu0 %3517
    %3519 = vrot.lane.b32.xlu0 %v3510, 126
    %v3520 = vpop.permute.xlu0 %3519
    %3521 = vrot.lane.b32.xlu0 %v3511, 126
    %v3522 = vpop.permute.xlu0 %3521
    %3523 = vrot.lane.b32.xlu0 %v3512, 126
    %v3524 = vpop.permute.xlu0 %3523
    %v3529 = vadd.f32 %v3425, %v3518
    %v3530 = vadd.f32 %v3426, %v3520
    %v3531 = vadd.f32 %v3427, %v3522
    %v3532 = vadd.f32 %v3428, %v3524
    %v3533 = vld [vmem:[#allocation2 + $0x1] sm:$0xff]
    %v3534 = vld [vmem:[#allocation2 + $0x9] sm:$0xff]
    %v3535 = vld [vmem:[#allocation2 + $0x61] sm:$0xff]
    %v3536 = vld [vmem:[#allocation2 + $0x69] sm:$0xff]
    %s3537 = sld [smem:[#allocation8 + $0x3]]
    %v3538 = vstv %s3537
    %v3539 = vmul.f32 %v3538, %v3533
    %v3540 = vmul.f32 %v3538, %v3534
    %v3541 = vmul.f32 %v3538, %v3535
    %v3542 = vmul.f32 %v3538, %v3536
    %v3543 = vadd.f32 %v3451, %v3539
    %v3544 = vadd.f32 %v3452, %v3540
    %v3545 = vadd.f32 %v3453, %v3541
    %v3546 = vadd.f32 %v3454, %v3542
    %s3547 = sld [smem:[#allocation8 + $0x27]]
    %v3548 = vstv %s3547
    %v3549 = vmul.f32 %v3548, %v3533
    %v3550 = vmul.f32 %v3548, %v3534
    %v3551 = vmul.f32 %v3548, %v3535
    %v3552 = vmul.f32 %v3548, %v3536
    %v3553 = vadd.f32 %v3477, %v3549
    %v3554 = vadd.f32 %v3478, %v3550
    %v3555 = vadd.f32 %v3479, %v3551
    %v3556 = vadd.f32 %v3480, %v3552
    %s3557 = sld [smem:[#allocation8 + $0x4b]]
    %v3558 = vstv %s3557
    %v3559 = vmul.f32 %v3558, %v3533
    %v3560 = vmul.f32 %v3558, %v3534
    %v3561 = vmul.f32 %v3558, %v3535
    %v3562 = vmul.f32 %v3558, %v3536
    %v3563 = vadd.f32 %v3503, %v3559
    %v3564 = vadd.f32 %v3504, %v3560
    %v3565 = vadd.f32 %v3505, %v3561
    %v3566 = vadd.f32 %v3506, %v3562
    %s3567 = sld [smem:[#allocation8 + $0x6f]]
    %v3568 = vstv %s3567
    %v3569 = vmul.f32 %v3568, %v3533
    %v3570 = vmul.f32 %v3568, %v3534
    %v3571 = vmul.f32 %v3568, %v3535
    %v3572 = vmul.f32 %v3568, %v3536
    %v3573 = vadd.f32 %v3529, %v3569
    %v3574 = vadd.f32 %v3530, %v3570
    %v3575 = vadd.f32 %v3531, %v3571
    %v3576 = vadd.f32 %v3532, %v3572
    %s3577 = sld [smem:[#allocation8 + $0x4]]
    %v3578 = vstv %s3577
    %v3579 = vmul.f32 %v3578, %v3533
    %v3580 = vmul.f32 %v3578, %v3534
    %v3581 = vmul.f32 %v3578, %v3535
    %v3582 = vmul.f32 %v3578, %v3536
    %3587 = vrot.lane.b32.xlu0 %v3579, 127
    %v3588 = vpop.permute.xlu0 %3587
    %3589 = vrot.lane.b32.xlu0 %v3580, 127
    %v3590 = vpop.permute.xlu0 %3589
    %3591 = vrot.lane.b32.xlu0 %v3581, 127
    %v3592 = vpop.permute.xlu0 %3591
    %3593 = vrot.lane.b32.xlu0 %v3582, 127
    %v3594 = vpop.permute.xlu0 %3593
    %v3599 = vadd.f32 %v3543, %v3588
    %v3600 = vadd.f32 %v3544, %v3590
    %v3601 = vadd.f32 %v3545, %v3592
    %v3602 = vadd.f32 %v3546, %v3594
    %s3603 = sld [smem:[#allocation8 + $0x28]]
    %v3604 = vstv %s3603
    %v3605 = vmul.f32 %v3604, %v3533
    %v3606 = vmul.f32 %v3604, %v3534
    %v3607 = vmul.f32 %v3604, %v3535
    %v3608 = vmul.f32 %v3604, %v3536
    %3613 = vrot.lane.b32.xlu0 %v3605, 127
    %v3614 = vpop.permute.xlu0 %3613
    %3615 = vrot.lane.b32.xlu0 %v3606, 127
    %v3616 = vpop.permute.xlu0 %3615
    %3617 = vrot.lane.b32.xlu0 %v3607, 127
    %v3618 = vpop.permute.xlu0 %3617
    %3619 = vrot.lane.b32.xlu0 %v3608, 127
    %v3620 = vpop.permute.xlu0 %3619
    %v3625 = vadd.f32 %v3553, %v3614
    %v3626 = vadd.f32 %v3554, %v3616
    %v3627 = vadd.f32 %v3555, %v3618
    %v3628 = vadd.f32 %v3556, %v3620
    %s3629 = sld [smem:[#allocation8 + $0x4c]]
    %v3630 = vstv %s3629
    %v3631 = vmul.f32 %v3630, %v3533
    %v3632 = vmul.f32 %v3630, %v3534
    %v3633 = vmul.f32 %v3630, %v3535
    %v3634 = vmul.f32 %v3630, %v3536
    %3639 = vrot.lane.b32.xlu0 %v3631, 127
    %v3640 = vpop.permute.xlu0 %3639
    %3641 = vrot.lane.b32.xlu0 %v3632, 127
    %v3642 = vpop.permute.xlu0 %3641
    %3643 = vrot.lane.b32.xlu0 %v3633, 127
    %v3644 = vpop.permute.xlu0 %3643
    %3645 = vrot.lane.b32.xlu0 %v3634, 127
    %v3646 = vpop.permute.xlu0 %3645
    %v3651 = vadd.f32 %v3563, %v3640
    %v3652 = vadd.f32 %v3564, %v3642
    %v3653 = vadd.f32 %v3565, %v3644
    %v3654 = vadd.f32 %v3566, %v3646
    %s3655 = sld [smem:[#allocation8 + $0x70]]
    %v3656 = vstv %s3655
    %v3657 = vmul.f32 %v3656, %v3533
    %v3658 = vmul.f32 %v3656, %v3534
    %v3659 = vmul.f32 %v3656, %v3535
    %v3660 = vmul.f32 %v3656, %v3536
    %3665 = vrot.lane.b32.xlu0 %v3657, 127
    %v3666 = vpop.permute.xlu0 %3665
    %3667 = vrot.lane.b32.xlu0 %v3658, 127
    %v3668 = vpop.permute.xlu0 %3667
    %3669 = vrot.lane.b32.xlu0 %v3659, 127
    %v3670 = vpop.permute.xlu0 %3669
    %3671 = vrot.lane.b32.xlu0 %v3660, 127
    %v3672 = vpop.permute.xlu0 %3671
    %v3677 = vadd.f32 %v3573, %v3666
    %v3678 = vadd.f32 %v3574, %v3668
    %v3679 = vadd.f32 %v3575, %v3670
    %v3680 = vadd.f32 %v3576, %v3672
    %s3681 = sld [smem:[#allocation8 + $0x5]]
    %v3682 = vstv %s3681
    %v3683 = vmul.f32 %v3682, %v3533
    %v3684 = vmul.f32 %v3682, %v3534
    %v3685 = vmul.f32 %v3682, %v3535
    %v3686 = vmul.f32 %v3682, %v3536
    %3691 = vrot.lane.b32.xlu0 %v3683, 126
    %v3692 = vpop.permute.xlu0 %3691
    %3693 = vrot.lane.b32.xlu0 %v3684, 126
    %v3694 = vpop.permute.xlu0 %3693
    %3695 = vrot.lane.b32.xlu0 %v3685, 126
    %v3696 = vpop.permute.xlu0 %3695
    %3697 = vrot.lane.b32.xlu0 %v3686, 126
    %v3698 = vpop.permute.xlu0 %3697
    %v3703 = vadd.f32 %v3599, %v3692
    %v3704 = vadd.f32 %v3600, %v3694
    %v3705 = vadd.f32 %v3601, %v3696
    %v3706 = vadd.f32 %v3602, %v3698
    %s3707 = sld [smem:[#allocation8 + $0x29]]
    %v3708 = vstv %s3707
    %v3709 = vmul.f32 %v3708, %v3533
    %v3710 = vmul.f32 %v3708, %v3534
    %v3711 = vmul.f32 %v3708, %v3535
    %v3712 = vmul.f32 %v3708, %v3536
    %3717 = vrot.lane.b32.xlu0 %v3709, 126
    %v3718 = vpop.permute.xlu0 %3717
    %3719 = vrot.lane.b32.xlu0 %v3710, 126
    %v3720 = vpop.permute.xlu0 %3719
    %3721 = vrot.lane.b32.xlu0 %v3711, 126
    %v3722 = vpop.permute.xlu0 %3721
    %3723 = vrot.lane.b32.xlu0 %v3712, 126
    %v3724 = vpop.permute.xlu0 %3723
    %v3729 = vadd.f32 %v3625, %v3718
    %v3730 = vadd.f32 %v3626, %v3720
    %v3731 = vadd.f32 %v3627, %v3722
    %v3732 = vadd.f32 %v3628, %v3724
    %s3733 = sld [smem:[#allocation8 + $0x4d]]
    %v3734 = vstv %s3733
    %v3735 = vmul.f32 %v3734, %v3533
    %v3736 = vmul.f32 %v3734, %v3534
    %v3737 = vmul.f32 %v3734, %v3535
    %v3738 = vmul.f32 %v3734, %v3536
    %3743 = vrot.lane.b32.xlu0 %v3735, 126
    %v3744 = vpop.permute.xlu0 %3743
    %3745 = vrot.lane.b32.xlu0 %v3736, 126
    %v3746 = vpop.permute.xlu0 %3745
    %3747 = vrot.lane.b32.xlu0 %v3737, 126
    %v3748 = vpop.permute.xlu0 %3747
    %3749 = vrot.lane.b32.xlu0 %v3738, 126
    %v3750 = vpop.permute.xlu0 %3749
    %v3755 = vadd.f32 %v3651, %v3744
    %v3756 = vadd.f32 %v3652, %v3746
    %v3757 = vadd.f32 %v3653, %v3748
    %v3758 = vadd.f32 %v3654, %v3750
    %s3759 = sld [smem:[#allocation8 + $0x71]]
    %v3760 = vstv %s3759
    %v3761 = vmul.f32 %v3760, %v3533
    %v3762 = vmul.f32 %v3760, %v3534
    %v3763 = vmul.f32 %v3760, %v3535
    %v3764 = vmul.f32 %v3760, %v3536
    %3769 = vrot.lane.b32.xlu0 %v3761, 126
    %v3770 = vpop.permute.xlu0 %3769
    %3771 = vrot.lane.b32.xlu0 %v3762, 126
    %v3772 = vpop.permute.xlu0 %3771
    %3773 = vrot.lane.b32.xlu0 %v3763, 126
    %v3774 = vpop.permute.xlu0 %3773
    %3775 = vrot.lane.b32.xlu0 %v3764, 126
    %v3776 = vpop.permute.xlu0 %3775
    %v3781 = vadd.f32 %v3677, %v3770
    %v3782 = vadd.f32 %v3678, %v3772
    %v3783 = vadd.f32 %v3679, %v3774
    %v3784 = vadd.f32 %v3680, %v3776
    %v3785 = vld [vmem:[#allocation2 + $0x2] sm:$0xff]
    %v3786 = vld [vmem:[#allocation2 + $0xa] sm:$0xff]
    %v3787 = vld [vmem:[#allocation2 + $0x62] sm:$0xff]
    %v3788 = vld [vmem:[#allocation2 + $0x6a] sm:$0xff]
    %s3789 = sld [smem:[#allocation8 + $0x6]]
    %v3790 = vstv %s3789
    %v3791 = vmul.f32 %v3790, %v3785
    %v3792 = vmul.f32 %v3790, %v3786
    %v3793 = vmul.f32 %v3790, %v3787
    %v3794 = vmul.f32 %v3790, %v3788
    %v3795 = vadd.f32 %v3703, %v3791
    %v3796 = vadd.f32 %v3704, %v3792
    %v3797 = vadd.f32 %v3705, %v3793
    %v3798 = vadd.f32 %v3706, %v3794
    %s3799 = sld [smem:[#allocation8 + $0x2a]]
    %v3800 = vstv %s3799
    %v3801 = vmul.f32 %v3800, %v3785
    %v3802 = vmul.f32 %v3800, %v3786
    %v3803 = vmul.f32 %v3800, %v3787
    %v3804 = vmul.f32 %v3800, %v3788
    %v3805 = vadd.f32 %v3729, %v3801
    %v3806 = vadd.f32 %v3730, %v3802
    %v3807 = vadd.f32 %v3731, %v3803
    %v3808 = vadd.f32 %v3732, %v3804
    %s3809 = sld [smem:[#allocation8 + $0x4e]]
    %v3810 = vstv %s3809
    %v3811 = vmul.f32 %v3810, %v3785
    %v3812 = vmul.f32 %v3810, %v3786
    %v3813 = vmul.f32 %v3810, %v3787
    %v3814 = vmul.f32 %v3810, %v3788
    %v3815 = vadd.f32 %v3755, %v3811
    %v3816 = vadd.f32 %v3756, %v3812
    %v3817 = vadd.f32 %v3757, %v3813
    %v3818 = vadd.f32 %v3758, %v3814
    %s3819 = sld [smem:[#allocation8 + $0x72]]
    %v3820 = vstv %s3819
    %v3821 = vmul.f32 %v3820, %v3785
    %v3822 = vmul.f32 %v3820, %v3786
    %v3823 = vmul.f32 %v3820, %v3787
    %v3824 = vmul.f32 %v3820, %v3788
    %v3825 = vadd.f32 %v3781, %v3821
    %v3826 = vadd.f32 %v3782, %v3822
    %v3827 = vadd.f32 %v3783, %v3823
    %v3828 = vadd.f32 %v3784, %v3824
    %s3829 = sld [smem:[#allocation8 + $0x7]]
    %v3830 = vstv %s3829
    %v3831 = vmul.f32 %v3830, %v3785
    %v3832 = vmul.f32 %v3830, %v3786
    %v3833 = vmul.f32 %v3830, %v3787
    %v3834 = vmul.f32 %v3830, %v3788
    %3839 = vrot.lane.b32.xlu0 %v3831, 127
    %v3840 = vpop.permute.xlu0 %3839
    %3841 = vrot.lane.b32.xlu0 %v3832, 127
    %v3842 = vpop.permute.xlu0 %3841
    %3843 = vrot.lane.b32.xlu0 %v3833, 127
    %v3844 = vpop.permute.xlu0 %3843
    %3845 = vrot.lane.b32.xlu0 %v3834, 127
    %v3846 = vpop.permute.xlu0 %3845
    %v3851 = vadd.f32 %v3795, %v3840
    %v3852 = vadd.f32 %v3796, %v3842
    %v3853 = vadd.f32 %v3797, %v3844
    %v3854 = vadd.f32 %v3798, %v3846
    %s3855 = sld [smem:[#allocation8 + $0x2b]]
    %v3856 = vstv %s3855
    %v3857 = vmul.f32 %v3856, %v3785
    %v3858 = vmul.f32 %v3856, %v3786
    %v3859 = vmul.f32 %v3856, %v3787
    %v3860 = vmul.f32 %v3856, %v3788
    %3865 = vrot.lane.b32.xlu0 %v3857, 127
    %v3866 = vpop.permute.xlu0 %3865
    %3867 = vrot.lane.b32.xlu0 %v3858, 127
    %v3868 = vpop.permute.xlu0 %3867
    %3869 = vrot.lane.b32.xlu0 %v3859, 127
    %v3870 = vpop.permute.xlu0 %3869
    %3871 = vrot.lane.b32.xlu0 %v3860, 127
    %v3872 = vpop.permute.xlu0 %3871
    %v3877 = vadd.f32 %v3805, %v3866
    %v3878 = vadd.f32 %v3806, %v3868
    %v3879 = vadd.f32 %v3807, %v3870
    %v3880 = vadd.f32 %v3808, %v3872
    %s3881 = sld [smem:[#allocation8 + $0x4f]]
    %v3882 = vstv %s3881
    %v3883 = vmul.f32 %v3882, %v3785
    %v3884 = vmul.f32 %v3882, %v3786
    %v3885 = vmul.f32 %v3882, %v3787
    %v3886 = vmul.f32 %v3882, %v3788
    %3891 = vrot.lane.b32.xlu0 %v3883, 127
    %v3892 = vpop.permute.xlu0 %3891
    %3893 = vrot.lane.b32.xlu0 %v3884, 127
    %v3894 = vpop.permute.xlu0 %3893
    %3895 = vrot.lane.b32.xlu0 %v3885, 127
    %v3896 = vpop.permute.xlu0 %3895
    %3897 = vrot.lane.b32.xlu0 %v3886, 127
    %v3898 = vpop.permute.xlu0 %3897
    %v3903 = vadd.f32 %v3815, %v3892
    %v3904 = vadd.f32 %v3816, %v3894
    %v3905 = vadd.f32 %v3817, %v3896
    %v3906 = vadd.f32 %v3818, %v3898
    %s3907 = sld [smem:[#allocation8 + $0x73]]
    %v3908 = vstv %s3907
    %v3909 = vmul.f32 %v3908, %v3785
    %v3910 = vmul.f32 %v3908, %v3786
    %v3911 = vmul.f32 %v3908, %v3787
    %v3912 = vmul.f32 %v3908, %v3788
    %3917 = vrot.lane.b32.xlu0 %v3909, 127
    %v3918 = vpop.permute.xlu0 %3917
    %3919 = vrot.lane.b32.xlu0 %v3910, 127
    %v3920 = vpop.permute.xlu0 %3919
    %3921 = vrot.lane.b32.xlu0 %v3911, 127
    %v3922 = vpop.permute.xlu0 %3921
    %3923 = vrot.lane.b32.xlu0 %v3912, 127
    %v3924 = vpop.permute.xlu0 %3923
    %v3929 = vadd.f32 %v3825, %v3918
    %v3930 = vadd.f32 %v3826, %v3920
    %v3931 = vadd.f32 %v3827, %v3922
    %v3932 = vadd.f32 %v3828, %v3924
    %s3933 = sld [smem:[#allocation8 + $0x8]]
    %v3934 = vstv %s3933
    %v3935 = vmul.f32 %v3934, %v3785
    %v3936 = vmul.f32 %v3934, %v3786
    %v3937 = vmul.f32 %v3934, %v3787
    %v3938 = vmul.f32 %v3934, %v3788
    %3943 = vrot.lane.b32.xlu0 %v3935, 126
    %v3944 = vpop.permute.xlu0 %3943
    %3945 = vrot.lane.b32.xlu0 %v3936, 126
    %v3946 = vpop.permute.xlu0 %3945
    %3947 = vrot.lane.b32.xlu0 %v3937, 126
    %v3948 = vpop.permute.xlu0 %3947
    %3949 = vrot.lane.b32.xlu0 %v3938, 126
    %v3950 = vpop.permute.xlu0 %3949
    %v3955 = vadd.f32 %v3851, %v3944
    %v3956 = vadd.f32 %v3852, %v3946
    %v3957 = vadd.f32 %v3853, %v3948
    %v3958 = vadd.f32 %v3854, %v3950
    %s3959 = sld [smem:[#allocation8 + $0x2c]]
    %v3960 = vstv %s3959
    %v3961 = vmul.f32 %v3960, %v3785
    %v3962 = vmul.f32 %v3960, %v3786
    %v3963 = vmul.f32 %v3960, %v3787
    %v3964 = vmul.f32 %v3960, %v3788
    %3969 = vrot.lane.b32.xlu0 %v3961, 126
    %v3970 = vpop.permute.xlu0 %3969
    %3971 = vrot.lane.b32.xlu0 %v3962, 126
    %v3972 = vpop.permute.xlu0 %3971
    %3973 = vrot.lane.b32.xlu0 %v3963, 126
    %v3974 = vpop.permute.xlu0 %3973
    %3975 = vrot.lane.b32.xlu0 %v3964, 126
    %v3976 = vpop.permute.xlu0 %3975
    %v3981 = vadd.f32 %v3877, %v3970
    %v3982 = vadd.f32 %v3878, %v3972
    %v3983 = vadd.f32 %v3879, %v3974
    %v3984 = vadd.f32 %v3880, %v3976
    %s3985 = sld [smem:[#allocation8 + $0x50]]
    %v3986 = vstv %s3985
    %v3987 = vmul.f32 %v3986, %v3785
    %v3988 = vmul.f32 %v3986, %v3786
    %v3989 = vmul.f32 %v3986, %v3787
    %v3990 = vmul.f32 %v3986, %v3788
    %3995 = vrot.lane.b32.xlu0 %v3987, 126
    %v3996 = vpop.permute.xlu0 %3995
    %3997 = vrot.lane.b32.xlu0 %v3988, 126
    %v3998 = vpop.permute.xlu0 %3997
    %3999 = vrot.lane.b32.xlu0 %v3989, 126
    %v4000 = vpop.permute.xlu0 %3999
    %4001 = vrot.lane.b32.xlu0 %v3990, 126
    %v4002 = vpop.permute.xlu0 %4001
    %v4007 = vadd.f32 %v3903, %v3996
    %v4008 = vadd.f32 %v3904, %v3998
    %v4009 = vadd.f32 %v3905, %v4000
    %v4010 = vadd.f32 %v3906, %v4002
    %s4011 = sld [smem:[#allocation8 + $0x74]]
    %v4012 = vstv %s4011
    %v4013 = vmul.f32 %v4012, %v3785
    %v4014 = vmul.f32 %v4012, %v3786
    %v4015 = vmul.f32 %v4012, %v3787
    %v4016 = vmul.f32 %v4012, %v3788
    %4021 = vrot.lane.b32.xlu0 %v4013, 126
    %v4022 = vpop.permute.xlu0 %4021
    %4023 = vrot.lane.b32.xlu0 %v4014, 126
    %v4024 = vpop.permute.xlu0 %4023
    %4025 = vrot.lane.b32.xlu0 %v4015, 126
    %v4026 = vpop.permute.xlu0 %4025
    %4027 = vrot.lane.b32.xlu0 %v4016, 126
    %v4028 = vpop.permute.xlu0 %4027
    %v4033 = vadd.f32 %v3929, %v4022
    %v4034 = vadd.f32 %v3930, %v4024
    %v4035 = vadd.f32 %v3931, %v4026
    %v4036 = vadd.f32 %v3932, %v4028
    %v4037 = vld [vmem:[%s3218] sm:$0xff]
    %v4038 = vld [vmem:[%s3218 + $0x8] sm:$0xff]
    %v4039 = vld [vmem:[%s3218 + $0x60] sm:$0xff]
    %v4040 = vld [vmem:[%s3218 + $0x68] sm:$0xff]
    %s4041 = sld [smem:[#allocation8 + $0x9]]
    %v4042 = vstv %s4041
    %v4043 = vmul.f32 %v4042, %v4037
    %v4044 = vmul.f32 %v4042, %v4038
    %v4045 = vmul.f32 %v4042, %v4039
    %v4046 = vmul.f32 %v4042, %v4040
    %v4047 = vadd.f32 %v3955, %v4043
    %v4048 = vadd.f32 %v3956, %v4044
    %v4049 = vadd.f32 %v3957, %v4045
    %v4050 = vadd.f32 %v3958, %v4046
    %s4051 = sld [smem:[#allocation8 + $0x2d]]
    %v4052 = vstv %s4051
    %v4053 = vmul.f32 %v4052, %v4037
    %v4054 = vmul.f32 %v4052, %v4038
    %v4055 = vmul.f32 %v4052, %v4039
    %v4056 = vmul.f32 %v4052, %v4040
    %v4057 = vadd.f32 %v3981, %v4053
    %v4058 = vadd.f32 %v3982, %v4054
    %v4059 = vadd.f32 %v3983, %v4055
    %v4060 = vadd.f32 %v3984, %v4056
    %s4061 = sld [smem:[#allocation8 + $0x51]]
    %v4062 = vstv %s4061
    %v4063 = vmul.f32 %v4062, %v4037
    %v4064 = vmul.f32 %v4062, %v4038
    %v4065 = vmul.f32 %v4062, %v4039
    %v4066 = vmul.f32 %v4062, %v4040
    %v4067 = vadd.f32 %v4007, %v4063
    %v4068 = vadd.f32 %v4008, %v4064
    %v4069 = vadd.f32 %v4009, %v4065
    %v4070 = vadd.f32 %v4010, %v4066
    %s4071 = sld [smem:[#allocation8 + $0x75]]
    %v4072 = vstv %s4071
    %v4073 = vmul.f32 %v4072, %v4037
    %v4074 = vmul.f32 %v4072, %v4038
    %v4075 = vmul.f32 %v4072, %v4039
    %v4076 = vmul.f32 %v4072, %v4040
    %v4077 = vadd.f32 %v4033, %v4073
    %v4078 = vadd.f32 %v4034, %v4074
    %v4079 = vadd.f32 %v4035, %v4075
    %v4080 = vadd.f32 %v4036, %v4076
    %s4081 = sld [smem:[#allocation8 + $0xa]]
    %v4082 = vstv %s4081
    %v4083 = vmul.f32 %v4082, %v4037
    %v4084 = vmul.f32 %v4082, %v4038
    %v4085 = vmul.f32 %v4082, %v4039
    %v4086 = vmul.f32 %v4082, %v4040
    %4091 = vrot.lane.b32.xlu0 %v4083, 127
    %v4092 = vpop.permute.xlu0 %4091
    %4093 = vrot.lane.b32.xlu0 %v4084, 127
    %v4094 = vpop.permute.xlu0 %4093
    %4095 = vrot.lane.b32.xlu0 %v4085, 127
    %v4096 = vpop.permute.xlu0 %4095
    %4097 = vrot.lane.b32.xlu0 %v4086, 127
    %v4098 = vpop.permute.xlu0 %4097
    %v4103 = vadd.f32 %v4047, %v4092
    %v4104 = vadd.f32 %v4048, %v4094
    %v4105 = vadd.f32 %v4049, %v4096
    %v4106 = vadd.f32 %v4050, %v4098
    %s4107 = sld [smem:[#allocation8 + $0x2e]]
    %v4108 = vstv %s4107
    %v4109 = vmul.f32 %v4108, %v4037
    %v4110 = vmul.f32 %v4108, %v4038
    %v4111 = vmul.f32 %v4108, %v4039
    %v4112 = vmul.f32 %v4108, %v4040
    %4117 = vrot.lane.b32.xlu0 %v4109, 127
    %v4118 = vpop.permute.xlu0 %4117
    %4119 = vrot.lane.b32.xlu0 %v4110, 127
    %v4120 = vpop.permute.xlu0 %4119
    %4121 = vrot.lane.b32.xlu0 %v4111, 127
    %v4122 = vpop.permute.xlu0 %4121
    %4123 = vrot.lane.b32.xlu0 %v4112, 127
    %v4124 = vpop.permute.xlu0 %4123
    %v4129 = vadd.f32 %v4057, %v4118
    %v4130 = vadd.f32 %v4058, %v4120
    %v4131 = vadd.f32 %v4059, %v4122
    %v4132 = vadd.f32 %v4060, %v4124
    %s4133 = sld [smem:[#allocation8 + $0x52]]
    %v4134 = vstv %s4133
    %v4135 = vmul.f32 %v4134, %v4037
    %v4136 = vmul.f32 %v4134, %v4038
    %v4137 = vmul.f32 %v4134, %v4039
    %v4138 = vmul.f32 %v4134, %v4040
    %4143 = vrot.lane.b32.xlu0 %v4135, 127
    %v4144 = vpop.permute.xlu0 %4143
    %4145 = vrot.lane.b32.xlu0 %v4136, 127
    %v4146 = vpop.permute.xlu0 %4145
    %4147 = vrot.lane.b32.xlu0 %v4137, 127
    %v4148 = vpop.permute.xlu0 %4147
    %4149 = vrot.lane.b32.xlu0 %v4138, 127
    %v4150 = vpop.permute.xlu0 %4149
    %v4155 = vadd.f32 %v4067, %v4144
    %v4156 = vadd.f32 %v4068, %v4146
    %v4157 = vadd.f32 %v4069, %v4148
    %v4158 = vadd.f32 %v4070, %v4150
    %s4159 = sld [smem:[#allocation8 + $0x76]]
    %v4160 = vstv %s4159
    %v4161 = vmul.f32 %v4160, %v4037
    %v4162 = vmul.f32 %v4160, %v4038
    %v4163 = vmul.f32 %v4160, %v4039
    %v4164 = vmul.f32 %v4160, %v4040
    %4169 = vrot.lane.b32.xlu0 %v4161, 127
    %v4170 = vpop.permute.xlu0 %4169
    %4171 = vrot.lane.b32.xlu0 %v4162, 127
    %v4172 = vpop.permute.xlu0 %4171
    %4173 = vrot.lane.b32.xlu0 %v4163, 127
    %v4174 = vpop.permute.xlu0 %4173
    %4175 = vrot.lane.b32.xlu0 %v4164, 127
    %v4176 = vpop.permute.xlu0 %4175
    %v4181 = vadd.f32 %v4077, %v4170
    %v4182 = vadd.f32 %v4078, %v4172
    %v4183 = vadd.f32 %v4079, %v4174
    %v4184 = vadd.f32 %v4080, %v4176
    %s4185 = sld [smem:[#allocation8 + $0xb]]
    %v4186 = vstv %s4185
    %v4187 = vmul.f32 %v4186, %v4037
    %v4188 = vmul.f32 %v4186, %v4038
    %v4189 = vmul.f32 %v4186, %v4039
    %v4190 = vmul.f32 %v4186, %v4040
    %4195 = vrot.lane.b32.xlu0 %v4187, 126
    %v4196 = vpop.permute.xlu0 %4195
    %4197 = vrot.lane.b32.xlu0 %v4188, 126
    %v4198 = vpop.permute.xlu0 %4197
    %4199 = vrot.lane.b32.xlu0 %v4189, 126
    %v4200 = vpop.permute.xlu0 %4199
    %4201 = vrot.lane.b32.xlu0 %v4190, 126
    %v4202 = vpop.permute.xlu0 %4201
    %v4207 = vadd.f32 %v4103, %v4196
    %v4208 = vadd.f32 %v4104, %v4198
    %v4209 = vadd.f32 %v4105, %v4200
    %v4210 = vadd.f32 %v4106, %v4202
    %s4211 = sld [smem:[#allocation8 + $0x2f]]
    %v4212 = vstv %s4211
    %v4213 = vmul.f32 %v4212, %v4037
    %v4214 = vmul.f32 %v4212, %v4038
    %v4215 = vmul.f32 %v4212, %v4039
    %v4216 = vmul.f32 %v4212, %v4040
    %4221 = vrot.lane.b32.xlu0 %v4213, 126
    %v4222 = vpop.permute.xlu0 %4221
    %4223 = vrot.lane.b32.xlu0 %v4214, 126
    %v4224 = vpop.permute.xlu0 %4223
    %4225 = vrot.lane.b32.xlu0 %v4215, 126
    %v4226 = vpop.permute.xlu0 %4225
    %4227 = vrot.lane.b32.xlu0 %v4216, 126
    %v4228 = vpop.permute.xlu0 %4227
    %v4233 = vadd.f32 %v4129, %v4222
    %v4234 = vadd.f32 %v4130, %v4224
    %v4235 = vadd.f32 %v4131, %v4226
    %v4236 = vadd.f32 %v4132, %v4228
    %s4237 = sld [smem:[#allocation8 + $0x53]]
    %v4238 = vstv %s4237
    %v4239 = vmul.f32 %v4238, %v4037
    %v4240 = vmul.f32 %v4238, %v4038
    %v4241 = vmul.f32 %v4238, %v4039
    %v4242 = vmul.f32 %v4238, %v4040
    %4247 = vrot.lane.b32.xlu0 %v4239, 126
    %v4248 = vpop.permute.xlu0 %4247
    %4249 = vrot.lane.b32.xlu0 %v4240, 126
    %v4250 = vpop.permute.xlu0 %4249
    %4251 = vrot.lane.b32.xlu0 %v4241, 126
    %v4252 = vpop.permute.xlu0 %4251
    %4253 = vrot.lane.b32.xlu0 %v4242, 126
    %v4254 = vpop.permute.xlu0 %4253
    %v4259 = vadd.f32 %v4155, %v4248
    %v4260 = vadd.f32 %v4156, %v4250
    %v4261 = vadd.f32 %v4157, %v4252
    %v4262 = vadd.f32 %v4158, %v4254
    %s4263 = sld [smem:[#allocation8 + $0x77]]
    %v4264 = vstv %s4263
    %v4265 = vmul.f32 %v4264, %v4037
    %v4266 = vmul.f32 %v4264, %v4038
    %v4267 = vmul.f32 %v4264, %v4039
    %v4268 = vmul.f32 %v4264, %v4040
    %4273 = vrot.lane.b32.xlu0 %v4265, 126
    %v4274 = vpop.permute.xlu0 %4273
    %4275 = vrot.lane.b32.xlu0 %v4266, 126
    %v4276 = vpop.permute.xlu0 %4275
    %4277 = vrot.lane.b32.xlu0 %v4267, 126
    %v4278 = vpop.permute.xlu0 %4277
    %4279 = vrot.lane.b32.xlu0 %v4268, 126
    %v4280 = vpop.permute.xlu0 %4279
    %v4285 = vadd.f32 %v4181, %v4274
    %v4286 = vadd.f32 %v4182, %v4276
    %v4287 = vadd.f32 %v4183, %v4278
    %v4288 = vadd.f32 %v4184, %v4280
    %v4289 = vld [vmem:[%s3218 + $0x1] sm:$0xff]
    %v4290 = vld [vmem:[%s3218 + $0x9] sm:$0xff]
    %v4291 = vld [vmem:[%s3218 + $0x61] sm:$0xff]
    %v4292 = vld [vmem:[%s3218 + $0x69] sm:$0xff]
    %s4293 = sld [smem:[#allocation8 + $0xc]]
    %v4294 = vstv %s4293
    %v4295 = vmul.f32 %v4294, %v4289
    %v4296 = vmul.f32 %v4294, %v4290
    %v4297 = vmul.f32 %v4294, %v4291
    %v4298 = vmul.f32 %v4294, %v4292
    %v4299 = vadd.f32 %v4207, %v4295
    %v4300 = vadd.f32 %v4208, %v4296
    %v4301 = vadd.f32 %v4209, %v4297
    %v4302 = vadd.f32 %v4210, %v4298
    %s4303 = sld [smem:[#allocation8 + $0x30]]
    %v4304 = vstv %s4303
    %v4305 = vmul.f32 %v4304, %v4289
    %v4306 = vmul.f32 %v4304, %v4290
    %v4307 = vmul.f32 %v4304, %v4291
    %v4308 = vmul.f32 %v4304, %v4292
    %v4309 = vadd.f32 %v4233, %v4305
    %v4310 = vadd.f32 %v4234, %v4306
    %v4311 = vadd.f32 %v4235, %v4307
    %v4312 = vadd.f32 %v4236, %v4308
    %s4313 = sld [smem:[#allocation8 + $0x54]]
    %v4314 = vstv %s4313
    %v4315 = vmul.f32 %v4314, %v4289
    %v4316 = vmul.f32 %v4314, %v4290
    %v4317 = vmul.f32 %v4314, %v4291
    %v4318 = vmul.f32 %v4314, %v4292
    %v4319 = vadd.f32 %v4259, %v4315
    %v4320 = vadd.f32 %v4260, %v4316
    %v4321 = vadd.f32 %v4261, %v4317
    %v4322 = vadd.f32 %v4262, %v4318
    %s4323 = sld [smem:[#allocation8 + $0x78]]
    %v4324 = vstv %s4323
    %v4325 = vmul.f32 %v4324, %v4289
    %v4326 = vmul.f32 %v4324, %v4290
    %v4327 = vmul.f32 %v4324, %v4291
    %v4328 = vmul.f32 %v4324, %v4292
    %v4329 = vadd.f32 %v4285, %v4325
    %v4330 = vadd.f32 %v4286, %v4326
    %v4331 = vadd.f32 %v4287, %v4327
    %v4332 = vadd.f32 %v4288, %v4328
    %s4333 = sld [smem:[#allocation8 + $0xd]]
    %v4334 = vstv %s4333
    %v4335 = vmul.f32 %v4334, %v4289
    %v4336 = vmul.f32 %v4334, %v4290
    %v4337 = vmul.f32 %v4334, %v4291
    %v4338 = vmul.f32 %v4334, %v4292
    %4343 = vrot.lane.b32.xlu0 %v4335, 127
    %v4344 = vpop.permute.xlu0 %4343
    %4345 = vrot.lane.b32.xlu0 %v4336, 127
    %v4346 = vpop.permute.xlu0 %4345
    %4347 = vrot.lane.b32.xlu0 %v4337, 127
    %v4348 = vpop.permute.xlu0 %4347
    %4349 = vrot.lane.b32.xlu0 %v4338, 127
    %v4350 = vpop.permute.xlu0 %4349
    %v4355 = vadd.f32 %v4299, %v4344
    %v4356 = vadd.f32 %v4300, %v4346
    %v4357 = vadd.f32 %v4301, %v4348
    %v4358 = vadd.f32 %v4302, %v4350
    %s4359 = sld [smem:[#allocation8 + $0x31]]
    %v4360 = vstv %s4359
    %v4361 = vmul.f32 %v4360, %v4289
    %v4362 = vmul.f32 %v4360, %v4290
    %v4363 = vmul.f32 %v4360, %v4291
    %v4364 = vmul.f32 %v4360, %v4292
    %4369 = vrot.lane.b32.xlu0 %v4361, 127
    %v4370 = vpop.permute.xlu0 %4369
    %4371 = vrot.lane.b32.xlu0 %v4362, 127
    %v4372 = vpop.permute.xlu0 %4371
    %4373 = vrot.lane.b32.xlu0 %v4363, 127
    %v4374 = vpop.permute.xlu0 %4373
    %4375 = vrot.lane.b32.xlu0 %v4364, 127
    %v4376 = vpop.permute.xlu0 %4375
    %v4381 = vadd.f32 %v4309, %v4370
    %v4382 = vadd.f32 %v4310, %v4372
    %v4383 = vadd.f32 %v4311, %v4374
    %v4384 = vadd.f32 %v4312, %v4376
    %s4385 = sld [smem:[#allocation8 + $0x55]]
    %v4386 = vstv %s4385
    %v4387 = vmul.f32 %v4386, %v4289
    %v4388 = vmul.f32 %v4386, %v4290
    %v4389 = vmul.f32 %v4386, %v4291
    %v4390 = vmul.f32 %v4386, %v4292
    %4395 = vrot.lane.b32.xlu0 %v4387, 127
    %v4396 = vpop.permute.xlu0 %4395
    %4397 = vrot.lane.b32.xlu0 %v4388, 127
    %v4398 = vpop.permute.xlu0 %4397
    %4399 = vrot.lane.b32.xlu0 %v4389, 127
    %v4400 = vpop.permute.xlu0 %4399
    %4401 = vrot.lane.b32.xlu0 %v4390, 127
    %v4402 = vpop.permute.xlu0 %4401
    %v4407 = vadd.f32 %v4319, %v4396
    %v4408 = vadd.f32 %v4320, %v4398
    %v4409 = vadd.f32 %v4321, %v4400
    %v4410 = vadd.f32 %v4322, %v4402
    %s4411 = sld [smem:[#allocation8 + $0x79]]
    %v4412 = vstv %s4411
    %v4413 = vmul.f32 %v4412, %v4289
    %v4414 = vmul.f32 %v4412, %v4290
    %v4415 = vmul.f32 %v4412, %v4291
    %v4416 = vmul.f32 %v4412, %v4292
    %4421 = vrot.lane.b32.xlu0 %v4413, 127
    %v4422 = vpop.permute.xlu0 %4421
    %4423 = vrot.lane.b32.xlu0 %v4414, 127
    %v4424 = vpop.permute.xlu0 %4423
    %4425 = vrot.lane.b32.xlu0 %v4415, 127
    %v4426 = vpop.permute.xlu0 %4425
    %4427 = vrot.lane.b32.xlu0 %v4416, 127
    %v4428 = vpop.permute.xlu0 %4427
    %v4433 = vadd.f32 %v4329, %v4422
    %v4434 = vadd.f32 %v4330, %v4424
    %v4435 = vadd.f32 %v4331, %v4426
    %v4436 = vadd.f32 %v4332, %v4428
    %s4437 = sld [smem:[#allocation8 + $0xe]]
    %v4438 = vstv %s4437
    %v4439 = vmul.f32 %v4438, %v4289
    %v4440 = vmul.f32 %v4438, %v4290
    %v4441 = vmul.f32 %v4438, %v4291
    %v4442 = vmul.f32 %v4438, %v4292
    %4447 = vrot.lane.b32.xlu0 %v4439, 126
    %v4448 = vpop.permute.xlu0 %4447
    %4449 = vrot.lane.b32.xlu0 %v4440, 126
    %v4450 = vpop.permute.xlu0 %4449
    %4451 = vrot.lane.b32.xlu0 %v4441, 126
    %v4452 = vpop.permute.xlu0 %4451
    %4453 = vrot.lane.b32.xlu0 %v4442, 126
    %v4454 = vpop.permute.xlu0 %4453
    %v4459 = vadd.f32 %v4355, %v4448
    %v4460 = vadd.f32 %v4356, %v4450
    %v4461 = vadd.f32 %v4357, %v4452
    %v4462 = vadd.f32 %v4358, %v4454
    %s4463 = sld [smem:[#allocation8 + $0x32]]
    %v4464 = vstv %s4463
    %v4465 = vmul.f32 %v4464, %v4289
    %v4466 = vmul.f32 %v4464, %v4290
    %v4467 = vmul.f32 %v4464, %v4291
    %v4468 = vmul.f32 %v4464, %v4292
    %4473 = vrot.lane.b32.xlu0 %v4465, 126
    %v4474 = vpop.permute.xlu0 %4473
    %4475 = vrot.lane.b32.xlu0 %v4466, 126
    %v4476 = vpop.permute.xlu0 %4475
    %4477 = vrot.lane.b32.xlu0 %v4467, 126
    %v4478 = vpop.permute.xlu0 %4477
    %4479 = vrot.lane.b32.xlu0 %v4468, 126
    %v4480 = vpop.permute.xlu0 %4479
    %v4485 = vadd.f32 %v4381, %v4474
    %v4486 = vadd.f32 %v4382, %v4476
    %v4487 = vadd.f32 %v4383, %v4478
    %v4488 = vadd.f32 %v4384, %v4480
    %s4489 = sld [smem:[#allocation8 + $0x56]]
    %v4490 = vstv %s4489
    %v4491 = vmul.f32 %v4490, %v4289
    %v4492 = vmul.f32 %v4490, %v4290
    %v4493 = vmul.f32 %v4490, %v4291
    %v4494 = vmul.f32 %v4490, %v4292
    %4499 = vrot.lane.b32.xlu0 %v4491, 126
    %v4500 = vpop.permute.xlu0 %4499
    %4501 = vrot.lane.b32.xlu0 %v4492, 126
    %v4502 = vpop.permute.xlu0 %4501
    %4503 = vrot.lane.b32.xlu0 %v4493, 126
    %v4504 = vpop.permute.xlu0 %4503
    %4505 = vrot.lane.b32.xlu0 %v4494, 126
    %v4506 = vpop.permute.xlu0 %4505
    %v4511 = vadd.f32 %v4407, %v4500
    %v4512 = vadd.f32 %v4408, %v4502
    %v4513 = vadd.f32 %v4409, %v4504
    %v4514 = vadd.f32 %v4410, %v4506
    %s4515 = sld [smem:[#allocation8 + $0x7a]]
    %v4516 = vstv %s4515
    %v4517 = vmul.f32 %v4516, %v4289
    %v4518 = vmul.f32 %v4516, %v4290
    %v4519 = vmul.f32 %v4516, %v4291
    %v4520 = vmul.f32 %v4516, %v4292
    %4525 = vrot.lane.b32.xlu0 %v4517, 126
    %v4526 = vpop.permute.xlu0 %4525
    %4527 = vrot.lane.b32.xlu0 %v4518, 126
    %v4528 = vpop.permute.xlu0 %4527
    %4529 = vrot.lane.b32.xlu0 %v4519, 126
    %v4530 = vpop.permute.xlu0 %4529
    %4531 = vrot.lane.b32.xlu0 %v4520, 126
    %v4532 = vpop.permute.xlu0 %4531
    %v4537 = vadd.f32 %v4433, %v4526
    %v4538 = vadd.f32 %v4434, %v4528
    %v4539 = vadd.f32 %v4435, %v4530
    %v4540 = vadd.f32 %v4436, %v4532
    %v4541 = vld [vmem:[%s3218 + $0x2] sm:$0xff]
    %v4542 = vld [vmem:[%s3218 + $0xa] sm:$0xff]
    %v4543 = vld [vmem:[%s3218 + $0x62] sm:$0xff]
    %v4544 = vld [vmem:[%s3218 + $0x6a] sm:$0xff]
    %s4545 = sld [smem:[#allocation8 + $0xf]]
    %v4546 = vstv %s4545
    %v4547 = vmul.f32 %v4546, %v4541
    %v4548 = vmul.f32 %v4546, %v4542
    %v4549 = vmul.f32 %v4546, %v4543
    %v4550 = vmul.f32 %v4546, %v4544
    %v4551 = vadd.f32 %v4459, %v4547
    %v4552 = vadd.f32 %v4460, %v4548
    %v4553 = vadd.f32 %v4461, %v4549
    %v4554 = vadd.f32 %v4462, %v4550
    %s4555 = sld [smem:[#allocation8 + $0x33]]
    %v4556 = vstv %s4555
    %v4557 = vmul.f32 %v4556, %v4541
    %v4558 = vmul.f32 %v4556, %v4542
    %v4559 = vmul.f32 %v4556, %v4543
    %v4560 = vmul.f32 %v4556, %v4544
    %v4561 = vadd.f32 %v4485, %v4557
    %v4562 = vadd.f32 %v4486, %v4558
    %v4563 = vadd.f32 %v4487, %v4559
    %v4564 = vadd.f32 %v4488, %v4560
    %s4565 = sld [smem:[#allocation8 + $0x57]]
    %v4566 = vstv %s4565
    %v4567 = vmul.f32 %v4566, %v4541
    %v4568 = vmul.f32 %v4566, %v4542
    %v4569 = vmul.f32 %v4566, %v4543
    %v4570 = vmul.f32 %v4566, %v4544
    %v4571 = vadd.f32 %v4511, %v4567
    %v4572 = vadd.f32 %v4512, %v4568
    %v4573 = vadd.f32 %v4513, %v4569
    %v4574 = vadd.f32 %v4514, %v4570
    %s4575 = sld [smem:[#allocation8 + $0x7b]]
    %v4576 = vstv %s4575
    %v4577 = vmul.f32 %v4576, %v4541
    %v4578 = vmul.f32 %v4576, %v4542
    %v4579 = vmul.f32 %v4576, %v4543
    %v4580 = vmul.f32 %v4576, %v4544
    %v4581 = vadd.f32 %v4537, %v4577
    %v4582 = vadd.f32 %v4538, %v4578
    %v4583 = vadd.f32 %v4539, %v4579
    %v4584 = vadd.f32 %v4540, %v4580
    %s4585 = sld [smem:[#allocation8 + $0x10]]
    %v4586 = vstv %s4585
    %v4587 = vmul.f32 %v4586, %v4541
    %v4588 = vmul.f32 %v4586, %v4542
    %v4589 = vmul.f32 %v4586, %v4543
    %v4590 = vmul.f32 %v4586, %v4544
    %4595 = vrot.lane.b32.xlu0 %v4587, 127
    %v4596 = vpop.permute.xlu0 %4595
    %4597 = vrot.lane.b32.xlu0 %v4588, 127
    %v4598 = vpop.permute.xlu0 %4597
    %4599 = vrot.lane.b32.xlu0 %v4589, 127
    %v4600 = vpop.permute.xlu0 %4599
    %4601 = vrot.lane.b32.xlu0 %v4590, 127
    %v4602 = vpop.permute.xlu0 %4601
    %v4607 = vadd.f32 %v4551, %v4596
    %v4608 = vadd.f32 %v4552, %v4598
    %v4609 = vadd.f32 %v4553, %v4600
    %v4610 = vadd.f32 %v4554, %v4602
    %s4611 = sld [smem:[#allocation8 + $0x34]]
    %v4612 = vstv %s4611
    %v4613 = vmul.f32 %v4612, %v4541
    %v4614 = vmul.f32 %v4612, %v4542
    %v4615 = vmul.f32 %v4612, %v4543
    %v4616 = vmul.f32 %v4612, %v4544
    %4621 = vrot.lane.b32.xlu0 %v4613, 127
    %v4622 = vpop.permute.xlu0 %4621
    %4623 = vrot.lane.b32.xlu0 %v4614, 127
    %v4624 = vpop.permute.xlu0 %4623
    %4625 = vrot.lane.b32.xlu0 %v4615, 127
    %v4626 = vpop.permute.xlu0 %4625
    %4627 = vrot.lane.b32.xlu0 %v4616, 127
    %v4628 = vpop.permute.xlu0 %4627
    %v4633 = vadd.f32 %v4561, %v4622
    %v4634 = vadd.f32 %v4562, %v4624
    %v4635 = vadd.f32 %v4563, %v4626
    %v4636 = vadd.f32 %v4564, %v4628
    %s4637 = sld [smem:[#allocation8 + $0x58]]
    %v4638 = vstv %s4637
    %v4639 = vmul.f32 %v4638, %v4541
    %v4640 = vmul.f32 %v4638, %v4542
    %v4641 = vmul.f32 %v4638, %v4543
    %v4642 = vmul.f32 %v4638, %v4544
    %4647 = vrot.lane.b32.xlu0 %v4639, 127
    %v4648 = vpop.permute.xlu0 %4647
    %4649 = vrot.lane.b32.xlu0 %v4640, 127
    %v4650 = vpop.permute.xlu0 %4649
    %4651 = vrot.lane.b32.xlu0 %v4641, 127
    %v4652 = vpop.permute.xlu0 %4651
    %4653 = vrot.lane.b32.xlu0 %v4642, 127
    %v4654 = vpop.permute.xlu0 %4653
    %v4659 = vadd.f32 %v4571, %v4648
    %v4660 = vadd.f32 %v4572, %v4650
    %v4661 = vadd.f32 %v4573, %v4652
    %v4662 = vadd.f32 %v4574, %v4654
    %s4663 = sld [smem:[#allocation8 + $0x7c]]
    %v4664 = vstv %s4663
    %v4665 = vmul.f32 %v4664, %v4541
    %v4666 = vmul.f32 %v4664, %v4542
    %v4667 = vmul.f32 %v4664, %v4543
    %v4668 = vmul.f32 %v4664, %v4544
    %4673 = vrot.lane.b32.xlu0 %v4665, 127
    %v4674 = vpop.permute.xlu0 %4673
    %4675 = vrot.lane.b32.xlu0 %v4666, 127
    %v4676 = vpop.permute.xlu0 %4675
    %4677 = vrot.lane.b32.xlu0 %v4667, 127
    %v4678 = vpop.permute.xlu0 %4677
    %4679 = vrot.lane.b32.xlu0 %v4668, 127
    %v4680 = vpop.permute.xlu0 %4679
    %v4685 = vadd.f32 %v4581, %v4674
    %v4686 = vadd.f32 %v4582, %v4676
    %v4687 = vadd.f32 %v4583, %v4678
    %v4688 = vadd.f32 %v4584, %v4680
    %s4689 = sld [smem:[#allocation8 + $0x11]]
    %v4690 = vstv %s4689
    %v4691 = vmul.f32 %v4690, %v4541
    %v4692 = vmul.f32 %v4690, %v4542
    %v4693 = vmul.f32 %v4690, %v4543
    %v4694 = vmul.f32 %v4690, %v4544
    %4699 = vrot.lane.b32.xlu0 %v4691, 126
    %v4700 = vpop.permute.xlu0 %4699
    %4701 = vrot.lane.b32.xlu0 %v4692, 126
    %v4702 = vpop.permute.xlu0 %4701
    %4703 = vrot.lane.b32.xlu0 %v4693, 126
    %v4704 = vpop.permute.xlu0 %4703
    %4705 = vrot.lane.b32.xlu0 %v4694, 126
    %v4706 = vpop.permute.xlu0 %4705
    %v4711 = vadd.f32 %v4607, %v4700
    %v4712 = vadd.f32 %v4608, %v4702
    %v4713 = vadd.f32 %v4609, %v4704
    %v4714 = vadd.f32 %v4610, %v4706
    %s4715 = sld [smem:[#allocation8 + $0x35]]
    %v4716 = vstv %s4715
    %v4717 = vmul.f32 %v4716, %v4541
    %v4718 = vmul.f32 %v4716, %v4542
    %v4719 = vmul.f32 %v4716, %v4543
    %v4720 = vmul.f32 %v4716, %v4544
    %4725 = vrot.lane.b32.xlu0 %v4717, 126
    %v4726 = vpop.permute.xlu0 %4725
    %4727 = vrot.lane.b32.xlu0 %v4718, 126
    %v4728 = vpop.permute.xlu0 %4727
    %4729 = vrot.lane.b32.xlu0 %v4719, 126
    %v4730 = vpop.permute.xlu0 %4729
    %4731 = vrot.lane.b32.xlu0 %v4720, 126
    %v4732 = vpop.permute.xlu0 %4731
    %v4737 = vadd.f32 %v4633, %v4726
    %v4738 = vadd.f32 %v4634, %v4728
    %v4739 = vadd.f32 %v4635, %v4730
    %v4740 = vadd.f32 %v4636, %v4732
    %s4741 = sld [smem:[#allocation8 + $0x59]]
    %v4742 = vstv %s4741
    %v4743 = vmul.f32 %v4742, %v4541
    %v4744 = vmul.f32 %v4742, %v4542
    %v4745 = vmul.f32 %v4742, %v4543
    %v4746 = vmul.f32 %v4742, %v4544
    %4751 = vrot.lane.b32.xlu0 %v4743, 126
    %v4752 = vpop.permute.xlu0 %4751
    %4753 = vrot.lane.b32.xlu0 %v4744, 126
    %v4754 = vpop.permute.xlu0 %4753
    %4755 = vrot.lane.b32.xlu0 %v4745, 126
    %v4756 = vpop.permute.xlu0 %4755
    %4757 = vrot.lane.b32.xlu0 %v4746, 126
    %v4758 = vpop.permute.xlu0 %4757
    %v4763 = vadd.f32 %v4659, %v4752
    %v4764 = vadd.f32 %v4660, %v4754
    %v4765 = vadd.f32 %v4661, %v4756
    %v4766 = vadd.f32 %v4662, %v4758
    %s4767 = sld [smem:[#allocation8 + $0x7d]]
    %v4768 = vstv %s4767
    %v4769 = vmul.f32 %v4768, %v4541
    %v4770 = vmul.f32 %v4768, %v4542
    %v4771 = vmul.f32 %v4768, %v4543
    %v4772 = vmul.f32 %v4768, %v4544
    %4777 = vrot.lane.b32.xlu0 %v4769, 126
    %v4778 = vpop.permute.xlu0 %4777
    %4779 = vrot.lane.b32.xlu0 %v4770, 126
    %v4780 = vpop.permute.xlu0 %4779
    %4781 = vrot.lane.b32.xlu0 %v4771, 126
    %v4782 = vpop.permute.xlu0 %4781
    %4783 = vrot.lane.b32.xlu0 %v4772, 126
    %v4784 = vpop.permute.xlu0 %4783
    %v4789 = vadd.f32 %v4685, %v4778
    %v4790 = vadd.f32 %v4686, %v4780
    %v4791 = vadd.f32 %v4687, %v4782
    %v4792 = vadd.f32 %v4688, %v4784
    %v4793 = vld [vmem:[%s3243] sm:$0xff]
    %v4794 = vld [vmem:[%s3243 + $0x8] sm:$0xff]
    %v4795 = vld [vmem:[%s3243 + $0x60] sm:$0xff]
    %v4796 = vld [vmem:[%s3243 + $0x68] sm:$0xff]
    %s4797 = sld [smem:[#allocation8 + $0x12]]
    %v4798 = vstv %s4797
    %v4799 = vmul.f32 %v4798, %v4793
    %v4800 = vmul.f32 %v4798, %v4794
    %v4801 = vmul.f32 %v4798, %v4795
    %v4802 = vmul.f32 %v4798, %v4796
    %v4803 = vadd.f32 %v4711, %v4799
    %v4804 = vadd.f32 %v4712, %v4800
    %v4805 = vadd.f32 %v4713, %v4801
    %v4806 = vadd.f32 %v4714, %v4802
    %s4807 = sld [smem:[#allocation8 + $0x36]]
    %v4808 = vstv %s4807
    %v4809 = vmul.f32 %v4808, %v4793
    %v4810 = vmul.f32 %v4808, %v4794
    %v4811 = vmul.f32 %v4808, %v4795
    %v4812 = vmul.f32 %v4808, %v4796
    %v4813 = vadd.f32 %v4737, %v4809
    %v4814 = vadd.f32 %v4738, %v4810
    %v4815 = vadd.f32 %v4739, %v4811
    %v4816 = vadd.f32 %v4740, %v4812
    %s4817 = sld [smem:[#allocation8 + $0x5a]]
    %v4818 = vstv %s4817
    %v4819 = vmul.f32 %v4818, %v4793
    %v4820 = vmul.f32 %v4818, %v4794
    %v4821 = vmul.f32 %v4818, %v4795
    %v4822 = vmul.f32 %v4818, %v4796
    %v4823 = vadd.f32 %v4763, %v4819
    %v4824 = vadd.f32 %v4764, %v4820
    %v4825 = vadd.f32 %v4765, %v4821
    %v4826 = vadd.f32 %v4766, %v4822
    %s4827 = sld [smem:[#allocation8 + $0x7e]]
    %v4828 = vstv %s4827
    %v4829 = vmul.f32 %v4828, %v4793
    %v4830 = vmul.f32 %v4828, %v4794
    %v4831 = vmul.f32 %v4828, %v4795
    %v4832 = vmul.f32 %v4828, %v4796
    %v4833 = vadd.f32 %v4789, %v4829
    %v4834 = vadd.f32 %v4790, %v4830
    %v4835 = vadd.f32 %v4791, %v4831
    %v4836 = vadd.f32 %v4792, %v4832
    %s4837 = sld [smem:[#allocation8 + $0x13]]
    %v4838 = vstv %s4837
    %v4839 = vmul.f32 %v4838, %v4793
    %v4840 = vmul.f32 %v4838, %v4794
    %v4841 = vmul.f32 %v4838, %v4795
    %v4842 = vmul.f32 %v4838, %v4796
    %4847 = vrot.lane.b32.xlu0 %v4839, 127
    %v4848 = vpop.permute.xlu0 %4847
    %4849 = vrot.lane.b32.xlu0 %v4840, 127
    %v4850 = vpop.permute.xlu0 %4849
    %4851 = vrot.lane.b32.xlu0 %v4841, 127
    %v4852 = vpop.permute.xlu0 %4851
    %4853 = vrot.lane.b32.xlu0 %v4842, 127
    %v4854 = vpop.permute.xlu0 %4853
    %v4859 = vadd.f32 %v4803, %v4848
    %v4860 = vadd.f32 %v4804, %v4850
    %v4861 = vadd.f32 %v4805, %v4852
    %v4862 = vadd.f32 %v4806, %v4854
    %s4863 = sld [smem:[#allocation8 + $0x37]]
    %v4864 = vstv %s4863
    %v4865 = vmul.f32 %v4864, %v4793
    %v4866 = vmul.f32 %v4864, %v4794
    %v4867 = vmul.f32 %v4864, %v4795
    %v4868 = vmul.f32 %v4864, %v4796
    %4873 = vrot.lane.b32.xlu0 %v4865, 127
    %v4874 = vpop.permute.xlu0 %4873
    %4875 = vrot.lane.b32.xlu0 %v4866, 127
    %v4876 = vpop.permute.xlu0 %4875
    %4877 = vrot.lane.b32.xlu0 %v4867, 127
    %v4878 = vpop.permute.xlu0 %4877
    %4879 = vrot.lane.b32.xlu0 %v4868, 127
    %v4880 = vpop.permute.xlu0 %4879
    %v4885 = vadd.f32 %v4813, %v4874
    %v4886 = vadd.f32 %v4814, %v4876
    %v4887 = vadd.f32 %v4815, %v4878
    %v4888 = vadd.f32 %v4816, %v4880
    %s4889 = sld [smem:[#allocation8 + $0x5b]]
    %v4890 = vstv %s4889
    %v4891 = vmul.f32 %v4890, %v4793
    %v4892 = vmul.f32 %v4890, %v4794
    %v4893 = vmul.f32 %v4890, %v4795
    %v4894 = vmul.f32 %v4890, %v4796
    %4899 = vrot.lane.b32.xlu0 %v4891, 127
    %v4900 = vpop.permute.xlu0 %4899
    %4901 = vrot.lane.b32.xlu0 %v4892, 127
    %v4902 = vpop.permute.xlu0 %4901
    %4903 = vrot.lane.b32.xlu0 %v4893, 127
    %v4904 = vpop.permute.xlu0 %4903
    %4905 = vrot.lane.b32.xlu0 %v4894, 127
    %v4906 = vpop.permute.xlu0 %4905
    %v4911 = vadd.f32 %v4823, %v4900
    %v4912 = vadd.f32 %v4824, %v4902
    %v4913 = vadd.f32 %v4825, %v4904
    %v4914 = vadd.f32 %v4826, %v4906
    %s4915 = sld [smem:[#allocation8 + $0x7f]]
    %v4916 = vstv %s4915
    %v4917 = vmul.f32 %v4916, %v4793
    %v4918 = vmul.f32 %v4916, %v4794
    %v4919 = vmul.f32 %v4916, %v4795
    %v4920 = vmul.f32 %v4916, %v4796
    %4925 = vrot.lane.b32.xlu0 %v4917, 127
    %v4926 = vpop.permute.xlu0 %4925
    %4927 = vrot.lane.b32.xlu0 %v4918, 127
    %v4928 = vpop.permute.xlu0 %4927
    %4929 = vrot.lane.b32.xlu0 %v4919, 127
    %v4930 = vpop.permute.xlu0 %4929
    %4931 = vrot.lane.b32.xlu0 %v4920, 127
    %v4932 = vpop.permute.xlu0 %4931
    %v4937 = vadd.f32 %v4833, %v4926
    %v4938 = vadd.f32 %v4834, %v4928
    %v4939 = vadd.f32 %v4835, %v4930
    %v4940 = vadd.f32 %v4836, %v4932
    %s4941 = sld [smem:[#allocation8 + $0x14]]
    %v4942 = vstv %s4941
    %v4943 = vmul.f32 %v4942, %v4793
    %v4944 = vmul.f32 %v4942, %v4794
    %v4945 = vmul.f32 %v4942, %v4795
    %v4946 = vmul.f32 %v4942, %v4796
    %4951 = vrot.lane.b32.xlu0 %v4943, 126
    %v4952 = vpop.permute.xlu0 %4951
    %4953 = vrot.lane.b32.xlu0 %v4944, 126
    %v4954 = vpop.permute.xlu0 %4953
    %4955 = vrot.lane.b32.xlu0 %v4945, 126
    %v4956 = vpop.permute.xlu0 %4955
    %4957 = vrot.lane.b32.xlu0 %v4946, 126
    %v4958 = vpop.permute.xlu0 %4957
    %v4963 = vadd.f32 %v4859, %v4952
    %v4964 = vadd.f32 %v4860, %v4954
    %v4965 = vadd.f32 %v4861, %v4956
    %v4966 = vadd.f32 %v4862, %v4958
    %s4967 = sld [smem:[#allocation8 + $0x38]]
    %v4968 = vstv %s4967
    %v4969 = vmul.f32 %v4968, %v4793
    %v4970 = vmul.f32 %v4968, %v4794
    %v4971 = vmul.f32 %v4968, %v4795
    %v4972 = vmul.f32 %v4968, %v4796
    %4977 = vrot.lane.b32.xlu0 %v4969, 126
    %v4978 = vpop.permute.xlu0 %4977
    %4979 = vrot.lane.b32.xlu0 %v4970, 126
    %v4980 = vpop.permute.xlu0 %4979
    %4981 = vrot.lane.b32.xlu0 %v4971, 126
    %v4982 = vpop.permute.xlu0 %4981
    %4983 = vrot.lane.b32.xlu0 %v4972, 126
    %v4984 = vpop.permute.xlu0 %4983
    %v4989 = vadd.f32 %v4885, %v4978
    %v4990 = vadd.f32 %v4886, %v4980
    %v4991 = vadd.f32 %v4887, %v4982
    %v4992 = vadd.f32 %v4888, %v4984
    %s4993 = sld [smem:[#allocation8 + $0x5c]]
    %v4994 = vstv %s4993
    %v4995 = vmul.f32 %v4994, %v4793
    %v4996 = vmul.f32 %v4994, %v4794
    %v4997 = vmul.f32 %v4994, %v4795
    %v4998 = vmul.f32 %v4994, %v4796
    %5003 = vrot.lane.b32.xlu0 %v4995, 126
    %v5004 = vpop.permute.xlu0 %5003
    %5005 = vrot.lane.b32.xlu0 %v4996, 126
    %v5006 = vpop.permute.xlu0 %5005
    %5007 = vrot.lane.b32.xlu0 %v4997, 126
    %v5008 = vpop.permute.xlu0 %5007
    %5009 = vrot.lane.b32.xlu0 %v4998, 126
    %v5010 = vpop.permute.xlu0 %5009
    %v5015 = vadd.f32 %v4911, %v5004
    %v5016 = vadd.f32 %v4912, %v5006
    %v5017 = vadd.f32 %v4913, %v5008
    %v5018 = vadd.f32 %v4914, %v5010
    %s5019 = sld [smem:[#allocation8 + $0x80]]
    %v5020 = vstv %s5019
    %v5021 = vmul.f32 %v5020, %v4793
    %v5022 = vmul.f32 %v5020, %v4794
    %v5023 = vmul.f32 %v5020, %v4795
    %v5024 = vmul.f32 %v5020, %v4796
    %5029 = vrot.lane.b32.xlu0 %v5021, 126
    %v5030 = vpop.permute.xlu0 %5029
    %5031 = vrot.lane.b32.xlu0 %v5022, 126
    %v5032 = vpop.permute.xlu0 %5031
    %5033 = vrot.lane.b32.xlu0 %v5023, 126
    %v5034 = vpop.permute.xlu0 %5033
    %5035 = vrot.lane.b32.xlu0 %v5024, 126
    %v5036 = vpop.permute.xlu0 %5035
    %v5041 = vadd.f32 %v4937, %v5030
    %v5042 = vadd.f32 %v4938, %v5032
    %v5043 = vadd.f32 %v4939, %v5034
    %v5044 = vadd.f32 %v4940, %v5036
    %v5045 = vld [vmem:[%s3243 + $0x1] sm:$0xff]
    %v5046 = vld [vmem:[%s3243 + $0x9] sm:$0xff]
    %v5047 = vld [vmem:[%s3243 + $0x61] sm:$0xff]
    %v5048 = vld [vmem:[%s3243 + $0x69] sm:$0xff]
    %s5049 = sld [smem:[#allocation8 + $0x15]]
    %v5050 = vstv %s5049
    %v5051 = vmul.f32 %v5050, %v5045
    %v5052 = vmul.f32 %v5050, %v5046
    %v5053 = vmul.f32 %v5050, %v5047
    %v5054 = vmul.f32 %v5050, %v5048
    %v5055 = vadd.f32 %v4963, %v5051
    %v5056 = vadd.f32 %v4964, %v5052
    %v5057 = vadd.f32 %v4965, %v5053
    %v5058 = vadd.f32 %v4966, %v5054
    %s5059 = sld [smem:[#allocation8 + $0x39]]
    %v5060 = vstv %s5059
    %v5061 = vmul.f32 %v5060, %v5045
    %v5062 = vmul.f32 %v5060, %v5046
    %v5063 = vmul.f32 %v5060, %v5047
    %v5064 = vmul.f32 %v5060, %v5048
    %v5065 = vadd.f32 %v4989, %v5061
    %v5066 = vadd.f32 %v4990, %v5062
    %v5067 = vadd.f32 %v4991, %v5063
    %v5068 = vadd.f32 %v4992, %v5064
    %s5069 = sld [smem:[#allocation8 + $0x5d]]
    %v5070 = vstv %s5069
    %v5071 = vmul.f32 %v5070, %v5045
    %v5072 = vmul.f32 %v5070, %v5046
    %v5073 = vmul.f32 %v5070, %v5047
    %v5074 = vmul.f32 %v5070, %v5048
    %v5075 = vadd.f32 %v5015, %v5071
    %v5076 = vadd.f32 %v5016, %v5072
    %v5077 = vadd.f32 %v5017, %v5073
    %v5078 = vadd.f32 %v5018, %v5074
    %s5079 = sld [smem:[#allocation8 + $0x81]]
    %v5080 = vstv %s5079
    %v5081 = vmul.f32 %v5080, %v5045
    %v5082 = vmul.f32 %v5080, %v5046
    %v5083 = vmul.f32 %v5080, %v5047
    %v5084 = vmul.f32 %v5080, %v5048
    %v5085 = vadd.f32 %v5041, %v5081
    %v5086 = vadd.f32 %v5042, %v5082
    %v5087 = vadd.f32 %v5043, %v5083
    %v5088 = vadd.f32 %v5044, %v5084
    %s5089 = sld [smem:[#allocation8 + $0x16]]
    %v5090 = vstv %s5089
    %v5091 = vmul.f32 %v5090, %v5045
    %v5092 = vmul.f32 %v5090, %v5046
    %v5093 = vmul.f32 %v5090, %v5047
    %v5094 = vmul.f32 %v5090, %v5048
    %5099 = vrot.lane.b32.xlu0 %v5091, 127
    %v5100 = vpop.permute.xlu0 %5099
    %5101 = vrot.lane.b32.xlu0 %v5092, 127
    %v5102 = vpop.permute.xlu0 %5101
    %5103 = vrot.lane.b32.xlu0 %v5093, 127
    %v5104 = vpop.permute.xlu0 %5103
    %5105 = vrot.lane.b32.xlu0 %v5094, 127
    %v5106 = vpop.permute.xlu0 %5105
    %v5111 = vadd.f32 %v5055, %v5100
    %v5112 = vadd.f32 %v5056, %v5102
    %v5113 = vadd.f32 %v5057, %v5104
    %v5114 = vadd.f32 %v5058, %v5106
    %s5115 = sld [smem:[#allocation8 + $0x3a]]
    %v5116 = vstv %s5115
    %v5117 = vmul.f32 %v5116, %v5045
    %v5118 = vmul.f32 %v5116, %v5046
    %v5119 = vmul.f32 %v5116, %v5047
    %v5120 = vmul.f32 %v5116, %v5048
    %5125 = vrot.lane.b32.xlu0 %v5117, 127
    %v5126 = vpop.permute.xlu0 %5125
    %5127 = vrot.lane.b32.xlu0 %v5118, 127
    %v5128 = vpop.permute.xlu0 %5127
    %5129 = vrot.lane.b32.xlu0 %v5119, 127
    %v5130 = vpop.permute.xlu0 %5129
    %5131 = vrot.lane.b32.xlu0 %v5120, 127
    %v5132 = vpop.permute.xlu0 %5131
    %v5137 = vadd.f32 %v5065, %v5126
    %v5138 = vadd.f32 %v5066, %v5128
    %v5139 = vadd.f32 %v5067, %v5130
    %v5140 = vadd.f32 %v5068, %v5132
    %s5141 = sld [smem:[#allocation8 + $0x5e]]
    %v5142 = vstv %s5141
    %v5143 = vmul.f32 %v5142, %v5045
    %v5144 = vmul.f32 %v5142, %v5046
    %v5145 = vmul.f32 %v5142, %v5047
    %v5146 = vmul.f32 %v5142, %v5048
    %5151 = vrot.lane.b32.xlu0 %v5143, 127
    %v5152 = vpop.permute.xlu0 %5151
    %5153 = vrot.lane.b32.xlu0 %v5144, 127
    %v5154 = vpop.permute.xlu0 %5153
    %5155 = vrot.lane.b32.xlu0 %v5145, 127
    %v5156 = vpop.permute.xlu0 %5155
    %5157 = vrot.lane.b32.xlu0 %v5146, 127
    %v5158 = vpop.permute.xlu0 %5157
    %v5163 = vadd.f32 %v5075, %v5152
    %v5164 = vadd.f32 %v5076, %v5154
    %v5165 = vadd.f32 %v5077, %v5156
    %v5166 = vadd.f32 %v5078, %v5158
    %s5167 = sld [smem:[#allocation8 + $0x82]]
    %v5168 = vstv %s5167
    %v5169 = vmul.f32 %v5168, %v5045
    %v5170 = vmul.f32 %v5168, %v5046
    %v5171 = vmul.f32 %v5168, %v5047
    %v5172 = vmul.f32 %v5168, %v5048
    %5177 = vrot.lane.b32.xlu0 %v5169, 127
    %v5178 = vpop.permute.xlu0 %5177
    %5179 = vrot.lane.b32.xlu0 %v5170, 127
    %v5180 = vpop.permute.xlu0 %5179
    %5181 = vrot.lane.b32.xlu0 %v5171, 127
    %v5182 = vpop.permute.xlu0 %5181
    %5183 = vrot.lane.b32.xlu0 %v5172, 127
    %v5184 = vpop.permute.xlu0 %5183
    %v5189 = vadd.f32 %v5085, %v5178
    %v5190 = vadd.f32 %v5086, %v5180
    %v5191 = vadd.f32 %v5087, %v5182
    %v5192 = vadd.f32 %v5088, %v5184
    %s5193 = sld [smem:[#allocation8 + $0x17]]
    %v5194 = vstv %s5193
    %v5195 = vmul.f32 %v5194, %v5045
    %v5196 = vmul.f32 %v5194, %v5046
    %v5197 = vmul.f32 %v5194, %v5047
    %v5198 = vmul.f32 %v5194, %v5048
    %5203 = vrot.lane.b32.xlu0 %v5195, 126
    %v5204 = vpop.permute.xlu0 %5203
    %5205 = vrot.lane.b32.xlu0 %v5196, 126
    %v5206 = vpop.permute.xlu0 %5205
    %5207 = vrot.lane.b32.xlu0 %v5197, 126
    %v5208 = vpop.permute.xlu0 %5207
    %5209 = vrot.lane.b32.xlu0 %v5198, 126
    %v5210 = vpop.permute.xlu0 %5209
    %v5215 = vadd.f32 %v5111, %v5204
    %v5216 = vadd.f32 %v5112, %v5206
    %v5217 = vadd.f32 %v5113, %v5208
    %v5218 = vadd.f32 %v5114, %v5210
    %s5219 = sld [smem:[#allocation8 + $0x3b]]
    %v5220 = vstv %s5219
    %v5221 = vmul.f32 %v5220, %v5045
    %v5222 = vmul.f32 %v5220, %v5046
    %v5223 = vmul.f32 %v5220, %v5047
    %v5224 = vmul.f32 %v5220, %v5048
    %5229 = vrot.lane.b32.xlu0 %v5221, 126
    %v5230 = vpop.permute.xlu0 %5229
    %5231 = vrot.lane.b32.xlu0 %v5222, 126
    %v5232 = vpop.permute.xlu0 %5231
    %5233 = vrot.lane.b32.xlu0 %v5223, 126
    %v5234 = vpop.permute.xlu0 %5233
    %5235 = vrot.lane.b32.xlu0 %v5224, 126
    %v5236 = vpop.permute.xlu0 %5235
    %v5241 = vadd.f32 %v5137, %v5230
    %v5242 = vadd.f32 %v5138, %v5232
    %v5243 = vadd.f32 %v5139, %v5234
    %v5244 = vadd.f32 %v5140, %v5236
    %s5245 = sld [smem:[#allocation8 + $0x5f]]
    %v5246 = vstv %s5245
    %v5247 = vmul.f32 %v5246, %v5045
    %v5248 = vmul.f32 %v5246, %v5046
    %v5249 = vmul.f32 %v5246, %v5047
    %v5250 = vmul.f32 %v5246, %v5048
    %5255 = vrot.lane.b32.xlu0 %v5247, 126
    %v5256 = vpop.permute.xlu0 %5255
    %5257 = vrot.lane.b32.xlu0 %v5248, 126
    %v5258 = vpop.permute.xlu0 %5257
    %5259 = vrot.lane.b32.xlu0 %v5249, 126
    %v5260 = vpop.permute.xlu0 %5259
    %5261 = vrot.lane.b32.xlu0 %v5250, 126
    %v5262 = vpop.permute.xlu0 %5261
    %v5267 = vadd.f32 %v5163, %v5256
    %v5268 = vadd.f32 %v5164, %v5258
    %v5269 = vadd.f32 %v5165, %v5260
    %v5270 = vadd.f32 %v5166, %v5262
    %s5271 = sld [smem:[#allocation8 + $0x83]]
    %v5272 = vstv %s5271
    %v5273 = vmul.f32 %v5272, %v5045
    %v5274 = vmul.f32 %v5272, %v5046
    %v5275 = vmul.f32 %v5272, %v5047
    %v5276 = vmul.f32 %v5272, %v5048
    %5281 = vrot.lane.b32.xlu0 %v5273, 126
    %v5282 = vpop.permute.xlu0 %5281
    %5283 = vrot.lane.b32.xlu0 %v5274, 126
    %v5284 = vpop.permute.xlu0 %5283
    %5285 = vrot.lane.b32.xlu0 %v5275, 126
    %v5286 = vpop.permute.xlu0 %5285
    %5287 = vrot.lane.b32.xlu0 %v5276, 126
    %v5288 = vpop.permute.xlu0 %5287
    %v5293 = vadd.f32 %v5189, %v5282
    %v5294 = vadd.f32 %v5190, %v5284
    %v5295 = vadd.f32 %v5191, %v5286
    %v5296 = vadd.f32 %v5192, %v5288
    %v5297 = vld [vmem:[%s3243 + $0x2] sm:$0xff]
    %v5298 = vld [vmem:[%s3243 + $0xa] sm:$0xff]
    %v5299 = vld [vmem:[%s3243 + $0x62] sm:$0xff]
    %v5300 = vld [vmem:[%s3243 + $0x6a] sm:$0xff]
    %s5301 = sld [smem:[#allocation8 + $0x18]]
    %v5302 = vstv %s5301
    %v5303 = vmul.f32 %v5302, %v5297
    %v5304 = vmul.f32 %v5302, %v5298
    %v5305 = vmul.f32 %v5302, %v5299
    %v5306 = vmul.f32 %v5302, %v5300
    %v5307 = vadd.f32 %v5215, %v5303
    %v5308 = vadd.f32 %v5216, %v5304
    %v5309 = vadd.f32 %v5217, %v5305
    %v5310 = vadd.f32 %v5218, %v5306
    %s5311 = sld [smem:[#allocation8 + $0x3c]]
    %v5312 = vstv %s5311
    %v5313 = vmul.f32 %v5312, %v5297
    %v5314 = vmul.f32 %v5312, %v5298
    %v5315 = vmul.f32 %v5312, %v5299
    %v5316 = vmul.f32 %v5312, %v5300
    %v5317 = vadd.f32 %v5241, %v5313
    %v5318 = vadd.f32 %v5242, %v5314
    %v5319 = vadd.f32 %v5243, %v5315
    %v5320 = vadd.f32 %v5244, %v5316
    %s5321 = sld [smem:[#allocation8 + $0x60]]
    %v5322 = vstv %s5321
    %v5323 = vmul.f32 %v5322, %v5297
    %v5324 = vmul.f32 %v5322, %v5298
    %v5325 = vmul.f32 %v5322, %v5299
    %v5326 = vmul.f32 %v5322, %v5300
    %v5327 = vadd.f32 %v5267, %v5323
    %v5328 = vadd.f32 %v5268, %v5324
    %v5329 = vadd.f32 %v5269, %v5325
    %v5330 = vadd.f32 %v5270, %v5326
    %s5331 = sld [smem:[#allocation8 + $0x84]]
    %v5332 = vstv %s5331
    %v5333 = vmul.f32 %v5332, %v5297
    %v5334 = vmul.f32 %v5332, %v5298
    %v5335 = vmul.f32 %v5332, %v5299
    %v5336 = vmul.f32 %v5332, %v5300
    %v5337 = vadd.f32 %v5293, %v5333
    %v5338 = vadd.f32 %v5294, %v5334
    %v5339 = vadd.f32 %v5295, %v5335
    %v5340 = vadd.f32 %v5296, %v5336
    %s5341 = sld [smem:[#allocation8 + $0x19]]
    %v5342 = vstv %s5341
    %v5343 = vmul.f32 %v5342, %v5297
    %v5344 = vmul.f32 %v5342, %v5298
    %v5345 = vmul.f32 %v5342, %v5299
    %v5346 = vmul.f32 %v5342, %v5300
    %5351 = vrot.lane.b32.xlu0 %v5343, 127
    %v5352 = vpop.permute.xlu0 %5351
    %5353 = vrot.lane.b32.xlu0 %v5344, 127
    %v5354 = vpop.permute.xlu0 %5353
    %5355 = vrot.lane.b32.xlu0 %v5345, 127
    %v5356 = vpop.permute.xlu0 %5355
    %5357 = vrot.lane.b32.xlu0 %v5346, 127
    %v5358 = vpop.permute.xlu0 %5357
    %v5363 = vadd.f32 %v5307, %v5352
    %v5364 = vadd.f32 %v5308, %v5354
    %v5365 = vadd.f32 %v5309, %v5356
    %v5366 = vadd.f32 %v5310, %v5358
    %s5367 = sld [smem:[#allocation8 + $0x3d]]
    %v5368 = vstv %s5367
    %v5369 = vmul.f32 %v5368, %v5297
    %v5370 = vmul.f32 %v5368, %v5298
    %v5371 = vmul.f32 %v5368, %v5299
    %v5372 = vmul.f32 %v5368, %v5300
    %5377 = vrot.lane.b32.xlu0 %v5369, 127
    %v5378 = vpop.permute.xlu0 %5377
    %5379 = vrot.lane.b32.xlu0 %v5370, 127
    %v5380 = vpop.permute.xlu0 %5379
    %5381 = vrot.lane.b32.xlu0 %v5371, 127
    %v5382 = vpop.permute.xlu0 %5381
    %5383 = vrot.lane.b32.xlu0 %v5372, 127
    %v5384 = vpop.permute.xlu0 %5383
    %v5389 = vadd.f32 %v5317, %v5378
    %v5390 = vadd.f32 %v5318, %v5380
    %v5391 = vadd.f32 %v5319, %v5382
    %v5392 = vadd.f32 %v5320, %v5384
    %s5393 = sld [smem:[#allocation8 + $0x61]]
    %v5394 = vstv %s5393
    %v5395 = vmul.f32 %v5394, %v5297
    %v5396 = vmul.f32 %v5394, %v5298
    %v5397 = vmul.f32 %v5394, %v5299
    %v5398 = vmul.f32 %v5394, %v5300
    %5403 = vrot.lane.b32.xlu0 %v5395, 127
    %v5404 = vpop.permute.xlu0 %5403
    %5405 = vrot.lane.b32.xlu0 %v5396, 127
    %v5406 = vpop.permute.xlu0 %5405
    %5407 = vrot.lane.b32.xlu0 %v5397, 127
    %v5408 = vpop.permute.xlu0 %5407
    %5409 = vrot.lane.b32.xlu0 %v5398, 127
    %v5410 = vpop.permute.xlu0 %5409
    %v5415 = vadd.f32 %v5327, %v5404
    %v5416 = vadd.f32 %v5328, %v5406
    %v5417 = vadd.f32 %v5329, %v5408
    %v5418 = vadd.f32 %v5330, %v5410
    %s5419 = sld [smem:[#allocation8 + $0x85]]
    %v5420 = vstv %s5419
    %v5421 = vmul.f32 %v5420, %v5297
    %v5422 = vmul.f32 %v5420, %v5298
    %v5423 = vmul.f32 %v5420, %v5299
    %v5424 = vmul.f32 %v5420, %v5300
    %5429 = vrot.lane.b32.xlu0 %v5421, 127
    %v5430 = vpop.permute.xlu0 %5429
    %5431 = vrot.lane.b32.xlu0 %v5422, 127
    %v5432 = vpop.permute.xlu0 %5431
    %5433 = vrot.lane.b32.xlu0 %v5423, 127
    %v5434 = vpop.permute.xlu0 %5433
    %5435 = vrot.lane.b32.xlu0 %v5424, 127
    %v5436 = vpop.permute.xlu0 %5435
    %v5441 = vadd.f32 %v5337, %v5430
    %v5442 = vadd.f32 %v5338, %v5432
    %v5443 = vadd.f32 %v5339, %v5434
    %v5444 = vadd.f32 %v5340, %v5436
    %s5445 = sld [smem:[#allocation8 + $0x1a]]
    %v5446 = vstv %s5445
    %v5447 = vmul.f32 %v5446, %v5297
    %v5448 = vmul.f32 %v5446, %v5298
    %v5449 = vmul.f32 %v5446, %v5299
    %v5450 = vmul.f32 %v5446, %v5300
    %5455 = vrot.lane.b32.xlu0 %v5447, 126
    %v5456 = vpop.permute.xlu0 %5455
    %5457 = vrot.lane.b32.xlu0 %v5448, 126
    %v5458 = vpop.permute.xlu0 %5457
    %5459 = vrot.lane.b32.xlu0 %v5449, 126
    %v5460 = vpop.permute.xlu0 %5459
    %5461 = vrot.lane.b32.xlu0 %v5450, 126
    %v5462 = vpop.permute.xlu0 %5461
    %v5467 = vadd.f32 %v5363, %v5456
    %v5468 = vadd.f32 %v5364, %v5458
    %v5469 = vadd.f32 %v5365, %v5460
    %v5470 = vadd.f32 %v5366, %v5462
    %s5471 = sld [smem:[#allocation8 + $0x3e]]
    %v5472 = vstv %s5471
    %v5473 = vmul.f32 %v5472, %v5297
    %v5474 = vmul.f32 %v5472, %v5298
    %v5475 = vmul.f32 %v5472, %v5299
    %v5476 = vmul.f32 %v5472, %v5300
    %5481 = vrot.lane.b32.xlu0 %v5473, 126
    %v5482 = vpop.permute.xlu0 %5481
    %5483 = vrot.lane.b32.xlu0 %v5474, 126
    %v5484 = vpop.permute.xlu0 %5483
    %5485 = vrot.lane.b32.xlu0 %v5475, 126
    %v5486 = vpop.permute.xlu0 %5485
    %5487 = vrot.lane.b32.xlu0 %v5476, 126
    %v5488 = vpop.permute.xlu0 %5487
    %v5493 = vadd.f32 %v5389, %v5482
    %v5494 = vadd.f32 %v5390, %v5484
    %v5495 = vadd.f32 %v5391, %v5486
    %v5496 = vadd.f32 %v5392, %v5488
    %s5497 = sld [smem:[#allocation8 + $0x62]]
    %v5498 = vstv %s5497
    %v5499 = vmul.f32 %v5498, %v5297
    %v5500 = vmul.f32 %v5498, %v5298
    %v5501 = vmul.f32 %v5498, %v5299
    %v5502 = vmul.f32 %v5498, %v5300
    %5507 = vrot.lane.b32.xlu0 %v5499, 126
    %v5508 = vpop.permute.xlu0 %5507
    %5509 = vrot.lane.b32.xlu0 %v5500, 126
    %v5510 = vpop.permute.xlu0 %5509
    %5511 = vrot.lane.b32.xlu0 %v5501, 126
    %v5512 = vpop.permute.xlu0 %5511
    %5513 = vrot.lane.b32.xlu0 %v5502, 126
    %v5514 = vpop.permute.xlu0 %5513
    %v5519 = vadd.f32 %v5415, %v5508
    %v5520 = vadd.f32 %v5416, %v5510
    %v5521 = vadd.f32 %v5417, %v5512
    %v5522 = vadd.f32 %v5418, %v5514
    %s5523 = sld [smem:[#allocation8 + $0x86]]
    %v5524 = vstv %s5523
    %v5525 = vmul.f32 %v5524, %v5297
    %v5526 = vmul.f32 %v5524, %v5298
    %v5527 = vmul.f32 %v5524, %v5299
    %v5528 = vmul.f32 %v5524, %v5300
    %5533 = vrot.lane.b32.xlu0 %v5525, 126
    %v5534 = vpop.permute.xlu0 %5533
    %5535 = vrot.lane.b32.xlu0 %v5526, 126
    %v5536 = vpop.permute.xlu0 %5535
    %5537 = vrot.lane.b32.xlu0 %v5527, 126
    %v5538 = vpop.permute.xlu0 %5537
    %5539 = vrot.lane.b32.xlu0 %v5528, 126
    %v5540 = vpop.permute.xlu0 %5539
    %v5545 = vadd.f32 %v5441, %v5534
    %v5546 = vadd.f32 %v5442, %v5536
    %v5547 = vadd.f32 %v5443, %v5538
    %v5548 = vadd.f32 %v5444, %v5540
    %v5549 = vld [vmem:[%s3268] sm:$0xff]
    %v5550 = vld [vmem:[%s3268 + $0x8] sm:$0xff]
    %v5551 = vld [vmem:[%s3268 + $0x60] sm:$0xff]
    %v5552 = vld [vmem:[%s3268 + $0x68] sm:$0xff]
    %s5553 = sld [smem:[#allocation8 + $0x1b]]
    %v5554 = vstv %s5553
    %v5555 = vmul.f32 %v5554, %v5549
    %v5556 = vmul.f32 %v5554, %v5550
    %v5557 = vmul.f32 %v5554, %v5551
    %v5558 = vmul.f32 %v5554, %v5552
    %v5559 = vadd.f32 %v5467, %v5555
    %v5560 = vadd.f32 %v5468, %v5556
    %v5561 = vadd.f32 %v5469, %v5557
    %v5562 = vadd.f32 %v5470, %v5558
    %s5563 = sld [smem:[#allocation8 + $0x3f]]
    %v5564 = vstv %s5563
    %v5565 = vmul.f32 %v5564, %v5549
    %v5566 = vmul.f32 %v5564, %v5550
    %v5567 = vmul.f32 %v5564, %v5551
    %v5568 = vmul.f32 %v5564, %v5552
    %v5569 = vadd.f32 %v5493, %v5565
    %v5570 = vadd.f32 %v5494, %v5566
    %v5571 = vadd.f32 %v5495, %v5567
    %v5572 = vadd.f32 %v5496, %v5568
    %s5573 = sld [smem:[#allocation8 + $0x63]]
    %v5574 = vstv %s5573
    %v5575 = vmul.f32 %v5574, %v5549
    %v5576 = vmul.f32 %v5574, %v5550
    %v5577 = vmul.f32 %v5574, %v5551
    %v5578 = vmul.f32 %v5574, %v5552
    %v5579 = vadd.f32 %v5519, %v5575
    %v5580 = vadd.f32 %v5520, %v5576
    %v5581 = vadd.f32 %v5521, %v5577
    %v5582 = vadd.f32 %v5522, %v5578
    %s5583 = sld [smem:[#allocation8 + $0x87]]
    %v5584 = vstv %s5583
    %v5585 = vmul.f32 %v5584, %v5549
    %v5586 = vmul.f32 %v5584, %v5550
    %v5587 = vmul.f32 %v5584, %v5551
    %v5588 = vmul.f32 %v5584, %v5552
    %v5589 = vadd.f32 %v5545, %v5585
    %v5590 = vadd.f32 %v5546, %v5586
    %v5591 = vadd.f32 %v5547, %v5587
    %v5592 = vadd.f32 %v5548, %v5588
    %s5593 = sld [smem:[#allocation8 + $0x1c]]
    %v5594 = vstv %s5593
    %v5595 = vmul.f32 %v5594, %v5549
    %v5596 = vmul.f32 %v5594, %v5550
    %v5597 = vmul.f32 %v5594, %v5551
    %v5598 = vmul.f32 %v5594, %v5552
    %5603 = vrot.lane.b32.xlu0 %v5595, 127
    %v5604 = vpop.permute.xlu0 %5603
    %5605 = vrot.lane.b32.xlu0 %v5596, 127
    %v5606 = vpop.permute.xlu0 %5605
    %5607 = vrot.lane.b32.xlu0 %v5597, 127
    %v5608 = vpop.permute.xlu0 %5607
    %5609 = vrot.lane.b32.xlu0 %v5598, 127
    %v5610 = vpop.permute.xlu0 %5609
    %v5615 = vadd.f32 %v5559, %v5604
    %v5616 = vadd.f32 %v5560, %v5606
    %v5617 = vadd.f32 %v5561, %v5608
    %v5618 = vadd.f32 %v5562, %v5610
    %s5619 = sld [smem:[#allocation8 + $0x40]]
    %v5620 = vstv %s5619
    %v5621 = vmul.f32 %v5620, %v5549
    %v5622 = vmul.f32 %v5620, %v5550
    %v5623 = vmul.f32 %v5620, %v5551
    %v5624 = vmul.f32 %v5620, %v5552
    %5629 = vrot.lane.b32.xlu0 %v5621, 127
    %v5630 = vpop.permute.xlu0 %5629
    %5631 = vrot.lane.b32.xlu0 %v5622, 127
    %v5632 = vpop.permute.xlu0 %5631
    %5633 = vrot.lane.b32.xlu0 %v5623, 127
    %v5634 = vpop.permute.xlu0 %5633
    %5635 = vrot.lane.b32.xlu0 %v5624, 127
    %v5636 = vpop.permute.xlu0 %5635
    %v5641 = vadd.f32 %v5569, %v5630
    %v5642 = vadd.f32 %v5570, %v5632
    %v5643 = vadd.f32 %v5571, %v5634
    %v5644 = vadd.f32 %v5572, %v5636
    %s5645 = sld [smem:[#allocation8 + $0x64]]
    %v5646 = vstv %s5645
    %v5647 = vmul.f32 %v5646, %v5549
    %v5648 = vmul.f32 %v5646, %v5550
    %v5649 = vmul.f32 %v5646, %v5551
    %v5650 = vmul.f32 %v5646, %v5552
    %5655 = vrot.lane.b32.xlu0 %v5647, 127
    %v5656 = vpop.permute.xlu0 %5655
    %5657 = vrot.lane.b32.xlu0 %v5648, 127
    %v5658 = vpop.permute.xlu0 %5657
    %5659 = vrot.lane.b32.xlu0 %v5649, 127
    %v5660 = vpop.permute.xlu0 %5659
    %5661 = vrot.lane.b32.xlu0 %v5650, 127
    %v5662 = vpop.permute.xlu0 %5661
    %v5667 = vadd.f32 %v5579, %v5656
    %v5668 = vadd.f32 %v5580, %v5658
    %v5669 = vadd.f32 %v5581, %v5660
    %v5670 = vadd.f32 %v5582, %v5662
    %s5671 = sld [smem:[#allocation8 + $0x88]]
    %v5672 = vstv %s5671
    %v5673 = vmul.f32 %v5672, %v5549
    %v5674 = vmul.f32 %v5672, %v5550
    %v5675 = vmul.f32 %v5672, %v5551
    %v5676 = vmul.f32 %v5672, %v5552
    %5681 = vrot.lane.b32.xlu0 %v5673, 127
    %v5682 = vpop.permute.xlu0 %5681
    %5683 = vrot.lane.b32.xlu0 %v5674, 127
    %v5684 = vpop.permute.xlu0 %5683
    %5685 = vrot.lane.b32.xlu0 %v5675, 127
    %v5686 = vpop.permute.xlu0 %5685
    %5687 = vrot.lane.b32.xlu0 %v5676, 127
    %v5688 = vpop.permute.xlu0 %5687
    %v5693 = vadd.f32 %v5589, %v5682
    %v5694 = vadd.f32 %v5590, %v5684
    %v5695 = vadd.f32 %v5591, %v5686
    %v5696 = vadd.f32 %v5592, %v5688
    %s5697 = sld [smem:[#allocation8 + $0x1d]]
    %v5698 = vstv %s5697
    %v5699 = vmul.f32 %v5698, %v5549
    %v5700 = vmul.f32 %v5698, %v5550
    %v5701 = vmul.f32 %v5698, %v5551
    %v5702 = vmul.f32 %v5698, %v5552
    %5707 = vrot.lane.b32.xlu0 %v5699, 126
    %v5708 = vpop.permute.xlu0 %5707
    %5709 = vrot.lane.b32.xlu0 %v5700, 126
    %v5710 = vpop.permute.xlu0 %5709
    %5711 = vrot.lane.b32.xlu0 %v5701, 126
    %v5712 = vpop.permute.xlu0 %5711
    %5713 = vrot.lane.b32.xlu0 %v5702, 126
    %v5714 = vpop.permute.xlu0 %5713
    %v5719 = vadd.f32 %v5615, %v5708
    %v5720 = vadd.f32 %v5616, %v5710
    %v5721 = vadd.f32 %v5617, %v5712
    %v5722 = vadd.f32 %v5618, %v5714
    %s5723 = sld [smem:[#allocation8 + $0x41]]
    %v5724 = vstv %s5723
    %v5725 = vmul.f32 %v5724, %v5549
    %v5726 = vmul.f32 %v5724, %v5550
    %v5727 = vmul.f32 %v5724, %v5551
    %v5728 = vmul.f32 %v5724, %v5552
    %5733 = vrot.lane.b32.xlu0 %v5725, 126
    %v5734 = vpop.permute.xlu0 %5733
    %5735 = vrot.lane.b32.xlu0 %v5726, 126
    %v5736 = vpop.permute.xlu0 %5735
    %5737 = vrot.lane.b32.xlu0 %v5727, 126
    %v5738 = vpop.permute.xlu0 %5737
    %5739 = vrot.lane.b32.xlu0 %v5728, 126
    %v5740 = vpop.permute.xlu0 %5739
    %v5745 = vadd.f32 %v5641, %v5734
    %v5746 = vadd.f32 %v5642, %v5736
    %v5747 = vadd.f32 %v5643, %v5738
    %v5748 = vadd.f32 %v5644, %v5740
    %s5749 = sld [smem:[#allocation8 + $0x65]]
    %v5750 = vstv %s5749
    %v5751 = vmul.f32 %v5750, %v5549
    %v5752 = vmul.f32 %v5750, %v5550
    %v5753 = vmul.f32 %v5750, %v5551
    %v5754 = vmul.f32 %v5750, %v5552
    %5759 = vrot.lane.b32.xlu0 %v5751, 126
    %v5760 = vpop.permute.xlu0 %5759
    %5761 = vrot.lane.b32.xlu0 %v5752, 126
    %v5762 = vpop.permute.xlu0 %5761
    %5763 = vrot.lane.b32.xlu0 %v5753, 126
    %v5764 = vpop.permute.xlu0 %5763
    %5765 = vrot.lane.b32.xlu0 %v5754, 126
    %v5766 = vpop.permute.xlu0 %5765
    %v5771 = vadd.f32 %v5667, %v5760
    %v5772 = vadd.f32 %v5668, %v5762
    %v5773 = vadd.f32 %v5669, %v5764
    %v5774 = vadd.f32 %v5670, %v5766
    %s5775 = sld [smem:[#allocation8 + $0x89]]
    %v5776 = vstv %s5775
    %v5777 = vmul.f32 %v5776, %v5549
    %v5778 = vmul.f32 %v5776, %v5550
    %v5779 = vmul.f32 %v5776, %v5551
    %v5780 = vmul.f32 %v5776, %v5552
    %5785 = vrot.lane.b32.xlu0 %v5777, 126
    %v5786 = vpop.permute.xlu0 %5785
    %5787 = vrot.lane.b32.xlu0 %v5778, 126
    %v5788 = vpop.permute.xlu0 %5787
    %5789 = vrot.lane.b32.xlu0 %v5779, 126
    %v5790 = vpop.permute.xlu0 %5789
    %5791 = vrot.lane.b32.xlu0 %v5780, 126
    %v5792 = vpop.permute.xlu0 %5791
    %v5797 = vadd.f32 %v5693, %v5786
    %v5798 = vadd.f32 %v5694, %v5788
    %v5799 = vadd.f32 %v5695, %v5790
    %v5800 = vadd.f32 %v5696, %v5792
    %v5801 = vld [vmem:[%s3268 + $0x1] sm:$0xff]
    %v5802 = vld [vmem:[%s3268 + $0x9] sm:$0xff]
    %v5803 = vld [vmem:[%s3268 + $0x61] sm:$0xff]
    %v5804 = vld [vmem:[%s3268 + $0x69] sm:$0xff]
    %s5805 = sld [smem:[#allocation8 + $0x1e]]
    %v5806 = vstv %s5805
    %v5807 = vmul.f32 %v5806, %v5801
    %v5808 = vmul.f32 %v5806, %v5802
    %v5809 = vmul.f32 %v5806, %v5803
    %v5810 = vmul.f32 %v5806, %v5804
    %v5811 = vadd.f32 %v5719, %v5807
    %v5812 = vadd.f32 %v5720, %v5808
    %v5813 = vadd.f32 %v5721, %v5809
    %v5814 = vadd.f32 %v5722, %v5810
    %s5815 = sld [smem:[#allocation8 + $0x42]]
    %v5816 = vstv %s5815
    %v5817 = vmul.f32 %v5816, %v5801
    %v5818 = vmul.f32 %v5816, %v5802
    %v5819 = vmul.f32 %v5816, %v5803
    %v5820 = vmul.f32 %v5816, %v5804
    %v5821 = vadd.f32 %v5745, %v5817
    %v5822 = vadd.f32 %v5746, %v5818
    %v5823 = vadd.f32 %v5747, %v5819
    %v5824 = vadd.f32 %v5748, %v5820
    %s5825 = sld [smem:[#allocation8 + $0x66]]
    %v5826 = vstv %s5825
    %v5827 = vmul.f32 %v5826, %v5801
    %v5828 = vmul.f32 %v5826, %v5802
    %v5829 = vmul.f32 %v5826, %v5803
    %v5830 = vmul.f32 %v5826, %v5804
    %v5831 = vadd.f32 %v5771, %v5827
    %v5832 = vadd.f32 %v5772, %v5828
    %v5833 = vadd.f32 %v5773, %v5829
    %v5834 = vadd.f32 %v5774, %v5830
    %s5835 = sld [smem:[#allocation8 + $0x8a]]
    %v5836 = vstv %s5835
    %v5837 = vmul.f32 %v5836, %v5801
    %v5838 = vmul.f32 %v5836, %v5802
    %v5839 = vmul.f32 %v5836, %v5803
    %v5840 = vmul.f32 %v5836, %v5804
    %v5841 = vadd.f32 %v5797, %v5837
    %v5842 = vadd.f32 %v5798, %v5838
    %v5843 = vadd.f32 %v5799, %v5839
    %v5844 = vadd.f32 %v5800, %v5840
    %s5845 = sld [smem:[#allocation8 + $0x1f]]
    %v5846 = vstv %s5845
    %v5847 = vmul.f32 %v5846, %v5801
    %v5848 = vmul.f32 %v5846, %v5802
    %v5849 = vmul.f32 %v5846, %v5803
    %v5850 = vmul.f32 %v5846, %v5804
    %5855 = vrot.lane.b32.xlu0 %v5847, 127
    %v5856 = vpop.permute.xlu0 %5855
    %5857 = vrot.lane.b32.xlu0 %v5848, 127
    %v5858 = vpop.permute.xlu0 %5857
    %5859 = vrot.lane.b32.xlu0 %v5849, 127
    %v5860 = vpop.permute.xlu0 %5859
    %5861 = vrot.lane.b32.xlu0 %v5850, 127
    %v5862 = vpop.permute.xlu0 %5861
    %v5867 = vadd.f32 %v5811, %v5856
    %v5868 = vadd.f32 %v5812, %v5858
    %v5869 = vadd.f32 %v5813, %v5860
    %v5870 = vadd.f32 %v5814, %v5862
    %s5871 = sld [smem:[#allocation8 + $0x43]]
    %v5872 = vstv %s5871
    %v5873 = vmul.f32 %v5872, %v5801
    %v5874 = vmul.f32 %v5872, %v5802
    %v5875 = vmul.f32 %v5872, %v5803
    %v5876 = vmul.f32 %v5872, %v5804
    %5881 = vrot.lane.b32.xlu0 %v5873, 127
    %v5882 = vpop.permute.xlu0 %5881
    %5883 = vrot.lane.b32.xlu0 %v5874, 127
    %v5884 = vpop.permute.xlu0 %5883
    %5885 = vrot.lane.b32.xlu0 %v5875, 127
    %v5886 = vpop.permute.xlu0 %5885
    %5887 = vrot.lane.b32.xlu0 %v5876, 127
    %v5888 = vpop.permute.xlu0 %5887
    %v5893 = vadd.f32 %v5821, %v5882
    %v5894 = vadd.f32 %v5822, %v5884
    %v5895 = vadd.f32 %v5823, %v5886
    %v5896 = vadd.f32 %v5824, %v5888
    %s5897 = sld [smem:[#allocation8 + $0x67]]
    %v5898 = vstv %s5897
    %v5899 = vmul.f32 %v5898, %v5801
    %v5900 = vmul.f32 %v5898, %v5802
    %v5901 = vmul.f32 %v5898, %v5803
    %v5902 = vmul.f32 %v5898, %v5804
    %5907 = vrot.lane.b32.xlu0 %v5899, 127
    %v5908 = vpop.permute.xlu0 %5907
    %5909 = vrot.lane.b32.xlu0 %v5900, 127
    %v5910 = vpop.permute.xlu0 %5909
    %5911 = vrot.lane.b32.xlu0 %v5901, 127
    %v5912 = vpop.permute.xlu0 %5911
    %5913 = vrot.lane.b32.xlu0 %v5902, 127
    %v5914 = vpop.permute.xlu0 %5913
    %v5919 = vadd.f32 %v5831, %v5908
    %v5920 = vadd.f32 %v5832, %v5910
    %v5921 = vadd.f32 %v5833, %v5912
    %v5922 = vadd.f32 %v5834, %v5914
    %s5923 = sld [smem:[#allocation8 + $0x8b]]
    %v5924 = vstv %s5923
    %v5925 = vmul.f32 %v5924, %v5801
    %v5926 = vmul.f32 %v5924, %v5802
    %v5927 = vmul.f32 %v5924, %v5803
    %v5928 = vmul.f32 %v5924, %v5804
    %5933 = vrot.lane.b32.xlu0 %v5925, 127
    %v5934 = vpop.permute.xlu0 %5933
    %5935 = vrot.lane.b32.xlu0 %v5926, 127
    %v5936 = vpop.permute.xlu0 %5935
    %5937 = vrot.lane.b32.xlu0 %v5927, 127
    %v5938 = vpop.permute.xlu0 %5937
    %5939 = vrot.lane.b32.xlu0 %v5928, 127
    %v5940 = vpop.permute.xlu0 %5939
    %v5945 = vadd.f32 %v5841, %v5934
    %v5946 = vadd.f32 %v5842, %v5936
    %v5947 = vadd.f32 %v5843, %v5938
    %v5948 = vadd.f32 %v5844, %v5940
    %s5949 = sld [smem:[#allocation8 + $0x20]]
    %v5950 = vstv %s5949
    %v5951 = vmul.f32 %v5950, %v5801
    %v5952 = vmul.f32 %v5950, %v5802
    %v5953 = vmul.f32 %v5950, %v5803
    %v5954 = vmul.f32 %v5950, %v5804
    %5959 = vrot.lane.b32.xlu0 %v5951, 126
    %v5960 = vpop.permute.xlu0 %5959
    %5961 = vrot.lane.b32.xlu0 %v5952, 126
    %v5962 = vpop.permute.xlu0 %5961
    %5963 = vrot.lane.b32.xlu0 %v5953, 126
    %v5964 = vpop.permute.xlu0 %5963
    %5965 = vrot.lane.b32.xlu0 %v5954, 126
    %v5966 = vpop.permute.xlu0 %5965
    %v5971 = vadd.f32 %v5867, %v5960
    %v5972 = vadd.f32 %v5868, %v5962
    %v5973 = vadd.f32 %v5869, %v5964
    %v5974 = vadd.f32 %v5870, %v5966
    %s5975 = sld [smem:[#allocation8 + $0x44]]
    %v5976 = vstv %s5975
    %v5977 = vmul.f32 %v5976, %v5801
    %v5978 = vmul.f32 %v5976, %v5802
    %v5979 = vmul.f32 %v5976, %v5803
    %v5980 = vmul.f32 %v5976, %v5804
    %5985 = vrot.lane.b32.xlu0 %v5977, 126
    %v5986 = vpop.permute.xlu0 %5985
    %5987 = vrot.lane.b32.xlu0 %v5978, 126
    %v5988 = vpop.permute.xlu0 %5987
    %5989 = vrot.lane.b32.xlu0 %v5979, 126
    %v5990 = vpop.permute.xlu0 %5989
    %5991 = vrot.lane.b32.xlu0 %v5980, 126
    %v5992 = vpop.permute.xlu0 %5991
    %v5997 = vadd.f32 %v5893, %v5986
    %v5998 = vadd.f32 %v5894, %v5988
    %v5999 = vadd.f32 %v5895, %v5990
    %v6000 = vadd.f32 %v5896, %v5992
    %s6001 = sld [smem:[#allocation8 + $0x68]]
    %v6002 = vstv %s6001
    %v6003 = vmul.f32 %v6002, %v5801
    %v6004 = vmul.f32 %v6002, %v5802
    %v6005 = vmul.f32 %v6002, %v5803
    %v6006 = vmul.f32 %v6002, %v5804
    %6011 = vrot.lane.b32.xlu0 %v6003, 126
    %v6012 = vpop.permute.xlu0 %6011
    %6013 = vrot.lane.b32.xlu0 %v6004, 126
    %v6014 = vpop.permute.xlu0 %6013
    %6015 = vrot.lane.b32.xlu0 %v6005, 126
    %v6016 = vpop.permute.xlu0 %6015
    %6017 = vrot.lane.b32.xlu0 %v6006, 126
    %v6018 = vpop.permute.xlu0 %6017
    %v6023 = vadd.f32 %v5919, %v6012
    %v6024 = vadd.f32 %v5920, %v6014
    %v6025 = vadd.f32 %v5921, %v6016
    %v6026 = vadd.f32 %v5922, %v6018
    %s6027 = sld [smem:[#allocation8 + $0x8c]]
    %v6028 = vstv %s6027
    %v6029 = vmul.f32 %v6028, %v5801
    %v6030 = vmul.f32 %v6028, %v5802
    %v6031 = vmul.f32 %v6028, %v5803
    %v6032 = vmul.f32 %v6028, %v5804
    %6037 = vrot.lane.b32.xlu0 %v6029, 126
    %v6038 = vpop.permute.xlu0 %6037
    %6039 = vrot.lane.b32.xlu0 %v6030, 126
    %v6040 = vpop.permute.xlu0 %6039
    %6041 = vrot.lane.b32.xlu0 %v6031, 126
    %v6042 = vpop.permute.xlu0 %6041
    %6043 = vrot.lane.b32.xlu0 %v6032, 126
    %v6044 = vpop.permute.xlu0 %6043
    %v6049 = vadd.f32 %v5945, %v6038
    %v6050 = vadd.f32 %v5946, %v6040
    %v6051 = vadd.f32 %v5947, %v6042
    %v6052 = vadd.f32 %v5948, %v6044
    %v6053 = vld [vmem:[%s3268 + $0x2] sm:$0xff]
    %v6054 = vld [vmem:[%s3268 + $0xa] sm:$0xff]
    %v6055 = vld [vmem:[%s3268 + $0x62] sm:$0xff]
    %v6056 = vld [vmem:[%s3268 + $0x6a] sm:$0xff]
    %s6057 = sld [smem:[#allocation8 + $0x21]]
    %v6058 = vstv %s6057
    %v6059 = vmul.f32 %v6058, %v6053
    %v6060 = vmul.f32 %v6058, %v6054
    %v6061 = vmul.f32 %v6058, %v6055
    %v6062 = vmul.f32 %v6058, %v6056
    %v6063 = vadd.f32 %v5971, %v6059
    %v6064 = vadd.f32 %v5972, %v6060
    %v6065 = vadd.f32 %v5973, %v6061
    %v6066 = vadd.f32 %v5974, %v6062
    %s6067 = sld [smem:[#allocation8 + $0x45]]
    %v6068 = vstv %s6067
    %v6069 = vmul.f32 %v6068, %v6053
    %v6070 = vmul.f32 %v6068, %v6054
    %v6071 = vmul.f32 %v6068, %v6055
    %v6072 = vmul.f32 %v6068, %v6056
    %v6073 = vadd.f32 %v5997, %v6069
    %v6074 = vadd.f32 %v5998, %v6070
    %v6075 = vadd.f32 %v5999, %v6071
    %v6076 = vadd.f32 %v6000, %v6072
    %s6077 = sld [smem:[#allocation8 + $0x69]]
    %v6078 = vstv %s6077
    %v6079 = vmul.f32 %v6078, %v6053
    %v6080 = vmul.f32 %v6078, %v6054
    %v6081 = vmul.f32 %v6078, %v6055
    %v6082 = vmul.f32 %v6078, %v6056
    %v6083 = vadd.f32 %v6023, %v6079
    %v6084 = vadd.f32 %v6024, %v6080
    %v6085 = vadd.f32 %v6025, %v6081
    %v6086 = vadd.f32 %v6026, %v6082
    %s6087 = sld [smem:[#allocation8 + $0x8d]]
    %v6088 = vstv %s6087
    %v6089 = vmul.f32 %v6088, %v6053
    %v6090 = vmul.f32 %v6088, %v6054
    %v6091 = vmul.f32 %v6088, %v6055
    %v6092 = vmul.f32 %v6088, %v6056
    %v6093 = vadd.f32 %v6049, %v6089
    %v6094 = vadd.f32 %v6050, %v6090
    %v6095 = vadd.f32 %v6051, %v6091
    %v6096 = vadd.f32 %v6052, %v6092
    %s6097 = sld [smem:[#allocation8 + $0x22]]
    %v6098 = vstv %s6097
    %v6099 = vmul.f32 %v6098, %v6053
    %v6100 = vmul.f32 %v6098, %v6054
    %v6101 = vmul.f32 %v6098, %v6055
    %v6102 = vmul.f32 %v6098, %v6056
    %6107 = vrot.lane.b32.xlu0 %v6099, 127
    %v6108 = vpop.permute.xlu0 %6107
    %6109 = vrot.lane.b32.xlu0 %v6100, 127
    %v6110 = vpop.permute.xlu0 %6109
    %6111 = vrot.lane.b32.xlu0 %v6101, 127
    %v6112 = vpop.permute.xlu0 %6111
    %6113 = vrot.lane.b32.xlu0 %v6102, 127
    %v6114 = vpop.permute.xlu0 %6113
    %v6119 = vadd.f32 %v6063, %v6108
    %v6120 = vadd.f32 %v6064, %v6110
    %v6121 = vadd.f32 %v6065, %v6112
    %v6122 = vadd.f32 %v6066, %v6114
    %s6123 = sld [smem:[#allocation8 + $0x46]]
    %v6124 = vstv %s6123
    %v6125 = vmul.f32 %v6124, %v6053
    %v6126 = vmul.f32 %v6124, %v6054
    %v6127 = vmul.f32 %v6124, %v6055
    %v6128 = vmul.f32 %v6124, %v6056
    %6133 = vrot.lane.b32.xlu0 %v6125, 127
    %v6134 = vpop.permute.xlu0 %6133
    %6135 = vrot.lane.b32.xlu0 %v6126, 127
    %v6136 = vpop.permute.xlu0 %6135
    %6137 = vrot.lane.b32.xlu0 %v6127, 127
    %v6138 = vpop.permute.xlu0 %6137
    %6139 = vrot.lane.b32.xlu0 %v6128, 127
    %v6140 = vpop.permute.xlu0 %6139
    %v6145 = vadd.f32 %v6073, %v6134
    %v6146 = vadd.f32 %v6074, %v6136
    %v6147 = vadd.f32 %v6075, %v6138
    %v6148 = vadd.f32 %v6076, %v6140
    %s6149 = sld [smem:[#allocation8 + $0x6a]]
    %v6150 = vstv %s6149
    %v6151 = vmul.f32 %v6150, %v6053
    %v6152 = vmul.f32 %v6150, %v6054
    %v6153 = vmul.f32 %v6150, %v6055
    %v6154 = vmul.f32 %v6150, %v6056
    %6159 = vrot.lane.b32.xlu0 %v6151, 127
    %v6160 = vpop.permute.xlu0 %6159
    %6161 = vrot.lane.b32.xlu0 %v6152, 127
    %v6162 = vpop.permute.xlu0 %6161
    %6163 = vrot.lane.b32.xlu0 %v6153, 127
    %v6164 = vpop.permute.xlu0 %6163
    %6165 = vrot.lane.b32.xlu0 %v6154, 127
    %v6166 = vpop.permute.xlu0 %6165
    %v6171 = vadd.f32 %v6083, %v6160
    %v6172 = vadd.f32 %v6084, %v6162
    %v6173 = vadd.f32 %v6085, %v6164
    %v6174 = vadd.f32 %v6086, %v6166
    %s6175 = sld [smem:[#allocation8 + $0x8e]]
    %v6176 = vstv %s6175
    %v6177 = vmul.f32 %v6176, %v6053
    %v6178 = vmul.f32 %v6176, %v6054
    %v6179 = vmul.f32 %v6176, %v6055
    %v6180 = vmul.f32 %v6176, %v6056
    %6185 = vrot.lane.b32.xlu0 %v6177, 127
    %v6186 = vpop.permute.xlu0 %6185
    %6187 = vrot.lane.b32.xlu0 %v6178, 127
    %v6188 = vpop.permute.xlu0 %6187
    %6189 = vrot.lane.b32.xlu0 %v6179, 127
    %v6190 = vpop.permute.xlu0 %6189
    %6191 = vrot.lane.b32.xlu0 %v6180, 127
    %v6192 = vpop.permute.xlu0 %6191
    %v6197 = vadd.f32 %v6093, %v6186
    %v6198 = vadd.f32 %v6094, %v6188
    %v6199 = vadd.f32 %v6095, %v6190
    %v6200 = vadd.f32 %v6096, %v6192
    %s6201 = sld [smem:[#allocation8 + $0x23]]
    %v6202 = vstv %s6201
    %v6203 = vmul.f32 %v6202, %v6053
    %v6204 = vmul.f32 %v6202, %v6054
    %v6205 = vmul.f32 %v6202, %v6055
    %v6206 = vmul.f32 %v6202, %v6056
    %6211 = vrot.lane.b32.xlu0 %v6203, 126
    %v6212 = vpop.permute.xlu0 %6211
    %6213 = vrot.lane.b32.xlu0 %v6204, 126
    %v6214 = vpop.permute.xlu0 %6213
    %6215 = vrot.lane.b32.xlu0 %v6205, 126
    %v6216 = vpop.permute.xlu0 %6215
    %6217 = vrot.lane.b32.xlu0 %v6206, 126
    %v6218 = vpop.permute.xlu0 %6217
    %v6223 = vadd.f32 %v6119, %v6212
    %v6224 = vadd.f32 %v6120, %v6214
    %v6225 = vadd.f32 %v6121, %v6216
    %v6226 = vadd.f32 %v6122, %v6218
    %s6227 = sld [smem:[#allocation8 + $0x47]]
    %v6228 = vstv %s6227
    %v6229 = vmul.f32 %v6228, %v6053
    %v6230 = vmul.f32 %v6228, %v6054
    %v6231 = vmul.f32 %v6228, %v6055
    %v6232 = vmul.f32 %v6228, %v6056
    %6237 = vrot.lane.b32.xlu0 %v6229, 126
    %v6238 = vpop.permute.xlu0 %6237
    %6239 = vrot.lane.b32.xlu0 %v6230, 126
    %v6240 = vpop.permute.xlu0 %6239
    %6241 = vrot.lane.b32.xlu0 %v6231, 126
    %v6242 = vpop.permute.xlu0 %6241
    %6243 = vrot.lane.b32.xlu0 %v6232, 126
    %v6244 = vpop.permute.xlu0 %6243
    %v6249 = vadd.f32 %v6145, %v6238
    %v6250 = vadd.f32 %v6146, %v6240
    %v6251 = vadd.f32 %v6147, %v6242
    %v6252 = vadd.f32 %v6148, %v6244
    %s6253 = sld [smem:[#allocation8 + $0x6b]]
    %v6254 = vstv %s6253
    %v6255 = vmul.f32 %v6254, %v6053
    %v6256 = vmul.f32 %v6254, %v6054
    %v6257 = vmul.f32 %v6254, %v6055
    %v6258 = vmul.f32 %v6254, %v6056
    %6263 = vrot.lane.b32.xlu0 %v6255, 126
    %v6264 = vpop.permute.xlu0 %6263
    %6265 = vrot.lane.b32.xlu0 %v6256, 126
    %v6266 = vpop.permute.xlu0 %6265
    %6267 = vrot.lane.b32.xlu0 %v6257, 126
    %v6268 = vpop.permute.xlu0 %6267
    %6269 = vrot.lane.b32.xlu0 %v6258, 126
    %v6270 = vpop.permute.xlu0 %6269
    %v6275 = vadd.f32 %v6171, %v6264
    %v6276 = vadd.f32 %v6172, %v6266
    %v6277 = vadd.f32 %v6173, %v6268
    %v6278 = vadd.f32 %v6174, %v6270
    %s6279 = sld [smem:[#allocation8 + $0x8f]]
    %v6280 = vstv %s6279
    %v6281 = vmul.f32 %v6280, %v6053
    %v6282 = vmul.f32 %v6280, %v6054
    %v6283 = vmul.f32 %v6280, %v6055
    %v6284 = vmul.f32 %v6280, %v6056
    %6289 = vrot.lane.b32.xlu0 %v6281, 126
    %v6290 = vpop.permute.xlu0 %6289
    %6291 = vrot.lane.b32.xlu0 %v6282, 126
    %v6292 = vpop.permute.xlu0 %6291
    %6293 = vrot.lane.b32.xlu0 %v6283, 126
    %v6294 = vpop.permute.xlu0 %6293
    %6295 = vrot.lane.b32.xlu0 %v6284, 126
    %v6296 = vpop.permute.xlu0 %6295
    %v6301 = vadd.f32 %v6197, %v6290
    %v6302 = vadd.f32 %v6198, %v6292
    %v6303 = vadd.f32 %v6199, %v6294
    %v6304 = vadd.f32 %v6200, %v6296
    %v6305 = vld [vmem:[%s0 + $0x1] sm:$0xff]
    %v6306 = vld [vmem:[%s0 + $0x9] sm:$0xff]
    %v6307 = vld [vmem:[%s0 + $0x61] sm:$0xff]
    %v6308 = vld [vmem:[%s0 + $0x69] sm:$0xff]
    %6313 = vrot.lane.b32.xlu0 %v6305, 127
    %v6314 = vpop.permute.xlu0 %6313
    %6315 = vrot.lane.b32.xlu0 %v6306, 127
    %v6316 = vpop.permute.xlu0 %6315
    %6317 = vrot.lane.b32.xlu0 %v6307, 127
    %v6318 = vpop.permute.xlu0 %6317
    %6319 = vrot.lane.b32.xlu0 %v6308, 127
    %v6320 = vpop.permute.xlu0 %6319
    %v6325 = vadd.f32 %v6223, %v6314
    %v6326 = vadd.f32 %v6224, %v6316
    %v6327 = vadd.f32 %v6225, %v6318
    %v6328 = vadd.f32 %v6226, %v6320
    %vm6329 = vcmask 130048
    %6330 = vst.msk [vmem:[#allocation11] sm:$0xff] %vm6329, %v6325
    %6331 = vst.msk [vmem:[#allocation11 + $0x8] sm:$0xff] %vm6329, %v6326
    %6332 = vst.msk [vmem:[#allocation11 + $0x40] sm:$0xff] %vm6329, %v6327
    %6333 = vst.msk [vmem:[#allocation11 + $0x48] sm:$0xff] %vm6329, %v6328
    %v6334 = vld [vmem:[%s902 + $0x1] sm:$0xff]
    %v6335 = vld [vmem:[%s902 + $0x9] sm:$0xff]
    %v6336 = vld [vmem:[%s902 + $0x61] sm:$0xff]
    %v6337 = vld [vmem:[%s902 + $0x69] sm:$0xff]
    %6342 = vrot.lane.b32.xlu0 %v6334, 127
    %v6343 = vpop.permute.xlu0 %6342
    %6344 = vrot.lane.b32.xlu0 %v6335, 127
    %v6345 = vpop.permute.xlu0 %6344
    %6346 = vrot.lane.b32.xlu0 %v6336, 127
    %v6347 = vpop.permute.xlu0 %6346
    %6348 = vrot.lane.b32.xlu0 %v6337, 127
    %v6349 = vpop.permute.xlu0 %6348
    %v6354 = vadd.f32 %v6249, %v6343
    %v6355 = vadd.f32 %v6250, %v6345
    %v6356 = vadd.f32 %v6251, %v6347
    %v6357 = vadd.f32 %v6252, %v6349
    %s6358 = scalar_lea.vmem [#allocation11], 16
    %6359 = vst.msk [vmem:[%s6358] sm:$0xff] %vm6329, %v6354
    %6360 = vst.msk [vmem:[%s6358 + $0x8] sm:$0xff] %vm6329, %v6355
    %6361 = vst.msk [vmem:[%s6358 + $0x40] sm:$0xff] %vm6329, %v6356
    %6362 = vst.msk [vmem:[%s6358 + $0x48] sm:$0xff] %vm6329, %v6357
    %v6363 = vld [vmem:[%s1659 + $0x1] sm:$0xff]
    %v6364 = vld [vmem:[%s1659 + $0x9] sm:$0xff]
    %v6365 = vld [vmem:[%s1659 + $0x61] sm:$0xff]
    %v6366 = vld [vmem:[%s1659 + $0x69] sm:$0xff]
    %6371 = vrot.lane.b32.xlu0 %v6363, 127
    %v6372 = vpop.permute.xlu0 %6371
    %6373 = vrot.lane.b32.xlu0 %v6364, 127
    %v6374 = vpop.permute.xlu0 %6373
    %6375 = vrot.lane.b32.xlu0 %v6365, 127
    %v6376 = vpop.permute.xlu0 %6375
    %6377 = vrot.lane.b32.xlu0 %v6366, 127
    %v6378 = vpop.permute.xlu0 %6377
    %v6383 = vadd.f32 %v6275, %v6372
    %v6384 = vadd.f32 %v6276, %v6374
    %v6385 = vadd.f32 %v6277, %v6376
    %v6386 = vadd.f32 %v6278, %v6378
    %s6387 = scalar_lea.vmem [#allocation11], 32
    %6388 = vst.msk [vmem:[%s6387] sm:$0xff] %vm6329, %v6383
    %6389 = vst.msk [vmem:[%s6387 + $0x8] sm:$0xff] %vm6329, %v6384
    %6390 = vst.msk [vmem:[%s6387 + $0x40] sm:$0xff] %vm6329, %v6385
    %6391 = vst.msk [vmem:[%s6387 + $0x48] sm:$0xff] %vm6329, %v6386
    %v6392 = vld [vmem:[%s2416 + $0x1] sm:$0xff]
    %v6393 = vld [vmem:[%s2416 + $0x9] sm:$0xff]
    %v6394 = vld [vmem:[%s2416 + $0x61] sm:$0xff]
    %v6395 = vld [vmem:[%s2416 + $0x69] sm:$0xff]
    %6400 = vrot.lane.b32.xlu0 %v6392, 127
    %v6401 = vpop.permute.xlu0 %6400
    %6402 = vrot.lane.b32.xlu0 %v6393, 127
    %v6403 = vpop.permute.xlu0 %6402
    %6404 = vrot.lane.b32.xlu0 %v6394, 127
    %v6405 = vpop.permute.xlu0 %6404
    %6406 = vrot.lane.b32.xlu0 %v6395, 127
    %v6407 = vpop.permute.xlu0 %6406
    %v6412 = vadd.f32 %v6301, %v6401
    %v6413 = vadd.f32 %v6302, %v6403
    %v6414 = vadd.f32 %v6303, %v6405
    %v6415 = vadd.f32 %v6304, %v6407
    %s6416 = scalar_lea.vmem [#allocation11], 48
    %6417 = vst.msk [vmem:[%s6416] sm:$0xff] %vm6329, %v6412
    %6418 = vst.msk [vmem:[%s6416 + $0x8] sm:$0xff] %vm6329, %v6413
    %6419 = vst.msk [vmem:[%s6416 + $0x40] sm:$0xff] %vm6329, %v6414
    %6420 = vst.msk [vmem:[%s6416 + $0x48] sm:$0xff] %vm6329, %v6415
    // Predicated region
    $region38: #{tpu_custom_call.1} parent=1 // pred_check
      _
    $region39: #{tpu_custom_call.1} parent=1 // pred_check_branch
      %6422 = sbr.rel (0) target = $region41
    $region40: #{tpu_custom_call.1} parent=1 // pred_region
      %s6424 = ssub.s32 2048, 2048
      %6425 = vsyncadd [#allocation4], %s6424
      %s6426 = sshll.u32 [#allocation11], 4
      %s6427 = int_to_ptr.vmem [resolvable:$true] %s6426
      %6432 = dma.vmem_to_hbm [thread:$0]  %s6427, 2048, %s5, [#allocation4], 128, 128, 8
    $region41: #{tpu_custom_call.1} parent=1 // pred_fallthru
      _
    // Predicated region
    $region42: #{tpu_custom_call.1} parent=1 // pred_check
      _
    $region43: #{tpu_custom_call.1} parent=1 // pred_check_branch
      %6434 = sbr.rel (0) target = $region45
    $region44: #{tpu_custom_call.1} parent=1 // pred_region
      %6435 = dma.done [#allocation4], 2048
    $region45: #{tpu_custom_call.1} parent=1 // pred_fallthru
      _
    %6436 = vsyncpa [#allocation4], 1
    %6437 = vsyncpa [#allocation5], 1
    %6438 = vsyncpa [#allocation7], 1
    %6439 = vsyncpa [#allocation10], 1

</llo_original>
